<compile_context>
chip_gen: v7x
topology: tpu7x:2x2x1
jax: 0.10.0
libtpu: 0.0.40
codegen_flags: <defaults>
</compile_context>

<pallas_src>
import math
import functools

import jax
import jax.numpy as jnp
from jax.experimental import pallas as pl
from jax.experimental.pallas import tpu as pltpu


# -----------------------------------------------------------------------------
# Kernel: one block of TN patch positions, M = TN * B fused patch-major rows.
#   emb  = x @ We + be                        (M, E)
#   qkv  = emb @ Wqkv + bqkv                  (M, 3E)   (Q columns pre-scaled)
#   per (patch, head) group: softmax(q k^T) v over the image-batch axis (B keys)
#   out  = concat_heads @ Wo + bo             (M, E)
#   res  = out @ Wr + br                      (M, D)
# -----------------------------------------------------------------------------
def _pbmsa_kernel(p_ref, we_ref, be_ref, wqkv_ref, bqkv_ref,
                  wo_ref, bo_ref, wr_ref, br_ref, o_ref, *scratch,
                  num_heads, batch):
    cdt = we_ref.dtype                       # MXU operand dtype (f32 or bf16)
    f32 = jnp.float32
    x = p_ref[...]                           # (M, D), rows ordered (patch, image)
    m = x.shape[0]
    tn = m // batch                          # patches in this block
    e = we_ref.shape[1]
    dh = e // num_heads
    aligned = (batch % 8 == 0)               # sublane-aligned attention groups

    # ---- patch embedding + fused QKV: two lane-dense 2-D matmuls (f32 acc) ----
    emb = jnp.dot(x, we_ref[...], preferred_element_type=f32) + be_ref[...]
    qkv = jnp.dot(emb.astype(cdt), wqkv_ref[...],
                  preferred_element_type=f32) + bqkv_ref[...]          # (M, 3E)

    # ---- regroup rows into per-patch attention groups: (M, 3E) -> (TN, B, 3E) --
    if aligned:
        qkv_g = qkv.reshape(tn, batch, 3 * e)          # free tile regrouping
    else:
        qkv_s = scratch[0]                             # (TN, B, 3E) f32 VMEM
        for n in range(tn):                            # TN small unrolled copies
            qkv_s[n] = qkv[n * batch:(n + 1) * batch, :]
        qkv_g = qkv_s[...]

    # ---- per-(patch, head) attention over the image-batch axis ----------------
    # True grouped attention: no (M, M) scores, no block-diagonal mask, no
    # TN-fold wasted MXU / exp / divide work.
    head_outs = []
    for h in range(num_heads):
        qh = qkv_g[:, :, h * dh:(h + 1) * dh].astype(cdt)             # (TN, B, dh)
        kh = qkv_g[:, :, e + h * dh:e + (h + 1) * dh].astype(cdt)
        vh = qkv_g[:, :, 2 * e + h * dh:2 * e + (h + 1) * dh].astype(cdt)

        s = jnp.einsum("nbd,ncd->nbc", qh, kh,
                       preferred_element_type=f32)                    # (TN, B, B)
        s = s - jnp.max(s, axis=-1, keepdims=True)
        p = jnp.exp(s)
        p = p * pl.reciprocal(jnp.sum(p, axis=-1, keepdims=True), approx=True)
        head_outs.append(jnp.einsum("nbc,ncd->nbd", p.astype(cdt), vh,
                                    preferred_element_type=f32))      # (TN, B, dh)

    attn_g = jnp.concatenate(head_outs, axis=-1)                      # (TN, B, E)

    # ---- ungroup back to row-major (M, E) --------------------------------------
    if aligned:
        attn = attn_g.reshape(m, e)
    else:
        attn_s = scratch[1]                            # (M, E) f32 VMEM
        for n in range(tn):
            attn_s[n * batch:(n + 1) * batch, :] = attn_g[n]
        attn = attn_s[...]

    # ---- output projection + restore: two lane-dense 2-D matmuls ---------------
    out = jnp.dot(attn.astype(cdt), wo_ref[...],
                  preferred_element_type=f32) + bo_ref[...]           # (M, E)
    res = jnp.dot(out.astype(cdt), wr_ref[...],
                  preferred_element_type=f32) + br_ref[...]           # (M, D)
    o_ref[...] = res.astype(o_ref.dtype)


def _full_spec(shape):
    n = len(shape)
    return pl.BlockSpec(shape, lambda *_: (0,) * n)


def _device_kind():
    try:
        return jax.devices()[0].device_kind.lower()
    except Exception:
        return ""


def _choose_num_blocks(N, B, base_nb, row_align, budget_bytes, D, E, in_bytes):
    """Pick a divisor nb of N so row blocks are sublane-aligned and fit VMEM."""
    cands = [d for d in range(1, N + 1)
             if N % d == 0 and (d == 1 or ((N // d) * B) % row_align == 0)]

    def block_bytes(d):
        mb = (N // d) * B
        # double-buffered in/out row slabs + dominant f32 activations
        return 2 * mb * D * (in_bytes + 4) + mb * (8 * E + 2 * D) * 4

    for d in cands:
        if d >= base_nb and block_bytes(d) <= budget_bytes:
            return d
    return cands[-1]


def pbmsa_pallas(x, params, *, patch_size, embed_dim, num_heads,
                 num_blocks=None, compute_dtype=jnp.bfloat16):
    """x: (B, C, H, W) float32, NCHW (same layout as the PyTorch module)."""
    B, C, H, W = x.shape
    p = patch_size
    nH, nW = H // p, W // p
    N = nH * nW
    D = p * p * C
    E = embed_dim
    Hh = num_heads
    dh = E // Hh
    scale = 1.0 / math.sqrt(dh)
    f32 = jnp.float32
    in_bytes = jnp.dtype(compute_dtype).itemsize

    # ---- generation-aware launch parameters -----------------------------------
    kind = _device_kind()
    is_v7 = "7" in kind                       # dual-TensorCore, 64 MiB VMEM per TC
    vmem_limit = (48 << 20) if is_v7 else (64 << 20)
    base_nb = num_blocks if num_blocks is not None else (2 if is_v7 else 1)
    row_align = 16 if in_bytes < 4 else 8     # bf16 sublane packing
    nb = _choose_num_blocks(N, B, max(int(base_nb), 1), row_align,
                            budget_bytes=vmem_limit // 2,
                            D=D, E=E, in_bytes=in_bytes)
    TN = N // nb
    M_blk = TN * B

    # ---- patchify (glue): the SINGLE patchify permutation already yields
    # patch-major rows, so there is no extra HBM transpose of the activations.
    rows = (x.astype(compute_dtype)
            .reshape(B, C, nH, p, nW, p)
            .transpose(2, 4, 0, 1, 3, 5)       # (ih, iw, B, C, pi, pj)
            .reshape(N * B, D))                # rows ordered (patch, image)

    # ---- weight prep (host): 2-D, lane-dense, x @ W convention -----------------
    we = params["w_embed"].T.astype(compute_dtype)                  # (D, E)
    be = params["b_embed"].reshape(1, E).astype(f32)                # (1, E)

    wqkv = params["in_proj_weight"].T.astype(f32)                   # (E, 3E) [q|k|v]
    bqkv = params["in_proj_bias"].reshape(1, 3 * E).astype(f32)     # (1, 3E)
    colscale = jnp.concatenate([jnp.full((E,), scale, f32),
                                jnp.ones((2 * E,), f32)])
    wqkv = (wqkv * colscale[None, :]).astype(compute_dtype)         # fold 1/sqrt(dh)
    bqkv = bqkv * colscale[None, :]

    wo = params["w_out"].T.astype(compute_dtype)                    # (E, E)
    bo = params["b_out"].reshape(1, E).astype(f32)                  # (1, E)
    wr = params["w_restore"].T.astype(compute_dtype)                # (E, D)
    br = params["b_restore"].reshape(1, D).astype(f32)              # (1, D)

    aligned = (B % 8 == 0)
    scratch_shapes = () if aligned else (
        pltpu.VMEM((TN, B, 3 * E), jnp.float32),   # grouped qkv (tiny-B fallback)
        pltpu.VMEM((M_blk, E), jnp.float32),       # ungrouped attention output
    )

    kernel = functools.partial(_pbmsa_kernel, num_heads=Hh, batch=B)

    # Weights have constant index maps so they are fetched once; for large E/D they
    # could additionally be single-buffered via pipeline_mode=pl.Buffered(1).
    out_rows = pl.pallas_call(
        kernel,
        out_shape=jax.ShapeDtypeStruct((N * B, D), jnp.float32),
        grid_spec=pltpu.PrefetchScalarGridSpec(
            num_scalar_prefetch=0,
            grid=(nb,),
            in_specs=[
                pl.BlockSpec((M_blk, D), lambda g: (g, 0)),   # patch-major row slab
                _full_spec(we.shape), _full_spec(be.shape),
                _full_spec(wqkv.shape), _full_spec(bqkv.shape),
                _full_spec(wo.shape), _full_spec(bo.shape),
                _full_spec(wr.shape), _full_spec(br.shape),
            ],
            out_specs=pl.BlockSpec((M_blk, D), lambda g: (g, 0)),
            scratch_shapes=scratch_shapes,
        ),
        compiler_params=pltpu.CompilerParams(
            dimension_semantics=("parallel",),
            vmem_limit_bytes=vmem_limit),
    )(rows, we, be, wqkv, bqkv, wo, bo, wr, br)

    # ---- un-patchify (glue): single permutation, matches restore_original ------
    out = out_rows.reshape(nH, nW, B, C, p, p).transpose(2, 3, 0, 4, 1, 5)
    return out.reshape(B, C, H, W)


# -----------------------------------------------------------------------------
# Pure-JAX reference (same math as nn.MultiheadAttention, batch_first=False).
# -----------------------------------------------------------------------------
def pbmsa_ref(x, params, *, patch_size, embed_dim, num_heads):
    B, C, H, W = x.shape
    p = patch_size
    nH, nW = H // p, W // p
    D = p * p * C
    patches = x.reshape(B, C, nH, p, nW, p).transpose(0, 2, 4, 1, 3, 5).reshape(B, nH * nW, D)
    emb = patches @ params["w_embed"].T + params["b_embed"]            # (B, N, E)
    qkv = emb @ params["in_proj_weight"].T + params["in_proj_bias"]    # (B, N, 3E)
    q, k, v = jnp.split(qkv, 3, axis=-1)
    dh = embed_dim // num_heads
    qh = q.reshape(B, -1, num_heads, dh)
    kh = k.reshape(B, -1, num_heads, dh)
    vh = v.reshape(B, -1, num_heads, dh)
    # attention across the image-batch dim (seq = B), independent per patch n, head h
    s = jnp.einsum("bnhd,cnhd->nhbc", qh, kh) / math.sqrt(dh)
    a = jax.nn.softmax(s, axis=-1)
    o = jnp.einsum("nhbc,cnhd->bnhd", a, vh).reshape(B, -1, embed_dim)
    o = o @ params["w_out"].T + params["b_out"]
    r = o @ params["w_restore"].T + params["b_restore"]                # (B, N, D)
    r = r.reshape(B, nH, nW, C, p, p).transpose(0, 3, 1, 4, 2, 5).reshape(B, C, H, W)
    return r


if __name__ == "__main__":
    # small shapes consistent with the module
    B, C, H, W = 2, 4, 16, 16
    patch_size = 4
    embed_dim = 32
    num_heads = 4
    D = patch_size * patch_size * C

    key = jax.random.PRNGKey(0)
    ks = jax.random.split(key, 10)
    x = jax.random.normal(ks[0], (B, C, H, W), dtype=jnp.float32)

    # deterministic synthetic parameters (PyTorch Linear convention: (out, in))
    params = {
        "w_embed": 0.05 * jax.random.normal(ks[1], (embed_dim, D), jnp.float32),
        "b_embed": 0.01 * jax.random.normal(ks[2], (embed_dim,), jnp.float32),
        "in_proj_weight": 0.05 * jax.random.normal(ks[3], (3 * embed_dim, embed_dim), jnp.float32),
        "in_proj_bias": 0.01 * jax.random.normal(ks[4], (3 * embed_dim,), jnp.float32),
        "w_out": 0.05 * jax.random.normal(ks[5], (embed_dim, embed_dim), jnp.float32),
        "b_out": 0.01 * jax.random.normal(ks[6], (embed_dim,), jnp.float32),
        "w_restore": 0.05 * jax.random.normal(ks[7], (D, embed_dim), jnp.float32),
        "b_restore": 0.01 * jax.random.normal(ks[8], (D,), jnp.float32),
    }

    ref = pbmsa_ref(x, params, patch_size=patch_size,
                    embed_dim=embed_dim, num_heads=num_heads)

    # f32 MXU-operand path (tight check)
    out = pbmsa_pallas(x, params, patch_size=patch_size,
                       embed_dim=embed_dim, num_heads=num_heads,
                       compute_dtype=jnp.float32)
    out = jax.block_until_ready(out)
    assert out.shape == (B, C, H, W)
    assert jnp.allclose(out, ref, atol=3e-3, rtol=3e-3), "f32 mismatch vs reference"

    # bf16 MXU-operand path (default; f32 accumulation, looser check)
    out_bf16 = pbmsa_pallas(x, params, patch_size=patch_size,
                            embed_dim=embed_dim, num_heads=num_heads,
                            compute_dtype=jnp.bfloat16)
    out_bf16 = jax.block_until_ready(out_bf16)
    assert jnp.allclose(out_bf16, ref, atol=3e-2, rtol=3e-2), "bf16 mismatch vs reference"

    print("KERNEL_OK")
</pallas_src>

<mosaic_0001>
module attributes {stable_mosaic.version = 11 : i64} {
  func.func @_pbmsa_kernel(%arg0: i32, %arg1: memref<32x64xf32, #tpu.memory_space<vmem>>, %arg2: memref<64x32xf32, #tpu.memory_space<vmem>>, %arg3: memref<1x32xf32, #tpu.memory_space<vmem>>, %arg4: memref<32x96xf32, #tpu.memory_space<vmem>>, %arg5: memref<1x96xf32, #tpu.memory_space<vmem>>, %arg6: memref<32x32xf32, #tpu.memory_space<vmem>>, %arg7: memref<1x32xf32, #tpu.memory_space<vmem>>, %arg8: memref<32x64xf32, #tpu.memory_space<vmem>>, %arg9: memref<1x64xf32, #tpu.memory_space<vmem>>, %arg10: memref<32x64xf32, #tpu.memory_space<vmem>>, %arg11: memref<16x2x96xf32, #tpu.memory_space<vmem>>, %arg12: memref<32x32xf32, #tpu.memory_space<vmem>>) attributes {dimension_semantics = [#tpu.dimension_semantics<parallel>], iteration_bounds = array<i64: 1>, scalar_prefetch = 0 : i64, scratch_operands = 2 : i64, tpu.core_type = #tpu.core_type<tc>, window_params = [{transform_indices = @transform_0, window_bounds = array<i64: 32, 64>}, {pipeline_mode = #tpu.pipeline_mode<synchronous>, transform_indices = @transform_1, window_bounds = array<i64: 64, 32>}, {pipeline_mode = #tpu.pipeline_mode<synchronous>, transform_indices = @transform_2, window_bounds = array<i64: 1, 32>}, {pipeline_mode = #tpu.pipeline_mode<synchronous>, transform_indices = @transform_3, window_bounds = array<i64: 32, 96>}, {pipeline_mode = #tpu.pipeline_mode<synchronous>, transform_indices = @transform_4, window_bounds = array<i64: 1, 96>}, {pipeline_mode = #tpu.pipeline_mode<synchronous>, transform_indices = @transform_5, window_bounds = array<i64: 32, 32>}, {pipeline_mode = #tpu.pipeline_mode<synchronous>, transform_indices = @transform_6, window_bounds = array<i64: 1, 32>}, {pipeline_mode = #tpu.pipeline_mode<synchronous>, transform_indices = @transform_7, window_bounds = array<i64: 32, 64>}, {pipeline_mode = #tpu.pipeline_mode<synchronous>, transform_indices = @transform_8, window_bounds = array<i64: 1, 64>}, {transform_indices = @transform_9, window_bounds = array<i64: 32, 64>}]} {
    %c0 = arith.constant 0 : index
    %c0_0 = arith.constant 0 : index
    %0 = vector.load %arg1[%c0, %c0_0] : memref<32x64xf32, #tpu.memory_space<vmem>>, vector<32x64xf32>
    %c0_1 = arith.constant 0 : index
    %c0_2 = arith.constant 0 : index
    %1 = vector.load %arg2[%c0_1, %c0_2] : memref<64x32xf32, #tpu.memory_space<vmem>>, vector<64x32xf32>
    %cst = arith.constant dense<0.000000e+00> : vector<32x32xf32>
    %2 = tpu.matmul %0, %1, %cst {dimension_numbers = #tpu.dot_dimension_numbers<[1], [0], [0], [1], [0, 0, 1, 1], [], []>} : vector<32x64xf32>, vector<64x32xf32>, vector<32x32xf32> -> vector<32x32xf32>
    %c0_3 = arith.constant 0 : index
    %c0_4 = arith.constant 0 : index
    %3 = vector.load %arg3[%c0_3, %c0_4] : memref<1x32xf32, #tpu.memory_space<vmem>>, vector<1x32xf32>
    %4 = vector.broadcast %3 : vector<1x32xf32> to vector<32x32xf32>
    %5 = arith.addf %2, %4 : vector<32x32xf32>
    %c0_5 = arith.constant 0 : index
    %c0_6 = arith.constant 0 : index
    %6 = vector.load %arg4[%c0_5, %c0_6] : memref<32x96xf32, #tpu.memory_space<vmem>>, vector<32x96xf32>
    %cst_7 = arith.constant dense<0.000000e+00> : vector<32x96xf32>
    %7 = tpu.matmul %5, %6, %cst_7 {dimension_numbers = #tpu.dot_dimension_numbers<[1], [0], [0], [1], [0, 0, 1, 1], [], []>} : vector<32x32xf32>, vector<32x96xf32>, vector<32x96xf32> -> vector<32x96xf32>
    %c0_8 = arith.constant 0 : index
    %c0_9 = arith.constant 0 : index
    %8 = vector.load %arg5[%c0_8, %c0_9] : memref<1x96xf32, #tpu.memory_space<vmem>>, vector<1x96xf32>
    %9 = vector.broadcast %8 : vector<1x96xf32> to vector<32x96xf32>
    %10 = arith.addf %7, %9 : vector<32x96xf32>
    %11 = vector.extract_strided_slice %10 {offsets = [0, 0], sizes = [2, 96], strides = [1, 1]} : vector<32x96xf32> to vector<2x96xf32>
    %c0_10 = arith.constant 0 : index
    %c0_11 = arith.constant 0 : index
    %c0_12 = arith.constant 0 : index
    %12 = vector.load %arg11[%c0_10, %c0_11, %c0_12] : memref<16x2x96xf32, #tpu.memory_space<vmem>>, vector<1x2x96xf32>
    %13 = vector.shape_cast %12 : vector<1x2x96xf32> to vector<2x96xf32>
    %14 = vector.shape_cast %11 : vector<2x96xf32> to vector<1x2x96xf32>
    tpu.vector_store %arg11[%c0_10, %c0_11, %c0_12], %14 {strides = array<i32>} : memref<16x2x96xf32, #tpu.memory_space<vmem>>, vector<1x2x96xf32>,
    %15 = vector.extract_strided_slice %10 {offsets = [2, 0], sizes = [2, 96], strides = [1, 1]} : vector<32x96xf32> to vector<2x96xf32>
    %c1 = arith.constant 1 : index
    %c0_13 = arith.constant 0 : index
    %c0_14 = arith.constant 0 : index
    %16 = vector.load %arg11[%c1, %c0_13, %c0_14] : memref<16x2x96xf32, #tpu.memory_space<vmem>>, vector<1x2x96xf32>
    %17 = vector.shape_cast %16 : vector<1x2x96xf32> to vector<2x96xf32>
    %18 = vector.shape_cast %15 : vector<2x96xf32> to vector<1x2x96xf32>
    tpu.vector_store %arg11[%c1, %c0_13, %c0_14], %18 {strides = array<i32>} : memref<16x2x96xf32, #tpu.memory_space<vmem>>, vector<1x2x96xf32>,
    %19 = vector.extract_strided_slice %10 {offsets = [4, 0], sizes = [2, 96], strides = [1, 1]} : vector<32x96xf32> to vector<2x96xf32>
    %c2 = arith.constant 2 : index
    %c0_15 = arith.constant 0 : index
    %c0_16 = arith.constant 0 : index
    %20 = vector.load %arg11[%c2, %c0_15, %c0_16] : memref<16x2x96xf32, #tpu.memory_space<vmem>>, vector<1x2x96xf32>
    %21 = vector.shape_cast %20 : vector<1x2x96xf32> to vector<2x96xf32>
    %22 = vector.shape_cast %19 : vector<2x96xf32> to vector<1x2x96xf32>
    tpu.vector_store %arg11[%c2, %c0_15, %c0_16], %22 {strides = array<i32>} : memref<16x2x96xf32, #tpu.memory_space<vmem>>, vector<1x2x96xf32>,
    %23 = vector.extract_strided_slice %10 {offsets = [6, 0], sizes = [2, 96], strides = [1, 1]} : vector<32x96xf32> to vector<2x96xf32>
    %c3 = arith.constant 3 : index
    %c0_17 = arith.constant 0 : index
    %c0_18 = arith.constant 0 : index
    %24 = vector.load %arg11[%c3, %c0_17, %c0_18] : memref<16x2x96xf32, #tpu.memory_space<vmem>>, vector<1x2x96xf32>
    %25 = vector.shape_cast %24 : vector<1x2x96xf32> to vector<2x96xf32>
    %26 = vector.shape_cast %23 : vector<2x96xf32> to vector<1x2x96xf32>
    tpu.vector_store %arg11[%c3, %c0_17, %c0_18], %26 {strides = array<i32>} : memref<16x2x96xf32, #tpu.memory_space<vmem>>, vector<1x2x96xf32>,
    %27 = vector.extract_strided_slice %10 {offsets = [8, 0], sizes = [2, 96], strides = [1, 1]} : vector<32x96xf32> to vector<2x96xf32>
    %c4 = arith.constant 4 : index
    %c0_19 = arith.constant 0 : index
    %c0_20 = arith.constant 0 : index
    %28 = vector.load %arg11[%c4, %c0_19, %c0_20] : memref<16x2x96xf32, #tpu.memory_space<vmem>>, vector<1x2x96xf32>
    %29 = vector.shape_cast %28 : vector<1x2x96xf32> to vector<2x96xf32>
    %30 = vector.shape_cast %27 : vector<2x96xf32> to vector<1x2x96xf32>
    tpu.vector_store %arg11[%c4, %c0_19, %c0_20], %30 {strides = array<i32>} : memref<16x2x96xf32, #tpu.memory_space<vmem>>, vector<1x2x96xf32>,
    %31 = vector.extract_strided_slice %10 {offsets = [10, 0], sizes = [2, 96], strides = [1, 1]} : vector<32x96xf32> to vector<2x96xf32>
    %c5 = arith.constant 5 : index
    %c0_21 = arith.constant 0 : index
    %c0_22 = arith.constant 0 : index
    %32 = vector.load %arg11[%c5, %c0_21, %c0_22] : memref<16x2x96xf32, #tpu.memory_space<vmem>>, vector<1x2x96xf32>
    %33 = vector.shape_cast %32 : vector<1x2x96xf32> to vector<2x96xf32>
    %34 = vector.shape_cast %31 : vector<2x96xf32> to vector<1x2x96xf32>
    tpu.vector_store %arg11[%c5, %c0_21, %c0_22], %34 {strides = array<i32>} : memref<16x2x96xf32, #tpu.memory_space<vmem>>, vector<1x2x96xf32>,
    %35 = vector.extract_strided_slice %10 {offsets = [12, 0], sizes = [2, 96], strides = [1, 1]} : vector<32x96xf32> to vector<2x96xf32>
    %c6 = arith.constant 6 : index
    %c0_23 = arith.constant 0 : index
    %c0_24 = arith.constant 0 : index
    %36 = vector.load %arg11[%c6, %c0_23, %c0_24] : memref<16x2x96xf32, #tpu.memory_space<vmem>>, vector<1x2x96xf32>
    %37 = vector.shape_cast %36 : vector<1x2x96xf32> to vector<2x96xf32>
    %38 = vector.shape_cast %35 : vector<2x96xf32> to vector<1x2x96xf32>
    tpu.vector_store %arg11[%c6, %c0_23, %c0_24], %38 {strides = array<i32>} : memref<16x2x96xf32, #tpu.memory_space<vmem>>, vector<1x2x96xf32>,
    %39 = vector.extract_strided_slice %10 {offsets = [14, 0], sizes = [2, 96], strides = [1, 1]} : vector<32x96xf32> to vector<2x96xf32>
    %c7 = arith.constant 7 : index
    %c0_25 = arith.constant 0 : index
    %c0_26 = arith.constant 0 : index
    %40 = vector.load %arg11[%c7, %c0_25, %c0_26] : memref<16x2x96xf32, #tpu.memory_space<vmem>>, vector<1x2x96xf32>
    %41 = vector.shape_cast %40 : vector<1x2x96xf32> to vector<2x96xf32>
    %42 = vector.shape_cast %39 : vector<2x96xf32> to vector<1x2x96xf32>
    tpu.vector_store %arg11[%c7, %c0_25, %c0_26], %42 {strides = array<i32>} : memref<16x2x96xf32, #tpu.memory_space<vmem>>, vector<1x2x96xf32>,
    %43 = vector.extract_strided_slice %10 {offsets = [16, 0], sizes = [2, 96], strides = [1, 1]} : vector<32x96xf32> to vector<2x96xf32>
    %c8 = arith.constant 8 : index
    %c0_27 = arith.constant 0 : index
    %c0_28 = arith.constant 0 : index
    %44 = vector.load %arg11[%c8, %c0_27, %c0_28] : memref<16x2x96xf32, #tpu.memory_space<vmem>>, vector<1x2x96xf32>
    %45 = vector.shape_cast %44 : vector<1x2x96xf32> to vector<2x96xf32>
    %46 = vector.shape_cast %43 : vector<2x96xf32> to vector<1x2x96xf32>
    tpu.vector_store %arg11[%c8, %c0_27, %c0_28], %46 {strides = array<i32>} : memref<16x2x96xf32, #tpu.memory_space<vmem>>, vector<1x2x96xf32>,
    %47 = vector.extract_strided_slice %10 {offsets = [18, 0], sizes = [2, 96], strides = [1, 1]} : vector<32x96xf32> to vector<2x96xf32>
    %c9 = arith.constant 9 : index
    %c0_29 = arith.constant 0 : index
    %c0_30 = arith.constant 0 : index
    %48 = vector.load %arg11[%c9, %c0_29, %c0_30] : memref<16x2x96xf32, #tpu.memory_space<vmem>>, vector<1x2x96xf32>
    %49 = vector.shape_cast %48 : vector<1x2x96xf32> to vector<2x96xf32>
    %50 = vector.shape_cast %47 : vector<2x96xf32> to vector<1x2x96xf32>
    tpu.vector_store %arg11[%c9, %c0_29, %c0_30], %50 {strides = array<i32>} : memref<16x2x96xf32, #tpu.memory_space<vmem>>, vector<1x2x96xf32>,
    %51 = vector.extract_strided_slice %10 {offsets = [20, 0], sizes = [2, 96], strides = [1, 1]} : vector<32x96xf32> to vector<2x96xf32>
    %c10 = arith.constant 10 : index
    %c0_31 = arith.constant 0 : index
    %c0_32 = arith.constant 0 : index
    %52 = vector.load %arg11[%c10, %c0_31, %c0_32] : memref<16x2x96xf32, #tpu.memory_space<vmem>>, vector<1x2x96xf32>
    %53 = vector.shape_cast %52 : vector<1x2x96xf32> to vector<2x96xf32>
    %54 = vector.shape_cast %51 : vector<2x96xf32> to vector<1x2x96xf32>
    tpu.vector_store %arg11[%c10, %c0_31, %c0_32], %54 {strides = array<i32>} : memref<16x2x96xf32, #tpu.memory_space<vmem>>, vector<1x2x96xf32>,
    %55 = vector.extract_strided_slice %10 {offsets = [22, 0], sizes = [2, 96], strides = [1, 1]} : vector<32x96xf32> to vector<2x96xf32>
    %c11 = arith.constant 11 : index
    %c0_33 = arith.constant 0 : index
    %c0_34 = arith.constant 0 : index
    %56 = vector.load %arg11[%c11, %c0_33, %c0_34] : memref<16x2x96xf32, #tpu.memory_space<vmem>>, vector<1x2x96xf32>
    %57 = vector.shape_cast %56 : vector<1x2x96xf32> to vector<2x96xf32>
    %58 = vector.shape_cast %55 : vector<2x96xf32> to vector<1x2x96xf32>
    tpu.vector_store %arg11[%c11, %c0_33, %c0_34], %58 {strides = array<i32>} : memref<16x2x96xf32, #tpu.memory_space<vmem>>, vector<1x2x96xf32>,
    %59 = vector.extract_strided_slice %10 {offsets = [24, 0], sizes = [2, 96], strides = [1, 1]} : vector<32x96xf32> to vector<2x96xf32>
    %c12 = arith.constant 12 : index
    %c0_35 = arith.constant 0 : index
    %c0_36 = arith.constant 0 : index
    %60 = vector.load %arg11[%c12, %c0_35, %c0_36] : memref<16x2x96xf32, #tpu.memory_space<vmem>>, vector<1x2x96xf32>
    %61 = vector.shape_cast %60 : vector<1x2x96xf32> to vector<2x96xf32>
    %62 = vector.shape_cast %59 : vector<2x96xf32> to vector<1x2x96xf32>
    tpu.vector_store %arg11[%c12, %c0_35, %c0_36], %62 {strides = array<i32>} : memref<16x2x96xf32, #tpu.memory_space<vmem>>, vector<1x2x96xf32>,
    %63 = vector.extract_strided_slice %10 {offsets = [26, 0], sizes = [2, 96], strides = [1, 1]} : vector<32x96xf32> to vector<2x96xf32>
    %c13 = arith.constant 13 : index
    %c0_37 = arith.constant 0 : index
    %c0_38 = arith.constant 0 : index
    %64 = vector.load %arg11[%c13, %c0_37, %c0_38] : memref<16x2x96xf32, #tpu.memory_space<vmem>>, vector<1x2x96xf32>
    %65 = vector.shape_cast %64 : vector<1x2x96xf32> to vector<2x96xf32>
    %66 = vector.shape_cast %63 : vector<2x96xf32> to vector<1x2x96xf32>
    tpu.vector_store %arg11[%c13, %c0_37, %c0_38], %66 {strides = array<i32>} : memref<16x2x96xf32, #tpu.memory_space<vmem>>, vector<1x2x96xf32>,
    %67 = vector.extract_strided_slice %10 {offsets = [28, 0], sizes = [2, 96], strides = [1, 1]} : vector<32x96xf32> to vector<2x96xf32>
    %c14 = arith.constant 14 : index
    %c0_39 = arith.constant 0 : index
    %c0_40 = arith.constant 0 : index
    %68 = vector.load %arg11[%c14, %c0_39, %c0_40] : memref<16x2x96xf32, #tpu.memory_space<vmem>>, vector<1x2x96xf32>
    %69 = vector.shape_cast %68 : vector<1x2x96xf32> to vector<2x96xf32>
    %70 = vector.shape_cast %67 : vector<2x96xf32> to vector<1x2x96xf32>
    tpu.vector_store %arg11[%c14, %c0_39, %c0_40], %70 {strides = array<i32>} : memref<16x2x96xf32, #tpu.memory_space<vmem>>, vector<1x2x96xf32>,
    %71 = vector.extract_strided_slice %10 {offsets = [30, 0], sizes = [2, 96], strides = [1, 1]} : vector<32x96xf32> to vector<2x96xf32>
    %c15 = arith.constant 15 : index
    %c0_41 = arith.constant 0 : index
    %c0_42 = arith.constant 0 : index
    %72 = vector.load %arg11[%c15, %c0_41, %c0_42] : memref<16x2x96xf32, #tpu.memory_space<vmem>>, vector<1x2x96xf32>
    %73 = vector.shape_cast %72 : vector<1x2x96xf32> to vector<2x96xf32>
    %74 = vector.shape_cast %71 : vector<2x96xf32> to vector<1x2x96xf32>
    tpu.vector_store %arg11[%c15, %c0_41, %c0_42], %74 {strides = array<i32>} : memref<16x2x96xf32, #tpu.memory_space<vmem>>, vector<1x2x96xf32>,
    %c0_43 = arith.constant 0 : index
    %c0_44 = arith.constant 0 : index
    %c0_45 = arith.constant 0 : index
    %75 = vector.load %arg11[%c0_43, %c0_44, %c0_45] : memref<16x2x96xf32, #tpu.memory_space<vmem>>, vector<16x2x96xf32>
    %76 = vector.extract_strided_slice %75 {offsets = [0, 0, 0], sizes = [16, 2, 8], strides = [1, 1, 1]} : vector<16x2x96xf32> to vector<16x2x8xf32>
    %77 = vector.extract_strided_slice %75 {offsets = [0, 0, 32], sizes = [16, 2, 8], strides = [1, 1, 1]} : vector<16x2x96xf32> to vector<16x2x8xf32>
    %78 = vector.extract_strided_slice %75 {offsets = [0, 0, 64], sizes = [16, 2, 8], strides = [1, 1, 1]} : vector<16x2x96xf32> to vector<16x2x8xf32>
    "tpu.trace_start"() <{level = 10 : i32, message = "nbd,ncd->nbc"}> : () -> ()
    %cst_46 = arith.constant dense<0.000000e+00> : vector<16x2x2xf32>
    %79 = tpu.matmul %76, %77, %cst_46 {dimension_numbers = #tpu.dot_dimension_numbers<[2], [2], [1], [1], [0, 0, 0, 1, 1, 1], [0], [0]>} : vector<16x2x8xf32>, vector<16x2x8xf32>, vector<16x2x2xf32> -> vector<16x2x2xf32>
    "tpu.trace_stop"() : () -> ()
    %cst_47 = arith.constant dense<0xFF800000> : vector<16x2xf32>
    %80 = vector.multi_reduction <maximumf>, %79, %cst_47 [2] : vector<16x2x2xf32> to vector<16x2xf32>
    %81 = vector.shape_cast %80 : vector<16x2xf32> to vector<16x2x1xf32>
    %82 = vector.broadcast %81 : vector<16x2x1xf32> to vector<16x2x2xf32>
    %83 = arith.subf %79, %82 : vector<16x2x2xf32>
    %84 = math.exp %83 : vector<16x2x2xf32>
    %cst_48 = arith.constant dense<0.000000e+00> : vector<16x2xf32>
    %85 = vector.multi_reduction <add>, %84, %cst_48 [2] : vector<16x2x2xf32> to vector<16x2xf32>
    %86 = vector.shape_cast %85 : vector<16x2xf32> to vector<16x2x1xf32>
    %87 = tpu.reciprocal %86 {approx = true} : vector<16x2x1xf32> -> vector<16x2x1xf32>
    %88 = vector.broadcast %87 : vector<16x2x1xf32> to vector<16x2x2xf32>
    %89 = arith.mulf %84, %88 : vector<16x2x2xf32>
    "tpu.trace_start"() <{level = 10 : i32, message = "nbc,ncd->nbd"}> : () -> ()
    %cst_49 = arith.constant dense<0.000000e+00> : vector<16x2x8xf32>
    %90 = tpu.matmul %89, %78, %cst_49 {dimension_numbers = #tpu.dot_dimension_numbers<[2], [1], [1], [2], [0, 0, 0, 1, 1, 2], [0], [0]>} : vector<16x2x2xf32>, vector<16x2x8xf32>, vector<16x2x8xf32> -> vector<16x2x8xf32>
    "tpu.trace_stop"() : () -> ()
    %91 = vector.extract_strided_slice %75 {offsets = [0, 0, 8], sizes = [16, 2, 8], strides = [1, 1, 1]} : vector<16x2x96xf32> to vector<16x2x8xf32>
    %92 = vector.extract_strided_slice %75 {offsets = [0, 0, 40], sizes = [16, 2, 8], strides = [1, 1, 1]} : vector<16x2x96xf32> to vector<16x2x8xf32>
    %93 = vector.extract_strided_slice %75 {offsets = [0, 0, 72], sizes = [16, 2, 8], strides = [1, 1, 1]} : vector<16x2x96xf32> to vector<16x2x8xf32>
    "tpu.trace_start"() <{level = 10 : i32, message = "nbd,ncd->nbc"}> : () -> ()
    %cst_50 = arith.constant dense<0.000000e+00> : vector<16x2x2xf32>
    %94 = tpu.matmul %91, %92, %cst_50 {dimension_numbers = #tpu.dot_dimension_numbers<[2], [2], [1], [1], [0, 0, 0, 1, 1, 1], [0], [0]>} : vector<16x2x8xf32>, vector<16x2x8xf32>, vector<16x2x2xf32> -> vector<16x2x2xf32>
    "tpu.trace_stop"() : () -> ()
    %cst_51 = arith.constant dense<0xFF800000> : vector<16x2xf32>
    %95 = vector.multi_reduction <maximumf>, %94, %cst_51 [2] : vector<16x2x2xf32> to vector<16x2xf32>
    %96 = vector.shape_cast %95 : vector<16x2xf32> to vector<16x2x1xf32>
    %97 = vector.broadcast %96 : vector<16x2x1xf32> to vector<16x2x2xf32>
    %98 = arith.subf %94, %97 : vector<16x2x2xf32>
    %99 = math.exp %98 : vector<16x2x2xf32>
    %cst_52 = arith.constant dense<0.000000e+00> : vector<16x2xf32>
    %100 = vector.multi_reduction <add>, %99, %cst_52 [2] : vector<16x2x2xf32> to vector<16x2xf32>
    %101 = vector.shape_cast %100 : vector<16x2xf32> to vector<16x2x1xf32>
    %102 = tpu.reciprocal %101 {approx = true} : vector<16x2x1xf32> -> vector<16x2x1xf32>
    %103 = vector.broadcast %102 : vector<16x2x1xf32> to vector<16x2x2xf32>
    %104 = arith.mulf %99, %103 : vector<16x2x2xf32>
    "tpu.trace_start"() <{level = 10 : i32, message = "nbc,ncd->nbd"}> : () -> ()
    %cst_53 = arith.constant dense<0.000000e+00> : vector<16x2x8xf32>
    %105 = tpu.matmul %104, %93, %cst_53 {dimension_numbers = #tpu.dot_dimension_numbers<[2], [1], [1], [2], [0, 0, 0, 1, 1, 2], [0], [0]>} : vector<16x2x2xf32>, vector<16x2x8xf32>, vector<16x2x8xf32> -> vector<16x2x8xf32>
    "tpu.trace_stop"() : () -> ()
    %106 = vector.extract_strided_slice %75 {offsets = [0, 0, 16], sizes = [16, 2, 8], strides = [1, 1, 1]} : vector<16x2x96xf32> to vector<16x2x8xf32>
    %107 = vector.extract_strided_slice %75 {offsets = [0, 0, 48], sizes = [16, 2, 8], strides = [1, 1, 1]} : vector<16x2x96xf32> to vector<16x2x8xf32>
    %108 = vector.extract_strided_slice %75 {offsets = [0, 0, 80], sizes = [16, 2, 8], strides = [1, 1, 1]} : vector<16x2x96xf32> to vector<16x2x8xf32>
    "tpu.trace_start"() <{level = 10 : i32, message = "nbd,ncd->nbc"}> : () -> ()
    %cst_54 = arith.constant dense<0.000000e+00> : vector<16x2x2xf32>
    %109 = tpu.matmul %106, %107, %cst_54 {dimension_numbers = #tpu.dot_dimension_numbers<[2], [2], [1], [1], [0, 0, 0, 1, 1, 1], [0], [0]>} : vector<16x2x8xf32>, vector<16x2x8xf32>, vector<16x2x2xf32> -> vector<16x2x2xf32>
    "tpu.trace_stop"() : () -> ()
    %cst_55 = arith.constant dense<0xFF800000> : vector<16x2xf32>
    %110 = vector.multi_reduction <maximumf>, %109, %cst_55 [2] : vector<16x2x2xf32> to vector<16x2xf32>
    %111 = vector.shape_cast %110 : vector<16x2xf32> to vector<16x2x1xf32>
    %112 = vector.broadcast %111 : vector<16x2x1xf32> to vector<16x2x2xf32>
    %113 = arith.subf %109, %112 : vector<16x2x2xf32>
    %114 = math.exp %113 : vector<16x2x2xf32>
    %cst_56 = arith.constant dense<0.000000e+00> : vector<16x2xf32>
    %115 = vector.multi_reduction <add>, %114, %cst_56 [2] : vector<16x2x2xf32> to vector<16x2xf32>
    %116 = vector.shape_cast %115 : vector<16x2xf32> to vector<16x2x1xf32>
    %117 = tpu.reciprocal %116 {approx = true} : vector<16x2x1xf32> -> vector<16x2x1xf32>
    %118 = vector.broadcast %117 : vector<16x2x1xf32> to vector<16x2x2xf32>
    %119 = arith.mulf %114, %118 : vector<16x2x2xf32>
    "tpu.trace_start"() <{level = 10 : i32, message = "nbc,ncd->nbd"}> : () -> ()
    %cst_57 = arith.constant dense<0.000000e+00> : vector<16x2x8xf32>
    %120 = tpu.matmul %119, %108, %cst_57 {dimension_numbers = #tpu.dot_dimension_numbers<[2], [1], [1], [2], [0, 0, 0, 1, 1, 2], [0], [0]>} : vector<16x2x2xf32>, vector<16x2x8xf32>, vector<16x2x8xf32> -> vector<16x2x8xf32>
    "tpu.trace_stop"() : () -> ()
    %121 = vector.extract_strided_slice %75 {offsets = [0, 0, 24], sizes = [16, 2, 8], strides = [1, 1, 1]} : vector<16x2x96xf32> to vector<16x2x8xf32>
    %122 = vector.extract_strided_slice %75 {offsets = [0, 0, 56], sizes = [16, 2, 8], strides = [1, 1, 1]} : vector<16x2x96xf32> to vector<16x2x8xf32>
    %123 = vector.extract_strided_slice %75 {offsets = [0, 0, 88], sizes = [16, 2, 8], strides = [1, 1, 1]} : vector<16x2x96xf32> to vector<16x2x8xf32>
    "tpu.trace_start"() <{level = 10 : i32, message = "nbd,ncd->nbc"}> : () -> ()
    %cst_58 = arith.constant dense<0.000000e+00> : vector<16x2x2xf32>
    %124 = tpu.matmul %121, %122, %cst_58 {dimension_numbers = #tpu.dot_dimension_numbers<[2], [2], [1], [1], [0, 0, 0, 1, 1, 1], [0], [0]>} : vector<16x2x8xf32>, vector<16x2x8xf32>, vector<16x2x2xf32> -> vector<16x2x2xf32>
    "tpu.trace_stop"() : () -> ()
    %cst_59 = arith.constant dense<0xFF800000> : vector<16x2xf32>
    %125 = vector.multi_reduction <maximumf>, %124, %cst_59 [2] : vector<16x2x2xf32> to vector<16x2xf32>
    %126 = vector.shape_cast %125 : vector<16x2xf32> to vector<16x2x1xf32>
    %127 = vector.broadcast %126 : vector<16x2x1xf32> to vector<16x2x2xf32>
    %128 = arith.subf %124, %127 : vector<16x2x2xf32>
    %129 = math.exp %128 : vector<16x2x2xf32>
    %cst_60 = arith.constant dense<0.000000e+00> : vector<16x2xf32>
    %130 = vector.multi_reduction <add>, %129, %cst_60 [2] : vector<16x2x2xf32> to vector<16x2xf32>
    %131 = vector.shape_cast %130 : vector<16x2xf32> to vector<16x2x1xf32>
    %132 = tpu.reciprocal %131 {approx = true} : vector<16x2x1xf32> -> vector<16x2x1xf32>
    %133 = vector.broadcast %132 : vector<16x2x1xf32> to vector<16x2x2xf32>
    %134 = arith.mulf %129, %133 : vector<16x2x2xf32>
    "tpu.trace_start"() <{level = 10 : i32, message = "nbc,ncd->nbd"}> : () -> ()
    %cst_61 = arith.constant dense<0.000000e+00> : vector<16x2x8xf32>
    %135 = tpu.matmul %134, %123, %cst_61 {dimension_numbers = #tpu.dot_dimension_numbers<[2], [1], [1], [2], [0, 0, 0, 1, 1, 2], [0], [0]>} : vector<16x2x2xf32>, vector<16x2x8xf32>, vector<16x2x8xf32> -> vector<16x2x8xf32>
    "tpu.trace_stop"() : () -> ()
    %136 = tpu.concatenate %90, %105, %120, %135 in 2 : vector<16x2x8xf32>, vector<16x2x8xf32>, vector<16x2x8xf32>, vector<16x2x8xf32> -> vector<16x2x32xf32>
    %137 = vector.extract_strided_slice %136 {offsets = [0, 0, 0], sizes = [1, 2, 32], strides = [1, 1, 1]} : vector<16x2x32xf32> to vector<1x2x32xf32>
    %138 = vector.shape_cast %137 : vector<1x2x32xf32> to vector<2x32xf32>
    %c0_62 = arith.constant 0 : index
    %c0_63 = arith.constant 0 : index
    %139 = vector.load %arg12[%c0_62, %c0_63] : memref<32x32xf32, #tpu.memory_space<vmem>>, vector<2x32xf32>
    tpu.vector_store %arg12[%c0_62, %c0_63], %138 {strides = array<i32>} : memref<32x32xf32, #tpu.memory_space<vmem>>, vector<2x32xf32>,
    %140 = vector.extract_strided_slice %136 {offsets = [1, 0, 0], sizes = [1, 2, 32], strides = [1, 1, 1]} : vector<16x2x32xf32> to vector<1x2x32xf32>
    %141 = vector.shape_cast %140 : vector<1x2x32xf32> to vector<2x32xf32>
    %c2_64 = arith.constant 2 : index
    %c0_65 = arith.constant 0 : index
    %142 = vector.load %arg12[%c2_64, %c0_65] : memref<32x32xf32, #tpu.memory_space<vmem>>, vector<2x32xf32>
    tpu.vector_store %arg12[%c2_64, %c0_65], %141 {strides = array<i32>} : memref<32x32xf32, #tpu.memory_space<vmem>>, vector<2x32xf32>,
    %143 = vector.extract_strided_slice %136 {offsets = [2, 0, 0], sizes = [1, 2, 32], strides = [1, 1, 1]} : vector<16x2x32xf32> to vector<1x2x32xf32>
    %144 = vector.shape_cast %143 : vector<1x2x32xf32> to vector<2x32xf32>
    %c4_66 = arith.constant 4 : index
    %c0_67 = arith.constant 0 : index
    %145 = vector.load %arg12[%c4_66, %c0_67] : memref<32x32xf32, #tpu.memory_space<vmem>>, vector<2x32xf32>
    tpu.vector_store %arg12[%c4_66, %c0_67], %144 {strides = array<i32>} : memref<32x32xf32, #tpu.memory_space<vmem>>, vector<2x32xf32>,
    %146 = vector.extract_strided_slice %136 {offsets = [3, 0, 0], sizes = [1, 2, 32], strides = [1, 1, 1]} : vector<16x2x32xf32> to vector<1x2x32xf32>
    %147 = vector.shape_cast %146 : vector<1x2x32xf32> to vector<2x32xf32>
    %c6_68 = arith.constant 6 : index
    %c0_69 = arith.constant 0 : index
    %148 = vector.load %arg12[%c6_68, %c0_69] : memref<32x32xf32, #tpu.memory_space<vmem>>, vector<2x32xf32>
    tpu.vector_store %arg12[%c6_68, %c0_69], %147 {strides = array<i32>} : memref<32x32xf32, #tpu.memory_space<vmem>>, vector<2x32xf32>,
    %149 = vector.extract_strided_slice %136 {offsets = [4, 0, 0], sizes = [1, 2, 32], strides = [1, 1, 1]} : vector<16x2x32xf32> to vector<1x2x32xf32>
    %150 = vector.shape_cast %149 : vector<1x2x32xf32> to vector<2x32xf32>
    %c8_70 = arith.constant 8 : index
    %c0_71 = arith.constant 0 : index
    %151 = vector.load %arg12[%c8_70, %c0_71] : memref<32x32xf32, #tpu.memory_space<vmem>>, vector<2x32xf32>
    tpu.vector_store %arg12[%c8_70, %c0_71], %150 {strides = array<i32>} : memref<32x32xf32, #tpu.memory_space<vmem>>, vector<2x32xf32>,
    %152 = vector.extract_strided_slice %136 {offsets = [5, 0, 0], sizes = [1, 2, 32], strides = [1, 1, 1]} : vector<16x2x32xf32> to vector<1x2x32xf32>
    %153 = vector.shape_cast %152 : vector<1x2x32xf32> to vector<2x32xf32>
    %c10_72 = arith.constant 10 : index
    %c0_73 = arith.constant 0 : index
    %154 = vector.load %arg12[%c10_72, %c0_73] : memref<32x32xf32, #tpu.memory_space<vmem>>, vector<2x32xf32>
    tpu.vector_store %arg12[%c10_72, %c0_73], %153 {strides = array<i32>} : memref<32x32xf32, #tpu.memory_space<vmem>>, vector<2x32xf32>,
    %155 = vector.extract_strided_slice %136 {offsets = [6, 0, 0], sizes = [1, 2, 32], strides = [1, 1, 1]} : vector<16x2x32xf32> to vector<1x2x32xf32>
    %156 = vector.shape_cast %155 : vector<1x2x32xf32> to vector<2x32xf32>
    %c12_74 = arith.constant 12 : index
    %c0_75 = arith.constant 0 : index
    %157 = vector.load %arg12[%c12_74, %c0_75] : memref<32x32xf32, #tpu.memory_space<vmem>>, vector<2x32xf32>
    tpu.vector_store %arg12[%c12_74, %c0_75], %156 {strides = array<i32>} : memref<32x32xf32, #tpu.memory_space<vmem>>, vector<2x32xf32>,
    %158 = vector.extract_strided_slice %136 {offsets = [7, 0, 0], sizes = [1, 2, 32], strides = [1, 1, 1]} : vector<16x2x32xf32> to vector<1x2x32xf32>
    %159 = vector.shape_cast %158 : vector<1x2x32xf32> to vector<2x32xf32>
    %c14_76 = arith.constant 14 : index
    %c0_77 = arith.constant 0 : index
    %160 = vector.load %arg12[%c14_76, %c0_77] : memref<32x32xf32, #tpu.memory_space<vmem>>, vector<2x32xf32>
    tpu.vector_store %arg12[%c14_76, %c0_77], %159 {strides = array<i32>} : memref<32x32xf32, #tpu.memory_space<vmem>>, vector<2x32xf32>,
    %161 = vector.extract_strided_slice %136 {offsets = [8, 0, 0], sizes = [1, 2, 32], strides = [1, 1, 1]} : vector<16x2x32xf32> to vector<1x2x32xf32>
    %162 = vector.shape_cast %161 : vector<1x2x32xf32> to vector<2x32xf32>
    %c16 = arith.constant 16 : index
    %c0_78 = arith.constant 0 : index
    %163 = vector.load %arg12[%c16, %c0_78] : memref<32x32xf32, #tpu.memory_space<vmem>>, vector<2x32xf32>
    tpu.vector_store %arg12[%c16, %c0_78], %162 {strides = array<i32>} : memref<32x32xf32, #tpu.memory_space<vmem>>, vector<2x32xf32>,
    %164 = vector.extract_strided_slice %136 {offsets = [9, 0, 0], sizes = [1, 2, 32], strides = [1, 1, 1]} : vector<16x2x32xf32> to vector<1x2x32xf32>
    %165 = vector.shape_cast %164 : vector<1x2x32xf32> to vector<2x32xf32>
    %c18 = arith.constant 18 : index
    %c0_79 = arith.constant 0 : index
    %166 = vector.load %arg12[%c18, %c0_79] : memref<32x32xf32, #tpu.memory_space<vmem>>, vector<2x32xf32>
    tpu.vector_store %arg12[%c18, %c0_79], %165 {strides = array<i32>} : memref<32x32xf32, #tpu.memory_space<vmem>>, vector<2x32xf32>,
    %167 = vector.extract_strided_slice %136 {offsets = [10, 0, 0], sizes = [1, 2, 32], strides = [1, 1, 1]} : vector<16x2x32xf32> to vector<1x2x32xf32>
    %168 = vector.shape_cast %167 : vector<1x2x32xf32> to vector<2x32xf32>
    %c20 = arith.constant 20 : index
    %c0_80 = arith.constant 0 : index
    %169 = vector.load %arg12[%c20, %c0_80] : memref<32x32xf32, #tpu.memory_space<vmem>>, vector<2x32xf32>
    tpu.vector_store %arg12[%c20, %c0_80], %168 {strides = array<i32>} : memref<32x32xf32, #tpu.memory_space<vmem>>, vector<2x32xf32>,
    %170 = vector.extract_strided_slice %136 {offsets = [11, 0, 0], sizes = [1, 2, 32], strides = [1, 1, 1]} : vector<16x2x32xf32> to vector<1x2x32xf32>
    %171 = vector.shape_cast %170 : vector<1x2x32xf32> to vector<2x32xf32>
    %c22 = arith.constant 22 : index
    %c0_81 = arith.constant 0 : index
    %172 = vector.load %arg12[%c22, %c0_81] : memref<32x32xf32, #tpu.memory_space<vmem>>, vector<2x32xf32>
    tpu.vector_store %arg12[%c22, %c0_81], %171 {strides = array<i32>} : memref<32x32xf32, #tpu.memory_space<vmem>>, vector<2x32xf32>,
    %173 = vector.extract_strided_slice %136 {offsets = [12, 0, 0], sizes = [1, 2, 32], strides = [1, 1, 1]} : vector<16x2x32xf32> to vector<1x2x32xf32>
    %174 = vector.shape_cast %173 : vector<1x2x32xf32> to vector<2x32xf32>
    %c24 = arith.constant 24 : index
    %c0_82 = arith.constant 0 : index
    %175 = vector.load %arg12[%c24, %c0_82] : memref<32x32xf32, #tpu.memory_space<vmem>>, vector<2x32xf32>
    tpu.vector_store %arg12[%c24, %c0_82], %174 {strides = array<i32>} : memref<32x32xf32, #tpu.memory_space<vmem>>, vector<2x32xf32>,
    %176 = vector.extract_strided_slice %136 {offsets = [13, 0, 0], sizes = [1, 2, 32], strides = [1, 1, 1]} : vector<16x2x32xf32> to vector<1x2x32xf32>
    %177 = vector.shape_cast %176 : vector<1x2x32xf32> to vector<2x32xf32>
    %c26 = arith.constant 26 : index
    %c0_83 = arith.constant 0 : index
    %178 = vector.load %arg12[%c26, %c0_83] : memref<32x32xf32, #tpu.memory_space<vmem>>, vector<2x32xf32>
    tpu.vector_store %arg12[%c26, %c0_83], %177 {strides = array<i32>} : memref<32x32xf32, #tpu.memory_space<vmem>>, vector<2x32xf32>,
    %179 = vector.extract_strided_slice %136 {offsets = [14, 0, 0], sizes = [1, 2, 32], strides = [1, 1, 1]} : vector<16x2x32xf32> to vector<1x2x32xf32>
    %180 = vector.shape_cast %179 : vector<1x2x32xf32> to vector<2x32xf32>
    %c28 = arith.constant 28 : index
    %c0_84 = arith.constant 0 : index
    %181 = vector.load %arg12[%c28, %c0_84] : memref<32x32xf32, #tpu.memory_space<vmem>>, vector<2x32xf32>
    tpu.vector_store %arg12[%c28, %c0_84], %180 {strides = array<i32>} : memref<32x32xf32, #tpu.memory_space<vmem>>, vector<2x32xf32>,
    %182 = vector.extract_strided_slice %136 {offsets = [15, 0, 0], sizes = [1, 2, 32], strides = [1, 1, 1]} : vector<16x2x32xf32> to vector<1x2x32xf32>
    %183 = vector.shape_cast %182 : vector<1x2x32xf32> to vector<2x32xf32>
    %c30 = arith.constant 30 : index
    %c0_85 = arith.constant 0 : index
    %184 = vector.load %arg12[%c30, %c0_85] : memref<32x32xf32, #tpu.memory_space<vmem>>, vector<2x32xf32>
    tpu.vector_store %arg12[%c30, %c0_85], %183 {strides = array<i32>} : memref<32x32xf32, #tpu.memory_space<vmem>>, vector<2x32xf32>,
    %c0_86 = arith.constant 0 : index
    %c0_87 = arith.constant 0 : index
    %185 = vector.load %arg12[%c0_86, %c0_87] : memref<32x32xf32, #tpu.memory_space<vmem>>, vector<32x32xf32>
    %c0_88 = arith.constant 0 : index
    %c0_89 = arith.constant 0 : index
    %186 = vector.load %arg6[%c0_88, %c0_89] : memref<32x32xf32, #tpu.memory_space<vmem>>, vector<32x32xf32>
    %cst_90 = arith.constant dense<0.000000e+00> : vector<32x32xf32>
    %187 = tpu.matmul %185, %186, %cst_90 {dimension_numbers = #tpu.dot_dimension_numbers<[1], [0], [0], [1], [0, 0, 1, 1], [], []>} : vector<32x32xf32>, vector<32x32xf32>, vector<32x32xf32> -> vector<32x32xf32>
    %c0_91 = arith.constant 0 : index
    %c0_92 = arith.constant 0 : index
    %188 = vector.load %arg7[%c0_91, %c0_92] : memref<1x32xf32, #tpu.memory_space<vmem>>, vector<1x32xf32>
    %189 = vector.broadcast %188 : vector<1x32xf32> to vector<32x32xf32>
    %190 = arith.addf %187, %189 : vector<32x32xf32>
    %c0_93 = arith.constant 0 : index
    %c0_94 = arith.constant 0 : index
    %191 = vector.load %arg8[%c0_93, %c0_94] : memref<32x64xf32, #tpu.memory_space<vmem>>, vector<32x64xf32>
    %cst_95 = arith.constant dense<0.000000e+00> : vector<32x64xf32>
    %192 = tpu.matmul %190, %191, %cst_95 {dimension_numbers = #tpu.dot_dimension_numbers<[1], [0], [0], [1], [0, 0, 1, 1], [], []>} : vector<32x32xf32>, vector<32x64xf32>, vector<32x64xf32> -> vector<32x64xf32>
    %c0_96 = arith.constant 0 : index
    %c0_97 = arith.constant 0 : index
    %193 = vector.load %arg9[%c0_96, %c0_97] : memref<1x64xf32, #tpu.memory_space<vmem>>, vector<1x64xf32>
    %194 = vector.broadcast %193 : vector<1x64xf32> to vector<32x64xf32>
    %195 = arith.addf %192, %194 : vector<32x64xf32>
    %c0_98 = arith.constant 0 : index
    %c0_99 = arith.constant 0 : index
    %196 = vector.load %arg10[%c0_98, %c0_99] : memref<32x64xf32, #tpu.memory_space<vmem>>, vector<32x64xf32>
    tpu.vector_store %arg10[%c0_98, %c0_99], %195 {strides = array<i32>} : memref<32x64xf32, #tpu.memory_space<vmem>>, vector<32x64xf32>,
    return
  }
  func.func @transform_0(%arg0: i32) -> (i32, i32) {
    %c0_i32 = arith.constant 0 : i32
    %c0_i32_0 = arith.constant 0 : i32
    return %arg0, %c0_i32 : i32, i32
  }
  func.func @transform_1(%arg0: i32) -> (i32, i32) {
    %c0_i32 = arith.constant 0 : i32
    %c0_i32_0 = arith.constant 0 : i32
    %c0_i32_1 = arith.constant 0 : i32
    return %c0_i32, %c0_i32_0 : i32, i32
  }
  func.func @transform_2(%arg0: i32) -> (i32, i32) {
    %c0_i32 = arith.constant 0 : i32
    %c0_i32_0 = arith.constant 0 : i32
    %c0_i32_1 = arith.constant 0 : i32
    return %c0_i32, %c0_i32_0 : i32, i32
  }
  func.func @transform_3(%arg0: i32) -> (i32, i32) {
    %c0_i32 = arith.constant 0 : i32
    %c0_i32_0 = arith.constant 0 : i32
    %c0_i32_1 = arith.constant 0 : i32
    return %c0_i32, %c0_i32_0 : i32, i32
  }
  func.func @transform_4(%arg0: i32) -> (i32, i32) {
    %c0_i32 = arith.constant 0 : i32
    %c0_i32_0 = arith.constant 0 : i32
    %c0_i32_1 = arith.constant 0 : i32
    return %c0_i32, %c0_i32_0 : i32, i32
  }
  func.func @transform_5(%arg0: i32) -> (i32, i32) {
    %c0_i32 = arith.constant 0 : i32
    %c0_i32_0 = arith.constant 0 : i32
    %c0_i32_1 = arith.constant 0 : i32
    return %c0_i32, %c0_i32_0 : i32, i32
  }
  func.func @transform_6(%arg0: i32) -> (i32, i32) {
    %c0_i32 = arith.constant 0 : i32
    %c0_i32_0 = arith.constant 0 : i32
    %c0_i32_1 = arith.constant 0 : i32
    return %c0_i32, %c0_i32_0 : i32, i32
  }
  func.func @transform_7(%arg0: i32) -> (i32, i32) {
    %c0_i32 = arith.constant 0 : i32
    %c0_i32_0 = arith.constant 0 : i32
    %c0_i32_1 = arith.constant 0 : i32
    return %c0_i32, %c0_i32_0 : i32, i32
  }
  func.func @transform_8(%arg0: i32) -> (i32, i32) {
    %c0_i32 = arith.constant 0 : i32
    %c0_i32_0 = arith.constant 0 : i32
    %c0_i32_1 = arith.constant 0 : i32
    return %c0_i32, %c0_i32_0 : i32, i32
  }
  func.func @transform_9(%arg0: i32) -> (i32, i32) {
    %c0_i32 = arith.constant 0 : i32
    %c0_i32_0 = arith.constant 0 : i32
    return %arg0, %c0_i32 : i32, i32
  }
}

</mosaic_0001>

<llo_original>
// kernel: tpu_custom_call.1
$region0: #{tpu_custom_call.1}
  #allocation0 [shape = 'u32[]', space=smem, size = 0x4, offset = 0x4, fixed_abs, tag = 'smem constant byte address 0x4 - core index']
  #allocation1 [shape = 'u32[144,128]{1,0:T(1,128)}', space=vmem, size = 0x12000, scoped, tag = 'internal scratch']
  #allocation2 [shape = 'f32[16,2,96]{2,1,0:T(2,128)}', space=vmem, size = 0x4000, scoped, tag = 'scratch operand']
  #allocation3 [shape = 'f32[32,32]{1,0:T(8,128)}', space=vmem, size = 0x4000, scoped, tag = 'scratch operand']
  %s0 = inlined_call_operand.hbm [shape: f32[32,64], index: 0, kind: input, shape index: {}]
  %s1 = inlined_call_operand.hbm [shape: f32[64,32], index: 1, kind: input, shape index: {}]
  %s2 = inlined_call_operand.hbm [shape: f32[1,32], index: 2, kind: input, shape index: {}]
  %s3 = inlined_call_operand.hbm [shape: f32[32,96], index: 3, kind: input, shape index: {}]
  %s4 = inlined_call_operand.hbm [shape: f32[1,96], index: 4, kind: input, shape index: {}]
  %s5 = inlined_call_operand.hbm [shape: f32[32,32], index: 5, kind: input, shape index: {}]
  %s6 = inlined_call_operand.hbm [shape: f32[1,32], index: 6, kind: input, shape index: {}]
  %s7 = inlined_call_operand.hbm [shape: f32[32,64], index: 7, kind: input, shape index: {}]
  %s8 = inlined_call_operand.hbm [shape: f32[1,64], index: 8, kind: input, shape index: {}]
  %s9 = inlined_call_operand.hbm [shape: f32[32,64], index: 9, kind: output, shape index: {}]
  %s10 = sld [smem:[#allocation0]]
  $region82: #{tpu_custom_call.1} parent=0
    _
  %s12 = ssub.s32 1, %s10
  %s13 = scalar_select 0, %s12, %s10
  $region1: #{tpu_custom_call.1} parent=0
    #allocation4 [shape = 'u8[16384]{0}', space=vmem, size = 0x4000, scoped, tag = 'input window, operand 0, single buffered']
    #allocation5 [shape = 's32[1]{0}', space=sflag, size = 0x4, scoped, tag = 'scoped memory for tpu_custom_call.1']
    #allocation6 [shape = 's32[1]{0}', space=sflag, size = 0x4, scoped, tag = 'scoped memory for tpu_custom_call.1']
    #allocation7 [shape = 'u8[32768]{0}', space=vmem, size = 0x8000, scoped, tag = 'input window, operand 1, single buffered']
    #allocation8 [shape = 's32[1]{0}', space=sflag, size = 0x4, scoped, tag = 'scoped memory for tpu_custom_call.1']
    #allocation9 [shape = 'u8[512]{0}', space=vmem, size = 0x400, scoped, tag = 'input window, operand 2, single buffered']
    #allocation10 [shape = 'u8[16384]{0}', space=vmem, size = 0x4000, scoped, tag = 'input window, operand 3, single buffered']
    #allocation11 [shape = 's32[1]{0}', space=sflag, size = 0x4, scoped, tag = 'scoped memory for tpu_custom_call.1']
    #allocation12 [shape = 'u8[512]{0}', space=vmem, size = 0x400, scoped, tag = 'input window, operand 4, single buffered']
    #allocation13 [shape = 'u8[16384]{0}', space=vmem, size = 0x4000, scoped, tag = 'input window, operand 5, single buffered']
    #allocation14 [shape = 's32[1]{0}', space=sflag, size = 0x4, scoped, tag = 'scoped memory for tpu_custom_call.1']
    #allocation15 [shape = 'u8[512]{0}', space=vmem, size = 0x400, scoped, tag = 'input window, operand 6, single buffered']
    #allocation16 [shape = 'u8[16384]{0}', space=vmem, size = 0x4000, scoped, tag = 'input window, operand 7, single buffered']
    #allocation17 [shape = 's32[1]{0}', space=sflag, size = 0x4, scoped, tag = 'scoped memory for tpu_custom_call.1']
    #allocation18 [shape = 'u8[512]{0}', space=vmem, size = 0x400, scoped, tag = 'input window, operand 8, single buffered']
    #allocation19 [shape = 'u8[16384]{0}', space=vmem, size = 0x4000, scoped, tag = 'output window, operand 0, single buffered']
    %14 = vsyncpa [#allocation5], 0
    %15 = vsyncpa [#allocation8], 0
    %16 = vsyncpa [#allocation11], 0
    %17 = vsyncpa [#allocation14], 0
    %18 = vsyncpa [#allocation17], 0
    %19 = vsyncpa [#allocation6], 0
    // Predicated region
    $region2: #{tpu_custom_call.1} parent=1 // pred_check
      _
    $region3: #{tpu_custom_call.1} parent=1 // pred_check_branch
      %21 = sbr.rel (0) target = $region5
    $region4: #{tpu_custom_call.1} parent=1 // pred_region
      %s23 = ssub.s32 512, 512
      %24 = vsyncadd [#allocation5], %s23
      %s25 = sshll.u32 [#allocation4], 4
      %s26 = int_to_ptr.vmem [resolvable:$true] %s25
      %31 = dma.hbm_to_vmem [thread:$0]  %s0, 512, %s26, [#allocation5], 128, 128, 8
    $region5: #{tpu_custom_call.1} parent=1 // pred_fallthru
      _
    // Predicated region
    $region6: #{tpu_custom_call.1} parent=1 // pred_check
      _
    $region7: #{tpu_custom_call.1} parent=1 // pred_check_branch
      %33 = sbr.rel (0) target = $region9
    $region8: #{tpu_custom_call.1} parent=1 // pred_region
      %s35 = ssub.s32 1024, 1024
      %36 = vsyncadd [#allocation8], %s35
      %s37 = sshll.u32 [#allocation7], 4
      %s38 = int_to_ptr.vmem [resolvable:$true] %s37
      %43 = dma.hbm_to_vmem [thread:$0]  %s1, 1024, %s38, [#allocation8], 128, 128, 8
    $region9: #{tpu_custom_call.1} parent=1 // pred_fallthru
      _
    // Predicated region
    $region10: #{tpu_custom_call.1} parent=1 // pred_check
      _
    $region11: #{tpu_custom_call.1} parent=1 // pred_check_branch
      %45 = sbr.rel (0) target = $region13
    $region12: #{tpu_custom_call.1} parent=1 // pred_region
      %s47 = ssub.s32 16, 16
      %48 = vsyncadd [#allocation8], %s47
      %s50 = sshll.u32 [#allocation9], 4
      %s51 = int_to_ptr.vmem [resolvable:$true] %s50
      %53 = dma.hbm_to_vmem [thread:$0]  %s2, 16, %s51, [#allocation8]
    $region13: #{tpu_custom_call.1} parent=1 // pred_fallthru
      _
    // Predicated region
    $region14: #{tpu_custom_call.1} parent=1 // pred_check
      _
    $region15: #{tpu_custom_call.1} parent=1 // pred_check_branch
      %55 = sbr.rel (0) target = $region17
    $region16: #{tpu_custom_call.1} parent=1 // pred_region
      %s57 = ssub.s32 512, 512
      %58 = vsyncadd [#allocation11], %s57
      %s59 = sshll.u32 [#allocation10], 4
      %s60 = int_to_ptr.vmem [resolvable:$true] %s59
      %65 = dma.hbm_to_vmem [thread:$0]  %s3, 512, %s60, [#allocation11], 128, 128, 8
    $region17: #{tpu_custom_call.1} parent=1 // pred_fallthru
      _
    // Predicated region
    $region18: #{tpu_custom_call.1} parent=1 // pred_check
      _
    $region19: #{tpu_custom_call.1} parent=1 // pred_check_branch
      %67 = sbr.rel (0) target = $region21
    $region20: #{tpu_custom_call.1} parent=1 // pred_region
      %s69 = ssub.s32 16, 16
      %70 = vsyncadd [#allocation11], %s69
      %s72 = sshll.u32 [#allocation12], 4
      %s73 = int_to_ptr.vmem [resolvable:$true] %s72
      %75 = dma.hbm_to_vmem [thread:$0]  %s4, 16, %s73, [#allocation11]
    $region21: #{tpu_custom_call.1} parent=1 // pred_fallthru
      _
    // Predicated region
    $region22: #{tpu_custom_call.1} parent=1 // pred_check
      _
    $region23: #{tpu_custom_call.1} parent=1 // pred_check_branch
      %77 = sbr.rel (0) target = $region25
    $region24: #{tpu_custom_call.1} parent=1 // pred_region
      %s79 = ssub.s32 512, 512
      %80 = vsyncadd [#allocation14], %s79
      %s81 = sshll.u32 [#allocation13], 4
      %s82 = int_to_ptr.vmem [resolvable:$true] %s81
      %87 = dma.hbm_to_vmem [thread:$0]  %s5, 512, %s82, [#allocation14], 128, 128, 8
    $region25: #{tpu_custom_call.1} parent=1 // pred_fallthru
      _
    // Predicated region
    $region26: #{tpu_custom_call.1} parent=1 // pred_check
      _
    $region27: #{tpu_custom_call.1} parent=1 // pred_check_branch
      %89 = sbr.rel (0) target = $region29
    $region28: #{tpu_custom_call.1} parent=1 // pred_region
      %s91 = ssub.s32 16, 16
      %92 = vsyncadd [#allocation14], %s91
      %s94 = sshll.u32 [#allocation15], 4
      %s95 = int_to_ptr.vmem [resolvable:$true] %s94
      %97 = dma.hbm_to_vmem [thread:$0]  %s6, 16, %s95, [#allocation14]
    $region29: #{tpu_custom_call.1} parent=1 // pred_fallthru
      _
    // Predicated region
    $region30: #{tpu_custom_call.1} parent=1 // pred_check
      _
    $region31: #{tpu_custom_call.1} parent=1 // pred_check_branch
      %99 = sbr.rel (0) target = $region33
    $region32: #{tpu_custom_call.1} parent=1 // pred_region
      %s101 = ssub.s32 512, 512
      %102 = vsyncadd [#allocation17], %s101
      %s103 = sshll.u32 [#allocation16], 4
      %s104 = int_to_ptr.vmem [resolvable:$true] %s103
      %109 = dma.hbm_to_vmem [thread:$0]  %s7, 512, %s104, [#allocation17], 128, 128, 8
    $region33: #{tpu_custom_call.1} parent=1 // pred_fallthru
      _
    // Predicated region
    $region34: #{tpu_custom_call.1} parent=1 // pred_check
      _
    $region35: #{tpu_custom_call.1} parent=1 // pred_check_branch
      %111 = sbr.rel (0) target = $region37
    $region36: #{tpu_custom_call.1} parent=1 // pred_region
      %s113 = ssub.s32 16, 16
      %114 = vsyncadd [#allocation17], %s113
      %s116 = sshll.u32 [#allocation18], 4
      %s117 = int_to_ptr.vmem [resolvable:$true] %s116
      %119 = dma.hbm_to_vmem [thread:$0]  %s8, 16, %s117, [#allocation17]
    $region37: #{tpu_custom_call.1} parent=1 // pred_fallthru
      _
    // Predicated region
    $region38: #{tpu_custom_call.1} parent=1 // pred_check
      _
    $region39: #{tpu_custom_call.1} parent=1 // pred_check_branch
      %121 = sbr.rel (0) target = $region41
    $region40: #{tpu_custom_call.1} parent=1 // pred_region
      %122 = dma.done [#allocation5], 512
    $region41: #{tpu_custom_call.1} parent=1 // pred_fallthru
      _
    // Predicated region
    $region42: #{tpu_custom_call.1} parent=1 // pred_check
      _
    $region43: #{tpu_custom_call.1} parent=1 // pred_check_branch
      %124 = sbr.rel (0) target = $region45
    $region44: #{tpu_custom_call.1} parent=1 // pred_region
      %125 = dma.done [#allocation8], 1024
    $region45: #{tpu_custom_call.1} parent=1 // pred_fallthru
      _
    // Predicated region
    $region46: #{tpu_custom_call.1} parent=1 // pred_check
      _
    $region47: #{tpu_custom_call.1} parent=1 // pred_check_branch
      %127 = sbr.rel (0) target = $region49
    $region48: #{tpu_custom_call.1} parent=1 // pred_region
      %128 = dma.done [#allocation8], 16
    $region49: #{tpu_custom_call.1} parent=1 // pred_fallthru
      _
    // Predicated region
    $region50: #{tpu_custom_call.1} parent=1 // pred_check
      _
    $region51: #{tpu_custom_call.1} parent=1 // pred_check_branch
      %130 = sbr.rel (0) target = $region53
    $region52: #{tpu_custom_call.1} parent=1 // pred_region
      %131 = dma.done [#allocation11], 512
    $region53: #{tpu_custom_call.1} parent=1 // pred_fallthru
      _
    // Predicated region
    $region54: #{tpu_custom_call.1} parent=1 // pred_check
      _
    $region55: #{tpu_custom_call.1} parent=1 // pred_check_branch
      %133 = sbr.rel (0) target = $region57
    $region56: #{tpu_custom_call.1} parent=1 // pred_region
      %134 = dma.done [#allocation11], 16
    $region57: #{tpu_custom_call.1} parent=1 // pred_fallthru
      _
    // Predicated region
    $region58: #{tpu_custom_call.1} parent=1 // pred_check
      _
    $region59: #{tpu_custom_call.1} parent=1 // pred_check_branch
      %136 = sbr.rel (0) target = $region61
    $region60: #{tpu_custom_call.1} parent=1 // pred_region
      %137 = dma.done [#allocation14], 512
    $region61: #{tpu_custom_call.1} parent=1 // pred_fallthru
      _
    // Predicated region
    $region62: #{tpu_custom_call.1} parent=1 // pred_check
      _
    $region63: #{tpu_custom_call.1} parent=1 // pred_check_branch
      %139 = sbr.rel (0) target = $region65
    $region64: #{tpu_custom_call.1} parent=1 // pred_region
      %140 = dma.done [#allocation14], 16
    $region65: #{tpu_custom_call.1} parent=1 // pred_fallthru
      _
    // Predicated region
    $region66: #{tpu_custom_call.1} parent=1 // pred_check
      _
    $region67: #{tpu_custom_call.1} parent=1 // pred_check_branch
      %142 = sbr.rel (0) target = $region69
    $region68: #{tpu_custom_call.1} parent=1 // pred_region
      %143 = dma.done [#allocation17], 512
    $region69: #{tpu_custom_call.1} parent=1 // pred_fallthru
      _
    // Predicated region
    $region70: #{tpu_custom_call.1} parent=1 // pred_check
      _
    $region71: #{tpu_custom_call.1} parent=1 // pred_check_branch
      %145 = sbr.rel (0) target = $region73
    $region72: #{tpu_custom_call.1} parent=1 // pred_region
      %146 = dma.done [#allocation17], 16
    $region73: #{tpu_custom_call.1} parent=1 // pred_fallthru
      _
    %v147 = vld [vmem:[#allocation4] sm:$0xff]
    %v148 = vld [vmem:[#allocation4 + $0x8] sm:$0xff]
    %v149 = vld [vmem:[#allocation4 + $0x10] sm:$0xff]
    %v150 = vld [vmem:[#allocation4 + $0x18] sm:$0xff]
    %v151 = vld [vmem:[#allocation7] sm:$0xff]
    %v152 = vld [vmem:[#allocation7 + $0x8] sm:$0xff]
    %v153 = vld [vmem:[#allocation7 + $0x10] sm:$0xff]
    %v154 = vld [vmem:[#allocation7 + $0x18] sm:$0xff]
    %v155 = vld [vmem:[#allocation7 + $0x20] sm:$0xff]
    %v156 = vld [vmem:[#allocation7 + $0x28] sm:$0xff]
    %v157 = vld [vmem:[#allocation7 + $0x30] sm:$0xff]
    %v158 = vld [vmem:[#allocation7 + $0x38] sm:$0xff]
    %v159 = vld [vmem:[#allocation9] sm:$0x1]
    %v161 = vlaneseq
    %v162 = vshrl.u32 %v161, 7
    %v163 = vsub.s32 0, %v162
    %v164 = vrot.slane %v159, %v163
    %vm166 = vcmask 523264
    %v168 = vsel %vm166, %v147, 0
    %v171 = vsel %vm166, %v148, 0
    %v174 = vsel %vm166, %v149, 0
    %v177 = vsel %vm166, %v150, 0
    %179 = vmatprep.subr.mxu0 0.0
    %180 = vmatpush1.msra.mxu0 %v151
    %181 = vmatprep.subr.mxu0 0.0
    %182 = vmatpush1.msra.mxu0 %v152
    %183 = vmatprep.subr.mxu0 0.0
    %184 = vmatpush1.msra.mxu0 %v153
    %185 = vmatprep.subr.mxu0 0.0
    %186 = vmatpush1.msra.mxu0 %v154
    %187 = vmatprep.subr.mxu0 0.0
    %188 = vmatpush1.msra.mxu0 %v155
    %189 = vmatprep.subr.mxu0 0.0
    %190 = vmatpush1.msra.mxu0 %v156
    %191 = vmatprep.subr.mxu0 0.0
    %192 = vmatpush1.msra.mxu0 %v157
    %193 = vmatprep.subr.mxu0 0.0
    %194 = vmatpush1.msra.mxu0 %v158
    %195 = vmatprep.subr.mxu0 0.0
    %196 = vmatpush1.msra.mxu0 0.0
    %197 = vmatprep.subr.mxu0 0.0
    %198 = vmatpush1.msra.mxu0 0.0
    %199 = vmatprep.subr.mxu0 0.0
    %200 = vmatpush1.msra.mxu0 0.0
    %201 = vmatprep.subr.mxu0 0.0
    %202 = vmatpush1.msra.mxu0 0.0
    %203 = vmatprep.subr.mxu0 0.0
    %204 = vmatpush1.msra.mxu0 0.0
    %205 = vmatprep.subr.mxu0 0.0
    %206 = vmatpush1.msra.mxu0 0.0
    %207 = vmatprep.subr.mxu0 0.0
    %208 = vmatpush1.msra.mxu0 0.0
    %209 = vmatprep.subr.mxu0 0.0
    %210 = vmatpush1.msra.mxu0 0.0
    %211 = vmatprep.subr.mxu0 0.0
    %212 = vmatpush1.msra.mxu0 0.0
    %213 = vmatprep.subr.mxu0 0.0
    %214 = vmatpush1.msra.mxu0 0.0
    %215 = vmatprep.subr.mxu0 0.0
    %216 = vmatpush1.msra.mxu0 0.0
    %217 = vmatprep.subr.mxu0 0.0
    %218 = vmatpush1.msra.mxu0 0.0
    %219 = vmatprep.subr.mxu0 0.0
    %220 = vmatpush1.msra.mxu0 0.0
    %221 = vmatprep.subr.mxu0 0.0
    %222 = vmatpush1.msra.mxu0 0.0
    %223 = vmatprep.subr.mxu0 0.0
    %224 = vmatpush1.msra.mxu0 0.0
    %225 = vmatprep.subr.mxu0 0.0
    %226 = vmatpush1.msra.mxu0 0.0
    %227 = vmatprep.subr.mxu0 0.0
    %228 = vmatpush1.msra.mxu0 0.0
    %229 = vmatprep.subr.mxu0 0.0
    %230 = vmatpush1.msra.mxu0 0.0
    %231 = vmatprep.subr.mxu0 0.0
    %232 = vmatpush1.msra.mxu0 0.0
    %233 = vmatprep.subr.mxu0 0.0
    %234 = vmatpush1.msra.mxu0 0.0
    %235 = vmatprep.subr.mxu0 0.0
    %236 = vmatpush1.msra.mxu0 0.0
    %237 = vmatprep.subr.mxu0 0.0
    %238 = vmatpush1.msra.mxu0 0.0
    %239 = vmatprep.subr.mxu0 0.0
    %240 = vmatpush1.msra.mxu0 0.0
    %241 = vmatprep.subr.mxu0 0.0
    %242 = vmatpush1.msra.mxu0 0.0
    %243 = vmatprep.mubr.f32.mxu0 0.0
    %244 = vmatmul.mubr.f32.gmra.mrb[0].mxu0 %v168
    %v245 = vpop.f32.mrb[0].mxu0
    %v246 = vadd.f32 %v164, %v245
    %v247 = vpop.f32.mrb[0].mxu0
    %248 = vmatprep.mubr.f32.mxu0 0.0
    %249 = vmatmul.mubr.f32.gmra.mrb[0].mxu0 %v171
    %v250 = vpop.f32.mrb[0].mxu0
    %v251 = vadd.f32 %v164, %v250
    %v252 = vpop.f32.mrb[0].mxu0
    %253 = vmatprep.mubr.f32.mxu0 0.0
    %254 = vmatmul.mubr.f32.gmra.mrb[0].mxu0 %v174
    %v255 = vpop.f32.mrb[0].mxu0
    %v256 = vadd.f32 %v164, %v255
    %v257 = vpop.f32.mrb[0].mxu0
    %258 = vmatprep.mubr.f32.mxu0 0.0
    %259 = vmatmul.mubr.f32.gmra.mrb[0].mxu0 %v177
    %v260 = vpop.f32.mrb[0].mxu0
    %v261 = vadd.f32 %v164, %v260
    %v262 = vpop.f32.mrb[0].mxu0
    %263 = vdwg.mxu0
    %v264 = vld [vmem:[#allocation10] sm:$0xff]
    %v265 = vld [vmem:[#allocation10 + $0x8] sm:$0xff]
    %v266 = vld [vmem:[#allocation10 + $0x10] sm:$0xff]
    %v267 = vld [vmem:[#allocation10 + $0x18] sm:$0xff]
    %v268 = vld [vmem:[#allocation12] sm:$0x1]
    %v270 = vlaneseq
    %v271 = vshrl.u32 %v270, 7
    %v272 = vsub.s32 0, %v271
    %v273 = vrot.slane %v268, %v272
    %vm275 = vcmask 261120
    %v277 = vsel %vm275, %v246, 0
    %v280 = vsel %vm275, %v251, 0
    %v283 = vsel %vm275, %v256, 0
    %v286 = vsel %vm275, %v261, 0
    %288 = vmatprep.subr.mxu0 0.0
    %289 = vmatpush1.msra.mxu0 %v264
    %290 = vmatprep.subr.mxu0 0.0
    %291 = vmatpush1.msra.mxu0 %v265
    %292 = vmatprep.subr.mxu0 0.0
    %293 = vmatpush1.msra.mxu0 %v266
    %294 = vmatprep.subr.mxu0 0.0
    %295 = vmatpush1.msra.mxu0 %v267
    %296 = vmatprep.subr.mxu0 0.0
    %297 = vmatpush1.msra.mxu0 0.0
    %298 = vmatprep.subr.mxu0 0.0
    %299 = vmatpush1.msra.mxu0 0.0
    %300 = vmatprep.subr.mxu0 0.0
    %301 = vmatpush1.msra.mxu0 0.0
    %302 = vmatprep.subr.mxu0 0.0
    %303 = vmatpush1.msra.mxu0 0.0
    %304 = vmatprep.subr.mxu0 0.0
    %305 = vmatpush1.msra.mxu0 0.0
    %306 = vmatprep.subr.mxu0 0.0
    %307 = vmatpush1.msra.mxu0 0.0
    %308 = vmatprep.subr.mxu0 0.0
    %309 = vmatpush1.msra.mxu0 0.0
    %310 = vmatprep.subr.mxu0 0.0
    %311 = vmatpush1.msra.mxu0 0.0
    %312 = vmatprep.subr.mxu0 0.0
    %313 = vmatpush1.msra.mxu0 0.0
    %314 = vmatprep.subr.mxu0 0.0
    %315 = vmatpush1.msra.mxu0 0.0
    %316 = vmatprep.subr.mxu0 0.0
    %317 = vmatpush1.msra.mxu0 0.0
    %318 = vmatprep.subr.mxu0 0.0
    %319 = vmatpush1.msra.mxu0 0.0
    %320 = vmatprep.subr.mxu0 0.0
    %321 = vmatpush1.msra.mxu0 0.0
    %322 = vmatprep.subr.mxu0 0.0
    %323 = vmatpush1.msra.mxu0 0.0
    %324 = vmatprep.subr.mxu0 0.0
    %325 = vmatpush1.msra.mxu0 0.0
    %326 = vmatprep.subr.mxu0 0.0
    %327 = vmatpush1.msra.mxu0 0.0
    %328 = vmatprep.subr.mxu0 0.0
    %329 = vmatpush1.msra.mxu0 0.0
    %330 = vmatprep.subr.mxu0 0.0
    %331 = vmatpush1.msra.mxu0 0.0
    %332 = vmatprep.subr.mxu0 0.0
    %333 = vmatpush1.msra.mxu0 0.0
    %334 = vmatprep.subr.mxu0 0.0
    %335 = vmatpush1.msra.mxu0 0.0
    %336 = vmatprep.subr.mxu0 0.0
    %337 = vmatpush1.msra.mxu0 0.0
    %338 = vmatprep.subr.mxu0 0.0
    %339 = vmatpush1.msra.mxu0 0.0
    %340 = vmatprep.subr.mxu0 0.0
    %341 = vmatpush1.msra.mxu0 0.0
    %342 = vmatprep.subr.mxu0 0.0
    %343 = vmatpush1.msra.mxu0 0.0
    %344 = vmatprep.subr.mxu0 0.0
    %345 = vmatpush1.msra.mxu0 0.0
    %346 = vmatprep.subr.mxu0 0.0
    %347 = vmatpush1.msra.mxu0 0.0
    %348 = vmatprep.subr.mxu0 0.0
    %349 = vmatpush1.msra.mxu0 0.0
    %350 = vmatprep.subr.mxu0 0.0
    %351 = vmatpush1.msra.mxu0 0.0
    %352 = vmatprep.mubr.f32.mxu0 0.0
    %353 = vmatmul.mubr.f32.gmra.mrb[0].mxu0 %v277
    %v354 = vpop.f32.mrb[0].mxu0
    %v355 = vadd.f32 %v273, %v354
    %v356 = vpop.f32.mrb[0].mxu0
    %357 = vmatprep.mubr.f32.mxu0 0.0
    %358 = vmatmul.mubr.f32.gmra.mrb[0].mxu0 %v280
    %v359 = vpop.f32.mrb[0].mxu0
    %v360 = vadd.f32 %v273, %v359
    %v361 = vpop.f32.mrb[0].mxu0
    %362 = vmatprep.mubr.f32.mxu0 0.0
    %363 = vmatmul.mubr.f32.gmra.mrb[0].mxu0 %v283
    %v364 = vpop.f32.mrb[0].mxu0
    %v365 = vadd.f32 %v273, %v364
    %v366 = vpop.f32.mrb[0].mxu0
    %367 = vmatprep.mubr.f32.mxu0 0.0
    %368 = vmatmul.mubr.f32.gmra.mrb[0].mxu0 %v286
    %v369 = vpop.f32.mrb[0].mxu0
    %v370 = vadd.f32 %v273, %v369
    %v371 = vpop.f32.mrb[0].mxu0
    %372 = vdwg.mxu0
    %vm373 = vcmask 779264
    %374 = vst.msk [vmem:[#allocation2] sm:$0x3] %vm373, %v355
    %s375 = scalar_lea.vmem [#allocation2], 2
    %vm376 = vcmask 781314
    %377 = vst.msk [vmem:[%s375 - $0x2] sm:$0xc] %vm376, %v355
    %s378 = scalar_lea.vmem [#allocation2], 4
    %vm379 = vcmask 783364
    %380 = vst.msk [vmem:[%s378 - $0x4] sm:$0x30] %vm379, %v355
    %s381 = scalar_lea.vmem [#allocation2], 6
    %vm382 = vcmask 785414
    %383 = vst.msk [vmem:[%s381 - $0x6] sm:$0xc0] %vm382, %v355
    %s384 = scalar_lea.vmem [#allocation2], 8
    %385 = vst.msk [vmem:[%s384] sm:$0x3] %vm373, %v360
    %s386 = scalar_lea.vmem [#allocation2], 10
    %387 = vst.msk [vmem:[%s386 - $0x2] sm:$0xc] %vm376, %v360
    %s388 = scalar_lea.vmem [#allocation2], 12
    %389 = vst.msk [vmem:[%s388 - $0x4] sm:$0x30] %vm379, %v360
    %s390 = scalar_lea.vmem [#allocation2], 14
    %391 = vst.msk [vmem:[%s390 - $0x6] sm:$0xc0] %vm382, %v360
    %s392 = scalar_lea.vmem [#allocation2], 16
    %393 = vst.msk [vmem:[%s392] sm:$0x3] %vm373, %v365
    %s394 = scalar_lea.vmem [#allocation2], 18
    %395 = vst.msk [vmem:[%s394 - $0x2] sm:$0xc] %vm376, %v365
    %s396 = scalar_lea.vmem [#allocation2], 20
    %397 = vst.msk [vmem:[%s396 - $0x4] sm:$0x30] %vm379, %v365
    %s398 = scalar_lea.vmem [#allocation2], 22
    %399 = vst.msk [vmem:[%s398 - $0x6] sm:$0xc0] %vm382, %v365
    %s400 = scalar_lea.vmem [#allocation2], 24
    %401 = vst.msk [vmem:[%s400] sm:$0x3] %vm373, %v370
    %s402 = scalar_lea.vmem [#allocation2], 26
    %403 = vst.msk [vmem:[%s402 - $0x2] sm:$0xc] %vm376, %v370
    %s404 = scalar_lea.vmem [#allocation2], 28
    %405 = vst.msk [vmem:[%s404 - $0x4] sm:$0x30] %vm379, %v370
    %s406 = scalar_lea.vmem [#allocation2], 30
    %407 = vst.msk [vmem:[%s406 - $0x6] sm:$0xc0] %vm382, %v370
    %v408 = vld [vmem:[#allocation2] sm:$0x3]
    %v409 = vld [vmem:[#allocation2 + $0x2] sm:$0x3]
    %v410 = vld [vmem:[#allocation2 + $0x4] sm:$0x3]
    %v411 = vld [vmem:[#allocation2 + $0x6] sm:$0x3]
    %v412 = vld [vmem:[#allocation2 + $0x8] sm:$0x3]
    %v413 = vld [vmem:[#allocation2 + $0xa] sm:$0x3]
    %v414 = vld [vmem:[#allocation2 + $0xc] sm:$0x3]
    %v415 = vld [vmem:[#allocation2 + $0xe] sm:$0x3]
    %v416 = vld [vmem:[#allocation2 + $0x10] sm:$0x3]
    %v417 = vld [vmem:[#allocation2 + $0x12] sm:$0x3]
    %v418 = vld [vmem:[#allocation2 + $0x14] sm:$0x3]
    %v419 = vld [vmem:[#allocation2 + $0x16] sm:$0x3]
    %v420 = vld [vmem:[#allocation2 + $0x18] sm:$0x3]
    %v421 = vld [vmem:[#allocation2 + $0x1a] sm:$0x3]
    %v422 = vld [vmem:[#allocation2 + $0x1c] sm:$0x3]
    %v423 = vld [vmem:[#allocation2 + $0x1e] sm:$0x3]
    %425 = vrot.lane.b32.xlu0 %v408, 96
    %v426 = vpop.permute.xlu0 %425
    %vm427 = vcmask 64512
    %v428 = vsel %vm427, %v408, 0
    %v430 = vsel %vm427, %v426, 0
    %432 = vmatprep.subr.mxu0 0.0
    %433 = vmatpush1.xpose.msra.mxu0 %v430
    %434 = vmatprep.subr.mxu0 0.0
    %435 = vmatpush1.xpose.msra.mxu0 0.0
    %436 = vmatprep.subr.mxu0 0.0
    %437 = vmatpush1.xpose.msra.mxu0 0.0
    %438 = vmatprep.subr.mxu0 0.0
    %439 = vmatpush1.xpose.msra.mxu0 0.0
    %440 = vmatprep.subr.mxu0 0.0
    %441 = vmatpush1.xpose.msra.mxu0 0.0
    %442 = vmatprep.subr.mxu0 0.0
    %443 = vmatpush1.xpose.msra.mxu0 0.0
    %444 = vmatprep.subr.mxu0 0.0
    %445 = vmatpush1.xpose.msra.mxu0 0.0
    %446 = vmatprep.subr.mxu0 0.0
    %447 = vmatpush1.xpose.msra.mxu0 0.0
    %448 = vmatprep.subr.mxu0 0.0
    %449 = vmatpush1.xpose.msra.mxu0 0.0
    %450 = vmatprep.subr.mxu0 0.0
    %451 = vmatpush1.xpose.msra.mxu0 0.0
    %452 = vmatprep.subr.mxu0 0.0
    %453 = vmatpush1.xpose.msra.mxu0 0.0
    %454 = vmatprep.subr.mxu0 0.0
    %455 = vmatpush1.xpose.msra.mxu0 0.0
    %456 = vmatprep.subr.mxu0 0.0
    %457 = vmatpush1.xpose.msra.mxu0 0.0
    %458 = vmatprep.subr.mxu0 0.0
    %459 = vmatpush1.xpose.msra.mxu0 0.0
    %460 = vmatprep.subr.mxu0 0.0
    %461 = vmatpush1.xpose.msra.mxu0 0.0
    %462 = vmatprep.subr.mxu0 0.0
    %463 = vmatpush1.xpose.msra.mxu0 0.0
    %464 = vmatprep.subr.mxu0 0.0
    %465 = vmatpush1.xpose.msra.mxu0 0.0
    %466 = vmatprep.subr.mxu0 0.0
    %467 = vmatpush1.xpose.msra.mxu0 0.0
    %468 = vmatprep.subr.mxu0 0.0
    %469 = vmatpush1.xpose.msra.mxu0 0.0
    %470 = vmatprep.subr.mxu0 0.0
    %471 = vmatpush1.xpose.msra.mxu0 0.0
    %472 = vmatprep.subr.mxu0 0.0
    %473 = vmatpush1.xpose.msra.mxu0 0.0
    %474 = vmatprep.subr.mxu0 0.0
    %475 = vmatpush1.xpose.msra.mxu0 0.0
    %476 = vmatprep.subr.mxu0 0.0
    %477 = vmatpush1.xpose.msra.mxu0 0.0
    %478 = vmatprep.subr.mxu0 0.0
    %479 = vmatpush1.xpose.msra.mxu0 0.0
    %480 = vmatprep.subr.mxu0 0.0
    %481 = vmatpush1.xpose.msra.mxu0 0.0
    %482 = vmatprep.subr.mxu0 0.0
    %483 = vmatpush1.xpose.msra.mxu0 0.0
    %484 = vmatprep.subr.mxu0 0.0
    %485 = vmatpush1.xpose.msra.mxu0 0.0
    %486 = vmatprep.subr.mxu0 0.0
    %487 = vmatpush1.xpose.msra.mxu0 0.0
    %488 = vmatprep.subr.mxu0 0.0
    %489 = vmatpush1.xpose.msra.mxu0 0.0
    %490 = vmatprep.subr.mxu0 0.0
    %491 = vmatpush1.xpose.msra.mxu0 0.0
    %492 = vmatprep.subr.mxu0 0.0
    %493 = vmatpush1.xpose.msra.mxu0 0.0
    %494 = vmatprep.subr.mxu0 0.0
    %495 = vmatpush1.xpose.msra.mxu0 0.0
    %496 = vmatprep.mubr.f32.mxu0 0.0
    %497 = vmatmul.mubr.f32.gmra.mrb[0].mxu0 %v428
    %v498 = vpop.f32.mrb[0].mxu0
    %v499 = vadd.f32 0.0, %v498
    %v500 = vpop.f32.mrb[0].mxu0
    %501 = vdwg.mxu0
    %503 = vrot.lane.b32.xlu0 %v409, 96
    %v504 = vpop.permute.xlu0 %503
    %v505 = vsel %vm427, %v409, 0
    %v507 = vsel %vm427, %v504, 0
    %509 = vmatprep.subr.mxu0 0.0
    %510 = vmatpush1.xpose.msra.mxu0 %v507
    %511 = vmatprep.subr.mxu0 0.0
    %512 = vmatpush1.xpose.msra.mxu0 0.0
    %513 = vmatprep.subr.mxu0 0.0
    %514 = vmatpush1.xpose.msra.mxu0 0.0
    %515 = vmatprep.subr.mxu0 0.0
    %516 = vmatpush1.xpose.msra.mxu0 0.0
    %517 = vmatprep.subr.mxu0 0.0
    %518 = vmatpush1.xpose.msra.mxu0 0.0
    %519 = vmatprep.subr.mxu0 0.0
    %520 = vmatpush1.xpose.msra.mxu0 0.0
    %521 = vmatprep.subr.mxu0 0.0
    %522 = vmatpush1.xpose.msra.mxu0 0.0
    %523 = vmatprep.subr.mxu0 0.0
    %524 = vmatpush1.xpose.msra.mxu0 0.0
    %525 = vmatprep.subr.mxu0 0.0
    %526 = vmatpush1.xpose.msra.mxu0 0.0
    %527 = vmatprep.subr.mxu0 0.0
    %528 = vmatpush1.xpose.msra.mxu0 0.0
    %529 = vmatprep.subr.mxu0 0.0
    %530 = vmatpush1.xpose.msra.mxu0 0.0
    %531 = vmatprep.subr.mxu0 0.0
    %532 = vmatpush1.xpose.msra.mxu0 0.0
    %533 = vmatprep.subr.mxu0 0.0
    %534 = vmatpush1.xpose.msra.mxu0 0.0
    %535 = vmatprep.subr.mxu0 0.0
    %536 = vmatpush1.xpose.msra.mxu0 0.0
    %537 = vmatprep.subr.mxu0 0.0
    %538 = vmatpush1.xpose.msra.mxu0 0.0
    %539 = vmatprep.subr.mxu0 0.0
    %540 = vmatpush1.xpose.msra.mxu0 0.0
    %541 = vmatprep.subr.mxu0 0.0
    %542 = vmatpush1.xpose.msra.mxu0 0.0
    %543 = vmatprep.subr.mxu0 0.0
    %544 = vmatpush1.xpose.msra.mxu0 0.0
    %545 = vmatprep.subr.mxu0 0.0
    %546 = vmatpush1.xpose.msra.mxu0 0.0
    %547 = vmatprep.subr.mxu0 0.0
    %548 = vmatpush1.xpose.msra.mxu0 0.0
    %549 = vmatprep.subr.mxu0 0.0
    %550 = vmatpush1.xpose.msra.mxu0 0.0
    %551 = vmatprep.subr.mxu0 0.0
    %552 = vmatpush1.xpose.msra.mxu0 0.0
    %553 = vmatprep.subr.mxu0 0.0
    %554 = vmatpush1.xpose.msra.mxu0 0.0
    %555 = vmatprep.subr.mxu0 0.0
    %556 = vmatpush1.xpose.msra.mxu0 0.0
    %557 = vmatprep.subr.mxu0 0.0
    %558 = vmatpush1.xpose.msra.mxu0 0.0
    %559 = vmatprep.subr.mxu0 0.0
    %560 = vmatpush1.xpose.msra.mxu0 0.0
    %561 = vmatprep.subr.mxu0 0.0
    %562 = vmatpush1.xpose.msra.mxu0 0.0
    %563 = vmatprep.subr.mxu0 0.0
    %564 = vmatpush1.xpose.msra.mxu0 0.0
    %565 = vmatprep.subr.mxu0 0.0
    %566 = vmatpush1.xpose.msra.mxu0 0.0
    %567 = vmatprep.subr.mxu0 0.0
    %568 = vmatpush1.xpose.msra.mxu0 0.0
    %569 = vmatprep.subr.mxu0 0.0
    %570 = vmatpush1.xpose.msra.mxu0 0.0
    %571 = vmatprep.subr.mxu0 0.0
    %572 = vmatpush1.xpose.msra.mxu0 0.0
    %573 = vmatprep.mubr.f32.mxu0 0.0
    %574 = vmatmul.mubr.f32.gmra.mrb[0].mxu0 %v505
    %v575 = vpop.f32.mrb[0].mxu0
    %v576 = vadd.f32 0.0, %v575
    %v577 = vpop.f32.mrb[0].mxu0
    %578 = vdwg.mxu0
    %580 = vrot.lane.b32.xlu0 %v410, 96
    %v581 = vpop.permute.xlu0 %580
    %v582 = vsel %vm427, %v410, 0
    %v584 = vsel %vm427, %v581, 0
    %586 = vmatprep.subr.mxu0 0.0
    %587 = vmatpush1.xpose.msra.mxu0 %v584
    %588 = vmatprep.subr.mxu0 0.0
    %589 = vmatpush1.xpose.msra.mxu0 0.0
    %590 = vmatprep.subr.mxu0 0.0
    %591 = vmatpush1.xpose.msra.mxu0 0.0
    %592 = vmatprep.subr.mxu0 0.0
    %593 = vmatpush1.xpose.msra.mxu0 0.0
    %594 = vmatprep.subr.mxu0 0.0
    %595 = vmatpush1.xpose.msra.mxu0 0.0
    %596 = vmatprep.subr.mxu0 0.0
    %597 = vmatpush1.xpose.msra.mxu0 0.0
    %598 = vmatprep.subr.mxu0 0.0
    %599 = vmatpush1.xpose.msra.mxu0 0.0
    %600 = vmatprep.subr.mxu0 0.0
    %601 = vmatpush1.xpose.msra.mxu0 0.0
    %602 = vmatprep.subr.mxu0 0.0
    %603 = vmatpush1.xpose.msra.mxu0 0.0
    %604 = vmatprep.subr.mxu0 0.0
    %605 = vmatpush1.xpose.msra.mxu0 0.0
    %606 = vmatprep.subr.mxu0 0.0
    %607 = vmatpush1.xpose.msra.mxu0 0.0
    %608 = vmatprep.subr.mxu0 0.0
    %609 = vmatpush1.xpose.msra.mxu0 0.0
    %610 = vmatprep.subr.mxu0 0.0
    %611 = vmatpush1.xpose.msra.mxu0 0.0
    %612 = vmatprep.subr.mxu0 0.0
    %613 = vmatpush1.xpose.msra.mxu0 0.0
    %614 = vmatprep.subr.mxu0 0.0
    %615 = vmatpush1.xpose.msra.mxu0 0.0
    %616 = vmatprep.subr.mxu0 0.0
    %617 = vmatpush1.xpose.msra.mxu0 0.0
    %618 = vmatprep.subr.mxu0 0.0
    %619 = vmatpush1.xpose.msra.mxu0 0.0
    %620 = vmatprep.subr.mxu0 0.0
    %621 = vmatpush1.xpose.msra.mxu0 0.0
    %622 = vmatprep.subr.mxu0 0.0
    %623 = vmatpush1.xpose.msra.mxu0 0.0
    %624 = vmatprep.subr.mxu0 0.0
    %625 = vmatpush1.xpose.msra.mxu0 0.0
    %626 = vmatprep.subr.mxu0 0.0
    %627 = vmatpush1.xpose.msra.mxu0 0.0
    %628 = vmatprep.subr.mxu0 0.0
    %629 = vmatpush1.xpose.msra.mxu0 0.0
    %630 = vmatprep.subr.mxu0 0.0
    %631 = vmatpush1.xpose.msra.mxu0 0.0
    %632 = vmatprep.subr.mxu0 0.0
    %633 = vmatpush1.xpose.msra.mxu0 0.0
    %634 = vmatprep.subr.mxu0 0.0
    %635 = vmatpush1.xpose.msra.mxu0 0.0
    %636 = vmatprep.subr.mxu0 0.0
    %637 = vmatpush1.xpose.msra.mxu0 0.0
    %638 = vmatprep.subr.mxu0 0.0
    %639 = vmatpush1.xpose.msra.mxu0 0.0
    %640 = vmatprep.subr.mxu0 0.0
    %641 = vmatpush1.xpose.msra.mxu0 0.0
    %642 = vmatprep.subr.mxu0 0.0
    %643 = vmatpush1.xpose.msra.mxu0 0.0
    %644 = vmatprep.subr.mxu0 0.0
    %645 = vmatpush1.xpose.msra.mxu0 0.0
    %646 = vmatprep.subr.mxu0 0.0
    %647 = vmatpush1.xpose.msra.mxu0 0.0
    %648 = vmatprep.subr.mxu0 0.0
    %649 = vmatpush1.xpose.msra.mxu0 0.0
    %650 = vmatprep.mubr.f32.mxu0 0.0
    %651 = vmatmul.mubr.f32.gmra.mrb[0].mxu0 %v582
    %v652 = vpop.f32.mrb[0].mxu0
    %v653 = vadd.f32 0.0, %v652
    %v654 = vpop.f32.mrb[0].mxu0
    %655 = vdwg.mxu0
    %657 = vrot.lane.b32.xlu0 %v411, 96
    %v658 = vpop.permute.xlu0 %657
    %v659 = vsel %vm427, %v411, 0
    %v661 = vsel %vm427, %v658, 0
    %663 = vmatprep.subr.mxu0 0.0
    %664 = vmatpush1.xpose.msra.mxu0 %v661
    %665 = vmatprep.subr.mxu0 0.0
    %666 = vmatpush1.xpose.msra.mxu0 0.0
    %667 = vmatprep.subr.mxu0 0.0
    %668 = vmatpush1.xpose.msra.mxu0 0.0
    %669 = vmatprep.subr.mxu0 0.0
    %670 = vmatpush1.xpose.msra.mxu0 0.0
    %671 = vmatprep.subr.mxu0 0.0
    %672 = vmatpush1.xpose.msra.mxu0 0.0
    %673 = vmatprep.subr.mxu0 0.0
    %674 = vmatpush1.xpose.msra.mxu0 0.0
    %675 = vmatprep.subr.mxu0 0.0
    %676 = vmatpush1.xpose.msra.mxu0 0.0
    %677 = vmatprep.subr.mxu0 0.0
    %678 = vmatpush1.xpose.msra.mxu0 0.0
    %679 = vmatprep.subr.mxu0 0.0
    %680 = vmatpush1.xpose.msra.mxu0 0.0
    %681 = vmatprep.subr.mxu0 0.0
    %682 = vmatpush1.xpose.msra.mxu0 0.0
    %683 = vmatprep.subr.mxu0 0.0
    %684 = vmatpush1.xpose.msra.mxu0 0.0
    %685 = vmatprep.subr.mxu0 0.0
    %686 = vmatpush1.xpose.msra.mxu0 0.0
    %687 = vmatprep.subr.mxu0 0.0
    %688 = vmatpush1.xpose.msra.mxu0 0.0
    %689 = vmatprep.subr.mxu0 0.0
    %690 = vmatpush1.xpose.msra.mxu0 0.0
    %691 = vmatprep.subr.mxu0 0.0
    %692 = vmatpush1.xpose.msra.mxu0 0.0
    %693 = vmatprep.subr.mxu0 0.0
    %694 = vmatpush1.xpose.msra.mxu0 0.0
    %695 = vmatprep.subr.mxu0 0.0
    %696 = vmatpush1.xpose.msra.mxu0 0.0
    %697 = vmatprep.subr.mxu0 0.0
    %698 = vmatpush1.xpose.msra.mxu0 0.0
    %699 = vmatprep.subr.mxu0 0.0
    %700 = vmatpush1.xpose.msra.mxu0 0.0
    %701 = vmatprep.subr.mxu0 0.0
    %702 = vmatpush1.xpose.msra.mxu0 0.0
    %703 = vmatprep.subr.mxu0 0.0
    %704 = vmatpush1.xpose.msra.mxu0 0.0
    %705 = vmatprep.subr.mxu0 0.0
    %706 = vmatpush1.xpose.msra.mxu0 0.0
    %707 = vmatprep.subr.mxu0 0.0
    %708 = vmatpush1.xpose.msra.mxu0 0.0
    %709 = vmatprep.subr.mxu0 0.0
    %710 = vmatpush1.xpose.msra.mxu0 0.0
    %711 = vmatprep.subr.mxu0 0.0
    %712 = vmatpush1.xpose.msra.mxu0 0.0
    %713 = vmatprep.subr.mxu0 0.0
    %714 = vmatpush1.xpose.msra.mxu0 0.0
    %715 = vmatprep.subr.mxu0 0.0
    %716 = vmatpush1.xpose.msra.mxu0 0.0
    %717 = vmatprep.subr.mxu0 0.0
    %718 = vmatpush1.xpose.msra.mxu0 0.0
    %719 = vmatprep.subr.mxu0 0.0
    %720 = vmatpush1.xpose.msra.mxu0 0.0
    %721 = vmatprep.subr.mxu0 0.0
    %722 = vmatpush1.xpose.msra.mxu0 0.0
    %723 = vmatprep.subr.mxu0 0.0
    %724 = vmatpush1.xpose.msra.mxu0 0.0
    %725 = vmatprep.subr.mxu0 0.0
    %726 = vmatpush1.xpose.msra.mxu0 0.0
    %727 = vmatprep.mubr.f32.mxu0 0.0
    %728 = vmatmul.mubr.f32.gmra.mrb[0].mxu0 %v659
    %v729 = vpop.f32.mrb[0].mxu0
    %v730 = vadd.f32 0.0, %v729
    %v731 = vpop.f32.mrb[0].mxu0
    %732 = vdwg.mxu0
    %734 = vrot.lane.b32.xlu0 %v412, 96
    %v735 = vpop.permute.xlu0 %734
    %v736 = vsel %vm427, %v412, 0
    %v738 = vsel %vm427, %v735, 0
    %740 = vmatprep.subr.mxu0 0.0
    %741 = vmatpush1.xpose.msra.mxu0 %v738
    %742 = vmatprep.subr.mxu0 0.0
    %743 = vmatpush1.xpose.msra.mxu0 0.0
    %744 = vmatprep.subr.mxu0 0.0
    %745 = vmatpush1.xpose.msra.mxu0 0.0
    %746 = vmatprep.subr.mxu0 0.0
    %747 = vmatpush1.xpose.msra.mxu0 0.0
    %748 = vmatprep.subr.mxu0 0.0
    %749 = vmatpush1.xpose.msra.mxu0 0.0
    %750 = vmatprep.subr.mxu0 0.0
    %751 = vmatpush1.xpose.msra.mxu0 0.0
    %752 = vmatprep.subr.mxu0 0.0
    %753 = vmatpush1.xpose.msra.mxu0 0.0
    %754 = vmatprep.subr.mxu0 0.0
    %755 = vmatpush1.xpose.msra.mxu0 0.0
    %756 = vmatprep.subr.mxu0 0.0
    %757 = vmatpush1.xpose.msra.mxu0 0.0
    %758 = vmatprep.subr.mxu0 0.0
    %759 = vmatpush1.xpose.msra.mxu0 0.0
    %760 = vmatprep.subr.mxu0 0.0
    %761 = vmatpush1.xpose.msra.mxu0 0.0
    %762 = vmatprep.subr.mxu0 0.0
    %763 = vmatpush1.xpose.msra.mxu0 0.0
    %764 = vmatprep.subr.mxu0 0.0
    %765 = vmatpush1.xpose.msra.mxu0 0.0
    %766 = vmatprep.subr.mxu0 0.0
    %767 = vmatpush1.xpose.msra.mxu0 0.0
    %768 = vmatprep.subr.mxu0 0.0
    %769 = vmatpush1.xpose.msra.mxu0 0.0
    %770 = vmatprep.subr.mxu0 0.0
    %771 = vmatpush1.xpose.msra.mxu0 0.0
    %772 = vmatprep.subr.mxu0 0.0
    %773 = vmatpush1.xpose.msra.mxu0 0.0
    %774 = vmatprep.subr.mxu0 0.0
    %775 = vmatpush1.xpose.msra.mxu0 0.0
    %776 = vmatprep.subr.mxu0 0.0
    %777 = vmatpush1.xpose.msra.mxu0 0.0
    %778 = vmatprep.subr.mxu0 0.0
    %779 = vmatpush1.xpose.msra.mxu0 0.0
    %780 = vmatprep.subr.mxu0 0.0
    %781 = vmatpush1.xpose.msra.mxu0 0.0
    %782 = vmatprep.subr.mxu0 0.0
    %783 = vmatpush1.xpose.msra.mxu0 0.0
    %784 = vmatprep.subr.mxu0 0.0
    %785 = vmatpush1.xpose.msra.mxu0 0.0
    %786 = vmatprep.subr.mxu0 0.0
    %787 = vmatpush1.xpose.msra.mxu0 0.0
    %788 = vmatprep.subr.mxu0 0.0
    %789 = vmatpush1.xpose.msra.mxu0 0.0
    %790 = vmatprep.subr.mxu0 0.0
    %791 = vmatpush1.xpose.msra.mxu0 0.0
    %792 = vmatprep.subr.mxu0 0.0
    %793 = vmatpush1.xpose.msra.mxu0 0.0
    %794 = vmatprep.subr.mxu0 0.0
    %795 = vmatpush1.xpose.msra.mxu0 0.0
    %796 = vmatprep.subr.mxu0 0.0
    %797 = vmatpush1.xpose.msra.mxu0 0.0
    %798 = vmatprep.subr.mxu0 0.0
    %799 = vmatpush1.xpose.msra.mxu0 0.0
    %800 = vmatprep.subr.mxu0 0.0
    %801 = vmatpush1.xpose.msra.mxu0 0.0
    %802 = vmatprep.subr.mxu0 0.0
    %803 = vmatpush1.xpose.msra.mxu0 0.0
    %804 = vmatprep.mubr.f32.mxu0 0.0
    %805 = vmatmul.mubr.f32.gmra.mrb[0].mxu0 %v736
    %v806 = vpop.f32.mrb[0].mxu0
    %v807 = vadd.f32 0.0, %v806
    %v808 = vpop.f32.mrb[0].mxu0
    %809 = vdwg.mxu0
    %811 = vrot.lane.b32.xlu0 %v413, 96
    %v812 = vpop.permute.xlu0 %811
    %v813 = vsel %vm427, %v413, 0
    %v815 = vsel %vm427, %v812, 0
    %817 = vmatprep.subr.mxu0 0.0
    %818 = vmatpush1.xpose.msra.mxu0 %v815
    %819 = vmatprep.subr.mxu0 0.0
    %820 = vmatpush1.xpose.msra.mxu0 0.0
    %821 = vmatprep.subr.mxu0 0.0
    %822 = vmatpush1.xpose.msra.mxu0 0.0
    %823 = vmatprep.subr.mxu0 0.0
    %824 = vmatpush1.xpose.msra.mxu0 0.0
    %825 = vmatprep.subr.mxu0 0.0
    %826 = vmatpush1.xpose.msra.mxu0 0.0
    %827 = vmatprep.subr.mxu0 0.0
    %828 = vmatpush1.xpose.msra.mxu0 0.0
    %829 = vmatprep.subr.mxu0 0.0
    %830 = vmatpush1.xpose.msra.mxu0 0.0
    %831 = vmatprep.subr.mxu0 0.0
    %832 = vmatpush1.xpose.msra.mxu0 0.0
    %833 = vmatprep.subr.mxu0 0.0
    %834 = vmatpush1.xpose.msra.mxu0 0.0
    %835 = vmatprep.subr.mxu0 0.0
    %836 = vmatpush1.xpose.msra.mxu0 0.0
    %837 = vmatprep.subr.mxu0 0.0
    %838 = vmatpush1.xpose.msra.mxu0 0.0
    %839 = vmatprep.subr.mxu0 0.0
    %840 = vmatpush1.xpose.msra.mxu0 0.0
    %841 = vmatprep.subr.mxu0 0.0
    %842 = vmatpush1.xpose.msra.mxu0 0.0
    %843 = vmatprep.subr.mxu0 0.0
    %844 = vmatpush1.xpose.msra.mxu0 0.0
    %845 = vmatprep.subr.mxu0 0.0
    %846 = vmatpush1.xpose.msra.mxu0 0.0
    %847 = vmatprep.subr.mxu0 0.0
    %848 = vmatpush1.xpose.msra.mxu0 0.0
    %849 = vmatprep.subr.mxu0 0.0
    %850 = vmatpush1.xpose.msra.mxu0 0.0
    %851 = vmatprep.subr.mxu0 0.0
    %852 = vmatpush1.xpose.msra.mxu0 0.0
    %853 = vmatprep.subr.mxu0 0.0
    %854 = vmatpush1.xpose.msra.mxu0 0.0
    %855 = vmatprep.subr.mxu0 0.0
    %856 = vmatpush1.xpose.msra.mxu0 0.0
    %857 = vmatprep.subr.mxu0 0.0
    %858 = vmatpush1.xpose.msra.mxu0 0.0
    %859 = vmatprep.subr.mxu0 0.0
    %860 = vmatpush1.xpose.msra.mxu0 0.0
    %861 = vmatprep.subr.mxu0 0.0
    %862 = vmatpush1.xpose.msra.mxu0 0.0
    %863 = vmatprep.subr.mxu0 0.0
    %864 = vmatpush1.xpose.msra.mxu0 0.0
    %865 = vmatprep.subr.mxu0 0.0
    %866 = vmatpush1.xpose.msra.mxu0 0.0
    %867 = vmatprep.subr.mxu0 0.0
    %868 = vmatpush1.xpose.msra.mxu0 0.0
    %869 = vmatprep.subr.mxu0 0.0
    %870 = vmatpush1.xpose.msra.mxu0 0.0
    %871 = vmatprep.subr.mxu0 0.0
    %872 = vmatpush1.xpose.msra.mxu0 0.0
    %873 = vmatprep.subr.mxu0 0.0
    %874 = vmatpush1.xpose.msra.mxu0 0.0
    %875 = vmatprep.subr.mxu0 0.0
    %876 = vmatpush1.xpose.msra.mxu0 0.0
    %877 = vmatprep.subr.mxu0 0.0
    %878 = vmatpush1.xpose.msra.mxu0 0.0
    %879 = vmatprep.subr.mxu0 0.0
    %880 = vmatpush1.xpose.msra.mxu0 0.0
    %881 = vmatprep.mubr.f32.mxu0 0.0
    %882 = vmatmul.mubr.f32.gmra.mrb[0].mxu0 %v813
    %v883 = vpop.f32.mrb[0].mxu0
    %v884 = vadd.f32 0.0, %v883
    %v885 = vpop.f32.mrb[0].mxu0
    %886 = vdwg.mxu0
    %888 = vrot.lane.b32.xlu0 %v414, 96
    %v889 = vpop.permute.xlu0 %888
    %v890 = vsel %vm427, %v414, 0
    %v892 = vsel %vm427, %v889, 0
    %894 = vmatprep.subr.mxu0 0.0
    %895 = vmatpush1.xpose.msra.mxu0 %v892
    %896 = vmatprep.subr.mxu0 0.0
    %897 = vmatpush1.xpose.msra.mxu0 0.0
    %898 = vmatprep.subr.mxu0 0.0
    %899 = vmatpush1.xpose.msra.mxu0 0.0
    %900 = vmatprep.subr.mxu0 0.0
    %901 = vmatpush1.xpose.msra.mxu0 0.0
    %902 = vmatprep.subr.mxu0 0.0
    %903 = vmatpush1.xpose.msra.mxu0 0.0
    %904 = vmatprep.subr.mxu0 0.0
    %905 = vmatpush1.xpose.msra.mxu0 0.0
    %906 = vmatprep.subr.mxu0 0.0
    %907 = vmatpush1.xpose.msra.mxu0 0.0
    %908 = vmatprep.subr.mxu0 0.0
    %909 = vmatpush1.xpose.msra.mxu0 0.0
    %910 = vmatprep.subr.mxu0 0.0
    %911 = vmatpush1.xpose.msra.mxu0 0.0
    %912 = vmatprep.subr.mxu0 0.0
    %913 = vmatpush1.xpose.msra.mxu0 0.0
    %914 = vmatprep.subr.mxu0 0.0
    %915 = vmatpush1.xpose.msra.mxu0 0.0
    %916 = vmatprep.subr.mxu0 0.0
    %917 = vmatpush1.xpose.msra.mxu0 0.0
    %918 = vmatprep.subr.mxu0 0.0
    %919 = vmatpush1.xpose.msra.mxu0 0.0
    %920 = vmatprep.subr.mxu0 0.0
    %921 = vmatpush1.xpose.msra.mxu0 0.0
    %922 = vmatprep.subr.mxu0 0.0
    %923 = vmatpush1.xpose.msra.mxu0 0.0
    %924 = vmatprep.subr.mxu0 0.0
    %925 = vmatpush1.xpose.msra.mxu0 0.0
    %926 = vmatprep.subr.mxu0 0.0
    %927 = vmatpush1.xpose.msra.mxu0 0.0
    %928 = vmatprep.subr.mxu0 0.0
    %929 = vmatpush1.xpose.msra.mxu0 0.0
    %930 = vmatprep.subr.mxu0 0.0
    %931 = vmatpush1.xpose.msra.mxu0 0.0
    %932 = vmatprep.subr.mxu0 0.0
    %933 = vmatpush1.xpose.msra.mxu0 0.0
    %934 = vmatprep.subr.mxu0 0.0
    %935 = vmatpush1.xpose.msra.mxu0 0.0
    %936 = vmatprep.subr.mxu0 0.0
    %937 = vmatpush1.xpose.msra.mxu0 0.0
    %938 = vmatprep.subr.mxu0 0.0
    %939 = vmatpush1.xpose.msra.mxu0 0.0
    %940 = vmatprep.subr.mxu0 0.0
    %941 = vmatpush1.xpose.msra.mxu0 0.0
    %942 = vmatprep.subr.mxu0 0.0
    %943 = vmatpush1.xpose.msra.mxu0 0.0
    %944 = vmatprep.subr.mxu0 0.0
    %945 = vmatpush1.xpose.msra.mxu0 0.0
    %946 = vmatprep.subr.mxu0 0.0
    %947 = vmatpush1.xpose.msra.mxu0 0.0
    %948 = vmatprep.subr.mxu0 0.0
    %949 = vmatpush1.xpose.msra.mxu0 0.0
    %950 = vmatprep.subr.mxu0 0.0
    %951 = vmatpush1.xpose.msra.mxu0 0.0
    %952 = vmatprep.subr.mxu0 0.0
    %953 = vmatpush1.xpose.msra.mxu0 0.0
    %954 = vmatprep.subr.mxu0 0.0
    %955 = vmatpush1.xpose.msra.mxu0 0.0
    %956 = vmatprep.subr.mxu0 0.0
    %957 = vmatpush1.xpose.msra.mxu0 0.0
    %958 = vmatprep.mubr.f32.mxu0 0.0
    %959 = vmatmul.mubr.f32.gmra.mrb[0].mxu0 %v890
    %v960 = vpop.f32.mrb[0].mxu0
    %v961 = vadd.f32 0.0, %v960
    %v962 = vpop.f32.mrb[0].mxu0
    %963 = vdwg.mxu0
    %965 = vrot.lane.b32.xlu0 %v415, 96
    %v966 = vpop.permute.xlu0 %965
    %v967 = vsel %vm427, %v415, 0
    %v969 = vsel %vm427, %v966, 0
    %971 = vmatprep.subr.mxu0 0.0
    %972 = vmatpush1.xpose.msra.mxu0 %v969
    %973 = vmatprep.subr.mxu0 0.0
    %974 = vmatpush1.xpose.msra.mxu0 0.0
    %975 = vmatprep.subr.mxu0 0.0
    %976 = vmatpush1.xpose.msra.mxu0 0.0
    %977 = vmatprep.subr.mxu0 0.0
    %978 = vmatpush1.xpose.msra.mxu0 0.0
    %979 = vmatprep.subr.mxu0 0.0
    %980 = vmatpush1.xpose.msra.mxu0 0.0
    %981 = vmatprep.subr.mxu0 0.0
    %982 = vmatpush1.xpose.msra.mxu0 0.0
    %983 = vmatprep.subr.mxu0 0.0
    %984 = vmatpush1.xpose.msra.mxu0 0.0
    %985 = vmatprep.subr.mxu0 0.0
    %986 = vmatpush1.xpose.msra.mxu0 0.0
    %987 = vmatprep.subr.mxu0 0.0
    %988 = vmatpush1.xpose.msra.mxu0 0.0
    %989 = vmatprep.subr.mxu0 0.0
    %990 = vmatpush1.xpose.msra.mxu0 0.0
    %991 = vmatprep.subr.mxu0 0.0
    %992 = vmatpush1.xpose.msra.mxu0 0.0
    %993 = vmatprep.subr.mxu0 0.0
    %994 = vmatpush1.xpose.msra.mxu0 0.0
    %995 = vmatprep.subr.mxu0 0.0
    %996 = vmatpush1.xpose.msra.mxu0 0.0
    %997 = vmatprep.subr.mxu0 0.0
    %998 = vmatpush1.xpose.msra.mxu0 0.0
    %999 = vmatprep.subr.mxu0 0.0
    %1000 = vmatpush1.xpose.msra.mxu0 0.0
    %1001 = vmatprep.subr.mxu0 0.0
    %1002 = vmatpush1.xpose.msra.mxu0 0.0
    %1003 = vmatprep.subr.mxu0 0.0
    %1004 = vmatpush1.xpose.msra.mxu0 0.0
    %1005 = vmatprep.subr.mxu0 0.0
    %1006 = vmatpush1.xpose.msra.mxu0 0.0
    %1007 = vmatprep.subr.mxu0 0.0
    %1008 = vmatpush1.xpose.msra.mxu0 0.0
    %1009 = vmatprep.subr.mxu0 0.0
    %1010 = vmatpush1.xpose.msra.mxu0 0.0
    %1011 = vmatprep.subr.mxu0 0.0
    %1012 = vmatpush1.xpose.msra.mxu0 0.0
    %1013 = vmatprep.subr.mxu0 0.0
    %1014 = vmatpush1.xpose.msra.mxu0 0.0
    %1015 = vmatprep.subr.mxu0 0.0
    %1016 = vmatpush1.xpose.msra.mxu0 0.0
    %1017 = vmatprep.subr.mxu0 0.0
    %1018 = vmatpush1.xpose.msra.mxu0 0.0
    %1019 = vmatprep.subr.mxu0 0.0
    %1020 = vmatpush1.xpose.msra.mxu0 0.0
    %1021 = vmatprep.subr.mxu0 0.0
    %1022 = vmatpush1.xpose.msra.mxu0 0.0
    %1023 = vmatprep.subr.mxu0 0.0
    %1024 = vmatpush1.xpose.msra.mxu0 0.0
    %1025 = vmatprep.subr.mxu0 0.0
    %1026 = vmatpush1.xpose.msra.mxu0 0.0
    %1027 = vmatprep.subr.mxu0 0.0
    %1028 = vmatpush1.xpose.msra.mxu0 0.0
    %1029 = vmatprep.subr.mxu0 0.0
    %1030 = vmatpush1.xpose.msra.mxu0 0.0
    %1031 = vmatprep.subr.mxu0 0.0
    %1032 = vmatpush1.xpose.msra.mxu0 0.0
    %1033 = vmatprep.subr.mxu0 0.0
    %1034 = vmatpush1.xpose.msra.mxu0 0.0
    %1035 = vmatprep.mubr.f32.mxu0 0.0
    %1036 = vmatmul.mubr.f32.gmra.mrb[0].mxu0 %v967
    %v1037 = vpop.f32.mrb[0].mxu0
    %v1038 = vadd.f32 0.0, %v1037
    %v1039 = vpop.f32.mrb[0].mxu0
    %1040 = vdwg.mxu0
    %1042 = vrot.lane.b32.xlu0 %v416, 96
    %v1043 = vpop.permute.xlu0 %1042
    %v1044 = vsel %vm427, %v416, 0
    %v1046 = vsel %vm427, %v1043, 0
    %1048 = vmatprep.subr.mxu0 0.0
    %1049 = vmatpush1.xpose.msra.mxu0 %v1046
    %1050 = vmatprep.subr.mxu0 0.0
    %1051 = vmatpush1.xpose.msra.mxu0 0.0
    %1052 = vmatprep.subr.mxu0 0.0
    %1053 = vmatpush1.xpose.msra.mxu0 0.0
    %1054 = vmatprep.subr.mxu0 0.0
    %1055 = vmatpush1.xpose.msra.mxu0 0.0
    %1056 = vmatprep.subr.mxu0 0.0
    %1057 = vmatpush1.xpose.msra.mxu0 0.0
    %1058 = vmatprep.subr.mxu0 0.0
    %1059 = vmatpush1.xpose.msra.mxu0 0.0
    %1060 = vmatprep.subr.mxu0 0.0
    %1061 = vmatpush1.xpose.msra.mxu0 0.0
    %1062 = vmatprep.subr.mxu0 0.0
    %1063 = vmatpush1.xpose.msra.mxu0 0.0
    %1064 = vmatprep.subr.mxu0 0.0
    %1065 = vmatpush1.xpose.msra.mxu0 0.0
    %1066 = vmatprep.subr.mxu0 0.0
    %1067 = vmatpush1.xpose.msra.mxu0 0.0
    %1068 = vmatprep.subr.mxu0 0.0
    %1069 = vmatpush1.xpose.msra.mxu0 0.0
    %1070 = vmatprep.subr.mxu0 0.0
    %1071 = vmatpush1.xpose.msra.mxu0 0.0
    %1072 = vmatprep.subr.mxu0 0.0
    %1073 = vmatpush1.xpose.msra.mxu0 0.0
    %1074 = vmatprep.subr.mxu0 0.0
    %1075 = vmatpush1.xpose.msra.mxu0 0.0
    %1076 = vmatprep.subr.mxu0 0.0
    %1077 = vmatpush1.xpose.msra.mxu0 0.0
    %1078 = vmatprep.subr.mxu0 0.0
    %1079 = vmatpush1.xpose.msra.mxu0 0.0
    %1080 = vmatprep.subr.mxu0 0.0
    %1081 = vmatpush1.xpose.msra.mxu0 0.0
    %1082 = vmatprep.subr.mxu0 0.0
    %1083 = vmatpush1.xpose.msra.mxu0 0.0
    %1084 = vmatprep.subr.mxu0 0.0
    %1085 = vmatpush1.xpose.msra.mxu0 0.0
    %1086 = vmatprep.subr.mxu0 0.0
    %1087 = vmatpush1.xpose.msra.mxu0 0.0
    %1088 = vmatprep.subr.mxu0 0.0
    %1089 = vmatpush1.xpose.msra.mxu0 0.0
    %1090 = vmatprep.subr.mxu0 0.0
    %1091 = vmatpush1.xpose.msra.mxu0 0.0
    %1092 = vmatprep.subr.mxu0 0.0
    %1093 = vmatpush1.xpose.msra.mxu0 0.0
    %1094 = vmatprep.subr.mxu0 0.0
    %1095 = vmatpush1.xpose.msra.mxu0 0.0
    %1096 = vmatprep.subr.mxu0 0.0
    %1097 = vmatpush1.xpose.msra.mxu0 0.0
    %1098 = vmatprep.subr.mxu0 0.0
    %1099 = vmatpush1.xpose.msra.mxu0 0.0
    %1100 = vmatprep.subr.mxu0 0.0
    %1101 = vmatpush1.xpose.msra.mxu0 0.0
    %1102 = vmatprep.subr.mxu0 0.0
    %1103 = vmatpush1.xpose.msra.mxu0 0.0
    %1104 = vmatprep.subr.mxu0 0.0
    %1105 = vmatpush1.xpose.msra.mxu0 0.0
    %1106 = vmatprep.subr.mxu0 0.0
    %1107 = vmatpush1.xpose.msra.mxu0 0.0
    %1108 = vmatprep.subr.mxu0 0.0
    %1109 = vmatpush1.xpose.msra.mxu0 0.0
    %1110 = vmatprep.subr.mxu0 0.0
    %1111 = vmatpush1.xpose.msra.mxu0 0.0
    %1112 = vmatprep.mubr.f32.mxu0 0.0
    %1113 = vmatmul.mubr.f32.gmra.mrb[0].mxu0 %v1044
    %v1114 = vpop.f32.mrb[0].mxu0
    %v1115 = vadd.f32 0.0, %v1114
    %v1116 = vpop.f32.mrb[0].mxu0
    %1117 = vdwg.mxu0
    %1119 = vrot.lane.b32.xlu0 %v417, 96
    %v1120 = vpop.permute.xlu0 %1119
    %v1121 = vsel %vm427, %v417, 0
    %v1123 = vsel %vm427, %v1120, 0
    %1125 = vmatprep.subr.mxu0 0.0
    %1126 = vmatpush1.xpose.msra.mxu0 %v1123
    %1127 = vmatprep.subr.mxu0 0.0
    %1128 = vmatpush1.xpose.msra.mxu0 0.0
    %1129 = vmatprep.subr.mxu0 0.0
    %1130 = vmatpush1.xpose.msra.mxu0 0.0
    %1131 = vmatprep.subr.mxu0 0.0
    %1132 = vmatpush1.xpose.msra.mxu0 0.0
    %1133 = vmatprep.subr.mxu0 0.0
    %1134 = vmatpush1.xpose.msra.mxu0 0.0
    %1135 = vmatprep.subr.mxu0 0.0
    %1136 = vmatpush1.xpose.msra.mxu0 0.0
    %1137 = vmatprep.subr.mxu0 0.0
    %1138 = vmatpush1.xpose.msra.mxu0 0.0
    %1139 = vmatprep.subr.mxu0 0.0
    %1140 = vmatpush1.xpose.msra.mxu0 0.0
    %1141 = vmatprep.subr.mxu0 0.0
    %1142 = vmatpush1.xpose.msra.mxu0 0.0
    %1143 = vmatprep.subr.mxu0 0.0
    %1144 = vmatpush1.xpose.msra.mxu0 0.0
    %1145 = vmatprep.subr.mxu0 0.0
    %1146 = vmatpush1.xpose.msra.mxu0 0.0
    %1147 = vmatprep.subr.mxu0 0.0
    %1148 = vmatpush1.xpose.msra.mxu0 0.0
    %1149 = vmatprep.subr.mxu0 0.0
    %1150 = vmatpush1.xpose.msra.mxu0 0.0
    %1151 = vmatprep.subr.mxu0 0.0
    %1152 = vmatpush1.xpose.msra.mxu0 0.0
    %1153 = vmatprep.subr.mxu0 0.0
    %1154 = vmatpush1.xpose.msra.mxu0 0.0
    %1155 = vmatprep.subr.mxu0 0.0
    %1156 = vmatpush1.xpose.msra.mxu0 0.0
    %1157 = vmatprep.subr.mxu0 0.0
    %1158 = vmatpush1.xpose.msra.mxu0 0.0
    %1159 = vmatprep.subr.mxu0 0.0
    %1160 = vmatpush1.xpose.msra.mxu0 0.0
    %1161 = vmatprep.subr.mxu0 0.0
    %1162 = vmatpush1.xpose.msra.mxu0 0.0
    %1163 = vmatprep.subr.mxu0 0.0
    %1164 = vmatpush1.xpose.msra.mxu0 0.0
    %1165 = vmatprep.subr.mxu0 0.0
    %1166 = vmatpush1.xpose.msra.mxu0 0.0
    %1167 = vmatprep.subr.mxu0 0.0
    %1168 = vmatpush1.xpose.msra.mxu0 0.0
    %1169 = vmatprep.subr.mxu0 0.0
    %1170 = vmatpush1.xpose.msra.mxu0 0.0
    %1171 = vmatprep.subr.mxu0 0.0
    %1172 = vmatpush1.xpose.msra.mxu0 0.0
    %1173 = vmatprep.subr.mxu0 0.0
    %1174 = vmatpush1.xpose.msra.mxu0 0.0
    %1175 = vmatprep.subr.mxu0 0.0
    %1176 = vmatpush1.xpose.msra.mxu0 0.0
    %1177 = vmatprep.subr.mxu0 0.0
    %1178 = vmatpush1.xpose.msra.mxu0 0.0
    %1179 = vmatprep.subr.mxu0 0.0
    %1180 = vmatpush1.xpose.msra.mxu0 0.0
    %1181 = vmatprep.subr.mxu0 0.0
    %1182 = vmatpush1.xpose.msra.mxu0 0.0
    %1183 = vmatprep.subr.mxu0 0.0
    %1184 = vmatpush1.xpose.msra.mxu0 0.0
    %1185 = vmatprep.subr.mxu0 0.0
    %1186 = vmatpush1.xpose.msra.mxu0 0.0
    %1187 = vmatprep.subr.mxu0 0.0
    %1188 = vmatpush1.xpose.msra.mxu0 0.0
    %1189 = vmatprep.mubr.f32.mxu0 0.0
    %1190 = vmatmul.mubr.f32.gmra.mrb[0].mxu0 %v1121
    %v1191 = vpop.f32.mrb[0].mxu0
    %v1192 = vadd.f32 0.0, %v1191
    %v1193 = vpop.f32.mrb[0].mxu0
    %1194 = vdwg.mxu0
    %1196 = vrot.lane.b32.xlu0 %v418, 96
    %v1197 = vpop.permute.xlu0 %1196
    %v1198 = vsel %vm427, %v418, 0
    %v1200 = vsel %vm427, %v1197, 0
    %1202 = vmatprep.subr.mxu0 0.0
    %1203 = vmatpush1.xpose.msra.mxu0 %v1200
    %1204 = vmatprep.subr.mxu0 0.0
    %1205 = vmatpush1.xpose.msra.mxu0 0.0
    %1206 = vmatprep.subr.mxu0 0.0
    %1207 = vmatpush1.xpose.msra.mxu0 0.0
    %1208 = vmatprep.subr.mxu0 0.0
    %1209 = vmatpush1.xpose.msra.mxu0 0.0
    %1210 = vmatprep.subr.mxu0 0.0
    %1211 = vmatpush1.xpose.msra.mxu0 0.0
    %1212 = vmatprep.subr.mxu0 0.0
    %1213 = vmatpush1.xpose.msra.mxu0 0.0
    %1214 = vmatprep.subr.mxu0 0.0
    %1215 = vmatpush1.xpose.msra.mxu0 0.0
    %1216 = vmatprep.subr.mxu0 0.0
    %1217 = vmatpush1.xpose.msra.mxu0 0.0
    %1218 = vmatprep.subr.mxu0 0.0
    %1219 = vmatpush1.xpose.msra.mxu0 0.0
    %1220 = vmatprep.subr.mxu0 0.0
    %1221 = vmatpush1.xpose.msra.mxu0 0.0
    %1222 = vmatprep.subr.mxu0 0.0
    %1223 = vmatpush1.xpose.msra.mxu0 0.0
    %1224 = vmatprep.subr.mxu0 0.0
    %1225 = vmatpush1.xpose.msra.mxu0 0.0
    %1226 = vmatprep.subr.mxu0 0.0
    %1227 = vmatpush1.xpose.msra.mxu0 0.0
    %1228 = vmatprep.subr.mxu0 0.0
    %1229 = vmatpush1.xpose.msra.mxu0 0.0
    %1230 = vmatprep.subr.mxu0 0.0
    %1231 = vmatpush1.xpose.msra.mxu0 0.0
    %1232 = vmatprep.subr.mxu0 0.0
    %1233 = vmatpush1.xpose.msra.mxu0 0.0
    %1234 = vmatprep.subr.mxu0 0.0
    %1235 = vmatpush1.xpose.msra.mxu0 0.0
    %1236 = vmatprep.subr.mxu0 0.0
    %1237 = vmatpush1.xpose.msra.mxu0 0.0
    %1238 = vmatprep.subr.mxu0 0.0
    %1239 = vmatpush1.xpose.msra.mxu0 0.0
    %1240 = vmatprep.subr.mxu0 0.0
    %1241 = vmatpush1.xpose.msra.mxu0 0.0
    %1242 = vmatprep.subr.mxu0 0.0
    %1243 = vmatpush1.xpose.msra.mxu0 0.0
    %1244 = vmatprep.subr.mxu0 0.0
    %1245 = vmatpush1.xpose.msra.mxu0 0.0
    %1246 = vmatprep.subr.mxu0 0.0
    %1247 = vmatpush1.xpose.msra.mxu0 0.0
    %1248 = vmatprep.subr.mxu0 0.0
    %1249 = vmatpush1.xpose.msra.mxu0 0.0
    %1250 = vmatprep.subr.mxu0 0.0
    %1251 = vmatpush1.xpose.msra.mxu0 0.0
    %1252 = vmatprep.subr.mxu0 0.0
    %1253 = vmatpush1.xpose.msra.mxu0 0.0
    %1254 = vmatprep.subr.mxu0 0.0
    %1255 = vmatpush1.xpose.msra.mxu0 0.0
    %1256 = vmatprep.subr.mxu0 0.0
    %1257 = vmatpush1.xpose.msra.mxu0 0.0
    %1258 = vmatprep.subr.mxu0 0.0
    %1259 = vmatpush1.xpose.msra.mxu0 0.0
    %1260 = vmatprep.subr.mxu0 0.0
    %1261 = vmatpush1.xpose.msra.mxu0 0.0
    %1262 = vmatprep.subr.mxu0 0.0
    %1263 = vmatpush1.xpose.msra.mxu0 0.0
    %1264 = vmatprep.subr.mxu0 0.0
    %1265 = vmatpush1.xpose.msra.mxu0 0.0
    %1266 = vmatprep.mubr.f32.mxu0 0.0
    %1267 = vmatmul.mubr.f32.gmra.mrb[0].mxu0 %v1198
    %v1268 = vpop.f32.mrb[0].mxu0
    %v1269 = vadd.f32 0.0, %v1268
    %v1270 = vpop.f32.mrb[0].mxu0
    %1271 = vdwg.mxu0
    %1273 = vrot.lane.b32.xlu0 %v419, 96
    %v1274 = vpop.permute.xlu0 %1273
    %v1275 = vsel %vm427, %v419, 0
    %v1277 = vsel %vm427, %v1274, 0
    %1279 = vmatprep.subr.mxu0 0.0
    %1280 = vmatpush1.xpose.msra.mxu0 %v1277
    %1281 = vmatprep.subr.mxu0 0.0
    %1282 = vmatpush1.xpose.msra.mxu0 0.0
    %1283 = vmatprep.subr.mxu0 0.0
    %1284 = vmatpush1.xpose.msra.mxu0 0.0
    %1285 = vmatprep.subr.mxu0 0.0
    %1286 = vmatpush1.xpose.msra.mxu0 0.0
    %1287 = vmatprep.subr.mxu0 0.0
    %1288 = vmatpush1.xpose.msra.mxu0 0.0
    %1289 = vmatprep.subr.mxu0 0.0
    %1290 = vmatpush1.xpose.msra.mxu0 0.0
    %1291 = vmatprep.subr.mxu0 0.0
    %1292 = vmatpush1.xpose.msra.mxu0 0.0
    %1293 = vmatprep.subr.mxu0 0.0
    %1294 = vmatpush1.xpose.msra.mxu0 0.0
    %1295 = vmatprep.subr.mxu0 0.0
    %1296 = vmatpush1.xpose.msra.mxu0 0.0
    %1297 = vmatprep.subr.mxu0 0.0
    %1298 = vmatpush1.xpose.msra.mxu0 0.0
    %1299 = vmatprep.subr.mxu0 0.0
    %1300 = vmatpush1.xpose.msra.mxu0 0.0
    %1301 = vmatprep.subr.mxu0 0.0
    %1302 = vmatpush1.xpose.msra.mxu0 0.0
    %1303 = vmatprep.subr.mxu0 0.0
    %1304 = vmatpush1.xpose.msra.mxu0 0.0
    %1305 = vmatprep.subr.mxu0 0.0
    %1306 = vmatpush1.xpose.msra.mxu0 0.0
    %1307 = vmatprep.subr.mxu0 0.0
    %1308 = vmatpush1.xpose.msra.mxu0 0.0
    %1309 = vmatprep.subr.mxu0 0.0
    %1310 = vmatpush1.xpose.msra.mxu0 0.0
    %1311 = vmatprep.subr.mxu0 0.0
    %1312 = vmatpush1.xpose.msra.mxu0 0.0
    %1313 = vmatprep.subr.mxu0 0.0
    %1314 = vmatpush1.xpose.msra.mxu0 0.0
    %1315 = vmatprep.subr.mxu0 0.0
    %1316 = vmatpush1.xpose.msra.mxu0 0.0
    %1317 = vmatprep.subr.mxu0 0.0
    %1318 = vmatpush1.xpose.msra.mxu0 0.0
    %1319 = vmatprep.subr.mxu0 0.0
    %1320 = vmatpush1.xpose.msra.mxu0 0.0
    %1321 = vmatprep.subr.mxu0 0.0
    %1322 = vmatpush1.xpose.msra.mxu0 0.0
    %1323 = vmatprep.subr.mxu0 0.0
    %1324 = vmatpush1.xpose.msra.mxu0 0.0
    %1325 = vmatprep.subr.mxu0 0.0
    %1326 = vmatpush1.xpose.msra.mxu0 0.0
    %1327 = vmatprep.subr.mxu0 0.0
    %1328 = vmatpush1.xpose.msra.mxu0 0.0
    %1329 = vmatprep.subr.mxu0 0.0
    %1330 = vmatpush1.xpose.msra.mxu0 0.0
    %1331 = vmatprep.subr.mxu0 0.0
    %1332 = vmatpush1.xpose.msra.mxu0 0.0
    %1333 = vmatprep.subr.mxu0 0.0
    %1334 = vmatpush1.xpose.msra.mxu0 0.0
    %1335 = vmatprep.subr.mxu0 0.0
    %1336 = vmatpush1.xpose.msra.mxu0 0.0
    %1337 = vmatprep.subr.mxu0 0.0
    %1338 = vmatpush1.xpose.msra.mxu0 0.0
    %1339 = vmatprep.subr.mxu0 0.0
    %1340 = vmatpush1.xpose.msra.mxu0 0.0
    %1341 = vmatprep.subr.mxu0 0.0
    %1342 = vmatpush1.xpose.msra.mxu0 0.0
    %1343 = vmatprep.mubr.f32.mxu0 0.0
    %1344 = vmatmul.mubr.f32.gmra.mrb[0].mxu0 %v1275
    %v1345 = vpop.f32.mrb[0].mxu0
    %v1346 = vadd.f32 0.0, %v1345
    %v1347 = vpop.f32.mrb[0].mxu0
    %1348 = vdwg.mxu0
    %1350 = vrot.lane.b32.xlu0 %v420, 96
    %v1351 = vpop.permute.xlu0 %1350
    %v1352 = vsel %vm427, %v420, 0
    %v1354 = vsel %vm427, %v1351, 0
    %1356 = vmatprep.subr.mxu0 0.0
    %1357 = vmatpush1.xpose.msra.mxu0 %v1354
    %1358 = vmatprep.subr.mxu0 0.0
    %1359 = vmatpush1.xpose.msra.mxu0 0.0
    %1360 = vmatprep.subr.mxu0 0.0
    %1361 = vmatpush1.xpose.msra.mxu0 0.0
    %1362 = vmatprep.subr.mxu0 0.0
    %1363 = vmatpush1.xpose.msra.mxu0 0.0
    %1364 = vmatprep.subr.mxu0 0.0
    %1365 = vmatpush1.xpose.msra.mxu0 0.0
    %1366 = vmatprep.subr.mxu0 0.0
    %1367 = vmatpush1.xpose.msra.mxu0 0.0
    %1368 = vmatprep.subr.mxu0 0.0
    %1369 = vmatpush1.xpose.msra.mxu0 0.0
    %1370 = vmatprep.subr.mxu0 0.0
    %1371 = vmatpush1.xpose.msra.mxu0 0.0
    %1372 = vmatprep.subr.mxu0 0.0
    %1373 = vmatpush1.xpose.msra.mxu0 0.0
    %1374 = vmatprep.subr.mxu0 0.0
    %1375 = vmatpush1.xpose.msra.mxu0 0.0
    %1376 = vmatprep.subr.mxu0 0.0
    %1377 = vmatpush1.xpose.msra.mxu0 0.0
    %1378 = vmatprep.subr.mxu0 0.0
    %1379 = vmatpush1.xpose.msra.mxu0 0.0
    %1380 = vmatprep.subr.mxu0 0.0
    %1381 = vmatpush1.xpose.msra.mxu0 0.0
    %1382 = vmatprep.subr.mxu0 0.0
    %1383 = vmatpush1.xpose.msra.mxu0 0.0
    %1384 = vmatprep.subr.mxu0 0.0
    %1385 = vmatpush1.xpose.msra.mxu0 0.0
    %1386 = vmatprep.subr.mxu0 0.0
    %1387 = vmatpush1.xpose.msra.mxu0 0.0
    %1388 = vmatprep.subr.mxu0 0.0
    %1389 = vmatpush1.xpose.msra.mxu0 0.0
    %1390 = vmatprep.subr.mxu0 0.0
    %1391 = vmatpush1.xpose.msra.mxu0 0.0
    %1392 = vmatprep.subr.mxu0 0.0
    %1393 = vmatpush1.xpose.msra.mxu0 0.0
    %1394 = vmatprep.subr.mxu0 0.0
    %1395 = vmatpush1.xpose.msra.mxu0 0.0
    %1396 = vmatprep.subr.mxu0 0.0
    %1397 = vmatpush1.xpose.msra.mxu0 0.0
    %1398 = vmatprep.subr.mxu0 0.0
    %1399 = vmatpush1.xpose.msra.mxu0 0.0
    %1400 = vmatprep.subr.mxu0 0.0
    %1401 = vmatpush1.xpose.msra.mxu0 0.0
    %1402 = vmatprep.subr.mxu0 0.0
    %1403 = vmatpush1.xpose.msra.mxu0 0.0
    %1404 = vmatprep.subr.mxu0 0.0
    %1405 = vmatpush1.xpose.msra.mxu0 0.0
    %1406 = vmatprep.subr.mxu0 0.0
    %1407 = vmatpush1.xpose.msra.mxu0 0.0
    %1408 = vmatprep.subr.mxu0 0.0
    %1409 = vmatpush1.xpose.msra.mxu0 0.0
    %1410 = vmatprep.subr.mxu0 0.0
    %1411 = vmatpush1.xpose.msra.mxu0 0.0
    %1412 = vmatprep.subr.mxu0 0.0
    %1413 = vmatpush1.xpose.msra.mxu0 0.0
    %1414 = vmatprep.subr.mxu0 0.0
    %1415 = vmatpush1.xpose.msra.mxu0 0.0
    %1416 = vmatprep.subr.mxu0 0.0
    %1417 = vmatpush1.xpose.msra.mxu0 0.0
    %1418 = vmatprep.subr.mxu0 0.0
    %1419 = vmatpush1.xpose.msra.mxu0 0.0
    %1420 = vmatprep.mubr.f32.mxu0 0.0
    %1421 = vmatmul.mubr.f32.gmra.mrb[0].mxu0 %v1352
    %v1422 = vpop.f32.mrb[0].mxu0
    %v1423 = vadd.f32 0.0, %v1422
    %v1424 = vpop.f32.mrb[0].mxu0
    %1425 = vdwg.mxu0
    %1427 = vrot.lane.b32.xlu0 %v421, 96
    %v1428 = vpop.permute.xlu0 %1427
    %v1429 = vsel %vm427, %v421, 0
    %v1431 = vsel %vm427, %v1428, 0
    %1433 = vmatprep.subr.mxu0 0.0
    %1434 = vmatpush1.xpose.msra.mxu0 %v1431
    %1435 = vmatprep.subr.mxu0 0.0
    %1436 = vmatpush1.xpose.msra.mxu0 0.0
    %1437 = vmatprep.subr.mxu0 0.0
    %1438 = vmatpush1.xpose.msra.mxu0 0.0
    %1439 = vmatprep.subr.mxu0 0.0
    %1440 = vmatpush1.xpose.msra.mxu0 0.0
    %1441 = vmatprep.subr.mxu0 0.0
    %1442 = vmatpush1.xpose.msra.mxu0 0.0
    %1443 = vmatprep.subr.mxu0 0.0
    %1444 = vmatpush1.xpose.msra.mxu0 0.0
    %1445 = vmatprep.subr.mxu0 0.0
    %1446 = vmatpush1.xpose.msra.mxu0 0.0
    %1447 = vmatprep.subr.mxu0 0.0
    %1448 = vmatpush1.xpose.msra.mxu0 0.0
    %1449 = vmatprep.subr.mxu0 0.0
    %1450 = vmatpush1.xpose.msra.mxu0 0.0
    %1451 = vmatprep.subr.mxu0 0.0
    %1452 = vmatpush1.xpose.msra.mxu0 0.0
    %1453 = vmatprep.subr.mxu0 0.0
    %1454 = vmatpush1.xpose.msra.mxu0 0.0
    %1455 = vmatprep.subr.mxu0 0.0
    %1456 = vmatpush1.xpose.msra.mxu0 0.0
    %1457 = vmatprep.subr.mxu0 0.0
    %1458 = vmatpush1.xpose.msra.mxu0 0.0
    %1459 = vmatprep.subr.mxu0 0.0
    %1460 = vmatpush1.xpose.msra.mxu0 0.0
    %1461 = vmatprep.subr.mxu0 0.0
    %1462 = vmatpush1.xpose.msra.mxu0 0.0
    %1463 = vmatprep.subr.mxu0 0.0
    %1464 = vmatpush1.xpose.msra.mxu0 0.0
    %1465 = vmatprep.subr.mxu0 0.0
    %1466 = vmatpush1.xpose.msra.mxu0 0.0
    %1467 = vmatprep.subr.mxu0 0.0
    %1468 = vmatpush1.xpose.msra.mxu0 0.0
    %1469 = vmatprep.subr.mxu0 0.0
    %1470 = vmatpush1.xpose.msra.mxu0 0.0
    %1471 = vmatprep.subr.mxu0 0.0
    %1472 = vmatpush1.xpose.msra.mxu0 0.0
    %1473 = vmatprep.subr.mxu0 0.0
    %1474 = vmatpush1.xpose.msra.mxu0 0.0
    %1475 = vmatprep.subr.mxu0 0.0
    %1476 = vmatpush1.xpose.msra.mxu0 0.0
    %1477 = vmatprep.subr.mxu0 0.0
    %1478 = vmatpush1.xpose.msra.mxu0 0.0
    %1479 = vmatprep.subr.mxu0 0.0
    %1480 = vmatpush1.xpose.msra.mxu0 0.0
    %1481 = vmatprep.subr.mxu0 0.0
    %1482 = vmatpush1.xpose.msra.mxu0 0.0
    %1483 = vmatprep.subr.mxu0 0.0
    %1484 = vmatpush1.xpose.msra.mxu0 0.0
    %1485 = vmatprep.subr.mxu0 0.0
    %1486 = vmatpush1.xpose.msra.mxu0 0.0
    %1487 = vmatprep.subr.mxu0 0.0
    %1488 = vmatpush1.xpose.msra.mxu0 0.0
    %1489 = vmatprep.subr.mxu0 0.0
    %1490 = vmatpush1.xpose.msra.mxu0 0.0
    %1491 = vmatprep.subr.mxu0 0.0
    %1492 = vmatpush1.xpose.msra.mxu0 0.0
    %1493 = vmatprep.subr.mxu0 0.0
    %1494 = vmatpush1.xpose.msra.mxu0 0.0
    %1495 = vmatprep.subr.mxu0 0.0
    %1496 = vmatpush1.xpose.msra.mxu0 0.0
    %1497 = vmatprep.mubr.f32.mxu0 0.0
    %1498 = vmatmul.mubr.f32.gmra.mrb[0].mxu0 %v1429
    %v1499 = vpop.f32.mrb[0].mxu0
    %v1500 = vadd.f32 0.0, %v1499
    %v1501 = vpop.f32.mrb[0].mxu0
    %1502 = vdwg.mxu0
    %1504 = vrot.lane.b32.xlu0 %v422, 96
    %v1505 = vpop.permute.xlu0 %1504
    %v1506 = vsel %vm427, %v422, 0
    %v1508 = vsel %vm427, %v1505, 0
    %1510 = vmatprep.subr.mxu0 0.0
    %1511 = vmatpush1.xpose.msra.mxu0 %v1508
    %1512 = vmatprep.subr.mxu0 0.0
    %1513 = vmatpush1.xpose.msra.mxu0 0.0
    %1514 = vmatprep.subr.mxu0 0.0
    %1515 = vmatpush1.xpose.msra.mxu0 0.0
    %1516 = vmatprep.subr.mxu0 0.0
    %1517 = vmatpush1.xpose.msra.mxu0 0.0
    %1518 = vmatprep.subr.mxu0 0.0
    %1519 = vmatpush1.xpose.msra.mxu0 0.0
    %1520 = vmatprep.subr.mxu0 0.0
    %1521 = vmatpush1.xpose.msra.mxu0 0.0
    %1522 = vmatprep.subr.mxu0 0.0
    %1523 = vmatpush1.xpose.msra.mxu0 0.0
    %1524 = vmatprep.subr.mxu0 0.0
    %1525 = vmatpush1.xpose.msra.mxu0 0.0
    %1526 = vmatprep.subr.mxu0 0.0
    %1527 = vmatpush1.xpose.msra.mxu0 0.0
    %1528 = vmatprep.subr.mxu0 0.0
    %1529 = vmatpush1.xpose.msra.mxu0 0.0
    %1530 = vmatprep.subr.mxu0 0.0
    %1531 = vmatpush1.xpose.msra.mxu0 0.0
    %1532 = vmatprep.subr.mxu0 0.0
    %1533 = vmatpush1.xpose.msra.mxu0 0.0
    %1534 = vmatprep.subr.mxu0 0.0
    %1535 = vmatpush1.xpose.msra.mxu0 0.0
    %1536 = vmatprep.subr.mxu0 0.0
    %1537 = vmatpush1.xpose.msra.mxu0 0.0
    %1538 = vmatprep.subr.mxu0 0.0
    %1539 = vmatpush1.xpose.msra.mxu0 0.0
    %1540 = vmatprep.subr.mxu0 0.0
    %1541 = vmatpush1.xpose.msra.mxu0 0.0
    %1542 = vmatprep.subr.mxu0 0.0
    %1543 = vmatpush1.xpose.msra.mxu0 0.0
    %1544 = vmatprep.subr.mxu0 0.0
    %1545 = vmatpush1.xpose.msra.mxu0 0.0
    %1546 = vmatprep.subr.mxu0 0.0
    %1547 = vmatpush1.xpose.msra.mxu0 0.0
    %1548 = vmatprep.subr.mxu0 0.0
    %1549 = vmatpush1.xpose.msra.mxu0 0.0
    %1550 = vmatprep.subr.mxu0 0.0
    %1551 = vmatpush1.xpose.msra.mxu0 0.0
    %1552 = vmatprep.subr.mxu0 0.0
    %1553 = vmatpush1.xpose.msra.mxu0 0.0
    %1554 = vmatprep.subr.mxu0 0.0
    %1555 = vmatpush1.xpose.msra.mxu0 0.0
    %1556 = vmatprep.subr.mxu0 0.0
    %1557 = vmatpush1.xpose.msra.mxu0 0.0
    %1558 = vmatprep.subr.mxu0 0.0
    %1559 = vmatpush1.xpose.msra.mxu0 0.0
    %1560 = vmatprep.subr.mxu0 0.0
    %1561 = vmatpush1.xpose.msra.mxu0 0.0
    %1562 = vmatprep.subr.mxu0 0.0
    %1563 = vmatpush1.xpose.msra.mxu0 0.0
    %1564 = vmatprep.subr.mxu0 0.0
    %1565 = vmatpush1.xpose.msra.mxu0 0.0
    %1566 = vmatprep.subr.mxu0 0.0
    %1567 = vmatpush1.xpose.msra.mxu0 0.0
    %1568 = vmatprep.subr.mxu0 0.0
    %1569 = vmatpush1.xpose.msra.mxu0 0.0
    %1570 = vmatprep.subr.mxu0 0.0
    %1571 = vmatpush1.xpose.msra.mxu0 0.0
    %1572 = vmatprep.subr.mxu0 0.0
    %1573 = vmatpush1.xpose.msra.mxu0 0.0
    %1574 = vmatprep.mubr.f32.mxu0 0.0
    %1575 = vmatmul.mubr.f32.gmra.mrb[0].mxu0 %v1506
    %v1576 = vpop.f32.mrb[0].mxu0
    %v1577 = vadd.f32 0.0, %v1576
    %v1578 = vpop.f32.mrb[0].mxu0
    %1579 = vdwg.mxu0
    %1581 = vrot.lane.b32.xlu0 %v423, 96
    %v1582 = vpop.permute.xlu0 %1581
    %v1583 = vsel %vm427, %v423, 0
    %v1585 = vsel %vm427, %v1582, 0
    %1587 = vmatprep.subr.mxu0 0.0
    %1588 = vmatpush1.xpose.msra.mxu0 %v1585
    %1589 = vmatprep.subr.mxu0 0.0
    %1590 = vmatpush1.xpose.msra.mxu0 0.0
    %1591 = vmatprep.subr.mxu0 0.0
    %1592 = vmatpush1.xpose.msra.mxu0 0.0
    %1593 = vmatprep.subr.mxu0 0.0
    %1594 = vmatpush1.xpose.msra.mxu0 0.0
    %1595 = vmatprep.subr.mxu0 0.0
    %1596 = vmatpush1.xpose.msra.mxu0 0.0
    %1597 = vmatprep.subr.mxu0 0.0
    %1598 = vmatpush1.xpose.msra.mxu0 0.0
    %1599 = vmatprep.subr.mxu0 0.0
    %1600 = vmatpush1.xpose.msra.mxu0 0.0
    %1601 = vmatprep.subr.mxu0 0.0
    %1602 = vmatpush1.xpose.msra.mxu0 0.0
    %1603 = vmatprep.subr.mxu0 0.0
    %1604 = vmatpush1.xpose.msra.mxu0 0.0
    %1605 = vmatprep.subr.mxu0 0.0
    %1606 = vmatpush1.xpose.msra.mxu0 0.0
    %1607 = vmatprep.subr.mxu0 0.0
    %1608 = vmatpush1.xpose.msra.mxu0 0.0
    %1609 = vmatprep.subr.mxu0 0.0
    %1610 = vmatpush1.xpose.msra.mxu0 0.0
    %1611 = vmatprep.subr.mxu0 0.0
    %1612 = vmatpush1.xpose.msra.mxu0 0.0
    %1613 = vmatprep.subr.mxu0 0.0
    %1614 = vmatpush1.xpose.msra.mxu0 0.0
    %1615 = vmatprep.subr.mxu0 0.0
    %1616 = vmatpush1.xpose.msra.mxu0 0.0
    %1617 = vmatprep.subr.mxu0 0.0
    %1618 = vmatpush1.xpose.msra.mxu0 0.0
    %1619 = vmatprep.subr.mxu0 0.0
    %1620 = vmatpush1.xpose.msra.mxu0 0.0
    %1621 = vmatprep.subr.mxu0 0.0
    %1622 = vmatpush1.xpose.msra.mxu0 0.0
    %1623 = vmatprep.subr.mxu0 0.0
    %1624 = vmatpush1.xpose.msra.mxu0 0.0
    %1625 = vmatprep.subr.mxu0 0.0
    %1626 = vmatpush1.xpose.msra.mxu0 0.0
    %1627 = vmatprep.subr.mxu0 0.0
    %1628 = vmatpush1.xpose.msra.mxu0 0.0
    %1629 = vmatprep.subr.mxu0 0.0
    %1630 = vmatpush1.xpose.msra.mxu0 0.0
    %1631 = vmatprep.subr.mxu0 0.0
    %1632 = vmatpush1.xpose.msra.mxu0 0.0
    %1633 = vmatprep.subr.mxu0 0.0
    %1634 = vmatpush1.xpose.msra.mxu0 0.0
    %1635 = vmatprep.subr.mxu0 0.0
    %1636 = vmatpush1.xpose.msra.mxu0 0.0
    %1637 = vmatprep.subr.mxu0 0.0
    %1638 = vmatpush1.xpose.msra.mxu0 0.0
    %1639 = vmatprep.subr.mxu0 0.0
    %1640 = vmatpush1.xpose.msra.mxu0 0.0
    %1641 = vmatprep.subr.mxu0 0.0
    %1642 = vmatpush1.xpose.msra.mxu0 0.0
    %1643 = vmatprep.subr.mxu0 0.0
    %1644 = vmatpush1.xpose.msra.mxu0 0.0
    %1645 = vmatprep.subr.mxu0 0.0
    %1646 = vmatpush1.xpose.msra.mxu0 0.0
    %1647 = vmatprep.subr.mxu0 0.0
    %1648 = vmatpush1.xpose.msra.mxu0 0.0
    %1649 = vmatprep.subr.mxu0 0.0
    %1650 = vmatpush1.xpose.msra.mxu0 0.0
    %1651 = vmatprep.mubr.f32.mxu0 0.0
    %1652 = vmatmul.mubr.f32.gmra.mrb[0].mxu0 %v1583
    %v1653 = vpop.f32.mrb[0].mxu0
    %v1654 = vadd.f32 0.0, %v1653
    %v1655 = vpop.f32.mrb[0].mxu0
    %1656 = vdwg.mxu0
    %vm1657 = vcmask 9216
    %v1658 = vsel %vm1657, %v499, -inf
    %1659 = vmax.xlane.f32.xlu0 %v1658
    %v1660 = vpop.xlane.xlu0 %1659
    %v1661 = vsel %vm1657, %v576, -inf
    %1662 = vmax.xlane.f32.xlu0 %v1661
    %v1663 = vpop.xlane.xlu0 %1662
    %v1664 = vsel %vm1657, %v653, -inf
    %1665 = vmax.xlane.f32.xlu0 %v1664
    %v1666 = vpop.xlane.xlu0 %1665
    %v1667 = vsel %vm1657, %v730, -inf
    %1668 = vmax.xlane.f32.xlu0 %v1667
    %v1669 = vpop.xlane.xlu0 %1668
    %v1670 = vsel %vm1657, %v807, -inf
    %1671 = vmax.xlane.f32.xlu0 %v1670
    %v1672 = vpop.xlane.xlu0 %1671
    %v1673 = vsel %vm1657, %v884, -inf
    %1674 = vmax.xlane.f32.xlu0 %v1673
    %v1675 = vpop.xlane.xlu0 %1674
    %v1676 = vsel %vm1657, %v961, -inf
    %1677 = vmax.xlane.f32.xlu0 %v1676
    %v1678 = vpop.xlane.xlu0 %1677
    %v1679 = vsel %vm1657, %v1038, -inf
    %1680 = vmax.xlane.f32.xlu0 %v1679
    %v1681 = vpop.xlane.xlu0 %1680
    %v1682 = vsel %vm1657, %v1115, -inf
    %1683 = vmax.xlane.f32.xlu0 %v1682
    %v1684 = vpop.xlane.xlu0 %1683
    %v1685 = vsel %vm1657, %v1192, -inf
    %1686 = vmax.xlane.f32.xlu0 %v1685
    %v1687 = vpop.xlane.xlu0 %1686
    %v1688 = vsel %vm1657, %v1269, -inf
    %1689 = vmax.xlane.f32.xlu0 %v1688
    %v1690 = vpop.xlane.xlu0 %1689
    %v1691 = vsel %vm1657, %v1346, -inf
    %1692 = vmax.xlane.f32.xlu0 %v1691
    %v1693 = vpop.xlane.xlu0 %1692
    %v1694 = vsel %vm1657, %v1423, -inf
    %1695 = vmax.xlane.f32.xlu0 %v1694
    %v1696 = vpop.xlane.xlu0 %1695
    %v1697 = vsel %vm1657, %v1500, -inf
    %1698 = vmax.xlane.f32.xlu0 %v1697
    %v1699 = vpop.xlane.xlu0 %1698
    %v1700 = vsel %vm1657, %v1577, -inf
    %1701 = vmax.xlane.f32.xlu0 %v1700
    %v1702 = vpop.xlane.xlu0 %1701
    %v1703 = vsel %vm1657, %v1654, -inf
    %1704 = vmax.xlane.f32.xlu0 %v1703
    %v1705 = vpop.xlane.xlu0 %1704
    %v1706 = vsub.f32 %v499, %v1660
    %v1707 = vsub.f32 %v576, %v1663
    %v1708 = vsub.f32 %v653, %v1666
    %v1709 = vsub.f32 %v730, %v1669
    %v1710 = vsub.f32 %v807, %v1672
    %v1711 = vsub.f32 %v884, %v1675
    %v1712 = vsub.f32 %v961, %v1678
    %v1713 = vsub.f32 %v1038, %v1681
    %v1714 = vsub.f32 %v1115, %v1684
    %v1715 = vsub.f32 %v1192, %v1687
    %v1716 = vsub.f32 %v1269, %v1690
    %v1717 = vsub.f32 %v1346, %v1693
    %v1718 = vsub.f32 %v1423, %v1696
    %v1719 = vsub.f32 %v1500, %v1699
    %v1720 = vsub.f32 %v1577, %v1702
    %v1721 = vsub.f32 %v1654, %v1705
    %v1722 = vmul.f32 %v1706, 1.442695
    %v1723 = vpow.pop %v1722
    %v1724 = vmul.f32 %v1707, 1.442695
    %v1725 = vpow.pop %v1724
    %v1726 = vmul.f32 %v1708, 1.442695
    %v1727 = vpow.pop %v1726
    %v1728 = vmul.f32 %v1709, 1.442695
    %v1729 = vpow.pop %v1728
    %v1730 = vmul.f32 %v1710, 1.442695
    %v1731 = vpow.pop %v1730
    %v1732 = vmul.f32 %v1711, 1.442695
    %v1733 = vpow.pop %v1732
    %v1734 = vmul.f32 %v1712, 1.442695
    %v1735 = vpow.pop %v1734
    %v1736 = vmul.f32 %v1713, 1.442695
    %v1737 = vpow.pop %v1736
    %v1738 = vmul.f32 %v1714, 1.442695
    %v1739 = vpow.pop %v1738
    %v1740 = vmul.f32 %v1715, 1.442695
    %v1741 = vpow.pop %v1740
    %v1742 = vmul.f32 %v1716, 1.442695
    %v1743 = vpow.pop %v1742
    %v1744 = vmul.f32 %v1717, 1.442695
    %v1745 = vpow.pop %v1744
    %v1746 = vmul.f32 %v1718, 1.442695
    %v1747 = vpow.pop %v1746
    %v1748 = vmul.f32 %v1719, 1.442695
    %v1749 = vpow.pop %v1748
    %v1750 = vmul.f32 %v1720, 1.442695
    %v1751 = vpow.pop %v1750
    %v1752 = vmul.f32 %v1721, 1.442695
    %v1753 = vpow.pop %v1752
    %v1754 = vsel %vm1657, %v1723, 0.0
    %1755 = vadd.xlane.f32.xlu0 %v1754
    %v1756 = vpop.xlane.xlu0 %1755
    %v1757 = vsel %vm1657, %v1725, 0.0
    %1758 = vadd.xlane.f32.xlu0 %v1757
    %v1759 = vpop.xlane.xlu0 %1758
    %v1760 = vsel %vm1657, %v1727, 0.0
    %1761 = vadd.xlane.f32.xlu0 %v1760
    %v1762 = vpop.xlane.xlu0 %1761
    %v1763 = vsel %vm1657, %v1729, 0.0
    %1764 = vadd.xlane.f32.xlu0 %v1763
    %v1765 = vpop.xlane.xlu0 %1764
    %v1766 = vsel %vm1657, %v1731, 0.0
    %1767 = vadd.xlane.f32.xlu0 %v1766
    %v1768 = vpop.xlane.xlu0 %1767
    %v1769 = vsel %vm1657, %v1733, 0.0
    %1770 = vadd.xlane.f32.xlu0 %v1769
    %v1771 = vpop.xlane.xlu0 %1770
    %v1772 = vsel %vm1657, %v1735, 0.0
    %1773 = vadd.xlane.f32.xlu0 %v1772
    %v1774 = vpop.xlane.xlu0 %1773
    %v1775 = vsel %vm1657, %v1737, 0.0
    %1776 = vadd.xlane.f32.xlu0 %v1775
    %v1777 = vpop.xlane.xlu0 %1776
    %v1778 = vsel %vm1657, %v1739, 0.0
    %1779 = vadd.xlane.f32.xlu0 %v1778
    %v1780 = vpop.xlane.xlu0 %1779
    %v1781 = vsel %vm1657, %v1741, 0.0
    %1782 = vadd.xlane.f32.xlu0 %v1781
    %v1783 = vpop.xlane.xlu0 %1782
    %v1784 = vsel %vm1657, %v1743, 0.0
    %1785 = vadd.xlane.f32.xlu0 %v1784
    %v1786 = vpop.xlane.xlu0 %1785
    %v1787 = vsel %vm1657, %v1745, 0.0
    %1788 = vadd.xlane.f32.xlu0 %v1787
    %v1789 = vpop.xlane.xlu0 %1788
    %v1790 = vsel %vm1657, %v1747, 0.0
    %1791 = vadd.xlane.f32.xlu0 %v1790
    %v1792 = vpop.xlane.xlu0 %1791
    %v1793 = vsel %vm1657, %v1749, 0.0
    %1794 = vadd.xlane.f32.xlu0 %v1793
    %v1795 = vpop.xlane.xlu0 %1794
    %v1796 = vsel %vm1657, %v1751, 0.0
    %1797 = vadd.xlane.f32.xlu0 %v1796
    %v1798 = vpop.xlane.xlu0 %1797
    %v1799 = vsel %vm1657, %v1753, 0.0
    %1800 = vadd.xlane.f32.xlu0 %v1799
    %v1801 = vpop.xlane.xlu0 %1800
    %v1802 = vrcp.pop %v1756
    %v1803 = vrcp.pop %v1759
    %v1804 = vrcp.pop %v1762
    %v1805 = vrcp.pop %v1765
    %v1806 = vrcp.pop %v1768
    %v1807 = vrcp.pop %v1771
    %v1808 = vrcp.pop %v1774
    %v1809 = vrcp.pop %v1777
    %v1810 = vrcp.pop %v1780
    %v1811 = vrcp.pop %v1783
    %v1812 = vrcp.pop %v1786
    %v1813 = vrcp.pop %v1789
    %v1814 = vrcp.pop %v1792
    %v1815 = vrcp.pop %v1795
    %v1816 = vrcp.pop %v1798
    %v1817 = vrcp.pop %v1801
    %v1818 = vmul.f32 %v1723, %v1802
    %v1819 = vmul.f32 %v1725, %v1803
    %v1820 = vmul.f32 %v1727, %v1804
    %v1821 = vmul.f32 %v1729, %v1805
    %v1822 = vmul.f32 %v1731, %v1806
    %v1823 = vmul.f32 %v1733, %v1807
    %v1824 = vmul.f32 %v1735, %v1808
    %v1825 = vmul.f32 %v1737, %v1809
    %v1826 = vmul.f32 %v1739, %v1810
    %v1827 = vmul.f32 %v1741, %v1811
    %v1828 = vmul.f32 %v1743, %v1812
    %v1829 = vmul.f32 %v1745, %v1813
    %v1830 = vmul.f32 %v1747, %v1814
    %v1831 = vmul.f32 %v1749, %v1815
    %v1832 = vmul.f32 %v1751, %v1816
    %v1833 = vmul.f32 %v1753, %v1817
    %1834 = vrot.lane.b32.xlu0 %v408, 64
    %v1835 = vpop.permute.xlu0 %1834
    %vm1836 = vcmask 15360
    %v1838 = vsel %vm1836, %v1818, 0
    %vm1840 = vcmask 1041408
    %v1841 = vsel %vm1840, %v1835, 0
    %1843 = vmatprep.subr.mxu0 0.0
    %1844 = vmatpush1.msra.mxu0 %v1841
    %1845 = vmatprep.subr.mxu0 0.0
    %1846 = vmatpush1.msra.mxu0 0.0
    %1847 = vmatprep.subr.mxu0 0.0
    %1848 = vmatpush1.msra.mxu0 0.0
    %1849 = vmatprep.subr.mxu0 0.0
    %1850 = vmatpush1.msra.mxu0 0.0
    %1851 = vmatprep.subr.mxu0 0.0
    %1852 = vmatpush1.msra.mxu0 0.0
    %1853 = vmatprep.subr.mxu0 0.0
    %1854 = vmatpush1.msra.mxu0 0.0
    %1855 = vmatprep.subr.mxu0 0.0
    %1856 = vmatpush1.msra.mxu0 0.0
    %1857 = vmatprep.subr.mxu0 0.0
    %1858 = vmatpush1.msra.mxu0 0.0
    %1859 = vmatprep.subr.mxu0 0.0
    %1860 = vmatpush1.msra.mxu0 0.0
    %1861 = vmatprep.subr.mxu0 0.0
    %1862 = vmatpush1.msra.mxu0 0.0
    %1863 = vmatprep.subr.mxu0 0.0
    %1864 = vmatpush1.msra.mxu0 0.0
    %1865 = vmatprep.subr.mxu0 0.0
    %1866 = vmatpush1.msra.mxu0 0.0
    %1867 = vmatprep.subr.mxu0 0.0
    %1868 = vmatpush1.msra.mxu0 0.0
    %1869 = vmatprep.subr.mxu0 0.0
    %1870 = vmatpush1.msra.mxu0 0.0
    %1871 = vmatprep.subr.mxu0 0.0
    %1872 = vmatpush1.msra.mxu0 0.0
    %1873 = vmatprep.subr.mxu0 0.0
    %1874 = vmatpush1.msra.mxu0 0.0
    %1875 = vmatprep.subr.mxu0 0.0
    %1876 = vmatpush1.msra.mxu0 0.0
    %1877 = vmatprep.subr.mxu0 0.0
    %1878 = vmatpush1.msra.mxu0 0.0
    %1879 = vmatprep.subr.mxu0 0.0
    %1880 = vmatpush1.msra.mxu0 0.0
    %1881 = vmatprep.subr.mxu0 0.0
    %1882 = vmatpush1.msra.mxu0 0.0
    %1883 = vmatprep.subr.mxu0 0.0
    %1884 = vmatpush1.msra.mxu0 0.0
    %1885 = vmatprep.subr.mxu0 0.0
    %1886 = vmatpush1.msra.mxu0 0.0
    %1887 = vmatprep.subr.mxu0 0.0
    %1888 = vmatpush1.msra.mxu0 0.0
    %1889 = vmatprep.subr.mxu0 0.0
    %1890 = vmatpush1.msra.mxu0 0.0
    %1891 = vmatprep.subr.mxu0 0.0
    %1892 = vmatpush1.msra.mxu0 0.0
    %1893 = vmatprep.subr.mxu0 0.0
    %1894 = vmatpush1.msra.mxu0 0.0
    %1895 = vmatprep.subr.mxu0 0.0
    %1896 = vmatpush1.msra.mxu0 0.0
    %1897 = vmatprep.subr.mxu0 0.0
    %1898 = vmatpush1.msra.mxu0 0.0
    %1899 = vmatprep.subr.mxu0 0.0
    %1900 = vmatpush1.msra.mxu0 0.0
    %1901 = vmatprep.subr.mxu0 0.0
    %1902 = vmatpush1.msra.mxu0 0.0
    %1903 = vmatprep.subr.mxu0 0.0
    %1904 = vmatpush1.msra.mxu0 0.0
    %1905 = vmatprep.subr.mxu0 0.0
    %1906 = vmatpush1.msra.mxu0 0.0
    %1907 = vmatprep.mubr.f32.mxu0 0.0
    %1908 = vmatmul.mubr.f32.gmra.mrb[0].mxu0 %v1838
    %v1909 = vpop.f32.mrb[0].mxu0
    %v1910 = vadd.f32 0.0, %v1909
    %v1911 = vpop.f32.mrb[0].mxu0
    %1912 = vdwg.mxu0
    %1913 = vrot.lane.b32.xlu0 %v409, 64
    %v1914 = vpop.permute.xlu0 %1913
    %v1916 = vsel %vm1836, %v1819, 0
    %v1918 = vsel %vm1840, %v1914, 0
    %1920 = vmatprep.subr.mxu0 0.0
    %1921 = vmatpush1.msra.mxu0 %v1918
    %1922 = vmatprep.subr.mxu0 0.0
    %1923 = vmatpush1.msra.mxu0 0.0
    %1924 = vmatprep.subr.mxu0 0.0
    %1925 = vmatpush1.msra.mxu0 0.0
    %1926 = vmatprep.subr.mxu0 0.0
    %1927 = vmatpush1.msra.mxu0 0.0
    %1928 = vmatprep.subr.mxu0 0.0
    %1929 = vmatpush1.msra.mxu0 0.0
    %1930 = vmatprep.subr.mxu0 0.0
    %1931 = vmatpush1.msra.mxu0 0.0
    %1932 = vmatprep.subr.mxu0 0.0
    %1933 = vmatpush1.msra.mxu0 0.0
    %1934 = vmatprep.subr.mxu0 0.0
    %1935 = vmatpush1.msra.mxu0 0.0
    %1936 = vmatprep.subr.mxu0 0.0
    %1937 = vmatpush1.msra.mxu0 0.0
    %1938 = vmatprep.subr.mxu0 0.0
    %1939 = vmatpush1.msra.mxu0 0.0
    %1940 = vmatprep.subr.mxu0 0.0
    %1941 = vmatpush1.msra.mxu0 0.0
    %1942 = vmatprep.subr.mxu0 0.0
    %1943 = vmatpush1.msra.mxu0 0.0
    %1944 = vmatprep.subr.mxu0 0.0
    %1945 = vmatpush1.msra.mxu0 0.0
    %1946 = vmatprep.subr.mxu0 0.0
    %1947 = vmatpush1.msra.mxu0 0.0
    %1948 = vmatprep.subr.mxu0 0.0
    %1949 = vmatpush1.msra.mxu0 0.0
    %1950 = vmatprep.subr.mxu0 0.0
    %1951 = vmatpush1.msra.mxu0 0.0
    %1952 = vmatprep.subr.mxu0 0.0
    %1953 = vmatpush1.msra.mxu0 0.0
    %1954 = vmatprep.subr.mxu0 0.0
    %1955 = vmatpush1.msra.mxu0 0.0
    %1956 = vmatprep.subr.mxu0 0.0
    %1957 = vmatpush1.msra.mxu0 0.0
    %1958 = vmatprep.subr.mxu0 0.0
    %1959 = vmatpush1.msra.mxu0 0.0
    %1960 = vmatprep.subr.mxu0 0.0
    %1961 = vmatpush1.msra.mxu0 0.0
    %1962 = vmatprep.subr.mxu0 0.0
    %1963 = vmatpush1.msra.mxu0 0.0
    %1964 = vmatprep.subr.mxu0 0.0
    %1965 = vmatpush1.msra.mxu0 0.0
    %1966 = vmatprep.subr.mxu0 0.0
    %1967 = vmatpush1.msra.mxu0 0.0
    %1968 = vmatprep.subr.mxu0 0.0
    %1969 = vmatpush1.msra.mxu0 0.0
    %1970 = vmatprep.subr.mxu0 0.0
    %1971 = vmatpush1.msra.mxu0 0.0
    %1972 = vmatprep.subr.mxu0 0.0
    %1973 = vmatpush1.msra.mxu0 0.0
    %1974 = vmatprep.subr.mxu0 0.0
    %1975 = vmatpush1.msra.mxu0 0.0
    %1976 = vmatprep.subr.mxu0 0.0
    %1977 = vmatpush1.msra.mxu0 0.0
    %1978 = vmatprep.subr.mxu0 0.0
    %1979 = vmatpush1.msra.mxu0 0.0
    %1980 = vmatprep.subr.mxu0 0.0
    %1981 = vmatpush1.msra.mxu0 0.0
    %1982 = vmatprep.subr.mxu0 0.0
    %1983 = vmatpush1.msra.mxu0 0.0
    %1984 = vmatprep.mubr.f32.mxu0 0.0
    %1985 = vmatmul.mubr.f32.gmra.mrb[0].mxu0 %v1916
    %v1986 = vpop.f32.mrb[0].mxu0
    %v1987 = vadd.f32 0.0, %v1986
    %v1988 = vpop.f32.mrb[0].mxu0
    %1989 = vdwg.mxu0
    %1990 = vrot.lane.b32.xlu0 %v410, 64
    %v1991 = vpop.permute.xlu0 %1990
    %v1993 = vsel %vm1836, %v1820, 0
    %v1995 = vsel %vm1840, %v1991, 0
    %1997 = vmatprep.subr.mxu0 0.0
    %1998 = vmatpush1.msra.mxu0 %v1995
    %1999 = vmatprep.subr.mxu0 0.0
    %2000 = vmatpush1.msra.mxu0 0.0
    %2001 = vmatprep.subr.mxu0 0.0
    %2002 = vmatpush1.msra.mxu0 0.0
    %2003 = vmatprep.subr.mxu0 0.0
    %2004 = vmatpush1.msra.mxu0 0.0
    %2005 = vmatprep.subr.mxu0 0.0
    %2006 = vmatpush1.msra.mxu0 0.0
    %2007 = vmatprep.subr.mxu0 0.0
    %2008 = vmatpush1.msra.mxu0 0.0
    %2009 = vmatprep.subr.mxu0 0.0
    %2010 = vmatpush1.msra.mxu0 0.0
    %2011 = vmatprep.subr.mxu0 0.0
    %2012 = vmatpush1.msra.mxu0 0.0
    %2013 = vmatprep.subr.mxu0 0.0
    %2014 = vmatpush1.msra.mxu0 0.0
    %2015 = vmatprep.subr.mxu0 0.0
    %2016 = vmatpush1.msra.mxu0 0.0
    %2017 = vmatprep.subr.mxu0 0.0
    %2018 = vmatpush1.msra.mxu0 0.0
    %2019 = vmatprep.subr.mxu0 0.0
    %2020 = vmatpush1.msra.mxu0 0.0
    %2021 = vmatprep.subr.mxu0 0.0
    %2022 = vmatpush1.msra.mxu0 0.0
    %2023 = vmatprep.subr.mxu0 0.0
    %2024 = vmatpush1.msra.mxu0 0.0
    %2025 = vmatprep.subr.mxu0 0.0
    %2026 = vmatpush1.msra.mxu0 0.0
    %2027 = vmatprep.subr.mxu0 0.0
    %2028 = vmatpush1.msra.mxu0 0.0
    %2029 = vmatprep.subr.mxu0 0.0
    %2030 = vmatpush1.msra.mxu0 0.0
    %2031 = vmatprep.subr.mxu0 0.0
    %2032 = vmatpush1.msra.mxu0 0.0
    %2033 = vmatprep.subr.mxu0 0.0
    %2034 = vmatpush1.msra.mxu0 0.0
    %2035 = vmatprep.subr.mxu0 0.0
    %2036 = vmatpush1.msra.mxu0 0.0
    %2037 = vmatprep.subr.mxu0 0.0
    %2038 = vmatpush1.msra.mxu0 0.0
    %2039 = vmatprep.subr.mxu0 0.0
    %2040 = vmatpush1.msra.mxu0 0.0
    %2041 = vmatprep.subr.mxu0 0.0
    %2042 = vmatpush1.msra.mxu0 0.0
    %2043 = vmatprep.subr.mxu0 0.0
    %2044 = vmatpush1.msra.mxu0 0.0
    %2045 = vmatprep.subr.mxu0 0.0
    %2046 = vmatpush1.msra.mxu0 0.0
    %2047 = vmatprep.subr.mxu0 0.0
    %2048 = vmatpush1.msra.mxu0 0.0
    %2049 = vmatprep.subr.mxu0 0.0
    %2050 = vmatpush1.msra.mxu0 0.0
    %2051 = vmatprep.subr.mxu0 0.0
    %2052 = vmatpush1.msra.mxu0 0.0
    %2053 = vmatprep.subr.mxu0 0.0
    %2054 = vmatpush1.msra.mxu0 0.0
    %2055 = vmatprep.subr.mxu0 0.0
    %2056 = vmatpush1.msra.mxu0 0.0
    %2057 = vmatprep.subr.mxu0 0.0
    %2058 = vmatpush1.msra.mxu0 0.0
    %2059 = vmatprep.subr.mxu0 0.0
    %2060 = vmatpush1.msra.mxu0 0.0
    %2061 = vmatprep.mubr.f32.mxu0 0.0
    %2062 = vmatmul.mubr.f32.gmra.mrb[0].mxu0 %v1993
    %v2063 = vpop.f32.mrb[0].mxu0
    %v2064 = vadd.f32 0.0, %v2063
    %v2065 = vpop.f32.mrb[0].mxu0
    %2066 = vdwg.mxu0
    %2067 = vrot.lane.b32.xlu0 %v411, 64
    %v2068 = vpop.permute.xlu0 %2067
    %v2070 = vsel %vm1836, %v1821, 0
    %v2072 = vsel %vm1840, %v2068, 0
    %2074 = vmatprep.subr.mxu0 0.0
    %2075 = vmatpush1.msra.mxu0 %v2072
    %2076 = vmatprep.subr.mxu0 0.0
    %2077 = vmatpush1.msra.mxu0 0.0
    %2078 = vmatprep.subr.mxu0 0.0
    %2079 = vmatpush1.msra.mxu0 0.0
    %2080 = vmatprep.subr.mxu0 0.0
    %2081 = vmatpush1.msra.mxu0 0.0
    %2082 = vmatprep.subr.mxu0 0.0
    %2083 = vmatpush1.msra.mxu0 0.0
    %2084 = vmatprep.subr.mxu0 0.0
    %2085 = vmatpush1.msra.mxu0 0.0
    %2086 = vmatprep.subr.mxu0 0.0
    %2087 = vmatpush1.msra.mxu0 0.0
    %2088 = vmatprep.subr.mxu0 0.0
    %2089 = vmatpush1.msra.mxu0 0.0
    %2090 = vmatprep.subr.mxu0 0.0
    %2091 = vmatpush1.msra.mxu0 0.0
    %2092 = vmatprep.subr.mxu0 0.0
    %2093 = vmatpush1.msra.mxu0 0.0
    %2094 = vmatprep.subr.mxu0 0.0
    %2095 = vmatpush1.msra.mxu0 0.0
    %2096 = vmatprep.subr.mxu0 0.0
    %2097 = vmatpush1.msra.mxu0 0.0
    %2098 = vmatprep.subr.mxu0 0.0
    %2099 = vmatpush1.msra.mxu0 0.0
    %2100 = vmatprep.subr.mxu0 0.0
    %2101 = vmatpush1.msra.mxu0 0.0
    %2102 = vmatprep.subr.mxu0 0.0
    %2103 = vmatpush1.msra.mxu0 0.0
    %2104 = vmatprep.subr.mxu0 0.0
    %2105 = vmatpush1.msra.mxu0 0.0
    %2106 = vmatprep.subr.mxu0 0.0
    %2107 = vmatpush1.msra.mxu0 0.0
    %2108 = vmatprep.subr.mxu0 0.0
    %2109 = vmatpush1.msra.mxu0 0.0
    %2110 = vmatprep.subr.mxu0 0.0
    %2111 = vmatpush1.msra.mxu0 0.0
    %2112 = vmatprep.subr.mxu0 0.0
    %2113 = vmatpush1.msra.mxu0 0.0
    %2114 = vmatprep.subr.mxu0 0.0
    %2115 = vmatpush1.msra.mxu0 0.0
    %2116 = vmatprep.subr.mxu0 0.0
    %2117 = vmatpush1.msra.mxu0 0.0
    %2118 = vmatprep.subr.mxu0 0.0
    %2119 = vmatpush1.msra.mxu0 0.0
    %2120 = vmatprep.subr.mxu0 0.0
    %2121 = vmatpush1.msra.mxu0 0.0
    %2122 = vmatprep.subr.mxu0 0.0
    %2123 = vmatpush1.msra.mxu0 0.0
    %2124 = vmatprep.subr.mxu0 0.0
    %2125 = vmatpush1.msra.mxu0 0.0
    %2126 = vmatprep.subr.mxu0 0.0
    %2127 = vmatpush1.msra.mxu0 0.0
    %2128 = vmatprep.subr.mxu0 0.0
    %2129 = vmatpush1.msra.mxu0 0.0
    %2130 = vmatprep.subr.mxu0 0.0
    %2131 = vmatpush1.msra.mxu0 0.0
    %2132 = vmatprep.subr.mxu0 0.0
    %2133 = vmatpush1.msra.mxu0 0.0
    %2134 = vmatprep.subr.mxu0 0.0
    %2135 = vmatpush1.msra.mxu0 0.0
    %2136 = vmatprep.subr.mxu0 0.0
    %2137 = vmatpush1.msra.mxu0 0.0
    %2138 = vmatprep.mubr.f32.mxu0 0.0
    %2139 = vmatmul.mubr.f32.gmra.mrb[0].mxu0 %v2070
    %v2140 = vpop.f32.mrb[0].mxu0
    %v2141 = vadd.f32 0.0, %v2140
    %v2142 = vpop.f32.mrb[0].mxu0
    %2143 = vdwg.mxu0
    %2144 = vrot.lane.b32.xlu0 %v412, 64
    %v2145 = vpop.permute.xlu0 %2144
    %v2147 = vsel %vm1836, %v1822, 0
    %v2149 = vsel %vm1840, %v2145, 0
    %2151 = vmatprep.subr.mxu0 0.0
    %2152 = vmatpush1.msra.mxu0 %v2149
    %2153 = vmatprep.subr.mxu0 0.0
    %2154 = vmatpush1.msra.mxu0 0.0
    %2155 = vmatprep.subr.mxu0 0.0
    %2156 = vmatpush1.msra.mxu0 0.0
    %2157 = vmatprep.subr.mxu0 0.0
    %2158 = vmatpush1.msra.mxu0 0.0
    %2159 = vmatprep.subr.mxu0 0.0
    %2160 = vmatpush1.msra.mxu0 0.0
    %2161 = vmatprep.subr.mxu0 0.0
    %2162 = vmatpush1.msra.mxu0 0.0
    %2163 = vmatprep.subr.mxu0 0.0
    %2164 = vmatpush1.msra.mxu0 0.0
    %2165 = vmatprep.subr.mxu0 0.0
    %2166 = vmatpush1.msra.mxu0 0.0
    %2167 = vmatprep.subr.mxu0 0.0
    %2168 = vmatpush1.msra.mxu0 0.0
    %2169 = vmatprep.subr.mxu0 0.0
    %2170 = vmatpush1.msra.mxu0 0.0
    %2171 = vmatprep.subr.mxu0 0.0
    %2172 = vmatpush1.msra.mxu0 0.0
    %2173 = vmatprep.subr.mxu0 0.0
    %2174 = vmatpush1.msra.mxu0 0.0
    %2175 = vmatprep.subr.mxu0 0.0
    %2176 = vmatpush1.msra.mxu0 0.0
    %2177 = vmatprep.subr.mxu0 0.0
    %2178 = vmatpush1.msra.mxu0 0.0
    %2179 = vmatprep.subr.mxu0 0.0
    %2180 = vmatpush1.msra.mxu0 0.0
    %2181 = vmatprep.subr.mxu0 0.0
    %2182 = vmatpush1.msra.mxu0 0.0
    %2183 = vmatprep.subr.mxu0 0.0
    %2184 = vmatpush1.msra.mxu0 0.0
    %2185 = vmatprep.subr.mxu0 0.0
    %2186 = vmatpush1.msra.mxu0 0.0
    %2187 = vmatprep.subr.mxu0 0.0
    %2188 = vmatpush1.msra.mxu0 0.0
    %2189 = vmatprep.subr.mxu0 0.0
    %2190 = vmatpush1.msra.mxu0 0.0
    %2191 = vmatprep.subr.mxu0 0.0
    %2192 = vmatpush1.msra.mxu0 0.0
    %2193 = vmatprep.subr.mxu0 0.0
    %2194 = vmatpush1.msra.mxu0 0.0
    %2195 = vmatprep.subr.mxu0 0.0
    %2196 = vmatpush1.msra.mxu0 0.0
    %2197 = vmatprep.subr.mxu0 0.0
    %2198 = vmatpush1.msra.mxu0 0.0
    %2199 = vmatprep.subr.mxu0 0.0
    %2200 = vmatpush1.msra.mxu0 0.0
    %2201 = vmatprep.subr.mxu0 0.0
    %2202 = vmatpush1.msra.mxu0 0.0
    %2203 = vmatprep.subr.mxu0 0.0
    %2204 = vmatpush1.msra.mxu0 0.0
    %2205 = vmatprep.subr.mxu0 0.0
    %2206 = vmatpush1.msra.mxu0 0.0
    %2207 = vmatprep.subr.mxu0 0.0
    %2208 = vmatpush1.msra.mxu0 0.0
    %2209 = vmatprep.subr.mxu0 0.0
    %2210 = vmatpush1.msra.mxu0 0.0
    %2211 = vmatprep.subr.mxu0 0.0
    %2212 = vmatpush1.msra.mxu0 0.0
    %2213 = vmatprep.subr.mxu0 0.0
    %2214 = vmatpush1.msra.mxu0 0.0
    %2215 = vmatprep.mubr.f32.mxu0 0.0
    %2216 = vmatmul.mubr.f32.gmra.mrb[0].mxu0 %v2147
    %v2217 = vpop.f32.mrb[0].mxu0
    %v2218 = vadd.f32 0.0, %v2217
    %v2219 = vpop.f32.mrb[0].mxu0
    %2220 = vdwg.mxu0
    %2221 = vrot.lane.b32.xlu0 %v413, 64
    %v2222 = vpop.permute.xlu0 %2221
    %v2224 = vsel %vm1836, %v1823, 0
    %v2226 = vsel %vm1840, %v2222, 0
    %2228 = vmatprep.subr.mxu0 0.0
    %2229 = vmatpush1.msra.mxu0 %v2226
    %2230 = vmatprep.subr.mxu0 0.0
    %2231 = vmatpush1.msra.mxu0 0.0
    %2232 = vmatprep.subr.mxu0 0.0
    %2233 = vmatpush1.msra.mxu0 0.0
    %2234 = vmatprep.subr.mxu0 0.0
    %2235 = vmatpush1.msra.mxu0 0.0
    %2236 = vmatprep.subr.mxu0 0.0
    %2237 = vmatpush1.msra.mxu0 0.0
    %2238 = vmatprep.subr.mxu0 0.0
    %2239 = vmatpush1.msra.mxu0 0.0
    %2240 = vmatprep.subr.mxu0 0.0
    %2241 = vmatpush1.msra.mxu0 0.0
    %2242 = vmatprep.subr.mxu0 0.0
    %2243 = vmatpush1.msra.mxu0 0.0
    %2244 = vmatprep.subr.mxu0 0.0
    %2245 = vmatpush1.msra.mxu0 0.0
    %2246 = vmatprep.subr.mxu0 0.0
    %2247 = vmatpush1.msra.mxu0 0.0
    %2248 = vmatprep.subr.mxu0 0.0
    %2249 = vmatpush1.msra.mxu0 0.0
    %2250 = vmatprep.subr.mxu0 0.0
    %2251 = vmatpush1.msra.mxu0 0.0
    %2252 = vmatprep.subr.mxu0 0.0
    %2253 = vmatpush1.msra.mxu0 0.0
    %2254 = vmatprep.subr.mxu0 0.0
    %2255 = vmatpush1.msra.mxu0 0.0
    %2256 = vmatprep.subr.mxu0 0.0
    %2257 = vmatpush1.msra.mxu0 0.0
    %2258 = vmatprep.subr.mxu0 0.0
    %2259 = vmatpush1.msra.mxu0 0.0
    %2260 = vmatprep.subr.mxu0 0.0
    %2261 = vmatpush1.msra.mxu0 0.0
    %2262 = vmatprep.subr.mxu0 0.0
    %2263 = vmatpush1.msra.mxu0 0.0
    %2264 = vmatprep.subr.mxu0 0.0
    %2265 = vmatpush1.msra.mxu0 0.0
    %2266 = vmatprep.subr.mxu0 0.0
    %2267 = vmatpush1.msra.mxu0 0.0
    %2268 = vmatprep.subr.mxu0 0.0
    %2269 = vmatpush1.msra.mxu0 0.0
    %2270 = vmatprep.subr.mxu0 0.0
    %2271 = vmatpush1.msra.mxu0 0.0
    %2272 = vmatprep.subr.mxu0 0.0
    %2273 = vmatpush1.msra.mxu0 0.0
    %2274 = vmatprep.subr.mxu0 0.0
    %2275 = vmatpush1.msra.mxu0 0.0
    %2276 = vmatprep.subr.mxu0 0.0
    %2277 = vmatpush1.msra.mxu0 0.0
    %2278 = vmatprep.subr.mxu0 0.0
    %2279 = vmatpush1.msra.mxu0 0.0
    %2280 = vmatprep.subr.mxu0 0.0
    %2281 = vmatpush1.msra.mxu0 0.0
    %2282 = vmatprep.subr.mxu0 0.0
    %2283 = vmatpush1.msra.mxu0 0.0
    %2284 = vmatprep.subr.mxu0 0.0
    %2285 = vmatpush1.msra.mxu0 0.0
    %2286 = vmatprep.subr.mxu0 0.0
    %2287 = vmatpush1.msra.mxu0 0.0
    %2288 = vmatprep.subr.mxu0 0.0
    %2289 = vmatpush1.msra.mxu0 0.0
    %2290 = vmatprep.subr.mxu0 0.0
    %2291 = vmatpush1.msra.mxu0 0.0
    %2292 = vmatprep.mubr.f32.mxu0 0.0
    %2293 = vmatmul.mubr.f32.gmra.mrb[0].mxu0 %v2224
    %v2294 = vpop.f32.mrb[0].mxu0
    %v2295 = vadd.f32 0.0, %v2294
    %v2296 = vpop.f32.mrb[0].mxu0
    %2297 = vdwg.mxu0
    %2298 = vrot.lane.b32.xlu0 %v414, 64
    %v2299 = vpop.permute.xlu0 %2298
    %v2301 = vsel %vm1836, %v1824, 0
    %v2303 = vsel %vm1840, %v2299, 0
    %2305 = vmatprep.subr.mxu0 0.0
    %2306 = vmatpush1.msra.mxu0 %v2303
    %2307 = vmatprep.subr.mxu0 0.0
    %2308 = vmatpush1.msra.mxu0 0.0
    %2309 = vmatprep.subr.mxu0 0.0
    %2310 = vmatpush1.msra.mxu0 0.0
    %2311 = vmatprep.subr.mxu0 0.0
    %2312 = vmatpush1.msra.mxu0 0.0
    %2313 = vmatprep.subr.mxu0 0.0
    %2314 = vmatpush1.msra.mxu0 0.0
    %2315 = vmatprep.subr.mxu0 0.0
    %2316 = vmatpush1.msra.mxu0 0.0
    %2317 = vmatprep.subr.mxu0 0.0
    %2318 = vmatpush1.msra.mxu0 0.0
    %2319 = vmatprep.subr.mxu0 0.0
    %2320 = vmatpush1.msra.mxu0 0.0
    %2321 = vmatprep.subr.mxu0 0.0
    %2322 = vmatpush1.msra.mxu0 0.0
    %2323 = vmatprep.subr.mxu0 0.0
    %2324 = vmatpush1.msra.mxu0 0.0
    %2325 = vmatprep.subr.mxu0 0.0
    %2326 = vmatpush1.msra.mxu0 0.0
    %2327 = vmatprep.subr.mxu0 0.0
    %2328 = vmatpush1.msra.mxu0 0.0
    %2329 = vmatprep.subr.mxu0 0.0
    %2330 = vmatpush1.msra.mxu0 0.0
    %2331 = vmatprep.subr.mxu0 0.0
    %2332 = vmatpush1.msra.mxu0 0.0
    %2333 = vmatprep.subr.mxu0 0.0
    %2334 = vmatpush1.msra.mxu0 0.0
    %2335 = vmatprep.subr.mxu0 0.0
    %2336 = vmatpush1.msra.mxu0 0.0
    %2337 = vmatprep.subr.mxu0 0.0
    %2338 = vmatpush1.msra.mxu0 0.0
    %2339 = vmatprep.subr.mxu0 0.0
    %2340 = vmatpush1.msra.mxu0 0.0
    %2341 = vmatprep.subr.mxu0 0.0
    %2342 = vmatpush1.msra.mxu0 0.0
    %2343 = vmatprep.subr.mxu0 0.0
    %2344 = vmatpush1.msra.mxu0 0.0
    %2345 = vmatprep.subr.mxu0 0.0
    %2346 = vmatpush1.msra.mxu0 0.0
    %2347 = vmatprep.subr.mxu0 0.0
    %2348 = vmatpush1.msra.mxu0 0.0
    %2349 = vmatprep.subr.mxu0 0.0
    %2350 = vmatpush1.msra.mxu0 0.0
    %2351 = vmatprep.subr.mxu0 0.0
    %2352 = vmatpush1.msra.mxu0 0.0
    %2353 = vmatprep.subr.mxu0 0.0
    %2354 = vmatpush1.msra.mxu0 0.0
    %2355 = vmatprep.subr.mxu0 0.0
    %2356 = vmatpush1.msra.mxu0 0.0
    %2357 = vmatprep.subr.mxu0 0.0
    %2358 = vmatpush1.msra.mxu0 0.0
    %2359 = vmatprep.subr.mxu0 0.0
    %2360 = vmatpush1.msra.mxu0 0.0
    %2361 = vmatprep.subr.mxu0 0.0
    %2362 = vmatpush1.msra.mxu0 0.0
    %2363 = vmatprep.subr.mxu0 0.0
    %2364 = vmatpush1.msra.mxu0 0.0
    %2365 = vmatprep.subr.mxu0 0.0
    %2366 = vmatpush1.msra.mxu0 0.0
    %2367 = vmatprep.subr.mxu0 0.0
    %2368 = vmatpush1.msra.mxu0 0.0
    %2369 = vmatprep.mubr.f32.mxu0 0.0
    %2370 = vmatmul.mubr.f32.gmra.mrb[0].mxu0 %v2301
    %v2371 = vpop.f32.mrb[0].mxu0
    %v2372 = vadd.f32 0.0, %v2371
    %v2373 = vpop.f32.mrb[0].mxu0
    %2374 = vdwg.mxu0
    %2375 = vrot.lane.b32.xlu0 %v415, 64
    %v2376 = vpop.permute.xlu0 %2375
    %v2378 = vsel %vm1836, %v1825, 0
    %v2380 = vsel %vm1840, %v2376, 0
    %2382 = vmatprep.subr.mxu0 0.0
    %2383 = vmatpush1.msra.mxu0 %v2380
    %2384 = vmatprep.subr.mxu0 0.0
    %2385 = vmatpush1.msra.mxu0 0.0
    %2386 = vmatprep.subr.mxu0 0.0
    %2387 = vmatpush1.msra.mxu0 0.0
    %2388 = vmatprep.subr.mxu0 0.0
    %2389 = vmatpush1.msra.mxu0 0.0
    %2390 = vmatprep.subr.mxu0 0.0
    %2391 = vmatpush1.msra.mxu0 0.0
    %2392 = vmatprep.subr.mxu0 0.0
    %2393 = vmatpush1.msra.mxu0 0.0
    %2394 = vmatprep.subr.mxu0 0.0
    %2395 = vmatpush1.msra.mxu0 0.0
    %2396 = vmatprep.subr.mxu0 0.0
    %2397 = vmatpush1.msra.mxu0 0.0
    %2398 = vmatprep.subr.mxu0 0.0
    %2399 = vmatpush1.msra.mxu0 0.0
    %2400 = vmatprep.subr.mxu0 0.0
    %2401 = vmatpush1.msra.mxu0 0.0
    %2402 = vmatprep.subr.mxu0 0.0
    %2403 = vmatpush1.msra.mxu0 0.0
    %2404 = vmatprep.subr.mxu0 0.0
    %2405 = vmatpush1.msra.mxu0 0.0
    %2406 = vmatprep.subr.mxu0 0.0
    %2407 = vmatpush1.msra.mxu0 0.0
    %2408 = vmatprep.subr.mxu0 0.0
    %2409 = vmatpush1.msra.mxu0 0.0
    %2410 = vmatprep.subr.mxu0 0.0
    %2411 = vmatpush1.msra.mxu0 0.0
    %2412 = vmatprep.subr.mxu0 0.0
    %2413 = vmatpush1.msra.mxu0 0.0
    %2414 = vmatprep.subr.mxu0 0.0
    %2415 = vmatpush1.msra.mxu0 0.0
    %2416 = vmatprep.subr.mxu0 0.0
    %2417 = vmatpush1.msra.mxu0 0.0
    %2418 = vmatprep.subr.mxu0 0.0
    %2419 = vmatpush1.msra.mxu0 0.0
    %2420 = vmatprep.subr.mxu0 0.0
    %2421 = vmatpush1.msra.mxu0 0.0
    %2422 = vmatprep.subr.mxu0 0.0
    %2423 = vmatpush1.msra.mxu0 0.0
    %2424 = vmatprep.subr.mxu0 0.0
    %2425 = vmatpush1.msra.mxu0 0.0
    %2426 = vmatprep.subr.mxu0 0.0
    %2427 = vmatpush1.msra.mxu0 0.0
    %2428 = vmatprep.subr.mxu0 0.0
    %2429 = vmatpush1.msra.mxu0 0.0
    %2430 = vmatprep.subr.mxu0 0.0
    %2431 = vmatpush1.msra.mxu0 0.0
    %2432 = vmatprep.subr.mxu0 0.0
    %2433 = vmatpush1.msra.mxu0 0.0
    %2434 = vmatprep.subr.mxu0 0.0
    %2435 = vmatpush1.msra.mxu0 0.0
    %2436 = vmatprep.subr.mxu0 0.0
    %2437 = vmatpush1.msra.mxu0 0.0
    %2438 = vmatprep.subr.mxu0 0.0
    %2439 = vmatpush1.msra.mxu0 0.0
    %2440 = vmatprep.subr.mxu0 0.0
    %2441 = vmatpush1.msra.mxu0 0.0
    %2442 = vmatprep.subr.mxu0 0.0
    %2443 = vmatpush1.msra.mxu0 0.0
    %2444 = vmatprep.subr.mxu0 0.0
    %2445 = vmatpush1.msra.mxu0 0.0
    %2446 = vmatprep.mubr.f32.mxu0 0.0
    %2447 = vmatmul.mubr.f32.gmra.mrb[0].mxu0 %v2378
    %v2448 = vpop.f32.mrb[0].mxu0
    %v2449 = vadd.f32 0.0, %v2448
    %v2450 = vpop.f32.mrb[0].mxu0
    %2451 = vdwg.mxu0
    %2452 = vrot.lane.b32.xlu0 %v416, 64
    %v2453 = vpop.permute.xlu0 %2452
    %v2455 = vsel %vm1836, %v1826, 0
    %v2457 = vsel %vm1840, %v2453, 0
    %2459 = vmatprep.subr.mxu0 0.0
    %2460 = vmatpush1.msra.mxu0 %v2457
    %2461 = vmatprep.subr.mxu0 0.0
    %2462 = vmatpush1.msra.mxu0 0.0
    %2463 = vmatprep.subr.mxu0 0.0
    %2464 = vmatpush1.msra.mxu0 0.0
    %2465 = vmatprep.subr.mxu0 0.0
    %2466 = vmatpush1.msra.mxu0 0.0
    %2467 = vmatprep.subr.mxu0 0.0
    %2468 = vmatpush1.msra.mxu0 0.0
    %2469 = vmatprep.subr.mxu0 0.0
    %2470 = vmatpush1.msra.mxu0 0.0
    %2471 = vmatprep.subr.mxu0 0.0
    %2472 = vmatpush1.msra.mxu0 0.0
    %2473 = vmatprep.subr.mxu0 0.0
    %2474 = vmatpush1.msra.mxu0 0.0
    %2475 = vmatprep.subr.mxu0 0.0
    %2476 = vmatpush1.msra.mxu0 0.0
    %2477 = vmatprep.subr.mxu0 0.0
    %2478 = vmatpush1.msra.mxu0 0.0
    %2479 = vmatprep.subr.mxu0 0.0
    %2480 = vmatpush1.msra.mxu0 0.0
    %2481 = vmatprep.subr.mxu0 0.0
    %2482 = vmatpush1.msra.mxu0 0.0
    %2483 = vmatprep.subr.mxu0 0.0
    %2484 = vmatpush1.msra.mxu0 0.0
    %2485 = vmatprep.subr.mxu0 0.0
    %2486 = vmatpush1.msra.mxu0 0.0
    %2487 = vmatprep.subr.mxu0 0.0
    %2488 = vmatpush1.msra.mxu0 0.0
    %2489 = vmatprep.subr.mxu0 0.0
    %2490 = vmatpush1.msra.mxu0 0.0
    %2491 = vmatprep.subr.mxu0 0.0
    %2492 = vmatpush1.msra.mxu0 0.0
    %2493 = vmatprep.subr.mxu0 0.0
    %2494 = vmatpush1.msra.mxu0 0.0
    %2495 = vmatprep.subr.mxu0 0.0
    %2496 = vmatpush1.msra.mxu0 0.0
    %2497 = vmatprep.subr.mxu0 0.0
    %2498 = vmatpush1.msra.mxu0 0.0
    %2499 = vmatprep.subr.mxu0 0.0
    %2500 = vmatpush1.msra.mxu0 0.0
    %2501 = vmatprep.subr.mxu0 0.0
    %2502 = vmatpush1.msra.mxu0 0.0
    %2503 = vmatprep.subr.mxu0 0.0
    %2504 = vmatpush1.msra.mxu0 0.0
    %2505 = vmatprep.subr.mxu0 0.0
    %2506 = vmatpush1.msra.mxu0 0.0
    %2507 = vmatprep.subr.mxu0 0.0
    %2508 = vmatpush1.msra.mxu0 0.0
    %2509 = vmatprep.subr.mxu0 0.0
    %2510 = vmatpush1.msra.mxu0 0.0
    %2511 = vmatprep.subr.mxu0 0.0
    %2512 = vmatpush1.msra.mxu0 0.0
    %2513 = vmatprep.subr.mxu0 0.0
    %2514 = vmatpush1.msra.mxu0 0.0
    %2515 = vmatprep.subr.mxu0 0.0
    %2516 = vmatpush1.msra.mxu0 0.0
    %2517 = vmatprep.subr.mxu0 0.0
    %2518 = vmatpush1.msra.mxu0 0.0
    %2519 = vmatprep.subr.mxu0 0.0
    %2520 = vmatpush1.msra.mxu0 0.0
    %2521 = vmatprep.subr.mxu0 0.0
    %2522 = vmatpush1.msra.mxu0 0.0
    %2523 = vmatprep.mubr.f32.mxu0 0.0
    %2524 = vmatmul.mubr.f32.gmra.mrb[0].mxu0 %v2455
    %v2525 = vpop.f32.mrb[0].mxu0
    %v2526 = vadd.f32 0.0, %v2525
    %v2527 = vpop.f32.mrb[0].mxu0
    %2528 = vdwg.mxu0
    %2529 = vrot.lane.b32.xlu0 %v417, 64
    %v2530 = vpop.permute.xlu0 %2529
    %v2532 = vsel %vm1836, %v1827, 0
    %v2534 = vsel %vm1840, %v2530, 0
    %2536 = vmatprep.subr.mxu0 0.0
    %2537 = vmatpush1.msra.mxu0 %v2534
    %2538 = vmatprep.subr.mxu0 0.0
    %2539 = vmatpush1.msra.mxu0 0.0
    %2540 = vmatprep.subr.mxu0 0.0
    %2541 = vmatpush1.msra.mxu0 0.0
    %2542 = vmatprep.subr.mxu0 0.0
    %2543 = vmatpush1.msra.mxu0 0.0
    %2544 = vmatprep.subr.mxu0 0.0
    %2545 = vmatpush1.msra.mxu0 0.0
    %2546 = vmatprep.subr.mxu0 0.0
    %2547 = vmatpush1.msra.mxu0 0.0
    %2548 = vmatprep.subr.mxu0 0.0
    %2549 = vmatpush1.msra.mxu0 0.0
    %2550 = vmatprep.subr.mxu0 0.0
    %2551 = vmatpush1.msra.mxu0 0.0
    %2552 = vmatprep.subr.mxu0 0.0
    %2553 = vmatpush1.msra.mxu0 0.0
    %2554 = vmatprep.subr.mxu0 0.0
    %2555 = vmatpush1.msra.mxu0 0.0
    %2556 = vmatprep.subr.mxu0 0.0
    %2557 = vmatpush1.msra.mxu0 0.0
    %2558 = vmatprep.subr.mxu0 0.0
    %2559 = vmatpush1.msra.mxu0 0.0
    %2560 = vmatprep.subr.mxu0 0.0
    %2561 = vmatpush1.msra.mxu0 0.0
    %2562 = vmatprep.subr.mxu0 0.0
    %2563 = vmatpush1.msra.mxu0 0.0
    %2564 = vmatprep.subr.mxu0 0.0
    %2565 = vmatpush1.msra.mxu0 0.0
    %2566 = vmatprep.subr.mxu0 0.0
    %2567 = vmatpush1.msra.mxu0 0.0
    %2568 = vmatprep.subr.mxu0 0.0
    %2569 = vmatpush1.msra.mxu0 0.0
    %2570 = vmatprep.subr.mxu0 0.0
    %2571 = vmatpush1.msra.mxu0 0.0
    %2572 = vmatprep.subr.mxu0 0.0
    %2573 = vmatpush1.msra.mxu0 0.0
    %2574 = vmatprep.subr.mxu0 0.0
    %2575 = vmatpush1.msra.mxu0 0.0
    %2576 = vmatprep.subr.mxu0 0.0
    %2577 = vmatpush1.msra.mxu0 0.0
    %2578 = vmatprep.subr.mxu0 0.0
    %2579 = vmatpush1.msra.mxu0 0.0
    %2580 = vmatprep.subr.mxu0 0.0
    %2581 = vmatpush1.msra.mxu0 0.0
    %2582 = vmatprep.subr.mxu0 0.0
    %2583 = vmatpush1.msra.mxu0 0.0
    %2584 = vmatprep.subr.mxu0 0.0
    %2585 = vmatpush1.msra.mxu0 0.0
    %2586 = vmatprep.subr.mxu0 0.0
    %2587 = vmatpush1.msra.mxu0 0.0
    %2588 = vmatprep.subr.mxu0 0.0
    %2589 = vmatpush1.msra.mxu0 0.0
    %2590 = vmatprep.subr.mxu0 0.0
    %2591 = vmatpush1.msra.mxu0 0.0
    %2592 = vmatprep.subr.mxu0 0.0
    %2593 = vmatpush1.msra.mxu0 0.0
    %2594 = vmatprep.subr.mxu0 0.0
    %2595 = vmatpush1.msra.mxu0 0.0
    %2596 = vmatprep.subr.mxu0 0.0
    %2597 = vmatpush1.msra.mxu0 0.0
    %2598 = vmatprep.subr.mxu0 0.0
    %2599 = vmatpush1.msra.mxu0 0.0
    %2600 = vmatprep.mubr.f32.mxu0 0.0
    %2601 = vmatmul.mubr.f32.gmra.mrb[0].mxu0 %v2532
    %v2602 = vpop.f32.mrb[0].mxu0
    %v2603 = vadd.f32 0.0, %v2602
    %v2604 = vpop.f32.mrb[0].mxu0
    %2605 = vdwg.mxu0
    %2606 = vrot.lane.b32.xlu0 %v418, 64
    %v2607 = vpop.permute.xlu0 %2606
    %v2609 = vsel %vm1836, %v1828, 0
    %v2611 = vsel %vm1840, %v2607, 0
    %2613 = vmatprep.subr.mxu0 0.0
    %2614 = vmatpush1.msra.mxu0 %v2611
    %2615 = vmatprep.subr.mxu0 0.0
    %2616 = vmatpush1.msra.mxu0 0.0
    %2617 = vmatprep.subr.mxu0 0.0
    %2618 = vmatpush1.msra.mxu0 0.0
    %2619 = vmatprep.subr.mxu0 0.0
    %2620 = vmatpush1.msra.mxu0 0.0
    %2621 = vmatprep.subr.mxu0 0.0
    %2622 = vmatpush1.msra.mxu0 0.0
    %2623 = vmatprep.subr.mxu0 0.0
    %2624 = vmatpush1.msra.mxu0 0.0
    %2625 = vmatprep.subr.mxu0 0.0
    %2626 = vmatpush1.msra.mxu0 0.0
    %2627 = vmatprep.subr.mxu0 0.0
    %2628 = vmatpush1.msra.mxu0 0.0
    %2629 = vmatprep.subr.mxu0 0.0
    %2630 = vmatpush1.msra.mxu0 0.0
    %2631 = vmatprep.subr.mxu0 0.0
    %2632 = vmatpush1.msra.mxu0 0.0
    %2633 = vmatprep.subr.mxu0 0.0
    %2634 = vmatpush1.msra.mxu0 0.0
    %2635 = vmatprep.subr.mxu0 0.0
    %2636 = vmatpush1.msra.mxu0 0.0
    %2637 = vmatprep.subr.mxu0 0.0
    %2638 = vmatpush1.msra.mxu0 0.0
    %2639 = vmatprep.subr.mxu0 0.0
    %2640 = vmatpush1.msra.mxu0 0.0
    %2641 = vmatprep.subr.mxu0 0.0
    %2642 = vmatpush1.msra.mxu0 0.0
    %2643 = vmatprep.subr.mxu0 0.0
    %2644 = vmatpush1.msra.mxu0 0.0
    %2645 = vmatprep.subr.mxu0 0.0
    %2646 = vmatpush1.msra.mxu0 0.0
    %2647 = vmatprep.subr.mxu0 0.0
    %2648 = vmatpush1.msra.mxu0 0.0
    %2649 = vmatprep.subr.mxu0 0.0
    %2650 = vmatpush1.msra.mxu0 0.0
    %2651 = vmatprep.subr.mxu0 0.0
    %2652 = vmatpush1.msra.mxu0 0.0
    %2653 = vmatprep.subr.mxu0 0.0
    %2654 = vmatpush1.msra.mxu0 0.0
    %2655 = vmatprep.subr.mxu0 0.0
    %2656 = vmatpush1.msra.mxu0 0.0
    %2657 = vmatprep.subr.mxu0 0.0
    %2658 = vmatpush1.msra.mxu0 0.0
    %2659 = vmatprep.subr.mxu0 0.0
    %2660 = vmatpush1.msra.mxu0 0.0
    %2661 = vmatprep.subr.mxu0 0.0
    %2662 = vmatpush1.msra.mxu0 0.0
    %2663 = vmatprep.subr.mxu0 0.0
    %2664 = vmatpush1.msra.mxu0 0.0
    %2665 = vmatprep.subr.mxu0 0.0
    %2666 = vmatpush1.msra.mxu0 0.0
    %2667 = vmatprep.subr.mxu0 0.0
    %2668 = vmatpush1.msra.mxu0 0.0
    %2669 = vmatprep.subr.mxu0 0.0
    %2670 = vmatpush1.msra.mxu0 0.0
    %2671 = vmatprep.subr.mxu0 0.0
    %2672 = vmatpush1.msra.mxu0 0.0
    %2673 = vmatprep.subr.mxu0 0.0
    %2674 = vmatpush1.msra.mxu0 0.0
    %2675 = vmatprep.subr.mxu0 0.0
    %2676 = vmatpush1.msra.mxu0 0.0
    %2677 = vmatprep.mubr.f32.mxu0 0.0
    %2678 = vmatmul.mubr.f32.gmra.mrb[0].mxu0 %v2609
    %v2679 = vpop.f32.mrb[0].mxu0
    %v2680 = vadd.f32 0.0, %v2679
    %v2681 = vpop.f32.mrb[0].mxu0
    %2682 = vdwg.mxu0
    %2683 = vrot.lane.b32.xlu0 %v419, 64
    %v2684 = vpop.permute.xlu0 %2683
    %v2686 = vsel %vm1836, %v1829, 0
    %v2688 = vsel %vm1840, %v2684, 0
    %2690 = vmatprep.subr.mxu0 0.0
    %2691 = vmatpush1.msra.mxu0 %v2688
    %2692 = vmatprep.subr.mxu0 0.0
    %2693 = vmatpush1.msra.mxu0 0.0
    %2694 = vmatprep.subr.mxu0 0.0
    %2695 = vmatpush1.msra.mxu0 0.0
    %2696 = vmatprep.subr.mxu0 0.0
    %2697 = vmatpush1.msra.mxu0 0.0
    %2698 = vmatprep.subr.mxu0 0.0
    %2699 = vmatpush1.msra.mxu0 0.0
    %2700 = vmatprep.subr.mxu0 0.0
    %2701 = vmatpush1.msra.mxu0 0.0
    %2702 = vmatprep.subr.mxu0 0.0
    %2703 = vmatpush1.msra.mxu0 0.0
    %2704 = vmatprep.subr.mxu0 0.0
    %2705 = vmatpush1.msra.mxu0 0.0
    %2706 = vmatprep.subr.mxu0 0.0
    %2707 = vmatpush1.msra.mxu0 0.0
    %2708 = vmatprep.subr.mxu0 0.0
    %2709 = vmatpush1.msra.mxu0 0.0
    %2710 = vmatprep.subr.mxu0 0.0
    %2711 = vmatpush1.msra.mxu0 0.0
    %2712 = vmatprep.subr.mxu0 0.0
    %2713 = vmatpush1.msra.mxu0 0.0
    %2714 = vmatprep.subr.mxu0 0.0
    %2715 = vmatpush1.msra.mxu0 0.0
    %2716 = vmatprep.subr.mxu0 0.0
    %2717 = vmatpush1.msra.mxu0 0.0
    %2718 = vmatprep.subr.mxu0 0.0
    %2719 = vmatpush1.msra.mxu0 0.0
    %2720 = vmatprep.subr.mxu0 0.0
    %2721 = vmatpush1.msra.mxu0 0.0
    %2722 = vmatprep.subr.mxu0 0.0
    %2723 = vmatpush1.msra.mxu0 0.0
    %2724 = vmatprep.subr.mxu0 0.0
    %2725 = vmatpush1.msra.mxu0 0.0
    %2726 = vmatprep.subr.mxu0 0.0
    %2727 = vmatpush1.msra.mxu0 0.0
    %2728 = vmatprep.subr.mxu0 0.0
    %2729 = vmatpush1.msra.mxu0 0.0
    %2730 = vmatprep.subr.mxu0 0.0
    %2731 = vmatpush1.msra.mxu0 0.0
    %2732 = vmatprep.subr.mxu0 0.0
    %2733 = vmatpush1.msra.mxu0 0.0
    %2734 = vmatprep.subr.mxu0 0.0
    %2735 = vmatpush1.msra.mxu0 0.0
    %2736 = vmatprep.subr.mxu0 0.0
    %2737 = vmatpush1.msra.mxu0 0.0
    %2738 = vmatprep.subr.mxu0 0.0
    %2739 = vmatpush1.msra.mxu0 0.0
    %2740 = vmatprep.subr.mxu0 0.0
    %2741 = vmatpush1.msra.mxu0 0.0
    %2742 = vmatprep.subr.mxu0 0.0
    %2743 = vmatpush1.msra.mxu0 0.0
    %2744 = vmatprep.subr.mxu0 0.0
    %2745 = vmatpush1.msra.mxu0 0.0
    %2746 = vmatprep.subr.mxu0 0.0
    %2747 = vmatpush1.msra.mxu0 0.0
    %2748 = vmatprep.subr.mxu0 0.0
    %2749 = vmatpush1.msra.mxu0 0.0
    %2750 = vmatprep.subr.mxu0 0.0
    %2751 = vmatpush1.msra.mxu0 0.0
    %2752 = vmatprep.subr.mxu0 0.0
    %2753 = vmatpush1.msra.mxu0 0.0
    %2754 = vmatprep.mubr.f32.mxu0 0.0
    %2755 = vmatmul.mubr.f32.gmra.mrb[0].mxu0 %v2686
    %v2756 = vpop.f32.mrb[0].mxu0
    %v2757 = vadd.f32 0.0, %v2756
    %v2758 = vpop.f32.mrb[0].mxu0
    %2759 = vdwg.mxu0
    %2760 = vrot.lane.b32.xlu0 %v420, 64
    %v2761 = vpop.permute.xlu0 %2760
    %v2763 = vsel %vm1836, %v1830, 0
    %v2765 = vsel %vm1840, %v2761, 0
    %2767 = vmatprep.subr.mxu0 0.0
    %2768 = vmatpush1.msra.mxu0 %v2765
    %2769 = vmatprep.subr.mxu0 0.0
    %2770 = vmatpush1.msra.mxu0 0.0
    %2771 = vmatprep.subr.mxu0 0.0
    %2772 = vmatpush1.msra.mxu0 0.0
    %2773 = vmatprep.subr.mxu0 0.0
    %2774 = vmatpush1.msra.mxu0 0.0
    %2775 = vmatprep.subr.mxu0 0.0
    %2776 = vmatpush1.msra.mxu0 0.0
    %2777 = vmatprep.subr.mxu0 0.0
    %2778 = vmatpush1.msra.mxu0 0.0
    %2779 = vmatprep.subr.mxu0 0.0
    %2780 = vmatpush1.msra.mxu0 0.0
    %2781 = vmatprep.subr.mxu0 0.0
    %2782 = vmatpush1.msra.mxu0 0.0
    %2783 = vmatprep.subr.mxu0 0.0
    %2784 = vmatpush1.msra.mxu0 0.0
    %2785 = vmatprep.subr.mxu0 0.0
    %2786 = vmatpush1.msra.mxu0 0.0
    %2787 = vmatprep.subr.mxu0 0.0
    %2788 = vmatpush1.msra.mxu0 0.0
    %2789 = vmatprep.subr.mxu0 0.0
    %2790 = vmatpush1.msra.mxu0 0.0
    %2791 = vmatprep.subr.mxu0 0.0
    %2792 = vmatpush1.msra.mxu0 0.0
    %2793 = vmatprep.subr.mxu0 0.0
    %2794 = vmatpush1.msra.mxu0 0.0
    %2795 = vmatprep.subr.mxu0 0.0
    %2796 = vmatpush1.msra.mxu0 0.0
    %2797 = vmatprep.subr.mxu0 0.0
    %2798 = vmatpush1.msra.mxu0 0.0
    %2799 = vmatprep.subr.mxu0 0.0
    %2800 = vmatpush1.msra.mxu0 0.0
    %2801 = vmatprep.subr.mxu0 0.0
    %2802 = vmatpush1.msra.mxu0 0.0
    %2803 = vmatprep.subr.mxu0 0.0
    %2804 = vmatpush1.msra.mxu0 0.0
    %2805 = vmatprep.subr.mxu0 0.0
    %2806 = vmatpush1.msra.mxu0 0.0
    %2807 = vmatprep.subr.mxu0 0.0
    %2808 = vmatpush1.msra.mxu0 0.0
    %2809 = vmatprep.subr.mxu0 0.0
    %2810 = vmatpush1.msra.mxu0 0.0
    %2811 = vmatprep.subr.mxu0 0.0
    %2812 = vmatpush1.msra.mxu0 0.0
    %2813 = vmatprep.subr.mxu0 0.0
    %2814 = vmatpush1.msra.mxu0 0.0
    %2815 = vmatprep.subr.mxu0 0.0
    %2816 = vmatpush1.msra.mxu0 0.0
    %2817 = vmatprep.subr.mxu0 0.0
    %2818 = vmatpush1.msra.mxu0 0.0
    %2819 = vmatprep.subr.mxu0 0.0
    %2820 = vmatpush1.msra.mxu0 0.0
    %2821 = vmatprep.subr.mxu0 0.0
    %2822 = vmatpush1.msra.mxu0 0.0
    %2823 = vmatprep.subr.mxu0 0.0
    %2824 = vmatpush1.msra.mxu0 0.0
    %2825 = vmatprep.subr.mxu0 0.0
    %2826 = vmatpush1.msra.mxu0 0.0
    %2827 = vmatprep.subr.mxu0 0.0
    %2828 = vmatpush1.msra.mxu0 0.0
    %2829 = vmatprep.subr.mxu0 0.0
    %2830 = vmatpush1.msra.mxu0 0.0
    %2831 = vmatprep.mubr.f32.mxu0 0.0
    %2832 = vmatmul.mubr.f32.gmra.mrb[0].mxu0 %v2763
    %v2833 = vpop.f32.mrb[0].mxu0
    %v2834 = vadd.f32 0.0, %v2833
    %v2835 = vpop.f32.mrb[0].mxu0
    %2836 = vdwg.mxu0
    %2837 = vrot.lane.b32.xlu0 %v421, 64
    %v2838 = vpop.permute.xlu0 %2837
    %v2840 = vsel %vm1836, %v1831, 0
    %v2842 = vsel %vm1840, %v2838, 0
    %2844 = vmatprep.subr.mxu0 0.0
    %2845 = vmatpush1.msra.mxu0 %v2842
    %2846 = vmatprep.subr.mxu0 0.0
    %2847 = vmatpush1.msra.mxu0 0.0
    %2848 = vmatprep.subr.mxu0 0.0
    %2849 = vmatpush1.msra.mxu0 0.0
    %2850 = vmatprep.subr.mxu0 0.0
    %2851 = vmatpush1.msra.mxu0 0.0
    %2852 = vmatprep.subr.mxu0 0.0
    %2853 = vmatpush1.msra.mxu0 0.0
    %2854 = vmatprep.subr.mxu0 0.0
    %2855 = vmatpush1.msra.mxu0 0.0
    %2856 = vmatprep.subr.mxu0 0.0
    %2857 = vmatpush1.msra.mxu0 0.0
    %2858 = vmatprep.subr.mxu0 0.0
    %2859 = vmatpush1.msra.mxu0 0.0
    %2860 = vmatprep.subr.mxu0 0.0
    %2861 = vmatpush1.msra.mxu0 0.0
    %2862 = vmatprep.subr.mxu0 0.0
    %2863 = vmatpush1.msra.mxu0 0.0
    %2864 = vmatprep.subr.mxu0 0.0
    %2865 = vmatpush1.msra.mxu0 0.0
    %2866 = vmatprep.subr.mxu0 0.0
    %2867 = vmatpush1.msra.mxu0 0.0
    %2868 = vmatprep.subr.mxu0 0.0
    %2869 = vmatpush1.msra.mxu0 0.0
    %2870 = vmatprep.subr.mxu0 0.0
    %2871 = vmatpush1.msra.mxu0 0.0
    %2872 = vmatprep.subr.mxu0 0.0
    %2873 = vmatpush1.msra.mxu0 0.0
    %2874 = vmatprep.subr.mxu0 0.0
    %2875 = vmatpush1.msra.mxu0 0.0
    %2876 = vmatprep.subr.mxu0 0.0
    %2877 = vmatpush1.msra.mxu0 0.0
    %2878 = vmatprep.subr.mxu0 0.0
    %2879 = vmatpush1.msra.mxu0 0.0
    %2880 = vmatprep.subr.mxu0 0.0
    %2881 = vmatpush1.msra.mxu0 0.0
    %2882 = vmatprep.subr.mxu0 0.0
    %2883 = vmatpush1.msra.mxu0 0.0
    %2884 = vmatprep.subr.mxu0 0.0
    %2885 = vmatpush1.msra.mxu0 0.0
    %2886 = vmatprep.subr.mxu0 0.0
    %2887 = vmatpush1.msra.mxu0 0.0
    %2888 = vmatprep.subr.mxu0 0.0
    %2889 = vmatpush1.msra.mxu0 0.0
    %2890 = vmatprep.subr.mxu0 0.0
    %2891 = vmatpush1.msra.mxu0 0.0
    %2892 = vmatprep.subr.mxu0 0.0
    %2893 = vmatpush1.msra.mxu0 0.0
    %2894 = vmatprep.subr.mxu0 0.0
    %2895 = vmatpush1.msra.mxu0 0.0
    %2896 = vmatprep.subr.mxu0 0.0
    %2897 = vmatpush1.msra.mxu0 0.0
    %2898 = vmatprep.subr.mxu0 0.0
    %2899 = vmatpush1.msra.mxu0 0.0
    %2900 = vmatprep.subr.mxu0 0.0
    %2901 = vmatpush1.msra.mxu0 0.0
    %2902 = vmatprep.subr.mxu0 0.0
    %2903 = vmatpush1.msra.mxu0 0.0
    %2904 = vmatprep.subr.mxu0 0.0
    %2905 = vmatpush1.msra.mxu0 0.0
    %2906 = vmatprep.subr.mxu0 0.0
    %2907 = vmatpush1.msra.mxu0 0.0
    %2908 = vmatprep.mubr.f32.mxu0 0.0
    %2909 = vmatmul.mubr.f32.gmra.mrb[0].mxu0 %v2840
    %v2910 = vpop.f32.mrb[0].mxu0
    %v2911 = vadd.f32 0.0, %v2910
    %v2912 = vpop.f32.mrb[0].mxu0
    %2913 = vdwg.mxu0
    %2914 = vrot.lane.b32.xlu0 %v422, 64
    %v2915 = vpop.permute.xlu0 %2914
    %v2917 = vsel %vm1836, %v1832, 0
    %v2919 = vsel %vm1840, %v2915, 0
    %2921 = vmatprep.subr.mxu0 0.0
    %2922 = vmatpush1.msra.mxu0 %v2919
    %2923 = vmatprep.subr.mxu0 0.0
    %2924 = vmatpush1.msra.mxu0 0.0
    %2925 = vmatprep.subr.mxu0 0.0
    %2926 = vmatpush1.msra.mxu0 0.0
    %2927 = vmatprep.subr.mxu0 0.0
    %2928 = vmatpush1.msra.mxu0 0.0
    %2929 = vmatprep.subr.mxu0 0.0
    %2930 = vmatpush1.msra.mxu0 0.0
    %2931 = vmatprep.subr.mxu0 0.0
    %2932 = vmatpush1.msra.mxu0 0.0
    %2933 = vmatprep.subr.mxu0 0.0
    %2934 = vmatpush1.msra.mxu0 0.0
    %2935 = vmatprep.subr.mxu0 0.0
    %2936 = vmatpush1.msra.mxu0 0.0
    %2937 = vmatprep.subr.mxu0 0.0
    %2938 = vmatpush1.msra.mxu0 0.0
    %2939 = vmatprep.subr.mxu0 0.0
    %2940 = vmatpush1.msra.mxu0 0.0
    %2941 = vmatprep.subr.mxu0 0.0
    %2942 = vmatpush1.msra.mxu0 0.0
    %2943 = vmatprep.subr.mxu0 0.0
    %2944 = vmatpush1.msra.mxu0 0.0
    %2945 = vmatprep.subr.mxu0 0.0
    %2946 = vmatpush1.msra.mxu0 0.0
    %2947 = vmatprep.subr.mxu0 0.0
    %2948 = vmatpush1.msra.mxu0 0.0
    %2949 = vmatprep.subr.mxu0 0.0
    %2950 = vmatpush1.msra.mxu0 0.0
    %2951 = vmatprep.subr.mxu0 0.0
    %2952 = vmatpush1.msra.mxu0 0.0
    %2953 = vmatprep.subr.mxu0 0.0
    %2954 = vmatpush1.msra.mxu0 0.0
    %2955 = vmatprep.subr.mxu0 0.0
    %2956 = vmatpush1.msra.mxu0 0.0
    %2957 = vmatprep.subr.mxu0 0.0
    %2958 = vmatpush1.msra.mxu0 0.0
    %2959 = vmatprep.subr.mxu0 0.0
    %2960 = vmatpush1.msra.mxu0 0.0
    %2961 = vmatprep.subr.mxu0 0.0
    %2962 = vmatpush1.msra.mxu0 0.0
    %2963 = vmatprep.subr.mxu0 0.0
    %2964 = vmatpush1.msra.mxu0 0.0
    %2965 = vmatprep.subr.mxu0 0.0
    %2966 = vmatpush1.msra.mxu0 0.0
    %2967 = vmatprep.subr.mxu0 0.0
    %2968 = vmatpush1.msra.mxu0 0.0
    %2969 = vmatprep.subr.mxu0 0.0
    %2970 = vmatpush1.msra.mxu0 0.0
    %2971 = vmatprep.subr.mxu0 0.0
    %2972 = vmatpush1.msra.mxu0 0.0
    %2973 = vmatprep.subr.mxu0 0.0
    %2974 = vmatpush1.msra.mxu0 0.0
    %2975 = vmatprep.subr.mxu0 0.0
    %2976 = vmatpush1.msra.mxu0 0.0
    %2977 = vmatprep.subr.mxu0 0.0
    %2978 = vmatpush1.msra.mxu0 0.0
    %2979 = vmatprep.subr.mxu0 0.0
    %2980 = vmatpush1.msra.mxu0 0.0
    %2981 = vmatprep.subr.mxu0 0.0
    %2982 = vmatpush1.msra.mxu0 0.0
    %2983 = vmatprep.subr.mxu0 0.0
    %2984 = vmatpush1.msra.mxu0 0.0
    %2985 = vmatprep.mubr.f32.mxu0 0.0
    %2986 = vmatmul.mubr.f32.gmra.mrb[0].mxu0 %v2917
    %v2987 = vpop.f32.mrb[0].mxu0
    %v2988 = vadd.f32 0.0, %v2987
    %v2989 = vpop.f32.mrb[0].mxu0
    %2990 = vdwg.mxu0
    %2991 = vrot.lane.b32.xlu0 %v423, 64
    %v2992 = vpop.permute.xlu0 %2991
    %v2994 = vsel %vm1836, %v1833, 0
    %v2996 = vsel %vm1840, %v2992, 0
    %2998 = vmatprep.subr.mxu0 0.0
    %2999 = vmatpush1.msra.mxu0 %v2996
    %3000 = vmatprep.subr.mxu0 0.0
    %3001 = vmatpush1.msra.mxu0 0.0
    %3002 = vmatprep.subr.mxu0 0.0
    %3003 = vmatpush1.msra.mxu0 0.0
    %3004 = vmatprep.subr.mxu0 0.0
    %3005 = vmatpush1.msra.mxu0 0.0
    %3006 = vmatprep.subr.mxu0 0.0
    %3007 = vmatpush1.msra.mxu0 0.0
    %3008 = vmatprep.subr.mxu0 0.0
    %3009 = vmatpush1.msra.mxu0 0.0
    %3010 = vmatprep.subr.mxu0 0.0
    %3011 = vmatpush1.msra.mxu0 0.0
    %3012 = vmatprep.subr.mxu0 0.0
    %3013 = vmatpush1.msra.mxu0 0.0
    %3014 = vmatprep.subr.mxu0 0.0
    %3015 = vmatpush1.msra.mxu0 0.0
    %3016 = vmatprep.subr.mxu0 0.0
    %3017 = vmatpush1.msra.mxu0 0.0
    %3018 = vmatprep.subr.mxu0 0.0
    %3019 = vmatpush1.msra.mxu0 0.0
    %3020 = vmatprep.subr.mxu0 0.0
    %3021 = vmatpush1.msra.mxu0 0.0
    %3022 = vmatprep.subr.mxu0 0.0
    %3023 = vmatpush1.msra.mxu0 0.0
    %3024 = vmatprep.subr.mxu0 0.0
    %3025 = vmatpush1.msra.mxu0 0.0
    %3026 = vmatprep.subr.mxu0 0.0
    %3027 = vmatpush1.msra.mxu0 0.0
    %3028 = vmatprep.subr.mxu0 0.0
    %3029 = vmatpush1.msra.mxu0 0.0
    %3030 = vmatprep.subr.mxu0 0.0
    %3031 = vmatpush1.msra.mxu0 0.0
    %3032 = vmatprep.subr.mxu0 0.0
    %3033 = vmatpush1.msra.mxu0 0.0
    %3034 = vmatprep.subr.mxu0 0.0
    %3035 = vmatpush1.msra.mxu0 0.0
    %3036 = vmatprep.subr.mxu0 0.0
    %3037 = vmatpush1.msra.mxu0 0.0
    %3038 = vmatprep.subr.mxu0 0.0
    %3039 = vmatpush1.msra.mxu0 0.0
    %3040 = vmatprep.subr.mxu0 0.0
    %3041 = vmatpush1.msra.mxu0 0.0
    %3042 = vmatprep.subr.mxu0 0.0
    %3043 = vmatpush1.msra.mxu0 0.0
    %3044 = vmatprep.subr.mxu0 0.0
    %3045 = vmatpush1.msra.mxu0 0.0
    %3046 = vmatprep.subr.mxu0 0.0
    %3047 = vmatpush1.msra.mxu0 0.0
    %3048 = vmatprep.subr.mxu0 0.0
    %3049 = vmatpush1.msra.mxu0 0.0
    %3050 = vmatprep.subr.mxu0 0.0
    %3051 = vmatpush1.msra.mxu0 0.0
    %3052 = vmatprep.subr.mxu0 0.0
    %3053 = vmatpush1.msra.mxu0 0.0
    %3054 = vmatprep.subr.mxu0 0.0
    %3055 = vmatpush1.msra.mxu0 0.0
    %3056 = vmatprep.subr.mxu0 0.0
    %3057 = vmatpush1.msra.mxu0 0.0
    %3058 = vmatprep.subr.mxu0 0.0
    %3059 = vmatpush1.msra.mxu0 0.0
    %3060 = vmatprep.subr.mxu0 0.0
    %3061 = vmatpush1.msra.mxu0 0.0
    %3062 = vmatprep.mubr.f32.mxu0 0.0
    %3063 = vmatmul.mubr.f32.gmra.mrb[0].mxu0 %v2994
    %v3064 = vpop.f32.mrb[0].mxu0
    %v3065 = vadd.f32 0.0, %v3064
    %v3066 = vpop.f32.mrb[0].mxu0
    %3067 = vdwg.mxu0
    %3068 = vrot.lane.b32.xlu0 %v408, 120
    %v3069 = vpop.permute.xlu0 %3068
    %3070 = vrot.lane.b32.xlu0 %v408, 88
    %v3071 = vpop.permute.xlu0 %3070
    %v3072 = vsel %vm427, %v3069, 0
    %v3074 = vsel %vm427, %v3071, 0
    %3076 = vmatprep.subr.mxu0 0.0
    %3077 = vmatpush1.xpose.msra.mxu0 %v3074
    %3078 = vmatprep.subr.mxu0 0.0
    %3079 = vmatpush1.xpose.msra.mxu0 0.0
    %3080 = vmatprep.subr.mxu0 0.0
    %3081 = vmatpush1.xpose.msra.mxu0 0.0
    %3082 = vmatprep.subr.mxu0 0.0
    %3083 = vmatpush1.xpose.msra.mxu0 0.0
    %3084 = vmatprep.subr.mxu0 0.0
    %3085 = vmatpush1.xpose.msra.mxu0 0.0
    %3086 = vmatprep.subr.mxu0 0.0
    %3087 = vmatpush1.xpose.msra.mxu0 0.0
    %3088 = vmatprep.subr.mxu0 0.0
    %3089 = vmatpush1.xpose.msra.mxu0 0.0
    %3090 = vmatprep.subr.mxu0 0.0
    %3091 = vmatpush1.xpose.msra.mxu0 0.0
    %3092 = vmatprep.subr.mxu0 0.0
    %3093 = vmatpush1.xpose.msra.mxu0 0.0
    %3094 = vmatprep.subr.mxu0 0.0
    %3095 = vmatpush1.xpose.msra.mxu0 0.0
    %3096 = vmatprep.subr.mxu0 0.0
    %3097 = vmatpush1.xpose.msra.mxu0 0.0
    %3098 = vmatprep.subr.mxu0 0.0
    %3099 = vmatpush1.xpose.msra.mxu0 0.0
    %3100 = vmatprep.subr.mxu0 0.0
    %3101 = vmatpush1.xpose.msra.mxu0 0.0
    %3102 = vmatprep.subr.mxu0 0.0
    %3103 = vmatpush1.xpose.msra.mxu0 0.0
    %3104 = vmatprep.subr.mxu0 0.0
    %3105 = vmatpush1.xpose.msra.mxu0 0.0
    %3106 = vmatprep.subr.mxu0 0.0
    %3107 = vmatpush1.xpose.msra.mxu0 0.0
    %3108 = vmatprep.subr.mxu0 0.0
    %3109 = vmatpush1.xpose.msra.mxu0 0.0
    %3110 = vmatprep.subr.mxu0 0.0
    %3111 = vmatpush1.xpose.msra.mxu0 0.0
    %3112 = vmatprep.subr.mxu0 0.0
    %3113 = vmatpush1.xpose.msra.mxu0 0.0
    %3114 = vmatprep.subr.mxu0 0.0
    %3115 = vmatpush1.xpose.msra.mxu0 0.0
    %3116 = vmatprep.subr.mxu0 0.0
    %3117 = vmatpush1.xpose.msra.mxu0 0.0
    %3118 = vmatprep.subr.mxu0 0.0
    %3119 = vmatpush1.xpose.msra.mxu0 0.0
    %3120 = vmatprep.subr.mxu0 0.0
    %3121 = vmatpush1.xpose.msra.mxu0 0.0
    %3122 = vmatprep.subr.mxu0 0.0
    %3123 = vmatpush1.xpose.msra.mxu0 0.0
    %3124 = vmatprep.subr.mxu0 0.0
    %3125 = vmatpush1.xpose.msra.mxu0 0.0
    %3126 = vmatprep.subr.mxu0 0.0
    %3127 = vmatpush1.xpose.msra.mxu0 0.0
    %3128 = vmatprep.subr.mxu0 0.0
    %3129 = vmatpush1.xpose.msra.mxu0 0.0
    %3130 = vmatprep.subr.mxu0 0.0
    %3131 = vmatpush1.xpose.msra.mxu0 0.0
    %3132 = vmatprep.subr.mxu0 0.0
    %3133 = vmatpush1.xpose.msra.mxu0 0.0
    %3134 = vmatprep.subr.mxu0 0.0
    %3135 = vmatpush1.xpose.msra.mxu0 0.0
    %3136 = vmatprep.subr.mxu0 0.0
    %3137 = vmatpush1.xpose.msra.mxu0 0.0
    %3138 = vmatprep.subr.mxu0 0.0
    %3139 = vmatpush1.xpose.msra.mxu0 0.0
    %3140 = vmatprep.mubr.f32.mxu0 0.0
    %3141 = vmatmul.mubr.f32.gmra.mrb[0].mxu0 %v3072
    %v3142 = vpop.f32.mrb[0].mxu0
    %v3143 = vadd.f32 0.0, %v3142
    %v3144 = vpop.f32.mrb[0].mxu0
    %3145 = vdwg.mxu0
    %3146 = vrot.lane.b32.xlu0 %v409, 120
    %v3147 = vpop.permute.xlu0 %3146
    %3148 = vrot.lane.b32.xlu0 %v409, 88
    %v3149 = vpop.permute.xlu0 %3148
    %v3150 = vsel %vm427, %v3147, 0
    %v3152 = vsel %vm427, %v3149, 0
    %3154 = vmatprep.subr.mxu0 0.0
    %3155 = vmatpush1.xpose.msra.mxu0 %v3152
    %3156 = vmatprep.subr.mxu0 0.0
    %3157 = vmatpush1.xpose.msra.mxu0 0.0
    %3158 = vmatprep.subr.mxu0 0.0
    %3159 = vmatpush1.xpose.msra.mxu0 0.0
    %3160 = vmatprep.subr.mxu0 0.0
    %3161 = vmatpush1.xpose.msra.mxu0 0.0
    %3162 = vmatprep.subr.mxu0 0.0
    %3163 = vmatpush1.xpose.msra.mxu0 0.0
    %3164 = vmatprep.subr.mxu0 0.0
    %3165 = vmatpush1.xpose.msra.mxu0 0.0
    %3166 = vmatprep.subr.mxu0 0.0
    %3167 = vmatpush1.xpose.msra.mxu0 0.0
    %3168 = vmatprep.subr.mxu0 0.0
    %3169 = vmatpush1.xpose.msra.mxu0 0.0
    %3170 = vmatprep.subr.mxu0 0.0
    %3171 = vmatpush1.xpose.msra.mxu0 0.0
    %3172 = vmatprep.subr.mxu0 0.0
    %3173 = vmatpush1.xpose.msra.mxu0 0.0
    %3174 = vmatprep.subr.mxu0 0.0
    %3175 = vmatpush1.xpose.msra.mxu0 0.0
    %3176 = vmatprep.subr.mxu0 0.0
    %3177 = vmatpush1.xpose.msra.mxu0 0.0
    %3178 = vmatprep.subr.mxu0 0.0
    %3179 = vmatpush1.xpose.msra.mxu0 0.0
    %3180 = vmatprep.subr.mxu0 0.0
    %3181 = vmatpush1.xpose.msra.mxu0 0.0
    %3182 = vmatprep.subr.mxu0 0.0
    %3183 = vmatpush1.xpose.msra.mxu0 0.0
    %3184 = vmatprep.subr.mxu0 0.0
    %3185 = vmatpush1.xpose.msra.mxu0 0.0
    %3186 = vmatprep.subr.mxu0 0.0
    %3187 = vmatpush1.xpose.msra.mxu0 0.0
    %3188 = vmatprep.subr.mxu0 0.0
    %3189 = vmatpush1.xpose.msra.mxu0 0.0
    %3190 = vmatprep.subr.mxu0 0.0
    %3191 = vmatpush1.xpose.msra.mxu0 0.0
    %3192 = vmatprep.subr.mxu0 0.0
    %3193 = vmatpush1.xpose.msra.mxu0 0.0
    %3194 = vmatprep.subr.mxu0 0.0
    %3195 = vmatpush1.xpose.msra.mxu0 0.0
    %3196 = vmatprep.subr.mxu0 0.0
    %3197 = vmatpush1.xpose.msra.mxu0 0.0
    %3198 = vmatprep.subr.mxu0 0.0
    %3199 = vmatpush1.xpose.msra.mxu0 0.0
    %3200 = vmatprep.subr.mxu0 0.0
    %3201 = vmatpush1.xpose.msra.mxu0 0.0
    %3202 = vmatprep.subr.mxu0 0.0
    %3203 = vmatpush1.xpose.msra.mxu0 0.0
    %3204 = vmatprep.subr.mxu0 0.0
    %3205 = vmatpush1.xpose.msra.mxu0 0.0
    %3206 = vmatprep.subr.mxu0 0.0
    %3207 = vmatpush1.xpose.msra.mxu0 0.0
    %3208 = vmatprep.subr.mxu0 0.0
    %3209 = vmatpush1.xpose.msra.mxu0 0.0
    %3210 = vmatprep.subr.mxu0 0.0
    %3211 = vmatpush1.xpose.msra.mxu0 0.0
    %3212 = vmatprep.subr.mxu0 0.0
    %3213 = vmatpush1.xpose.msra.mxu0 0.0
    %3214 = vmatprep.subr.mxu0 0.0
    %3215 = vmatpush1.xpose.msra.mxu0 0.0
    %3216 = vmatprep.subr.mxu0 0.0
    %3217 = vmatpush1.xpose.msra.mxu0 0.0
    %3218 = vmatprep.mubr.f32.mxu0 0.0
    %3219 = vmatmul.mubr.f32.gmra.mrb[0].mxu0 %v3150
    %v3220 = vpop.f32.mrb[0].mxu0
    %v3221 = vadd.f32 0.0, %v3220
    %v3222 = vpop.f32.mrb[0].mxu0
    %3223 = vdwg.mxu0
    %3224 = vrot.lane.b32.xlu0 %v410, 120
    %v3225 = vpop.permute.xlu0 %3224
    %3226 = vrot.lane.b32.xlu0 %v410, 88
    %v3227 = vpop.permute.xlu0 %3226
    %v3228 = vsel %vm427, %v3225, 0
    %v3230 = vsel %vm427, %v3227, 0
    %3232 = vmatprep.subr.mxu0 0.0
    %3233 = vmatpush1.xpose.msra.mxu0 %v3230
    %3234 = vmatprep.subr.mxu0 0.0
    %3235 = vmatpush1.xpose.msra.mxu0 0.0
    %3236 = vmatprep.subr.mxu0 0.0
    %3237 = vmatpush1.xpose.msra.mxu0 0.0
    %3238 = vmatprep.subr.mxu0 0.0
    %3239 = vmatpush1.xpose.msra.mxu0 0.0
    %3240 = vmatprep.subr.mxu0 0.0
    %3241 = vmatpush1.xpose.msra.mxu0 0.0
    %3242 = vmatprep.subr.mxu0 0.0
    %3243 = vmatpush1.xpose.msra.mxu0 0.0
    %3244 = vmatprep.subr.mxu0 0.0
    %3245 = vmatpush1.xpose.msra.mxu0 0.0
    %3246 = vmatprep.subr.mxu0 0.0
    %3247 = vmatpush1.xpose.msra.mxu0 0.0
    %3248 = vmatprep.subr.mxu0 0.0
    %3249 = vmatpush1.xpose.msra.mxu0 0.0
    %3250 = vmatprep.subr.mxu0 0.0
    %3251 = vmatpush1.xpose.msra.mxu0 0.0
    %3252 = vmatprep.subr.mxu0 0.0
    %3253 = vmatpush1.xpose.msra.mxu0 0.0
    %3254 = vmatprep.subr.mxu0 0.0
    %3255 = vmatpush1.xpose.msra.mxu0 0.0
    %3256 = vmatprep.subr.mxu0 0.0
    %3257 = vmatpush1.xpose.msra.mxu0 0.0
    %3258 = vmatprep.subr.mxu0 0.0
    %3259 = vmatpush1.xpose.msra.mxu0 0.0
    %3260 = vmatprep.subr.mxu0 0.0
    %3261 = vmatpush1.xpose.msra.mxu0 0.0
    %3262 = vmatprep.subr.mxu0 0.0
    %3263 = vmatpush1.xpose.msra.mxu0 0.0
    %3264 = vmatprep.subr.mxu0 0.0
    %3265 = vmatpush1.xpose.msra.mxu0 0.0
    %3266 = vmatprep.subr.mxu0 0.0
    %3267 = vmatpush1.xpose.msra.mxu0 0.0
    %3268 = vmatprep.subr.mxu0 0.0
    %3269 = vmatpush1.xpose.msra.mxu0 0.0
    %3270 = vmatprep.subr.mxu0 0.0
    %3271 = vmatpush1.xpose.msra.mxu0 0.0
    %3272 = vmatprep.subr.mxu0 0.0
    %3273 = vmatpush1.xpose.msra.mxu0 0.0
    %3274 = vmatprep.subr.mxu0 0.0
    %3275 = vmatpush1.xpose.msra.mxu0 0.0
    %3276 = vmatprep.subr.mxu0 0.0
    %3277 = vmatpush1.xpose.msra.mxu0 0.0
    %3278 = vmatprep.subr.mxu0 0.0
    %3279 = vmatpush1.xpose.msra.mxu0 0.0
    %3280 = vmatprep.subr.mxu0 0.0
    %3281 = vmatpush1.xpose.msra.mxu0 0.0
    %3282 = vmatprep.subr.mxu0 0.0
    %3283 = vmatpush1.xpose.msra.mxu0 0.0
    %3284 = vmatprep.subr.mxu0 0.0
    %3285 = vmatpush1.xpose.msra.mxu0 0.0
    %3286 = vmatprep.subr.mxu0 0.0
    %3287 = vmatpush1.xpose.msra.mxu0 0.0
    %3288 = vmatprep.subr.mxu0 0.0
    %3289 = vmatpush1.xpose.msra.mxu0 0.0
    %3290 = vmatprep.subr.mxu0 0.0
    %3291 = vmatpush1.xpose.msra.mxu0 0.0
    %3292 = vmatprep.subr.mxu0 0.0
    %3293 = vmatpush1.xpose.msra.mxu0 0.0
    %3294 = vmatprep.subr.mxu0 0.0
    %3295 = vmatpush1.xpose.msra.mxu0 0.0
    %3296 = vmatprep.mubr.f32.mxu0 0.0
    %3297 = vmatmul.mubr.f32.gmra.mrb[0].mxu0 %v3228
    %v3298 = vpop.f32.mrb[0].mxu0
    %v3299 = vadd.f32 0.0, %v3298
    %v3300 = vpop.f32.mrb[0].mxu0
    %3301 = vdwg.mxu0
    %3302 = vrot.lane.b32.xlu0 %v411, 120
    %v3303 = vpop.permute.xlu0 %3302
    %3304 = vrot.lane.b32.xlu0 %v411, 88
    %v3305 = vpop.permute.xlu0 %3304
    %v3306 = vsel %vm427, %v3303, 0
    %v3308 = vsel %vm427, %v3305, 0
    %3310 = vmatprep.subr.mxu0 0.0
    %3311 = vmatpush1.xpose.msra.mxu0 %v3308
    %3312 = vmatprep.subr.mxu0 0.0
    %3313 = vmatpush1.xpose.msra.mxu0 0.0
    %3314 = vmatprep.subr.mxu0 0.0
    %3315 = vmatpush1.xpose.msra.mxu0 0.0
    %3316 = vmatprep.subr.mxu0 0.0
    %3317 = vmatpush1.xpose.msra.mxu0 0.0
    %3318 = vmatprep.subr.mxu0 0.0
    %3319 = vmatpush1.xpose.msra.mxu0 0.0
    %3320 = vmatprep.subr.mxu0 0.0
    %3321 = vmatpush1.xpose.msra.mxu0 0.0
    %3322 = vmatprep.subr.mxu0 0.0
    %3323 = vmatpush1.xpose.msra.mxu0 0.0
    %3324 = vmatprep.subr.mxu0 0.0
    %3325 = vmatpush1.xpose.msra.mxu0 0.0
    %3326 = vmatprep.subr.mxu0 0.0
    %3327 = vmatpush1.xpose.msra.mxu0 0.0
    %3328 = vmatprep.subr.mxu0 0.0
    %3329 = vmatpush1.xpose.msra.mxu0 0.0
    %3330 = vmatprep.subr.mxu0 0.0
    %3331 = vmatpush1.xpose.msra.mxu0 0.0
    %3332 = vmatprep.subr.mxu0 0.0
    %3333 = vmatpush1.xpose.msra.mxu0 0.0
    %3334 = vmatprep.subr.mxu0 0.0
    %3335 = vmatpush1.xpose.msra.mxu0 0.0
    %3336 = vmatprep.subr.mxu0 0.0
    %3337 = vmatpush1.xpose.msra.mxu0 0.0
    %3338 = vmatprep.subr.mxu0 0.0
    %3339 = vmatpush1.xpose.msra.mxu0 0.0
    %3340 = vmatprep.subr.mxu0 0.0
    %3341 = vmatpush1.xpose.msra.mxu0 0.0
    %3342 = vmatprep.subr.mxu0 0.0
    %3343 = vmatpush1.xpose.msra.mxu0 0.0
    %3344 = vmatprep.subr.mxu0 0.0
    %3345 = vmatpush1.xpose.msra.mxu0 0.0
    %3346 = vmatprep.subr.mxu0 0.0
    %3347 = vmatpush1.xpose.msra.mxu0 0.0
    %3348 = vmatprep.subr.mxu0 0.0
    %3349 = vmatpush1.xpose.msra.mxu0 0.0
    %3350 = vmatprep.subr.mxu0 0.0
    %3351 = vmatpush1.xpose.msra.mxu0 0.0
    %3352 = vmatprep.subr.mxu0 0.0
    %3353 = vmatpush1.xpose.msra.mxu0 0.0
    %3354 = vmatprep.subr.mxu0 0.0
    %3355 = vmatpush1.xpose.msra.mxu0 0.0
    %3356 = vmatprep.subr.mxu0 0.0
    %3357 = vmatpush1.xpose.msra.mxu0 0.0
    %3358 = vmatprep.subr.mxu0 0.0
    %3359 = vmatpush1.xpose.msra.mxu0 0.0
    %3360 = vmatprep.subr.mxu0 0.0
    %3361 = vmatpush1.xpose.msra.mxu0 0.0
    %3362 = vmatprep.subr.mxu0 0.0
    %3363 = vmatpush1.xpose.msra.mxu0 0.0
    %3364 = vmatprep.subr.mxu0 0.0
    %3365 = vmatpush1.xpose.msra.mxu0 0.0
    %3366 = vmatprep.subr.mxu0 0.0
    %3367 = vmatpush1.xpose.msra.mxu0 0.0
    %3368 = vmatprep.subr.mxu0 0.0
    %3369 = vmatpush1.xpose.msra.mxu0 0.0
    %3370 = vmatprep.subr.mxu0 0.0
    %3371 = vmatpush1.xpose.msra.mxu0 0.0
    %3372 = vmatprep.subr.mxu0 0.0
    %3373 = vmatpush1.xpose.msra.mxu0 0.0
    %3374 = vmatprep.mubr.f32.mxu0 0.0
    %3375 = vmatmul.mubr.f32.gmra.mrb[0].mxu0 %v3306
    %v3376 = vpop.f32.mrb[0].mxu0
    %v3377 = vadd.f32 0.0, %v3376
    %v3378 = vpop.f32.mrb[0].mxu0
    %3379 = vdwg.mxu0
    %3380 = vrot.lane.b32.xlu0 %v412, 120
    %v3381 = vpop.permute.xlu0 %3380
    %3382 = vrot.lane.b32.xlu0 %v412, 88
    %v3383 = vpop.permute.xlu0 %3382
    %v3384 = vsel %vm427, %v3381, 0
    %v3386 = vsel %vm427, %v3383, 0
    %3388 = vmatprep.subr.mxu0 0.0
    %3389 = vmatpush1.xpose.msra.mxu0 %v3386
    %3390 = vmatprep.subr.mxu0 0.0
    %3391 = vmatpush1.xpose.msra.mxu0 0.0
    %3392 = vmatprep.subr.mxu0 0.0
    %3393 = vmatpush1.xpose.msra.mxu0 0.0
    %3394 = vmatprep.subr.mxu0 0.0
    %3395 = vmatpush1.xpose.msra.mxu0 0.0
    %3396 = vmatprep.subr.mxu0 0.0
    %3397 = vmatpush1.xpose.msra.mxu0 0.0
    %3398 = vmatprep.subr.mxu0 0.0
    %3399 = vmatpush1.xpose.msra.mxu0 0.0
    %3400 = vmatprep.subr.mxu0 0.0
    %3401 = vmatpush1.xpose.msra.mxu0 0.0
    %3402 = vmatprep.subr.mxu0 0.0
    %3403 = vmatpush1.xpose.msra.mxu0 0.0
    %3404 = vmatprep.subr.mxu0 0.0
    %3405 = vmatpush1.xpose.msra.mxu0 0.0
    %3406 = vmatprep.subr.mxu0 0.0
    %3407 = vmatpush1.xpose.msra.mxu0 0.0
    %3408 = vmatprep.subr.mxu0 0.0
    %3409 = vmatpush1.xpose.msra.mxu0 0.0
    %3410 = vmatprep.subr.mxu0 0.0
    %3411 = vmatpush1.xpose.msra.mxu0 0.0
    %3412 = vmatprep.subr.mxu0 0.0
    %3413 = vmatpush1.xpose.msra.mxu0 0.0
    %3414 = vmatprep.subr.mxu0 0.0
    %3415 = vmatpush1.xpose.msra.mxu0 0.0
    %3416 = vmatprep.subr.mxu0 0.0
    %3417 = vmatpush1.xpose.msra.mxu0 0.0
    %3418 = vmatprep.subr.mxu0 0.0
    %3419 = vmatpush1.xpose.msra.mxu0 0.0
    %3420 = vmatprep.subr.mxu0 0.0
    %3421 = vmatpush1.xpose.msra.mxu0 0.0
    %3422 = vmatprep.subr.mxu0 0.0
    %3423 = vmatpush1.xpose.msra.mxu0 0.0
    %3424 = vmatprep.subr.mxu0 0.0
    %3425 = vmatpush1.xpose.msra.mxu0 0.0
    %3426 = vmatprep.subr.mxu0 0.0
    %3427 = vmatpush1.xpose.msra.mxu0 0.0
    %3428 = vmatprep.subr.mxu0 0.0
    %3429 = vmatpush1.xpose.msra.mxu0 0.0
    %3430 = vmatprep.subr.mxu0 0.0
    %3431 = vmatpush1.xpose.msra.mxu0 0.0
    %3432 = vmatprep.subr.mxu0 0.0
    %3433 = vmatpush1.xpose.msra.mxu0 0.0
    %3434 = vmatprep.subr.mxu0 0.0
    %3435 = vmatpush1.xpose.msra.mxu0 0.0
    %3436 = vmatprep.subr.mxu0 0.0
    %3437 = vmatpush1.xpose.msra.mxu0 0.0
    %3438 = vmatprep.subr.mxu0 0.0
    %3439 = vmatpush1.xpose.msra.mxu0 0.0
    %3440 = vmatprep.subr.mxu0 0.0
    %3441 = vmatpush1.xpose.msra.mxu0 0.0
    %3442 = vmatprep.subr.mxu0 0.0
    %3443 = vmatpush1.xpose.msra.mxu0 0.0
    %3444 = vmatprep.subr.mxu0 0.0
    %3445 = vmatpush1.xpose.msra.mxu0 0.0
    %3446 = vmatprep.subr.mxu0 0.0
    %3447 = vmatpush1.xpose.msra.mxu0 0.0
    %3448 = vmatprep.subr.mxu0 0.0
    %3449 = vmatpush1.xpose.msra.mxu0 0.0
    %3450 = vmatprep.subr.mxu0 0.0
    %3451 = vmatpush1.xpose.msra.mxu0 0.0
    %3452 = vmatprep.mubr.f32.mxu0 0.0
    %3453 = vmatmul.mubr.f32.gmra.mrb[0].mxu0 %v3384
    %v3454 = vpop.f32.mrb[0].mxu0
    %v3455 = vadd.f32 0.0, %v3454
    %v3456 = vpop.f32.mrb[0].mxu0
    %3457 = vdwg.mxu0
    %3458 = vrot.lane.b32.xlu0 %v413, 120
    %v3459 = vpop.permute.xlu0 %3458
    %3460 = vrot.lane.b32.xlu0 %v413, 88
    %v3461 = vpop.permute.xlu0 %3460
    %v3462 = vsel %vm427, %v3459, 0
    %v3464 = vsel %vm427, %v3461, 0
    %3466 = vmatprep.subr.mxu0 0.0
    %3467 = vmatpush1.xpose.msra.mxu0 %v3464
    %3468 = vmatprep.subr.mxu0 0.0
    %3469 = vmatpush1.xpose.msra.mxu0 0.0
    %3470 = vmatprep.subr.mxu0 0.0
    %3471 = vmatpush1.xpose.msra.mxu0 0.0
    %3472 = vmatprep.subr.mxu0 0.0
    %3473 = vmatpush1.xpose.msra.mxu0 0.0
    %3474 = vmatprep.subr.mxu0 0.0
    %3475 = vmatpush1.xpose.msra.mxu0 0.0
    %3476 = vmatprep.subr.mxu0 0.0
    %3477 = vmatpush1.xpose.msra.mxu0 0.0
    %3478 = vmatprep.subr.mxu0 0.0
    %3479 = vmatpush1.xpose.msra.mxu0 0.0
    %3480 = vmatprep.subr.mxu0 0.0
    %3481 = vmatpush1.xpose.msra.mxu0 0.0
    %3482 = vmatprep.subr.mxu0 0.0
    %3483 = vmatpush1.xpose.msra.mxu0 0.0
    %3484 = vmatprep.subr.mxu0 0.0
    %3485 = vmatpush1.xpose.msra.mxu0 0.0
    %3486 = vmatprep.subr.mxu0 0.0
    %3487 = vmatpush1.xpose.msra.mxu0 0.0
    %3488 = vmatprep.subr.mxu0 0.0
    %3489 = vmatpush1.xpose.msra.mxu0 0.0
    %3490 = vmatprep.subr.mxu0 0.0
    %3491 = vmatpush1.xpose.msra.mxu0 0.0
    %3492 = vmatprep.subr.mxu0 0.0
    %3493 = vmatpush1.xpose.msra.mxu0 0.0
    %3494 = vmatprep.subr.mxu0 0.0
    %3495 = vmatpush1.xpose.msra.mxu0 0.0
    %3496 = vmatprep.subr.mxu0 0.0
    %3497 = vmatpush1.xpose.msra.mxu0 0.0
    %3498 = vmatprep.subr.mxu0 0.0
    %3499 = vmatpush1.xpose.msra.mxu0 0.0
    %3500 = vmatprep.subr.mxu0 0.0
    %3501 = vmatpush1.xpose.msra.mxu0 0.0
    %3502 = vmatprep.subr.mxu0 0.0
    %3503 = vmatpush1.xpose.msra.mxu0 0.0
    %3504 = vmatprep.subr.mxu0 0.0
    %3505 = vmatpush1.xpose.msra.mxu0 0.0
    %3506 = vmatprep.subr.mxu0 0.0
    %3507 = vmatpush1.xpose.msra.mxu0 0.0
    %3508 = vmatprep.subr.mxu0 0.0
    %3509 = vmatpush1.xpose.msra.mxu0 0.0
    %3510 = vmatprep.subr.mxu0 0.0
    %3511 = vmatpush1.xpose.msra.mxu0 0.0
    %3512 = vmatprep.subr.mxu0 0.0
    %3513 = vmatpush1.xpose.msra.mxu0 0.0
    %3514 = vmatprep.subr.mxu0 0.0
    %3515 = vmatpush1.xpose.msra.mxu0 0.0
    %3516 = vmatprep.subr.mxu0 0.0
    %3517 = vmatpush1.xpose.msra.mxu0 0.0
    %3518 = vmatprep.subr.mxu0 0.0
    %3519 = vmatpush1.xpose.msra.mxu0 0.0
    %3520 = vmatprep.subr.mxu0 0.0
    %3521 = vmatpush1.xpose.msra.mxu0 0.0
    %3522 = vmatprep.subr.mxu0 0.0
    %3523 = vmatpush1.xpose.msra.mxu0 0.0
    %3524 = vmatprep.subr.mxu0 0.0
    %3525 = vmatpush1.xpose.msra.mxu0 0.0
    %3526 = vmatprep.subr.mxu0 0.0
    %3527 = vmatpush1.xpose.msra.mxu0 0.0
    %3528 = vmatprep.subr.mxu0 0.0
    %3529 = vmatpush1.xpose.msra.mxu0 0.0
    %3530 = vmatprep.mubr.f32.mxu0 0.0
    %3531 = vmatmul.mubr.f32.gmra.mrb[0].mxu0 %v3462
    %v3532 = vpop.f32.mrb[0].mxu0
    %v3533 = vadd.f32 0.0, %v3532
    %v3534 = vpop.f32.mrb[0].mxu0
    %3535 = vdwg.mxu0
    %3536 = vrot.lane.b32.xlu0 %v414, 120
    %v3537 = vpop.permute.xlu0 %3536
    %3538 = vrot.lane.b32.xlu0 %v414, 88
    %v3539 = vpop.permute.xlu0 %3538
    %v3540 = vsel %vm427, %v3537, 0
    %v3542 = vsel %vm427, %v3539, 0
    %3544 = vmatprep.subr.mxu0 0.0
    %3545 = vmatpush1.xpose.msra.mxu0 %v3542
    %3546 = vmatprep.subr.mxu0 0.0
    %3547 = vmatpush1.xpose.msra.mxu0 0.0
    %3548 = vmatprep.subr.mxu0 0.0
    %3549 = vmatpush1.xpose.msra.mxu0 0.0
    %3550 = vmatprep.subr.mxu0 0.0
    %3551 = vmatpush1.xpose.msra.mxu0 0.0
    %3552 = vmatprep.subr.mxu0 0.0
    %3553 = vmatpush1.xpose.msra.mxu0 0.0
    %3554 = vmatprep.subr.mxu0 0.0
    %3555 = vmatpush1.xpose.msra.mxu0 0.0
    %3556 = vmatprep.subr.mxu0 0.0
    %3557 = vmatpush1.xpose.msra.mxu0 0.0
    %3558 = vmatprep.subr.mxu0 0.0
    %3559 = vmatpush1.xpose.msra.mxu0 0.0
    %3560 = vmatprep.subr.mxu0 0.0
    %3561 = vmatpush1.xpose.msra.mxu0 0.0
    %3562 = vmatprep.subr.mxu0 0.0
    %3563 = vmatpush1.xpose.msra.mxu0 0.0
    %3564 = vmatprep.subr.mxu0 0.0
    %3565 = vmatpush1.xpose.msra.mxu0 0.0
    %3566 = vmatprep.subr.mxu0 0.0
    %3567 = vmatpush1.xpose.msra.mxu0 0.0
    %3568 = vmatprep.subr.mxu0 0.0
    %3569 = vmatpush1.xpose.msra.mxu0 0.0
    %3570 = vmatprep.subr.mxu0 0.0
    %3571 = vmatpush1.xpose.msra.mxu0 0.0
    %3572 = vmatprep.subr.mxu0 0.0
    %3573 = vmatpush1.xpose.msra.mxu0 0.0
    %3574 = vmatprep.subr.mxu0 0.0
    %3575 = vmatpush1.xpose.msra.mxu0 0.0
    %3576 = vmatprep.subr.mxu0 0.0
    %3577 = vmatpush1.xpose.msra.mxu0 0.0
    %3578 = vmatprep.subr.mxu0 0.0
    %3579 = vmatpush1.xpose.msra.mxu0 0.0
    %3580 = vmatprep.subr.mxu0 0.0
    %3581 = vmatpush1.xpose.msra.mxu0 0.0
    %3582 = vmatprep.subr.mxu0 0.0
    %3583 = vmatpush1.xpose.msra.mxu0 0.0
    %3584 = vmatprep.subr.mxu0 0.0
    %3585 = vmatpush1.xpose.msra.mxu0 0.0
    %3586 = vmatprep.subr.mxu0 0.0
    %3587 = vmatpush1.xpose.msra.mxu0 0.0
    %3588 = vmatprep.subr.mxu0 0.0
    %3589 = vmatpush1.xpose.msra.mxu0 0.0
    %3590 = vmatprep.subr.mxu0 0.0
    %3591 = vmatpush1.xpose.msra.mxu0 0.0
    %3592 = vmatprep.subr.mxu0 0.0
    %3593 = vmatpush1.xpose.msra.mxu0 0.0
    %3594 = vmatprep.subr.mxu0 0.0
    %3595 = vmatpush1.xpose.msra.mxu0 0.0
    %3596 = vmatprep.subr.mxu0 0.0
    %3597 = vmatpush1.xpose.msra.mxu0 0.0
    %3598 = vmatprep.subr.mxu0 0.0
    %3599 = vmatpush1.xpose.msra.mxu0 0.0
    %3600 = vmatprep.subr.mxu0 0.0
    %3601 = vmatpush1.xpose.msra.mxu0 0.0
    %3602 = vmatprep.subr.mxu0 0.0
    %3603 = vmatpush1.xpose.msra.mxu0 0.0
    %3604 = vmatprep.subr.mxu0 0.0
    %3605 = vmatpush1.xpose.msra.mxu0 0.0
    %3606 = vmatprep.subr.mxu0 0.0
    %3607 = vmatpush1.xpose.msra.mxu0 0.0
    %3608 = vmatprep.mubr.f32.mxu0 0.0
    %3609 = vmatmul.mubr.f32.gmra.mrb[0].mxu0 %v3540
    %v3610 = vpop.f32.mrb[0].mxu0
    %v3611 = vadd.f32 0.0, %v3610
    %v3612 = vpop.f32.mrb[0].mxu0
    %3613 = vdwg.mxu0
    %3614 = vrot.lane.b32.xlu0 %v415, 120
    %v3615 = vpop.permute.xlu0 %3614
    %3616 = vrot.lane.b32.xlu0 %v415, 88
    %v3617 = vpop.permute.xlu0 %3616
    %v3618 = vsel %vm427, %v3615, 0
    %v3620 = vsel %vm427, %v3617, 0
    %3622 = vmatprep.subr.mxu0 0.0
    %3623 = vmatpush1.xpose.msra.mxu0 %v3620
    %3624 = vmatprep.subr.mxu0 0.0
    %3625 = vmatpush1.xpose.msra.mxu0 0.0
    %3626 = vmatprep.subr.mxu0 0.0
    %3627 = vmatpush1.xpose.msra.mxu0 0.0
    %3628 = vmatprep.subr.mxu0 0.0
    %3629 = vmatpush1.xpose.msra.mxu0 0.0
    %3630 = vmatprep.subr.mxu0 0.0
    %3631 = vmatpush1.xpose.msra.mxu0 0.0
    %3632 = vmatprep.subr.mxu0 0.0
    %3633 = vmatpush1.xpose.msra.mxu0 0.0
    %3634 = vmatprep.subr.mxu0 0.0
    %3635 = vmatpush1.xpose.msra.mxu0 0.0
    %3636 = vmatprep.subr.mxu0 0.0
    %3637 = vmatpush1.xpose.msra.mxu0 0.0
    %3638 = vmatprep.subr.mxu0 0.0
    %3639 = vmatpush1.xpose.msra.mxu0 0.0
    %3640 = vmatprep.subr.mxu0 0.0
    %3641 = vmatpush1.xpose.msra.mxu0 0.0
    %3642 = vmatprep.subr.mxu0 0.0
    %3643 = vmatpush1.xpose.msra.mxu0 0.0
    %3644 = vmatprep.subr.mxu0 0.0
    %3645 = vmatpush1.xpose.msra.mxu0 0.0
    %3646 = vmatprep.subr.mxu0 0.0
    %3647 = vmatpush1.xpose.msra.mxu0 0.0
    %3648 = vmatprep.subr.mxu0 0.0
    %3649 = vmatpush1.xpose.msra.mxu0 0.0
    %3650 = vmatprep.subr.mxu0 0.0
    %3651 = vmatpush1.xpose.msra.mxu0 0.0
    %3652 = vmatprep.subr.mxu0 0.0
    %3653 = vmatpush1.xpose.msra.mxu0 0.0
    %3654 = vmatprep.subr.mxu0 0.0
    %3655 = vmatpush1.xpose.msra.mxu0 0.0
    %3656 = vmatprep.subr.mxu0 0.0
    %3657 = vmatpush1.xpose.msra.mxu0 0.0
    %3658 = vmatprep.subr.mxu0 0.0
    %3659 = vmatpush1.xpose.msra.mxu0 0.0
    %3660 = vmatprep.subr.mxu0 0.0
    %3661 = vmatpush1.xpose.msra.mxu0 0.0
    %3662 = vmatprep.subr.mxu0 0.0
    %3663 = vmatpush1.xpose.msra.mxu0 0.0
    %3664 = vmatprep.subr.mxu0 0.0
    %3665 = vmatpush1.xpose.msra.mxu0 0.0
    %3666 = vmatprep.subr.mxu0 0.0
    %3667 = vmatpush1.xpose.msra.mxu0 0.0
    %3668 = vmatprep.subr.mxu0 0.0
    %3669 = vmatpush1.xpose.msra.mxu0 0.0
    %3670 = vmatprep.subr.mxu0 0.0
    %3671 = vmatpush1.xpose.msra.mxu0 0.0
    %3672 = vmatprep.subr.mxu0 0.0
    %3673 = vmatpush1.xpose.msra.mxu0 0.0
    %3674 = vmatprep.subr.mxu0 0.0
    %3675 = vmatpush1.xpose.msra.mxu0 0.0
    %3676 = vmatprep.subr.mxu0 0.0
    %3677 = vmatpush1.xpose.msra.mxu0 0.0
    %3678 = vmatprep.subr.mxu0 0.0
    %3679 = vmatpush1.xpose.msra.mxu0 0.0
    %3680 = vmatprep.subr.mxu0 0.0
    %3681 = vmatpush1.xpose.msra.mxu0 0.0
    %3682 = vmatprep.subr.mxu0 0.0
    %3683 = vmatpush1.xpose.msra.mxu0 0.0
    %3684 = vmatprep.subr.mxu0 0.0
    %3685 = vmatpush1.xpose.msra.mxu0 0.0
    %3686 = vmatprep.mubr.f32.mxu0 0.0
    %3687 = vmatmul.mubr.f32.gmra.mrb[0].mxu0 %v3618
    %v3688 = vpop.f32.mrb[0].mxu0
    %v3689 = vadd.f32 0.0, %v3688
    %v3690 = vpop.f32.mrb[0].mxu0
    %3691 = vdwg.mxu0
    %3692 = vrot.lane.b32.xlu0 %v416, 120
    %v3693 = vpop.permute.xlu0 %3692
    %3694 = vrot.lane.b32.xlu0 %v416, 88
    %v3695 = vpop.permute.xlu0 %3694
    %v3696 = vsel %vm427, %v3693, 0
    %v3698 = vsel %vm427, %v3695, 0
    %3700 = vmatprep.subr.mxu0 0.0
    %3701 = vmatpush1.xpose.msra.mxu0 %v3698
    %3702 = vmatprep.subr.mxu0 0.0
    %3703 = vmatpush1.xpose.msra.mxu0 0.0
    %3704 = vmatprep.subr.mxu0 0.0
    %3705 = vmatpush1.xpose.msra.mxu0 0.0
    %3706 = vmatprep.subr.mxu0 0.0
    %3707 = vmatpush1.xpose.msra.mxu0 0.0
    %3708 = vmatprep.subr.mxu0 0.0
    %3709 = vmatpush1.xpose.msra.mxu0 0.0
    %3710 = vmatprep.subr.mxu0 0.0
    %3711 = vmatpush1.xpose.msra.mxu0 0.0
    %3712 = vmatprep.subr.mxu0 0.0
    %3713 = vmatpush1.xpose.msra.mxu0 0.0
    %3714 = vmatprep.subr.mxu0 0.0
    %3715 = vmatpush1.xpose.msra.mxu0 0.0
    %3716 = vmatprep.subr.mxu0 0.0
    %3717 = vmatpush1.xpose.msra.mxu0 0.0
    %3718 = vmatprep.subr.mxu0 0.0
    %3719 = vmatpush1.xpose.msra.mxu0 0.0
    %3720 = vmatprep.subr.mxu0 0.0
    %3721 = vmatpush1.xpose.msra.mxu0 0.0
    %3722 = vmatprep.subr.mxu0 0.0
    %3723 = vmatpush1.xpose.msra.mxu0 0.0
    %3724 = vmatprep.subr.mxu0 0.0
    %3725 = vmatpush1.xpose.msra.mxu0 0.0
    %3726 = vmatprep.subr.mxu0 0.0
    %3727 = vmatpush1.xpose.msra.mxu0 0.0
    %3728 = vmatprep.subr.mxu0 0.0
    %3729 = vmatpush1.xpose.msra.mxu0 0.0
    %3730 = vmatprep.subr.mxu0 0.0
    %3731 = vmatpush1.xpose.msra.mxu0 0.0
    %3732 = vmatprep.subr.mxu0 0.0
    %3733 = vmatpush1.xpose.msra.mxu0 0.0
    %3734 = vmatprep.subr.mxu0 0.0
    %3735 = vmatpush1.xpose.msra.mxu0 0.0
    %3736 = vmatprep.subr.mxu0 0.0
    %3737 = vmatpush1.xpose.msra.mxu0 0.0
    %3738 = vmatprep.subr.mxu0 0.0
    %3739 = vmatpush1.xpose.msra.mxu0 0.0
    %3740 = vmatprep.subr.mxu0 0.0
    %3741 = vmatpush1.xpose.msra.mxu0 0.0
    %3742 = vmatprep.subr.mxu0 0.0
    %3743 = vmatpush1.xpose.msra.mxu0 0.0
    %3744 = vmatprep.subr.mxu0 0.0
    %3745 = vmatpush1.xpose.msra.mxu0 0.0
    %3746 = vmatprep.subr.mxu0 0.0
    %3747 = vmatpush1.xpose.msra.mxu0 0.0
    %3748 = vmatprep.subr.mxu0 0.0
    %3749 = vmatpush1.xpose.msra.mxu0 0.0
    %3750 = vmatprep.subr.mxu0 0.0
    %3751 = vmatpush1.xpose.msra.mxu0 0.0
    %3752 = vmatprep.subr.mxu0 0.0
    %3753 = vmatpush1.xpose.msra.mxu0 0.0
    %3754 = vmatprep.subr.mxu0 0.0
    %3755 = vmatpush1.xpose.msra.mxu0 0.0
    %3756 = vmatprep.subr.mxu0 0.0
    %3757 = vmatpush1.xpose.msra.mxu0 0.0
    %3758 = vmatprep.subr.mxu0 0.0
    %3759 = vmatpush1.xpose.msra.mxu0 0.0
    %3760 = vmatprep.subr.mxu0 0.0
    %3761 = vmatpush1.xpose.msra.mxu0 0.0
    %3762 = vmatprep.subr.mxu0 0.0
    %3763 = vmatpush1.xpose.msra.mxu0 0.0
    %3764 = vmatprep.mubr.f32.mxu0 0.0
    %3765 = vmatmul.mubr.f32.gmra.mrb[0].mxu0 %v3696
    %v3766 = vpop.f32.mrb[0].mxu0
    %v3767 = vadd.f32 0.0, %v3766
    %v3768 = vpop.f32.mrb[0].mxu0
    %3769 = vdwg.mxu0
    %3770 = vrot.lane.b32.xlu0 %v417, 120
    %v3771 = vpop.permute.xlu0 %3770
    %3772 = vrot.lane.b32.xlu0 %v417, 88
    %v3773 = vpop.permute.xlu0 %3772
    %v3774 = vsel %vm427, %v3771, 0
    %v3776 = vsel %vm427, %v3773, 0
    %3778 = vmatprep.subr.mxu0 0.0
    %3779 = vmatpush1.xpose.msra.mxu0 %v3776
    %3780 = vmatprep.subr.mxu0 0.0
    %3781 = vmatpush1.xpose.msra.mxu0 0.0
    %3782 = vmatprep.subr.mxu0 0.0
    %3783 = vmatpush1.xpose.msra.mxu0 0.0
    %3784 = vmatprep.subr.mxu0 0.0
    %3785 = vmatpush1.xpose.msra.mxu0 0.0
    %3786 = vmatprep.subr.mxu0 0.0
    %3787 = vmatpush1.xpose.msra.mxu0 0.0
    %3788 = vmatprep.subr.mxu0 0.0
    %3789 = vmatpush1.xpose.msra.mxu0 0.0
    %3790 = vmatprep.subr.mxu0 0.0
    %3791 = vmatpush1.xpose.msra.mxu0 0.0
    %3792 = vmatprep.subr.mxu0 0.0
    %3793 = vmatpush1.xpose.msra.mxu0 0.0
    %3794 = vmatprep.subr.mxu0 0.0
    %3795 = vmatpush1.xpose.msra.mxu0 0.0
    %3796 = vmatprep.subr.mxu0 0.0
    %3797 = vmatpush1.xpose.msra.mxu0 0.0
    %3798 = vmatprep.subr.mxu0 0.0
    %3799 = vmatpush1.xpose.msra.mxu0 0.0
    %3800 = vmatprep.subr.mxu0 0.0
    %3801 = vmatpush1.xpose.msra.mxu0 0.0
    %3802 = vmatprep.subr.mxu0 0.0
    %3803 = vmatpush1.xpose.msra.mxu0 0.0
    %3804 = vmatprep.subr.mxu0 0.0
    %3805 = vmatpush1.xpose.msra.mxu0 0.0
    %3806 = vmatprep.subr.mxu0 0.0
    %3807 = vmatpush1.xpose.msra.mxu0 0.0
    %3808 = vmatprep.subr.mxu0 0.0
    %3809 = vmatpush1.xpose.msra.mxu0 0.0
    %3810 = vmatprep.subr.mxu0 0.0
    %3811 = vmatpush1.xpose.msra.mxu0 0.0
    %3812 = vmatprep.subr.mxu0 0.0
    %3813 = vmatpush1.xpose.msra.mxu0 0.0
    %3814 = vmatprep.subr.mxu0 0.0
    %3815 = vmatpush1.xpose.msra.mxu0 0.0
    %3816 = vmatprep.subr.mxu0 0.0
    %3817 = vmatpush1.xpose.msra.mxu0 0.0
    %3818 = vmatprep.subr.mxu0 0.0
    %3819 = vmatpush1.xpose.msra.mxu0 0.0
    %3820 = vmatprep.subr.mxu0 0.0
    %3821 = vmatpush1.xpose.msra.mxu0 0.0
    %3822 = vmatprep.subr.mxu0 0.0
    %3823 = vmatpush1.xpose.msra.mxu0 0.0
    %3824 = vmatprep.subr.mxu0 0.0
    %3825 = vmatpush1.xpose.msra.mxu0 0.0
    %3826 = vmatprep.subr.mxu0 0.0
    %3827 = vmatpush1.xpose.msra.mxu0 0.0
    %3828 = vmatprep.subr.mxu0 0.0
    %3829 = vmatpush1.xpose.msra.mxu0 0.0
    %3830 = vmatprep.subr.mxu0 0.0
    %3831 = vmatpush1.xpose.msra.mxu0 0.0
    %3832 = vmatprep.subr.mxu0 0.0
    %3833 = vmatpush1.xpose.msra.mxu0 0.0
    %3834 = vmatprep.subr.mxu0 0.0
    %3835 = vmatpush1.xpose.msra.mxu0 0.0
    %3836 = vmatprep.subr.mxu0 0.0
    %3837 = vmatpush1.xpose.msra.mxu0 0.0
    %3838 = vmatprep.subr.mxu0 0.0
    %3839 = vmatpush1.xpose.msra.mxu0 0.0
    %3840 = vmatprep.subr.mxu0 0.0
    %3841 = vmatpush1.xpose.msra.mxu0 0.0
    %3842 = vmatprep.mubr.f32.mxu0 0.0
    %3843 = vmatmul.mubr.f32.gmra.mrb[0].mxu0 %v3774
    %v3844 = vpop.f32.mrb[0].mxu0
    %v3845 = vadd.f32 0.0, %v3844
    %v3846 = vpop.f32.mrb[0].mxu0
    %3847 = vdwg.mxu0
    %3848 = vrot.lane.b32.xlu0 %v418, 120
    %v3849 = vpop.permute.xlu0 %3848
    %3850 = vrot.lane.b32.xlu0 %v418, 88
    %v3851 = vpop.permute.xlu0 %3850
    %v3852 = vsel %vm427, %v3849, 0
    %v3854 = vsel %vm427, %v3851, 0
    %3856 = vmatprep.subr.mxu0 0.0
    %3857 = vmatpush1.xpose.msra.mxu0 %v3854
    %3858 = vmatprep.subr.mxu0 0.0
    %3859 = vmatpush1.xpose.msra.mxu0 0.0
    %3860 = vmatprep.subr.mxu0 0.0
    %3861 = vmatpush1.xpose.msra.mxu0 0.0
    %3862 = vmatprep.subr.mxu0 0.0
    %3863 = vmatpush1.xpose.msra.mxu0 0.0
    %3864 = vmatprep.subr.mxu0 0.0
    %3865 = vmatpush1.xpose.msra.mxu0 0.0
    %3866 = vmatprep.subr.mxu0 0.0
    %3867 = vmatpush1.xpose.msra.mxu0 0.0
    %3868 = vmatprep.subr.mxu0 0.0
    %3869 = vmatpush1.xpose.msra.mxu0 0.0
    %3870 = vmatprep.subr.mxu0 0.0
    %3871 = vmatpush1.xpose.msra.mxu0 0.0
    %3872 = vmatprep.subr.mxu0 0.0
    %3873 = vmatpush1.xpose.msra.mxu0 0.0
    %3874 = vmatprep.subr.mxu0 0.0
    %3875 = vmatpush1.xpose.msra.mxu0 0.0
    %3876 = vmatprep.subr.mxu0 0.0
    %3877 = vmatpush1.xpose.msra.mxu0 0.0
    %3878 = vmatprep.subr.mxu0 0.0
    %3879 = vmatpush1.xpose.msra.mxu0 0.0
    %3880 = vmatprep.subr.mxu0 0.0
    %3881 = vmatpush1.xpose.msra.mxu0 0.0
    %3882 = vmatprep.subr.mxu0 0.0
    %3883 = vmatpush1.xpose.msra.mxu0 0.0
    %3884 = vmatprep.subr.mxu0 0.0
    %3885 = vmatpush1.xpose.msra.mxu0 0.0
    %3886 = vmatprep.subr.mxu0 0.0
    %3887 = vmatpush1.xpose.msra.mxu0 0.0
    %3888 = vmatprep.subr.mxu0 0.0
    %3889 = vmatpush1.xpose.msra.mxu0 0.0
    %3890 = vmatprep.subr.mxu0 0.0
    %3891 = vmatpush1.xpose.msra.mxu0 0.0
    %3892 = vmatprep.subr.mxu0 0.0
    %3893 = vmatpush1.xpose.msra.mxu0 0.0
    %3894 = vmatprep.subr.mxu0 0.0
    %3895 = vmatpush1.xpose.msra.mxu0 0.0
    %3896 = vmatprep.subr.mxu0 0.0
    %3897 = vmatpush1.xpose.msra.mxu0 0.0
    %3898 = vmatprep.subr.mxu0 0.0
    %3899 = vmatpush1.xpose.msra.mxu0 0.0
    %3900 = vmatprep.subr.mxu0 0.0
    %3901 = vmatpush1.xpose.msra.mxu0 0.0
    %3902 = vmatprep.subr.mxu0 0.0
    %3903 = vmatpush1.xpose.msra.mxu0 0.0
    %3904 = vmatprep.subr.mxu0 0.0
    %3905 = vmatpush1.xpose.msra.mxu0 0.0
    %3906 = vmatprep.subr.mxu0 0.0
    %3907 = vmatpush1.xpose.msra.mxu0 0.0
    %3908 = vmatprep.subr.mxu0 0.0
    %3909 = vmatpush1.xpose.msra.mxu0 0.0
    %3910 = vmatprep.subr.mxu0 0.0
    %3911 = vmatpush1.xpose.msra.mxu0 0.0
    %3912 = vmatprep.subr.mxu0 0.0
    %3913 = vmatpush1.xpose.msra.mxu0 0.0
    %3914 = vmatprep.subr.mxu0 0.0
    %3915 = vmatpush1.xpose.msra.mxu0 0.0
    %3916 = vmatprep.subr.mxu0 0.0
    %3917 = vmatpush1.xpose.msra.mxu0 0.0
    %3918 = vmatprep.subr.mxu0 0.0
    %3919 = vmatpush1.xpose.msra.mxu0 0.0
    %3920 = vmatprep.mubr.f32.mxu0 0.0
    %3921 = vmatmul.mubr.f32.gmra.mrb[0].mxu0 %v3852
    %v3922 = vpop.f32.mrb[0].mxu0
    %v3923 = vadd.f32 0.0, %v3922
    %v3924 = vpop.f32.mrb[0].mxu0
    %3925 = vdwg.mxu0
    %3926 = vrot.lane.b32.xlu0 %v419, 120
    %v3927 = vpop.permute.xlu0 %3926
    %3928 = vrot.lane.b32.xlu0 %v419, 88
    %v3929 = vpop.permute.xlu0 %3928
    %v3930 = vsel %vm427, %v3927, 0
    %v3932 = vsel %vm427, %v3929, 0
    %3934 = vmatprep.subr.mxu0 0.0
    %3935 = vmatpush1.xpose.msra.mxu0 %v3932
    %3936 = vmatprep.subr.mxu0 0.0
    %3937 = vmatpush1.xpose.msra.mxu0 0.0
    %3938 = vmatprep.subr.mxu0 0.0
    %3939 = vmatpush1.xpose.msra.mxu0 0.0
    %3940 = vmatprep.subr.mxu0 0.0
    %3941 = vmatpush1.xpose.msra.mxu0 0.0
    %3942 = vmatprep.subr.mxu0 0.0
    %3943 = vmatpush1.xpose.msra.mxu0 0.0
    %3944 = vmatprep.subr.mxu0 0.0
    %3945 = vmatpush1.xpose.msra.mxu0 0.0
    %3946 = vmatprep.subr.mxu0 0.0
    %3947 = vmatpush1.xpose.msra.mxu0 0.0
    %3948 = vmatprep.subr.mxu0 0.0
    %3949 = vmatpush1.xpose.msra.mxu0 0.0
    %3950 = vmatprep.subr.mxu0 0.0
    %3951 = vmatpush1.xpose.msra.mxu0 0.0
    %3952 = vmatprep.subr.mxu0 0.0
    %3953 = vmatpush1.xpose.msra.mxu0 0.0
    %3954 = vmatprep.subr.mxu0 0.0
    %3955 = vmatpush1.xpose.msra.mxu0 0.0
    %3956 = vmatprep.subr.mxu0 0.0
    %3957 = vmatpush1.xpose.msra.mxu0 0.0
    %3958 = vmatprep.subr.mxu0 0.0
    %3959 = vmatpush1.xpose.msra.mxu0 0.0
    %3960 = vmatprep.subr.mxu0 0.0
    %3961 = vmatpush1.xpose.msra.mxu0 0.0
    %3962 = vmatprep.subr.mxu0 0.0
    %3963 = vmatpush1.xpose.msra.mxu0 0.0
    %3964 = vmatprep.subr.mxu0 0.0
    %3965 = vmatpush1.xpose.msra.mxu0 0.0
    %3966 = vmatprep.subr.mxu0 0.0
    %3967 = vmatpush1.xpose.msra.mxu0 0.0
    %3968 = vmatprep.subr.mxu0 0.0
    %3969 = vmatpush1.xpose.msra.mxu0 0.0
    %3970 = vmatprep.subr.mxu0 0.0
    %3971 = vmatpush1.xpose.msra.mxu0 0.0
    %3972 = vmatprep.subr.mxu0 0.0
    %3973 = vmatpush1.xpose.msra.mxu0 0.0
    %3974 = vmatprep.subr.mxu0 0.0
    %3975 = vmatpush1.xpose.msra.mxu0 0.0
    %3976 = vmatprep.subr.mxu0 0.0
    %3977 = vmatpush1.xpose.msra.mxu0 0.0
    %3978 = vmatprep.subr.mxu0 0.0
    %3979 = vmatpush1.xpose.msra.mxu0 0.0
    %3980 = vmatprep.subr.mxu0 0.0
    %3981 = vmatpush1.xpose.msra.mxu0 0.0
    %3982 = vmatprep.subr.mxu0 0.0
    %3983 = vmatpush1.xpose.msra.mxu0 0.0
    %3984 = vmatprep.subr.mxu0 0.0
    %3985 = vmatpush1.xpose.msra.mxu0 0.0
    %3986 = vmatprep.subr.mxu0 0.0
    %3987 = vmatpush1.xpose.msra.mxu0 0.0
    %3988 = vmatprep.subr.mxu0 0.0
    %3989 = vmatpush1.xpose.msra.mxu0 0.0
    %3990 = vmatprep.subr.mxu0 0.0
    %3991 = vmatpush1.xpose.msra.mxu0 0.0
    %3992 = vmatprep.subr.mxu0 0.0
    %3993 = vmatpush1.xpose.msra.mxu0 0.0
    %3994 = vmatprep.subr.mxu0 0.0
    %3995 = vmatpush1.xpose.msra.mxu0 0.0
    %3996 = vmatprep.subr.mxu0 0.0
    %3997 = vmatpush1.xpose.msra.mxu0 0.0
    %3998 = vmatprep.mubr.f32.mxu0 0.0
    %3999 = vmatmul.mubr.f32.gmra.mrb[0].mxu0 %v3930
    %v4000 = vpop.f32.mrb[0].mxu0
    %v4001 = vadd.f32 0.0, %v4000
    %v4002 = vpop.f32.mrb[0].mxu0
    %4003 = vdwg.mxu0
    %4004 = vrot.lane.b32.xlu0 %v420, 120
    %v4005 = vpop.permute.xlu0 %4004
    %4006 = vrot.lane.b32.xlu0 %v420, 88
    %v4007 = vpop.permute.xlu0 %4006
    %v4008 = vsel %vm427, %v4005, 0
    %v4010 = vsel %vm427, %v4007, 0
    %4012 = vmatprep.subr.mxu0 0.0
    %4013 = vmatpush1.xpose.msra.mxu0 %v4010
    %4014 = vmatprep.subr.mxu0 0.0
    %4015 = vmatpush1.xpose.msra.mxu0 0.0
    %4016 = vmatprep.subr.mxu0 0.0
    %4017 = vmatpush1.xpose.msra.mxu0 0.0
    %4018 = vmatprep.subr.mxu0 0.0
    %4019 = vmatpush1.xpose.msra.mxu0 0.0
    %4020 = vmatprep.subr.mxu0 0.0
    %4021 = vmatpush1.xpose.msra.mxu0 0.0
    %4022 = vmatprep.subr.mxu0 0.0
    %4023 = vmatpush1.xpose.msra.mxu0 0.0
    %4024 = vmatprep.subr.mxu0 0.0
    %4025 = vmatpush1.xpose.msra.mxu0 0.0
    %4026 = vmatprep.subr.mxu0 0.0
    %4027 = vmatpush1.xpose.msra.mxu0 0.0
    %4028 = vmatprep.subr.mxu0 0.0
    %4029 = vmatpush1.xpose.msra.mxu0 0.0
    %4030 = vmatprep.subr.mxu0 0.0
    %4031 = vmatpush1.xpose.msra.mxu0 0.0
    %4032 = vmatprep.subr.mxu0 0.0
    %4033 = vmatpush1.xpose.msra.mxu0 0.0
    %4034 = vmatprep.subr.mxu0 0.0
    %4035 = vmatpush1.xpose.msra.mxu0 0.0
    %4036 = vmatprep.subr.mxu0 0.0
    %4037 = vmatpush1.xpose.msra.mxu0 0.0
    %4038 = vmatprep.subr.mxu0 0.0
    %4039 = vmatpush1.xpose.msra.mxu0 0.0
    %4040 = vmatprep.subr.mxu0 0.0
    %4041 = vmatpush1.xpose.msra.mxu0 0.0
    %4042 = vmatprep.subr.mxu0 0.0
    %4043 = vmatpush1.xpose.msra.mxu0 0.0
    %4044 = vmatprep.subr.mxu0 0.0
    %4045 = vmatpush1.xpose.msra.mxu0 0.0
    %4046 = vmatprep.subr.mxu0 0.0
    %4047 = vmatpush1.xpose.msra.mxu0 0.0
    %4048 = vmatprep.subr.mxu0 0.0
    %4049 = vmatpush1.xpose.msra.mxu0 0.0
    %4050 = vmatprep.subr.mxu0 0.0
    %4051 = vmatpush1.xpose.msra.mxu0 0.0
    %4052 = vmatprep.subr.mxu0 0.0
    %4053 = vmatpush1.xpose.msra.mxu0 0.0
    %4054 = vmatprep.subr.mxu0 0.0
    %4055 = vmatpush1.xpose.msra.mxu0 0.0
    %4056 = vmatprep.subr.mxu0 0.0
    %4057 = vmatpush1.xpose.msra.mxu0 0.0
    %4058 = vmatprep.subr.mxu0 0.0
    %4059 = vmatpush1.xpose.msra.mxu0 0.0
    %4060 = vmatprep.subr.mxu0 0.0
    %4061 = vmatpush1.xpose.msra.mxu0 0.0
    %4062 = vmatprep.subr.mxu0 0.0
    %4063 = vmatpush1.xpose.msra.mxu0 0.0
    %4064 = vmatprep.subr.mxu0 0.0
    %4065 = vmatpush1.xpose.msra.mxu0 0.0
    %4066 = vmatprep.subr.mxu0 0.0
    %4067 = vmatpush1.xpose.msra.mxu0 0.0
    %4068 = vmatprep.subr.mxu0 0.0
    %4069 = vmatpush1.xpose.msra.mxu0 0.0
    %4070 = vmatprep.subr.mxu0 0.0
    %4071 = vmatpush1.xpose.msra.mxu0 0.0
    %4072 = vmatprep.subr.mxu0 0.0
    %4073 = vmatpush1.xpose.msra.mxu0 0.0
    %4074 = vmatprep.subr.mxu0 0.0
    %4075 = vmatpush1.xpose.msra.mxu0 0.0
    %4076 = vmatprep.mubr.f32.mxu0 0.0
    %4077 = vmatmul.mubr.f32.gmra.mrb[0].mxu0 %v4008
    %v4078 = vpop.f32.mrb[0].mxu0
    %v4079 = vadd.f32 0.0, %v4078
    %v4080 = vpop.f32.mrb[0].mxu0
    %4081 = vdwg.mxu0
    %4082 = vrot.lane.b32.xlu0 %v421, 120
    %v4083 = vpop.permute.xlu0 %4082
    %4084 = vrot.lane.b32.xlu0 %v421, 88
    %v4085 = vpop.permute.xlu0 %4084
    %v4086 = vsel %vm427, %v4083, 0
    %v4088 = vsel %vm427, %v4085, 0
    %4090 = vmatprep.subr.mxu0 0.0
    %4091 = vmatpush1.xpose.msra.mxu0 %v4088
    %4092 = vmatprep.subr.mxu0 0.0
    %4093 = vmatpush1.xpose.msra.mxu0 0.0
    %4094 = vmatprep.subr.mxu0 0.0
    %4095 = vmatpush1.xpose.msra.mxu0 0.0
    %4096 = vmatprep.subr.mxu0 0.0
    %4097 = vmatpush1.xpose.msra.mxu0 0.0
    %4098 = vmatprep.subr.mxu0 0.0
    %4099 = vmatpush1.xpose.msra.mxu0 0.0
    %4100 = vmatprep.subr.mxu0 0.0
    %4101 = vmatpush1.xpose.msra.mxu0 0.0
    %4102 = vmatprep.subr.mxu0 0.0
    %4103 = vmatpush1.xpose.msra.mxu0 0.0
    %4104 = vmatprep.subr.mxu0 0.0
    %4105 = vmatpush1.xpose.msra.mxu0 0.0
    %4106 = vmatprep.subr.mxu0 0.0
    %4107 = vmatpush1.xpose.msra.mxu0 0.0
    %4108 = vmatprep.subr.mxu0 0.0
    %4109 = vmatpush1.xpose.msra.mxu0 0.0
    %4110 = vmatprep.subr.mxu0 0.0
    %4111 = vmatpush1.xpose.msra.mxu0 0.0
    %4112 = vmatprep.subr.mxu0 0.0
    %4113 = vmatpush1.xpose.msra.mxu0 0.0
    %4114 = vmatprep.subr.mxu0 0.0
    %4115 = vmatpush1.xpose.msra.mxu0 0.0
    %4116 = vmatprep.subr.mxu0 0.0
    %4117 = vmatpush1.xpose.msra.mxu0 0.0
    %4118 = vmatprep.subr.mxu0 0.0
    %4119 = vmatpush1.xpose.msra.mxu0 0.0
    %4120 = vmatprep.subr.mxu0 0.0
    %4121 = vmatpush1.xpose.msra.mxu0 0.0
    %4122 = vmatprep.subr.mxu0 0.0
    %4123 = vmatpush1.xpose.msra.mxu0 0.0
    %4124 = vmatprep.subr.mxu0 0.0
    %4125 = vmatpush1.xpose.msra.mxu0 0.0
    %4126 = vmatprep.subr.mxu0 0.0
    %4127 = vmatpush1.xpose.msra.mxu0 0.0
    %4128 = vmatprep.subr.mxu0 0.0
    %4129 = vmatpush1.xpose.msra.mxu0 0.0
    %4130 = vmatprep.subr.mxu0 0.0
    %4131 = vmatpush1.xpose.msra.mxu0 0.0
    %4132 = vmatprep.subr.mxu0 0.0
    %4133 = vmatpush1.xpose.msra.mxu0 0.0
    %4134 = vmatprep.subr.mxu0 0.0
    %4135 = vmatpush1.xpose.msra.mxu0 0.0
    %4136 = vmatprep.subr.mxu0 0.0
    %4137 = vmatpush1.xpose.msra.mxu0 0.0
    %4138 = vmatprep.subr.mxu0 0.0
    %4139 = vmatpush1.xpose.msra.mxu0 0.0
    %4140 = vmatprep.subr.mxu0 0.0
    %4141 = vmatpush1.xpose.msra.mxu0 0.0
    %4142 = vmatprep.subr.mxu0 0.0
    %4143 = vmatpush1.xpose.msra.mxu0 0.0
    %4144 = vmatprep.subr.mxu0 0.0
    %4145 = vmatpush1.xpose.msra.mxu0 0.0
    %4146 = vmatprep.subr.mxu0 0.0
    %4147 = vmatpush1.xpose.msra.mxu0 0.0
    %4148 = vmatprep.subr.mxu0 0.0
    %4149 = vmatpush1.xpose.msra.mxu0 0.0
    %4150 = vmatprep.subr.mxu0 0.0
    %4151 = vmatpush1.xpose.msra.mxu0 0.0
    %4152 = vmatprep.subr.mxu0 0.0
    %4153 = vmatpush1.xpose.msra.mxu0 0.0
    %4154 = vmatprep.mubr.f32.mxu0 0.0
    %4155 = vmatmul.mubr.f32.gmra.mrb[0].mxu0 %v4086
    %v4156 = vpop.f32.mrb[0].mxu0
    %v4157 = vadd.f32 0.0, %v4156
    %v4158 = vpop.f32.mrb[0].mxu0
    %4159 = vdwg.mxu0
    %4160 = vrot.lane.b32.xlu0 %v422, 120
    %v4161 = vpop.permute.xlu0 %4160
    %4162 = vrot.lane.b32.xlu0 %v422, 88
    %v4163 = vpop.permute.xlu0 %4162
    %v4164 = vsel %vm427, %v4161, 0
    %v4166 = vsel %vm427, %v4163, 0
    %4168 = vmatprep.subr.mxu0 0.0
    %4169 = vmatpush1.xpose.msra.mxu0 %v4166
    %4170 = vmatprep.subr.mxu0 0.0
    %4171 = vmatpush1.xpose.msra.mxu0 0.0
    %4172 = vmatprep.subr.mxu0 0.0
    %4173 = vmatpush1.xpose.msra.mxu0 0.0
    %4174 = vmatprep.subr.mxu0 0.0
    %4175 = vmatpush1.xpose.msra.mxu0 0.0
    %4176 = vmatprep.subr.mxu0 0.0
    %4177 = vmatpush1.xpose.msra.mxu0 0.0
    %4178 = vmatprep.subr.mxu0 0.0
    %4179 = vmatpush1.xpose.msra.mxu0 0.0
    %4180 = vmatprep.subr.mxu0 0.0
    %4181 = vmatpush1.xpose.msra.mxu0 0.0
    %4182 = vmatprep.subr.mxu0 0.0
    %4183 = vmatpush1.xpose.msra.mxu0 0.0
    %4184 = vmatprep.subr.mxu0 0.0
    %4185 = vmatpush1.xpose.msra.mxu0 0.0
    %4186 = vmatprep.subr.mxu0 0.0
    %4187 = vmatpush1.xpose.msra.mxu0 0.0
    %4188 = vmatprep.subr.mxu0 0.0
    %4189 = vmatpush1.xpose.msra.mxu0 0.0
    %4190 = vmatprep.subr.mxu0 0.0
    %4191 = vmatpush1.xpose.msra.mxu0 0.0
    %4192 = vmatprep.subr.mxu0 0.0
    %4193 = vmatpush1.xpose.msra.mxu0 0.0
    %4194 = vmatprep.subr.mxu0 0.0
    %4195 = vmatpush1.xpose.msra.mxu0 0.0
    %4196 = vmatprep.subr.mxu0 0.0
    %4197 = vmatpush1.xpose.msra.mxu0 0.0
    %4198 = vmatprep.subr.mxu0 0.0
    %4199 = vmatpush1.xpose.msra.mxu0 0.0
    %4200 = vmatprep.subr.mxu0 0.0
    %4201 = vmatpush1.xpose.msra.mxu0 0.0
    %4202 = vmatprep.subr.mxu0 0.0
    %4203 = vmatpush1.xpose.msra.mxu0 0.0
    %4204 = vmatprep.subr.mxu0 0.0
    %4205 = vmatpush1.xpose.msra.mxu0 0.0
    %4206 = vmatprep.subr.mxu0 0.0
    %4207 = vmatpush1.xpose.msra.mxu0 0.0
    %4208 = vmatprep.subr.mxu0 0.0
    %4209 = vmatpush1.xpose.msra.mxu0 0.0
    %4210 = vmatprep.subr.mxu0 0.0
    %4211 = vmatpush1.xpose.msra.mxu0 0.0
    %4212 = vmatprep.subr.mxu0 0.0
    %4213 = vmatpush1.xpose.msra.mxu0 0.0
    %4214 = vmatprep.subr.mxu0 0.0
    %4215 = vmatpush1.xpose.msra.mxu0 0.0
    %4216 = vmatprep.subr.mxu0 0.0
    %4217 = vmatpush1.xpose.msra.mxu0 0.0
    %4218 = vmatprep.subr.mxu0 0.0
    %4219 = vmatpush1.xpose.msra.mxu0 0.0
    %4220 = vmatprep.subr.mxu0 0.0
    %4221 = vmatpush1.xpose.msra.mxu0 0.0
    %4222 = vmatprep.subr.mxu0 0.0
    %4223 = vmatpush1.xpose.msra.mxu0 0.0
    %4224 = vmatprep.subr.mxu0 0.0
    %4225 = vmatpush1.xpose.msra.mxu0 0.0
    %4226 = vmatprep.subr.mxu0 0.0
    %4227 = vmatpush1.xpose.msra.mxu0 0.0
    %4228 = vmatprep.subr.mxu0 0.0
    %4229 = vmatpush1.xpose.msra.mxu0 0.0
    %4230 = vmatprep.subr.mxu0 0.0
    %4231 = vmatpush1.xpose.msra.mxu0 0.0
    %4232 = vmatprep.mubr.f32.mxu0 0.0
    %4233 = vmatmul.mubr.f32.gmra.mrb[0].mxu0 %v4164
    %v4234 = vpop.f32.mrb[0].mxu0
    %v4235 = vadd.f32 0.0, %v4234
    %v4236 = vpop.f32.mrb[0].mxu0
    %4237 = vdwg.mxu0
    %4238 = vrot.lane.b32.xlu0 %v423, 120
    %v4239 = vpop.permute.xlu0 %4238
    %4240 = vrot.lane.b32.xlu0 %v423, 88
    %v4241 = vpop.permute.xlu0 %4240
    %v4242 = vsel %vm427, %v4239, 0
    %v4244 = vsel %vm427, %v4241, 0
    %4246 = vmatprep.subr.mxu0 0.0
    %4247 = vmatpush1.xpose.msra.mxu0 %v4244
    %4248 = vmatprep.subr.mxu0 0.0
    %4249 = vmatpush1.xpose.msra.mxu0 0.0
    %4250 = vmatprep.subr.mxu0 0.0
    %4251 = vmatpush1.xpose.msra.mxu0 0.0
    %4252 = vmatprep.subr.mxu0 0.0
    %4253 = vmatpush1.xpose.msra.mxu0 0.0
    %4254 = vmatprep.subr.mxu0 0.0
    %4255 = vmatpush1.xpose.msra.mxu0 0.0
    %4256 = vmatprep.subr.mxu0 0.0
    %4257 = vmatpush1.xpose.msra.mxu0 0.0
    %4258 = vmatprep.subr.mxu0 0.0
    %4259 = vmatpush1.xpose.msra.mxu0 0.0
    %4260 = vmatprep.subr.mxu0 0.0
    %4261 = vmatpush1.xpose.msra.mxu0 0.0
    %4262 = vmatprep.subr.mxu0 0.0
    %4263 = vmatpush1.xpose.msra.mxu0 0.0
    %4264 = vmatprep.subr.mxu0 0.0
    %4265 = vmatpush1.xpose.msra.mxu0 0.0
    %4266 = vmatprep.subr.mxu0 0.0
    %4267 = vmatpush1.xpose.msra.mxu0 0.0
    %4268 = vmatprep.subr.mxu0 0.0
    %4269 = vmatpush1.xpose.msra.mxu0 0.0
    %4270 = vmatprep.subr.mxu0 0.0
    %4271 = vmatpush1.xpose.msra.mxu0 0.0
    %4272 = vmatprep.subr.mxu0 0.0
    %4273 = vmatpush1.xpose.msra.mxu0 0.0
    %4274 = vmatprep.subr.mxu0 0.0
    %4275 = vmatpush1.xpose.msra.mxu0 0.0
    %4276 = vmatprep.subr.mxu0 0.0
    %4277 = vmatpush1.xpose.msra.mxu0 0.0
    %4278 = vmatprep.subr.mxu0 0.0
    %4279 = vmatpush1.xpose.msra.mxu0 0.0
    %4280 = vmatprep.subr.mxu0 0.0
    %4281 = vmatpush1.xpose.msra.mxu0 0.0
    %4282 = vmatprep.subr.mxu0 0.0
    %4283 = vmatpush1.xpose.msra.mxu0 0.0
    %4284 = vmatprep.subr.mxu0 0.0
    %4285 = vmatpush1.xpose.msra.mxu0 0.0
    %4286 = vmatprep.subr.mxu0 0.0
    %4287 = vmatpush1.xpose.msra.mxu0 0.0
    %4288 = vmatprep.subr.mxu0 0.0
    %4289 = vmatpush1.xpose.msra.mxu0 0.0
    %4290 = vmatprep.subr.mxu0 0.0
    %4291 = vmatpush1.xpose.msra.mxu0 0.0
    %4292 = vmatprep.subr.mxu0 0.0
    %4293 = vmatpush1.xpose.msra.mxu0 0.0
    %4294 = vmatprep.subr.mxu0 0.0
    %4295 = vmatpush1.xpose.msra.mxu0 0.0
    %4296 = vmatprep.subr.mxu0 0.0
    %4297 = vmatpush1.xpose.msra.mxu0 0.0
    %4298 = vmatprep.subr.mxu0 0.0
    %4299 = vmatpush1.xpose.msra.mxu0 0.0
    %4300 = vmatprep.subr.mxu0 0.0
    %4301 = vmatpush1.xpose.msra.mxu0 0.0
    %4302 = vmatprep.subr.mxu0 0.0
    %4303 = vmatpush1.xpose.msra.mxu0 0.0
    %4304 = vmatprep.subr.mxu0 0.0
    %4305 = vmatpush1.xpose.msra.mxu0 0.0
    %4306 = vmatprep.subr.mxu0 0.0
    %4307 = vmatpush1.xpose.msra.mxu0 0.0
    %4308 = vmatprep.subr.mxu0 0.0
    %4309 = vmatpush1.xpose.msra.mxu0 0.0
    %4310 = vmatprep.mubr.f32.mxu0 0.0
    %4311 = vmatmul.mubr.f32.gmra.mrb[0].mxu0 %v4242
    %v4312 = vpop.f32.mrb[0].mxu0
    %v4313 = vadd.f32 0.0, %v4312
    %v4314 = vpop.f32.mrb[0].mxu0
    %4315 = vdwg.mxu0
    %v4316 = vsel %vm1657, %v3143, -inf
    %4317 = vmax.xlane.f32.xlu0 %v4316
    %v4318 = vpop.xlane.xlu0 %4317
    %v4319 = vsel %vm1657, %v3221, -inf
    %4320 = vmax.xlane.f32.xlu0 %v4319
    %v4321 = vpop.xlane.xlu0 %4320
    %v4322 = vsel %vm1657, %v3299, -inf
    %4323 = vmax.xlane.f32.xlu0 %v4322
    %v4324 = vpop.xlane.xlu0 %4323
    %v4325 = vsel %vm1657, %v3377, -inf
    %4326 = vmax.xlane.f32.xlu0 %v4325
    %v4327 = vpop.xlane.xlu0 %4326
    %v4328 = vsel %vm1657, %v3455, -inf
    %4329 = vmax.xlane.f32.xlu0 %v4328
    %v4330 = vpop.xlane.xlu0 %4329
    %v4331 = vsel %vm1657, %v3533, -inf
    %4332 = vmax.xlane.f32.xlu0 %v4331
    %v4333 = vpop.xlane.xlu0 %4332
    %v4334 = vsel %vm1657, %v3611, -inf
    %4335 = vmax.xlane.f32.xlu0 %v4334
    %v4336 = vpop.xlane.xlu0 %4335
    %v4337 = vsel %vm1657, %v3689, -inf
    %4338 = vmax.xlane.f32.xlu0 %v4337
    %v4339 = vpop.xlane.xlu0 %4338
    %v4340 = vsel %vm1657, %v3767, -inf
    %4341 = vmax.xlane.f32.xlu0 %v4340
    %v4342 = vpop.xlane.xlu0 %4341
    %v4343 = vsel %vm1657, %v3845, -inf
    %4344 = vmax.xlane.f32.xlu0 %v4343
    %v4345 = vpop.xlane.xlu0 %4344
    %v4346 = vsel %vm1657, %v3923, -inf
    %4347 = vmax.xlane.f32.xlu0 %v4346
    %v4348 = vpop.xlane.xlu0 %4347
    %v4349 = vsel %vm1657, %v4001, -inf
    %4350 = vmax.xlane.f32.xlu0 %v4349
    %v4351 = vpop.xlane.xlu0 %4350
    %v4352 = vsel %vm1657, %v4079, -inf
    %4353 = vmax.xlane.f32.xlu0 %v4352
    %v4354 = vpop.xlane.xlu0 %4353
    %v4355 = vsel %vm1657, %v4157, -inf
    %4356 = vmax.xlane.f32.xlu0 %v4355
    %v4357 = vpop.xlane.xlu0 %4356
    %v4358 = vsel %vm1657, %v4235, -inf
    %4359 = vmax.xlane.f32.xlu0 %v4358
    %v4360 = vpop.xlane.xlu0 %4359
    %v4361 = vsel %vm1657, %v4313, -inf
    %4362 = vmax.xlane.f32.xlu0 %v4361
    %v4363 = vpop.xlane.xlu0 %4362
    %v4364 = vsub.f32 %v3143, %v4318
    %v4365 = vsub.f32 %v3221, %v4321
    %v4366 = vsub.f32 %v3299, %v4324
    %v4367 = vsub.f32 %v3377, %v4327
    %v4368 = vsub.f32 %v3455, %v4330
    %v4369 = vsub.f32 %v3533, %v4333
    %v4370 = vsub.f32 %v3611, %v4336
    %v4371 = vsub.f32 %v3689, %v4339
    %v4372 = vsub.f32 %v3767, %v4342
    %v4373 = vsub.f32 %v3845, %v4345
    %v4374 = vsub.f32 %v3923, %v4348
    %v4375 = vsub.f32 %v4001, %v4351
    %v4376 = vsub.f32 %v4079, %v4354
    %v4377 = vsub.f32 %v4157, %v4357
    %v4378 = vsub.f32 %v4235, %v4360
    %v4379 = vsub.f32 %v4313, %v4363
    %v4380 = vmul.f32 %v4364, 1.442695
    %v4381 = vpow.pop %v4380
    %v4382 = vmul.f32 %v4365, 1.442695
    %v4383 = vpow.pop %v4382
    %v4384 = vmul.f32 %v4366, 1.442695
    %v4385 = vpow.pop %v4384
    %v4386 = vmul.f32 %v4367, 1.442695
    %v4387 = vpow.pop %v4386
    %v4388 = vmul.f32 %v4368, 1.442695
    %v4389 = vpow.pop %v4388
    %v4390 = vmul.f32 %v4369, 1.442695
    %v4391 = vpow.pop %v4390
    %v4392 = vmul.f32 %v4370, 1.442695
    %v4393 = vpow.pop %v4392
    %v4394 = vmul.f32 %v4371, 1.442695
    %v4395 = vpow.pop %v4394
    %v4396 = vmul.f32 %v4372, 1.442695
    %v4397 = vpow.pop %v4396
    %v4398 = vmul.f32 %v4373, 1.442695
    %v4399 = vpow.pop %v4398
    %v4400 = vmul.f32 %v4374, 1.442695
    %v4401 = vpow.pop %v4400
    %v4402 = vmul.f32 %v4375, 1.442695
    %v4403 = vpow.pop %v4402
    %v4404 = vmul.f32 %v4376, 1.442695
    %v4405 = vpow.pop %v4404
    %v4406 = vmul.f32 %v4377, 1.442695
    %v4407 = vpow.pop %v4406
    %v4408 = vmul.f32 %v4378, 1.442695
    %v4409 = vpow.pop %v4408
    %v4410 = vmul.f32 %v4379, 1.442695
    %v4411 = vpow.pop %v4410
    %v4412 = vsel %vm1657, %v4381, 0.0
    %4413 = vadd.xlane.f32.xlu0 %v4412
    %v4414 = vpop.xlane.xlu0 %4413
    %v4415 = vsel %vm1657, %v4383, 0.0
    %4416 = vadd.xlane.f32.xlu0 %v4415
    %v4417 = vpop.xlane.xlu0 %4416
    %v4418 = vsel %vm1657, %v4385, 0.0
    %4419 = vadd.xlane.f32.xlu0 %v4418
    %v4420 = vpop.xlane.xlu0 %4419
    %v4421 = vsel %vm1657, %v4387, 0.0
    %4422 = vadd.xlane.f32.xlu0 %v4421
    %v4423 = vpop.xlane.xlu0 %4422
    %v4424 = vsel %vm1657, %v4389, 0.0
    %4425 = vadd.xlane.f32.xlu0 %v4424
    %v4426 = vpop.xlane.xlu0 %4425
    %v4427 = vsel %vm1657, %v4391, 0.0
    %4428 = vadd.xlane.f32.xlu0 %v4427
    %v4429 = vpop.xlane.xlu0 %4428
    %v4430 = vsel %vm1657, %v4393, 0.0
    %4431 = vadd.xlane.f32.xlu0 %v4430
    %v4432 = vpop.xlane.xlu0 %4431
    %v4433 = vsel %vm1657, %v4395, 0.0
    %4434 = vadd.xlane.f32.xlu0 %v4433
    %v4435 = vpop.xlane.xlu0 %4434
    %v4436 = vsel %vm1657, %v4397, 0.0
    %4437 = vadd.xlane.f32.xlu0 %v4436
    %v4438 = vpop.xlane.xlu0 %4437
    %v4439 = vsel %vm1657, %v4399, 0.0
    %4440 = vadd.xlane.f32.xlu0 %v4439
    %v4441 = vpop.xlane.xlu0 %4440
    %v4442 = vsel %vm1657, %v4401, 0.0
    %4443 = vadd.xlane.f32.xlu0 %v4442
    %v4444 = vpop.xlane.xlu0 %4443
    %v4445 = vsel %vm1657, %v4403, 0.0
    %4446 = vadd.xlane.f32.xlu0 %v4445
    %v4447 = vpop.xlane.xlu0 %4446
    %v4448 = vsel %vm1657, %v4405, 0.0
    %4449 = vadd.xlane.f32.xlu0 %v4448
    %v4450 = vpop.xlane.xlu0 %4449
    %v4451 = vsel %vm1657, %v4407, 0.0
    %4452 = vadd.xlane.f32.xlu0 %v4451
    %v4453 = vpop.xlane.xlu0 %4452
    %v4454 = vsel %vm1657, %v4409, 0.0
    %4455 = vadd.xlane.f32.xlu0 %v4454
    %v4456 = vpop.xlane.xlu0 %4455
    %v4457 = vsel %vm1657, %v4411, 0.0
    %4458 = vadd.xlane.f32.xlu0 %v4457
    %v4459 = vpop.xlane.xlu0 %4458
    %v4460 = vrcp.pop %v4414
    %v4461 = vrcp.pop %v4417
    %v4462 = vrcp.pop %v4420
    %v4463 = vrcp.pop %v4423
    %v4464 = vrcp.pop %v4426
    %v4465 = vrcp.pop %v4429
    %v4466 = vrcp.pop %v4432
    %v4467 = vrcp.pop %v4435
    %v4468 = vrcp.pop %v4438
    %v4469 = vrcp.pop %v4441
    %v4470 = vrcp.pop %v4444
    %v4471 = vrcp.pop %v4447
    %v4472 = vrcp.pop %v4450
    %v4473 = vrcp.pop %v4453
    %v4474 = vrcp.pop %v4456
    %v4475 = vrcp.pop %v4459
    %v4476 = vmul.f32 %v4381, %v4460
    %v4477 = vmul.f32 %v4383, %v4461
    %v4478 = vmul.f32 %v4385, %v4462
    %v4479 = vmul.f32 %v4387, %v4463
    %v4480 = vmul.f32 %v4389, %v4464
    %v4481 = vmul.f32 %v4391, %v4465
    %v4482 = vmul.f32 %v4393, %v4466
    %v4483 = vmul.f32 %v4395, %v4467
    %v4484 = vmul.f32 %v4397, %v4468
    %v4485 = vmul.f32 %v4399, %v4469
    %v4486 = vmul.f32 %v4401, %v4470
    %v4487 = vmul.f32 %v4403, %v4471
    %v4488 = vmul.f32 %v4405, %v4472
    %v4489 = vmul.f32 %v4407, %v4473
    %v4490 = vmul.f32 %v4409, %v4474
    %v4491 = vmul.f32 %v4411, %v4475
    %4492 = vrot.lane.b32.xlu0 %v408, 56
    %v4493 = vpop.permute.xlu0 %4492
    %v4495 = vsel %vm1836, %v4476, 0
    %v4497 = vsel %vm1840, %v4493, 0
    %4499 = vmatprep.subr.mxu0 0.0
    %4500 = vmatpush1.msra.mxu0 %v4497
    %4501 = vmatprep.subr.mxu0 0.0
    %4502 = vmatpush1.msra.mxu0 0.0
    %4503 = vmatprep.subr.mxu0 0.0
    %4504 = vmatpush1.msra.mxu0 0.0
    %4505 = vmatprep.subr.mxu0 0.0
    %4506 = vmatpush1.msra.mxu0 0.0
    %4507 = vmatprep.subr.mxu0 0.0
    %4508 = vmatpush1.msra.mxu0 0.0
    %4509 = vmatprep.subr.mxu0 0.0
    %4510 = vmatpush1.msra.mxu0 0.0
    %4511 = vmatprep.subr.mxu0 0.0
    %4512 = vmatpush1.msra.mxu0 0.0
    %4513 = vmatprep.subr.mxu0 0.0
    %4514 = vmatpush1.msra.mxu0 0.0
    %4515 = vmatprep.subr.mxu0 0.0
    %4516 = vmatpush1.msra.mxu0 0.0
    %4517 = vmatprep.subr.mxu0 0.0
    %4518 = vmatpush1.msra.mxu0 0.0
    %4519 = vmatprep.subr.mxu0 0.0
    %4520 = vmatpush1.msra.mxu0 0.0
    %4521 = vmatprep.subr.mxu0 0.0
    %4522 = vmatpush1.msra.mxu0 0.0
    %4523 = vmatprep.subr.mxu0 0.0
    %4524 = vmatpush1.msra.mxu0 0.0
    %4525 = vmatprep.subr.mxu0 0.0
    %4526 = vmatpush1.msra.mxu0 0.0
    %4527 = vmatprep.subr.mxu0 0.0
    %4528 = vmatpush1.msra.mxu0 0.0
    %4529 = vmatprep.subr.mxu0 0.0
    %4530 = vmatpush1.msra.mxu0 0.0
    %4531 = vmatprep.subr.mxu0 0.0
    %4532 = vmatpush1.msra.mxu0 0.0
    %4533 = vmatprep.subr.mxu0 0.0
    %4534 = vmatpush1.msra.mxu0 0.0
    %4535 = vmatprep.subr.mxu0 0.0
    %4536 = vmatpush1.msra.mxu0 0.0
    %4537 = vmatprep.subr.mxu0 0.0
    %4538 = vmatpush1.msra.mxu0 0.0
    %4539 = vmatprep.subr.mxu0 0.0
    %4540 = vmatpush1.msra.mxu0 0.0
    %4541 = vmatprep.subr.mxu0 0.0
    %4542 = vmatpush1.msra.mxu0 0.0
    %4543 = vmatprep.subr.mxu0 0.0
    %4544 = vmatpush1.msra.mxu0 0.0
    %4545 = vmatprep.subr.mxu0 0.0
    %4546 = vmatpush1.msra.mxu0 0.0
    %4547 = vmatprep.subr.mxu0 0.0
    %4548 = vmatpush1.msra.mxu0 0.0
    %4549 = vmatprep.subr.mxu0 0.0
    %4550 = vmatpush1.msra.mxu0 0.0
    %4551 = vmatprep.subr.mxu0 0.0
    %4552 = vmatpush1.msra.mxu0 0.0
    %4553 = vmatprep.subr.mxu0 0.0
    %4554 = vmatpush1.msra.mxu0 0.0
    %4555 = vmatprep.subr.mxu0 0.0
    %4556 = vmatpush1.msra.mxu0 0.0
    %4557 = vmatprep.subr.mxu0 0.0
    %4558 = vmatpush1.msra.mxu0 0.0
    %4559 = vmatprep.subr.mxu0 0.0
    %4560 = vmatpush1.msra.mxu0 0.0
    %4561 = vmatprep.subr.mxu0 0.0
    %4562 = vmatpush1.msra.mxu0 0.0
    %4563 = vmatprep.mubr.f32.mxu0 0.0
    %4564 = vmatmul.mubr.f32.gmra.mrb[0].mxu0 %v4495
    %v4565 = vpop.f32.mrb[0].mxu0
    %v4566 = vadd.f32 0.0, %v4565
    %v4567 = vpop.f32.mrb[0].mxu0
    %4568 = vdwg.mxu0
    %4569 = vrot.lane.b32.xlu0 %v409, 56
    %v4570 = vpop.permute.xlu0 %4569
    %v4572 = vsel %vm1836, %v4477, 0
    %v4574 = vsel %vm1840, %v4570, 0
    %4576 = vmatprep.subr.mxu0 0.0
    %4577 = vmatpush1.msra.mxu0 %v4574
    %4578 = vmatprep.subr.mxu0 0.0
    %4579 = vmatpush1.msra.mxu0 0.0
    %4580 = vmatprep.subr.mxu0 0.0
    %4581 = vmatpush1.msra.mxu0 0.0
    %4582 = vmatprep.subr.mxu0 0.0
    %4583 = vmatpush1.msra.mxu0 0.0
    %4584 = vmatprep.subr.mxu0 0.0
    %4585 = vmatpush1.msra.mxu0 0.0
    %4586 = vmatprep.subr.mxu0 0.0
    %4587 = vmatpush1.msra.mxu0 0.0
    %4588 = vmatprep.subr.mxu0 0.0
    %4589 = vmatpush1.msra.mxu0 0.0
    %4590 = vmatprep.subr.mxu0 0.0
    %4591 = vmatpush1.msra.mxu0 0.0
    %4592 = vmatprep.subr.mxu0 0.0
    %4593 = vmatpush1.msra.mxu0 0.0
    %4594 = vmatprep.subr.mxu0 0.0
    %4595 = vmatpush1.msra.mxu0 0.0
    %4596 = vmatprep.subr.mxu0 0.0
    %4597 = vmatpush1.msra.mxu0 0.0
    %4598 = vmatprep.subr.mxu0 0.0
    %4599 = vmatpush1.msra.mxu0 0.0
    %4600 = vmatprep.subr.mxu0 0.0
    %4601 = vmatpush1.msra.mxu0 0.0
    %4602 = vmatprep.subr.mxu0 0.0
    %4603 = vmatpush1.msra.mxu0 0.0
    %4604 = vmatprep.subr.mxu0 0.0
    %4605 = vmatpush1.msra.mxu0 0.0
    %4606 = vmatprep.subr.mxu0 0.0
    %4607 = vmatpush1.msra.mxu0 0.0
    %4608 = vmatprep.subr.mxu0 0.0
    %4609 = vmatpush1.msra.mxu0 0.0
    %4610 = vmatprep.subr.mxu0 0.0
    %4611 = vmatpush1.msra.mxu0 0.0
    %4612 = vmatprep.subr.mxu0 0.0
    %4613 = vmatpush1.msra.mxu0 0.0
    %4614 = vmatprep.subr.mxu0 0.0
    %4615 = vmatpush1.msra.mxu0 0.0
    %4616 = vmatprep.subr.mxu0 0.0
    %4617 = vmatpush1.msra.mxu0 0.0
    %4618 = vmatprep.subr.mxu0 0.0
    %4619 = vmatpush1.msra.mxu0 0.0
    %4620 = vmatprep.subr.mxu0 0.0
    %4621 = vmatpush1.msra.mxu0 0.0
    %4622 = vmatprep.subr.mxu0 0.0
    %4623 = vmatpush1.msra.mxu0 0.0
    %4624 = vmatprep.subr.mxu0 0.0
    %4625 = vmatpush1.msra.mxu0 0.0
    %4626 = vmatprep.subr.mxu0 0.0
    %4627 = vmatpush1.msra.mxu0 0.0
    %4628 = vmatprep.subr.mxu0 0.0
    %4629 = vmatpush1.msra.mxu0 0.0
    %4630 = vmatprep.subr.mxu0 0.0
    %4631 = vmatpush1.msra.mxu0 0.0
    %4632 = vmatprep.subr.mxu0 0.0
    %4633 = vmatpush1.msra.mxu0 0.0
    %4634 = vmatprep.subr.mxu0 0.0
    %4635 = vmatpush1.msra.mxu0 0.0
    %4636 = vmatprep.subr.mxu0 0.0
    %4637 = vmatpush1.msra.mxu0 0.0
    %4638 = vmatprep.subr.mxu0 0.0
    %4639 = vmatpush1.msra.mxu0 0.0
    %4640 = vmatprep.mubr.f32.mxu0 0.0
    %4641 = vmatmul.mubr.f32.gmra.mrb[0].mxu0 %v4572
    %v4642 = vpop.f32.mrb[0].mxu0
    %v4643 = vadd.f32 0.0, %v4642
    %v4644 = vpop.f32.mrb[0].mxu0
    %4645 = vdwg.mxu0
    %4646 = vrot.lane.b32.xlu0 %v410, 56
    %v4647 = vpop.permute.xlu0 %4646
    %v4649 = vsel %vm1836, %v4478, 0
    %v4651 = vsel %vm1840, %v4647, 0
    %4653 = vmatprep.subr.mxu0 0.0
    %4654 = vmatpush1.msra.mxu0 %v4651
    %4655 = vmatprep.subr.mxu0 0.0
    %4656 = vmatpush1.msra.mxu0 0.0
    %4657 = vmatprep.subr.mxu0 0.0
    %4658 = vmatpush1.msra.mxu0 0.0
    %4659 = vmatprep.subr.mxu0 0.0
    %4660 = vmatpush1.msra.mxu0 0.0
    %4661 = vmatprep.subr.mxu0 0.0
    %4662 = vmatpush1.msra.mxu0 0.0
    %4663 = vmatprep.subr.mxu0 0.0
    %4664 = vmatpush1.msra.mxu0 0.0
    %4665 = vmatprep.subr.mxu0 0.0
    %4666 = vmatpush1.msra.mxu0 0.0
    %4667 = vmatprep.subr.mxu0 0.0
    %4668 = vmatpush1.msra.mxu0 0.0
    %4669 = vmatprep.subr.mxu0 0.0
    %4670 = vmatpush1.msra.mxu0 0.0
    %4671 = vmatprep.subr.mxu0 0.0
    %4672 = vmatpush1.msra.mxu0 0.0
    %4673 = vmatprep.subr.mxu0 0.0
    %4674 = vmatpush1.msra.mxu0 0.0
    %4675 = vmatprep.subr.mxu0 0.0
    %4676 = vmatpush1.msra.mxu0 0.0
    %4677 = vmatprep.subr.mxu0 0.0
    %4678 = vmatpush1.msra.mxu0 0.0
    %4679 = vmatprep.subr.mxu0 0.0
    %4680 = vmatpush1.msra.mxu0 0.0
    %4681 = vmatprep.subr.mxu0 0.0
    %4682 = vmatpush1.msra.mxu0 0.0
    %4683 = vmatprep.subr.mxu0 0.0
    %4684 = vmatpush1.msra.mxu0 0.0
    %4685 = vmatprep.subr.mxu0 0.0
    %4686 = vmatpush1.msra.mxu0 0.0
    %4687 = vmatprep.subr.mxu0 0.0
    %4688 = vmatpush1.msra.mxu0 0.0
    %4689 = vmatprep.subr.mxu0 0.0
    %4690 = vmatpush1.msra.mxu0 0.0
    %4691 = vmatprep.subr.mxu0 0.0
    %4692 = vmatpush1.msra.mxu0 0.0
    %4693 = vmatprep.subr.mxu0 0.0
    %4694 = vmatpush1.msra.mxu0 0.0
    %4695 = vmatprep.subr.mxu0 0.0
    %4696 = vmatpush1.msra.mxu0 0.0
    %4697 = vmatprep.subr.mxu0 0.0
    %4698 = vmatpush1.msra.mxu0 0.0
    %4699 = vmatprep.subr.mxu0 0.0
    %4700 = vmatpush1.msra.mxu0 0.0
    %4701 = vmatprep.subr.mxu0 0.0
    %4702 = vmatpush1.msra.mxu0 0.0
    %4703 = vmatprep.subr.mxu0 0.0
    %4704 = vmatpush1.msra.mxu0 0.0
    %4705 = vmatprep.subr.mxu0 0.0
    %4706 = vmatpush1.msra.mxu0 0.0
    %4707 = vmatprep.subr.mxu0 0.0
    %4708 = vmatpush1.msra.mxu0 0.0
    %4709 = vmatprep.subr.mxu0 0.0
    %4710 = vmatpush1.msra.mxu0 0.0
    %4711 = vmatprep.subr.mxu0 0.0
    %4712 = vmatpush1.msra.mxu0 0.0
    %4713 = vmatprep.subr.mxu0 0.0
    %4714 = vmatpush1.msra.mxu0 0.0
    %4715 = vmatprep.subr.mxu0 0.0
    %4716 = vmatpush1.msra.mxu0 0.0
    %4717 = vmatprep.mubr.f32.mxu0 0.0
    %4718 = vmatmul.mubr.f32.gmra.mrb[0].mxu0 %v4649
    %v4719 = vpop.f32.mrb[0].mxu0
    %v4720 = vadd.f32 0.0, %v4719
    %v4721 = vpop.f32.mrb[0].mxu0
    %4722 = vdwg.mxu0
    %4723 = vrot.lane.b32.xlu0 %v411, 56
    %v4724 = vpop.permute.xlu0 %4723
    %v4726 = vsel %vm1836, %v4479, 0
    %v4728 = vsel %vm1840, %v4724, 0
    %4730 = vmatprep.subr.mxu0 0.0
    %4731 = vmatpush1.msra.mxu0 %v4728
    %4732 = vmatprep.subr.mxu0 0.0
    %4733 = vmatpush1.msra.mxu0 0.0
    %4734 = vmatprep.subr.mxu0 0.0
    %4735 = vmatpush1.msra.mxu0 0.0
    %4736 = vmatprep.subr.mxu0 0.0
    %4737 = vmatpush1.msra.mxu0 0.0
    %4738 = vmatprep.subr.mxu0 0.0
    %4739 = vmatpush1.msra.mxu0 0.0
    %4740 = vmatprep.subr.mxu0 0.0
    %4741 = vmatpush1.msra.mxu0 0.0
    %4742 = vmatprep.subr.mxu0 0.0
    %4743 = vmatpush1.msra.mxu0 0.0
    %4744 = vmatprep.subr.mxu0 0.0
    %4745 = vmatpush1.msra.mxu0 0.0
    %4746 = vmatprep.subr.mxu0 0.0
    %4747 = vmatpush1.msra.mxu0 0.0
    %4748 = vmatprep.subr.mxu0 0.0
    %4749 = vmatpush1.msra.mxu0 0.0
    %4750 = vmatprep.subr.mxu0 0.0
    %4751 = vmatpush1.msra.mxu0 0.0
    %4752 = vmatprep.subr.mxu0 0.0
    %4753 = vmatpush1.msra.mxu0 0.0
    %4754 = vmatprep.subr.mxu0 0.0
    %4755 = vmatpush1.msra.mxu0 0.0
    %4756 = vmatprep.subr.mxu0 0.0
    %4757 = vmatpush1.msra.mxu0 0.0
    %4758 = vmatprep.subr.mxu0 0.0
    %4759 = vmatpush1.msra.mxu0 0.0
    %4760 = vmatprep.subr.mxu0 0.0
    %4761 = vmatpush1.msra.mxu0 0.0
    %4762 = vmatprep.subr.mxu0 0.0
    %4763 = vmatpush1.msra.mxu0 0.0
    %4764 = vmatprep.subr.mxu0 0.0
    %4765 = vmatpush1.msra.mxu0 0.0
    %4766 = vmatprep.subr.mxu0 0.0
    %4767 = vmatpush1.msra.mxu0 0.0
    %4768 = vmatprep.subr.mxu0 0.0
    %4769 = vmatpush1.msra.mxu0 0.0
    %4770 = vmatprep.subr.mxu0 0.0
    %4771 = vmatpush1.msra.mxu0 0.0
    %4772 = vmatprep.subr.mxu0 0.0
    %4773 = vmatpush1.msra.mxu0 0.0
    %4774 = vmatprep.subr.mxu0 0.0
    %4775 = vmatpush1.msra.mxu0 0.0
    %4776 = vmatprep.subr.mxu0 0.0
    %4777 = vmatpush1.msra.mxu0 0.0
    %4778 = vmatprep.subr.mxu0 0.0
    %4779 = vmatpush1.msra.mxu0 0.0
    %4780 = vmatprep.subr.mxu0 0.0
    %4781 = vmatpush1.msra.mxu0 0.0
    %4782 = vmatprep.subr.mxu0 0.0
    %4783 = vmatpush1.msra.mxu0 0.0
    %4784 = vmatprep.subr.mxu0 0.0
    %4785 = vmatpush1.msra.mxu0 0.0
    %4786 = vmatprep.subr.mxu0 0.0
    %4787 = vmatpush1.msra.mxu0 0.0
    %4788 = vmatprep.subr.mxu0 0.0
    %4789 = vmatpush1.msra.mxu0 0.0
    %4790 = vmatprep.subr.mxu0 0.0
    %4791 = vmatpush1.msra.mxu0 0.0
    %4792 = vmatprep.subr.mxu0 0.0
    %4793 = vmatpush1.msra.mxu0 0.0
    %4794 = vmatprep.mubr.f32.mxu0 0.0
    %4795 = vmatmul.mubr.f32.gmra.mrb[0].mxu0 %v4726
    %v4796 = vpop.f32.mrb[0].mxu0
    %v4797 = vadd.f32 0.0, %v4796
    %v4798 = vpop.f32.mrb[0].mxu0
    %4799 = vdwg.mxu0
    %4800 = vrot.lane.b32.xlu0 %v412, 56
    %v4801 = vpop.permute.xlu0 %4800
    %v4803 = vsel %vm1836, %v4480, 0
    %v4805 = vsel %vm1840, %v4801, 0
    %4807 = vmatprep.subr.mxu0 0.0
    %4808 = vmatpush1.msra.mxu0 %v4805
    %4809 = vmatprep.subr.mxu0 0.0
    %4810 = vmatpush1.msra.mxu0 0.0
    %4811 = vmatprep.subr.mxu0 0.0
    %4812 = vmatpush1.msra.mxu0 0.0
    %4813 = vmatprep.subr.mxu0 0.0
    %4814 = vmatpush1.msra.mxu0 0.0
    %4815 = vmatprep.subr.mxu0 0.0
    %4816 = vmatpush1.msra.mxu0 0.0
    %4817 = vmatprep.subr.mxu0 0.0
    %4818 = vmatpush1.msra.mxu0 0.0
    %4819 = vmatprep.subr.mxu0 0.0
    %4820 = vmatpush1.msra.mxu0 0.0
    %4821 = vmatprep.subr.mxu0 0.0
    %4822 = vmatpush1.msra.mxu0 0.0
    %4823 = vmatprep.subr.mxu0 0.0
    %4824 = vmatpush1.msra.mxu0 0.0
    %4825 = vmatprep.subr.mxu0 0.0
    %4826 = vmatpush1.msra.mxu0 0.0
    %4827 = vmatprep.subr.mxu0 0.0
    %4828 = vmatpush1.msra.mxu0 0.0
    %4829 = vmatprep.subr.mxu0 0.0
    %4830 = vmatpush1.msra.mxu0 0.0
    %4831 = vmatprep.subr.mxu0 0.0
    %4832 = vmatpush1.msra.mxu0 0.0
    %4833 = vmatprep.subr.mxu0 0.0
    %4834 = vmatpush1.msra.mxu0 0.0
    %4835 = vmatprep.subr.mxu0 0.0
    %4836 = vmatpush1.msra.mxu0 0.0
    %4837 = vmatprep.subr.mxu0 0.0
    %4838 = vmatpush1.msra.mxu0 0.0
    %4839 = vmatprep.subr.mxu0 0.0
    %4840 = vmatpush1.msra.mxu0 0.0
    %4841 = vmatprep.subr.mxu0 0.0
    %4842 = vmatpush1.msra.mxu0 0.0
    %4843 = vmatprep.subr.mxu0 0.0
    %4844 = vmatpush1.msra.mxu0 0.0
    %4845 = vmatprep.subr.mxu0 0.0
    %4846 = vmatpush1.msra.mxu0 0.0
    %4847 = vmatprep.subr.mxu0 0.0
    %4848 = vmatpush1.msra.mxu0 0.0
    %4849 = vmatprep.subr.mxu0 0.0
    %4850 = vmatpush1.msra.mxu0 0.0
    %4851 = vmatprep.subr.mxu0 0.0
    %4852 = vmatpush1.msra.mxu0 0.0
    %4853 = vmatprep.subr.mxu0 0.0
    %4854 = vmatpush1.msra.mxu0 0.0
    %4855 = vmatprep.subr.mxu0 0.0
    %4856 = vmatpush1.msra.mxu0 0.0
    %4857 = vmatprep.subr.mxu0 0.0
    %4858 = vmatpush1.msra.mxu0 0.0
    %4859 = vmatprep.subr.mxu0 0.0
    %4860 = vmatpush1.msra.mxu0 0.0
    %4861 = vmatprep.subr.mxu0 0.0
    %4862 = vmatpush1.msra.mxu0 0.0
    %4863 = vmatprep.subr.mxu0 0.0
    %4864 = vmatpush1.msra.mxu0 0.0
    %4865 = vmatprep.subr.mxu0 0.0
    %4866 = vmatpush1.msra.mxu0 0.0
    %4867 = vmatprep.subr.mxu0 0.0
    %4868 = vmatpush1.msra.mxu0 0.0
    %4869 = vmatprep.subr.mxu0 0.0
    %4870 = vmatpush1.msra.mxu0 0.0
    %4871 = vmatprep.mubr.f32.mxu0 0.0
    %4872 = vmatmul.mubr.f32.gmra.mrb[0].mxu0 %v4803
    %v4873 = vpop.f32.mrb[0].mxu0
    %v4874 = vadd.f32 0.0, %v4873
    %v4875 = vpop.f32.mrb[0].mxu0
    %4876 = vdwg.mxu0
    %4877 = vrot.lane.b32.xlu0 %v413, 56
    %v4878 = vpop.permute.xlu0 %4877
    %v4880 = vsel %vm1836, %v4481, 0
    %v4882 = vsel %vm1840, %v4878, 0
    %4884 = vmatprep.subr.mxu0 0.0
    %4885 = vmatpush1.msra.mxu0 %v4882
    %4886 = vmatprep.subr.mxu0 0.0
    %4887 = vmatpush1.msra.mxu0 0.0
    %4888 = vmatprep.subr.mxu0 0.0
    %4889 = vmatpush1.msra.mxu0 0.0
    %4890 = vmatprep.subr.mxu0 0.0
    %4891 = vmatpush1.msra.mxu0 0.0
    %4892 = vmatprep.subr.mxu0 0.0
    %4893 = vmatpush1.msra.mxu0 0.0
    %4894 = vmatprep.subr.mxu0 0.0
    %4895 = vmatpush1.msra.mxu0 0.0
    %4896 = vmatprep.subr.mxu0 0.0
    %4897 = vmatpush1.msra.mxu0 0.0
    %4898 = vmatprep.subr.mxu0 0.0
    %4899 = vmatpush1.msra.mxu0 0.0
    %4900 = vmatprep.subr.mxu0 0.0
    %4901 = vmatpush1.msra.mxu0 0.0
    %4902 = vmatprep.subr.mxu0 0.0
    %4903 = vmatpush1.msra.mxu0 0.0
    %4904 = vmatprep.subr.mxu0 0.0
    %4905 = vmatpush1.msra.mxu0 0.0
    %4906 = vmatprep.subr.mxu0 0.0
    %4907 = vmatpush1.msra.mxu0 0.0
    %4908 = vmatprep.subr.mxu0 0.0
    %4909 = vmatpush1.msra.mxu0 0.0
    %4910 = vmatprep.subr.mxu0 0.0
    %4911 = vmatpush1.msra.mxu0 0.0
    %4912 = vmatprep.subr.mxu0 0.0
    %4913 = vmatpush1.msra.mxu0 0.0
    %4914 = vmatprep.subr.mxu0 0.0
    %4915 = vmatpush1.msra.mxu0 0.0
    %4916 = vmatprep.subr.mxu0 0.0
    %4917 = vmatpush1.msra.mxu0 0.0
    %4918 = vmatprep.subr.mxu0 0.0
    %4919 = vmatpush1.msra.mxu0 0.0
    %4920 = vmatprep.subr.mxu0 0.0
    %4921 = vmatpush1.msra.mxu0 0.0
    %4922 = vmatprep.subr.mxu0 0.0
    %4923 = vmatpush1.msra.mxu0 0.0
    %4924 = vmatprep.subr.mxu0 0.0
    %4925 = vmatpush1.msra.mxu0 0.0
    %4926 = vmatprep.subr.mxu0 0.0
    %4927 = vmatpush1.msra.mxu0 0.0
    %4928 = vmatprep.subr.mxu0 0.0
    %4929 = vmatpush1.msra.mxu0 0.0
    %4930 = vmatprep.subr.mxu0 0.0
    %4931 = vmatpush1.msra.mxu0 0.0
    %4932 = vmatprep.subr.mxu0 0.0
    %4933 = vmatpush1.msra.mxu0 0.0
    %4934 = vmatprep.subr.mxu0 0.0
    %4935 = vmatpush1.msra.mxu0 0.0
    %4936 = vmatprep.subr.mxu0 0.0
    %4937 = vmatpush1.msra.mxu0 0.0
    %4938 = vmatprep.subr.mxu0 0.0
    %4939 = vmatpush1.msra.mxu0 0.0
    %4940 = vmatprep.subr.mxu0 0.0
    %4941 = vmatpush1.msra.mxu0 0.0
    %4942 = vmatprep.subr.mxu0 0.0
    %4943 = vmatpush1.msra.mxu0 0.0
    %4944 = vmatprep.subr.mxu0 0.0
    %4945 = vmatpush1.msra.mxu0 0.0
    %4946 = vmatprep.subr.mxu0 0.0
    %4947 = vmatpush1.msra.mxu0 0.0
    %4948 = vmatprep.mubr.f32.mxu0 0.0
    %4949 = vmatmul.mubr.f32.gmra.mrb[0].mxu0 %v4880
    %v4950 = vpop.f32.mrb[0].mxu0
    %v4951 = vadd.f32 0.0, %v4950
    %v4952 = vpop.f32.mrb[0].mxu0
    %4953 = vdwg.mxu0
    %4954 = vrot.lane.b32.xlu0 %v414, 56
    %v4955 = vpop.permute.xlu0 %4954
    %v4957 = vsel %vm1836, %v4482, 0
    %v4959 = vsel %vm1840, %v4955, 0
    %4961 = vmatprep.subr.mxu0 0.0
    %4962 = vmatpush1.msra.mxu0 %v4959
    %4963 = vmatprep.subr.mxu0 0.0
    %4964 = vmatpush1.msra.mxu0 0.0
    %4965 = vmatprep.subr.mxu0 0.0
    %4966 = vmatpush1.msra.mxu0 0.0
    %4967 = vmatprep.subr.mxu0 0.0
    %4968 = vmatpush1.msra.mxu0 0.0
    %4969 = vmatprep.subr.mxu0 0.0
    %4970 = vmatpush1.msra.mxu0 0.0
    %4971 = vmatprep.subr.mxu0 0.0
    %4972 = vmatpush1.msra.mxu0 0.0
    %4973 = vmatprep.subr.mxu0 0.0
    %4974 = vmatpush1.msra.mxu0 0.0
    %4975 = vmatprep.subr.mxu0 0.0
    %4976 = vmatpush1.msra.mxu0 0.0
    %4977 = vmatprep.subr.mxu0 0.0
    %4978 = vmatpush1.msra.mxu0 0.0
    %4979 = vmatprep.subr.mxu0 0.0
    %4980 = vmatpush1.msra.mxu0 0.0
    %4981 = vmatprep.subr.mxu0 0.0
    %4982 = vmatpush1.msra.mxu0 0.0
    %4983 = vmatprep.subr.mxu0 0.0
    %4984 = vmatpush1.msra.mxu0 0.0
    %4985 = vmatprep.subr.mxu0 0.0
    %4986 = vmatpush1.msra.mxu0 0.0
    %4987 = vmatprep.subr.mxu0 0.0
    %4988 = vmatpush1.msra.mxu0 0.0
    %4989 = vmatprep.subr.mxu0 0.0
    %4990 = vmatpush1.msra.mxu0 0.0
    %4991 = vmatprep.subr.mxu0 0.0
    %4992 = vmatpush1.msra.mxu0 0.0
    %4993 = vmatprep.subr.mxu0 0.0
    %4994 = vmatpush1.msra.mxu0 0.0
    %4995 = vmatprep.subr.mxu0 0.0
    %4996 = vmatpush1.msra.mxu0 0.0
    %4997 = vmatprep.subr.mxu0 0.0
    %4998 = vmatpush1.msra.mxu0 0.0
    %4999 = vmatprep.subr.mxu0 0.0
    %5000 = vmatpush1.msra.mxu0 0.0
    %5001 = vmatprep.subr.mxu0 0.0
    %5002 = vmatpush1.msra.mxu0 0.0
    %5003 = vmatprep.subr.mxu0 0.0
    %5004 = vmatpush1.msra.mxu0 0.0
    %5005 = vmatprep.subr.mxu0 0.0
    %5006 = vmatpush1.msra.mxu0 0.0
    %5007 = vmatprep.subr.mxu0 0.0
    %5008 = vmatpush1.msra.mxu0 0.0
    %5009 = vmatprep.subr.mxu0 0.0
    %5010 = vmatpush1.msra.mxu0 0.0
    %5011 = vmatprep.subr.mxu0 0.0
    %5012 = vmatpush1.msra.mxu0 0.0
    %5013 = vmatprep.subr.mxu0 0.0
    %5014 = vmatpush1.msra.mxu0 0.0
    %5015 = vmatprep.subr.mxu0 0.0
    %5016 = vmatpush1.msra.mxu0 0.0
    %5017 = vmatprep.subr.mxu0 0.0
    %5018 = vmatpush1.msra.mxu0 0.0
    %5019 = vmatprep.subr.mxu0 0.0
    %5020 = vmatpush1.msra.mxu0 0.0
    %5021 = vmatprep.subr.mxu0 0.0
    %5022 = vmatpush1.msra.mxu0 0.0
    %5023 = vmatprep.subr.mxu0 0.0
    %5024 = vmatpush1.msra.mxu0 0.0
    %5025 = vmatprep.mubr.f32.mxu0 0.0
    %5026 = vmatmul.mubr.f32.gmra.mrb[0].mxu0 %v4957
    %v5027 = vpop.f32.mrb[0].mxu0
    %v5028 = vadd.f32 0.0, %v5027
    %v5029 = vpop.f32.mrb[0].mxu0
    %5030 = vdwg.mxu0
    %5031 = vrot.lane.b32.xlu0 %v415, 56
    %v5032 = vpop.permute.xlu0 %5031
    %v5034 = vsel %vm1836, %v4483, 0
    %v5036 = vsel %vm1840, %v5032, 0
    %5038 = vmatprep.subr.mxu0 0.0
    %5039 = vmatpush1.msra.mxu0 %v5036
    %5040 = vmatprep.subr.mxu0 0.0
    %5041 = vmatpush1.msra.mxu0 0.0
    %5042 = vmatprep.subr.mxu0 0.0
    %5043 = vmatpush1.msra.mxu0 0.0
    %5044 = vmatprep.subr.mxu0 0.0
    %5045 = vmatpush1.msra.mxu0 0.0
    %5046 = vmatprep.subr.mxu0 0.0
    %5047 = vmatpush1.msra.mxu0 0.0
    %5048 = vmatprep.subr.mxu0 0.0
    %5049 = vmatpush1.msra.mxu0 0.0
    %5050 = vmatprep.subr.mxu0 0.0
    %5051 = vmatpush1.msra.mxu0 0.0
    %5052 = vmatprep.subr.mxu0 0.0
    %5053 = vmatpush1.msra.mxu0 0.0
    %5054 = vmatprep.subr.mxu0 0.0
    %5055 = vmatpush1.msra.mxu0 0.0
    %5056 = vmatprep.subr.mxu0 0.0
    %5057 = vmatpush1.msra.mxu0 0.0
    %5058 = vmatprep.subr.mxu0 0.0
    %5059 = vmatpush1.msra.mxu0 0.0
    %5060 = vmatprep.subr.mxu0 0.0
    %5061 = vmatpush1.msra.mxu0 0.0
    %5062 = vmatprep.subr.mxu0 0.0
    %5063 = vmatpush1.msra.mxu0 0.0
    %5064 = vmatprep.subr.mxu0 0.0
    %5065 = vmatpush1.msra.mxu0 0.0
    %5066 = vmatprep.subr.mxu0 0.0
    %5067 = vmatpush1.msra.mxu0 0.0
    %5068 = vmatprep.subr.mxu0 0.0
    %5069 = vmatpush1.msra.mxu0 0.0
    %5070 = vmatprep.subr.mxu0 0.0
    %5071 = vmatpush1.msra.mxu0 0.0
    %5072 = vmatprep.subr.mxu0 0.0
    %5073 = vmatpush1.msra.mxu0 0.0
    %5074 = vmatprep.subr.mxu0 0.0
    %5075 = vmatpush1.msra.mxu0 0.0
    %5076 = vmatprep.subr.mxu0 0.0
    %5077 = vmatpush1.msra.mxu0 0.0
    %5078 = vmatprep.subr.mxu0 0.0
    %5079 = vmatpush1.msra.mxu0 0.0
    %5080 = vmatprep.subr.mxu0 0.0
    %5081 = vmatpush1.msra.mxu0 0.0
    %5082 = vmatprep.subr.mxu0 0.0
    %5083 = vmatpush1.msra.mxu0 0.0
    %5084 = vmatprep.subr.mxu0 0.0
    %5085 = vmatpush1.msra.mxu0 0.0
    %5086 = vmatprep.subr.mxu0 0.0
    %5087 = vmatpush1.msra.mxu0 0.0
    %5088 = vmatprep.subr.mxu0 0.0
    %5089 = vmatpush1.msra.mxu0 0.0
    %5090 = vmatprep.subr.mxu0 0.0
    %5091 = vmatpush1.msra.mxu0 0.0
    %5092 = vmatprep.subr.mxu0 0.0
    %5093 = vmatpush1.msra.mxu0 0.0
    %5094 = vmatprep.subr.mxu0 0.0
    %5095 = vmatpush1.msra.mxu0 0.0
    %5096 = vmatprep.subr.mxu0 0.0
    %5097 = vmatpush1.msra.mxu0 0.0
    %5098 = vmatprep.subr.mxu0 0.0
    %5099 = vmatpush1.msra.mxu0 0.0
    %5100 = vmatprep.subr.mxu0 0.0
    %5101 = vmatpush1.msra.mxu0 0.0
    %5102 = vmatprep.mubr.f32.mxu0 0.0
    %5103 = vmatmul.mubr.f32.gmra.mrb[0].mxu0 %v5034
    %v5104 = vpop.f32.mrb[0].mxu0
    %v5105 = vadd.f32 0.0, %v5104
    %v5106 = vpop.f32.mrb[0].mxu0
    %5107 = vdwg.mxu0
    %5108 = vrot.lane.b32.xlu0 %v416, 56
    %v5109 = vpop.permute.xlu0 %5108
    %v5111 = vsel %vm1836, %v4484, 0
    %v5113 = vsel %vm1840, %v5109, 0
    %5115 = vmatprep.subr.mxu0 0.0
    %5116 = vmatpush1.msra.mxu0 %v5113
    %5117 = vmatprep.subr.mxu0 0.0
    %5118 = vmatpush1.msra.mxu0 0.0
    %5119 = vmatprep.subr.mxu0 0.0
    %5120 = vmatpush1.msra.mxu0 0.0
    %5121 = vmatprep.subr.mxu0 0.0
    %5122 = vmatpush1.msra.mxu0 0.0
    %5123 = vmatprep.subr.mxu0 0.0
    %5124 = vmatpush1.msra.mxu0 0.0
    %5125 = vmatprep.subr.mxu0 0.0
    %5126 = vmatpush1.msra.mxu0 0.0
    %5127 = vmatprep.subr.mxu0 0.0
    %5128 = vmatpush1.msra.mxu0 0.0
    %5129 = vmatprep.subr.mxu0 0.0
    %5130 = vmatpush1.msra.mxu0 0.0
    %5131 = vmatprep.subr.mxu0 0.0
    %5132 = vmatpush1.msra.mxu0 0.0
    %5133 = vmatprep.subr.mxu0 0.0
    %5134 = vmatpush1.msra.mxu0 0.0
    %5135 = vmatprep.subr.mxu0 0.0
    %5136 = vmatpush1.msra.mxu0 0.0
    %5137 = vmatprep.subr.mxu0 0.0
    %5138 = vmatpush1.msra.mxu0 0.0
    %5139 = vmatprep.subr.mxu0 0.0
    %5140 = vmatpush1.msra.mxu0 0.0
    %5141 = vmatprep.subr.mxu0 0.0
    %5142 = vmatpush1.msra.mxu0 0.0
    %5143 = vmatprep.subr.mxu0 0.0
    %5144 = vmatpush1.msra.mxu0 0.0
    %5145 = vmatprep.subr.mxu0 0.0
    %5146 = vmatpush1.msra.mxu0 0.0
    %5147 = vmatprep.subr.mxu0 0.0
    %5148 = vmatpush1.msra.mxu0 0.0
    %5149 = vmatprep.subr.mxu0 0.0
    %5150 = vmatpush1.msra.mxu0 0.0
    %5151 = vmatprep.subr.mxu0 0.0
    %5152 = vmatpush1.msra.mxu0 0.0
    %5153 = vmatprep.subr.mxu0 0.0
    %5154 = vmatpush1.msra.mxu0 0.0
    %5155 = vmatprep.subr.mxu0 0.0
    %5156 = vmatpush1.msra.mxu0 0.0
    %5157 = vmatprep.subr.mxu0 0.0
    %5158 = vmatpush1.msra.mxu0 0.0
    %5159 = vmatprep.subr.mxu0 0.0
    %5160 = vmatpush1.msra.mxu0 0.0
    %5161 = vmatprep.subr.mxu0 0.0
    %5162 = vmatpush1.msra.mxu0 0.0
    %5163 = vmatprep.subr.mxu0 0.0
    %5164 = vmatpush1.msra.mxu0 0.0
    %5165 = vmatprep.subr.mxu0 0.0
    %5166 = vmatpush1.msra.mxu0 0.0
    %5167 = vmatprep.subr.mxu0 0.0
    %5168 = vmatpush1.msra.mxu0 0.0
    %5169 = vmatprep.subr.mxu0 0.0
    %5170 = vmatpush1.msra.mxu0 0.0
    %5171 = vmatprep.subr.mxu0 0.0
    %5172 = vmatpush1.msra.mxu0 0.0
    %5173 = vmatprep.subr.mxu0 0.0
    %5174 = vmatpush1.msra.mxu0 0.0
    %5175 = vmatprep.subr.mxu0 0.0
    %5176 = vmatpush1.msra.mxu0 0.0
    %5177 = vmatprep.subr.mxu0 0.0
    %5178 = vmatpush1.msra.mxu0 0.0
    %5179 = vmatprep.mubr.f32.mxu0 0.0
    %5180 = vmatmul.mubr.f32.gmra.mrb[0].mxu0 %v5111
    %v5181 = vpop.f32.mrb[0].mxu0
    %v5182 = vadd.f32 0.0, %v5181
    %v5183 = vpop.f32.mrb[0].mxu0
    %5184 = vdwg.mxu0
    %5185 = vrot.lane.b32.xlu0 %v417, 56
    %v5186 = vpop.permute.xlu0 %5185
    %v5188 = vsel %vm1836, %v4485, 0
    %v5190 = vsel %vm1840, %v5186, 0
    %5192 = vmatprep.subr.mxu0 0.0
    %5193 = vmatpush1.msra.mxu0 %v5190
    %5194 = vmatprep.subr.mxu0 0.0
    %5195 = vmatpush1.msra.mxu0 0.0
    %5196 = vmatprep.subr.mxu0 0.0
    %5197 = vmatpush1.msra.mxu0 0.0
    %5198 = vmatprep.subr.mxu0 0.0
    %5199 = vmatpush1.msra.mxu0 0.0
    %5200 = vmatprep.subr.mxu0 0.0
    %5201 = vmatpush1.msra.mxu0 0.0
    %5202 = vmatprep.subr.mxu0 0.0
    %5203 = vmatpush1.msra.mxu0 0.0
    %5204 = vmatprep.subr.mxu0 0.0
    %5205 = vmatpush1.msra.mxu0 0.0
    %5206 = vmatprep.subr.mxu0 0.0
    %5207 = vmatpush1.msra.mxu0 0.0
    %5208 = vmatprep.subr.mxu0 0.0
    %5209 = vmatpush1.msra.mxu0 0.0
    %5210 = vmatprep.subr.mxu0 0.0
    %5211 = vmatpush1.msra.mxu0 0.0
    %5212 = vmatprep.subr.mxu0 0.0
    %5213 = vmatpush1.msra.mxu0 0.0
    %5214 = vmatprep.subr.mxu0 0.0
    %5215 = vmatpush1.msra.mxu0 0.0
    %5216 = vmatprep.subr.mxu0 0.0
    %5217 = vmatpush1.msra.mxu0 0.0
    %5218 = vmatprep.subr.mxu0 0.0
    %5219 = vmatpush1.msra.mxu0 0.0
    %5220 = vmatprep.subr.mxu0 0.0
    %5221 = vmatpush1.msra.mxu0 0.0
    %5222 = vmatprep.subr.mxu0 0.0
    %5223 = vmatpush1.msra.mxu0 0.0
    %5224 = vmatprep.subr.mxu0 0.0
    %5225 = vmatpush1.msra.mxu0 0.0
    %5226 = vmatprep.subr.mxu0 0.0
    %5227 = vmatpush1.msra.mxu0 0.0
    %5228 = vmatprep.subr.mxu0 0.0
    %5229 = vmatpush1.msra.mxu0 0.0
    %5230 = vmatprep.subr.mxu0 0.0
    %5231 = vmatpush1.msra.mxu0 0.0
    %5232 = vmatprep.subr.mxu0 0.0
    %5233 = vmatpush1.msra.mxu0 0.0
    %5234 = vmatprep.subr.mxu0 0.0
    %5235 = vmatpush1.msra.mxu0 0.0
    %5236 = vmatprep.subr.mxu0 0.0
    %5237 = vmatpush1.msra.mxu0 0.0
    %5238 = vmatprep.subr.mxu0 0.0
    %5239 = vmatpush1.msra.mxu0 0.0
    %5240 = vmatprep.subr.mxu0 0.0
    %5241 = vmatpush1.msra.mxu0 0.0
    %5242 = vmatprep.subr.mxu0 0.0
    %5243 = vmatpush1.msra.mxu0 0.0
    %5244 = vmatprep.subr.mxu0 0.0
    %5245 = vmatpush1.msra.mxu0 0.0
    %5246 = vmatprep.subr.mxu0 0.0
    %5247 = vmatpush1.msra.mxu0 0.0
    %5248 = vmatprep.subr.mxu0 0.0
    %5249 = vmatpush1.msra.mxu0 0.0
    %5250 = vmatprep.subr.mxu0 0.0
    %5251 = vmatpush1.msra.mxu0 0.0
    %5252 = vmatprep.subr.mxu0 0.0
    %5253 = vmatpush1.msra.mxu0 0.0
    %5254 = vmatprep.subr.mxu0 0.0
    %5255 = vmatpush1.msra.mxu0 0.0
    %5256 = vmatprep.mubr.f32.mxu0 0.0
    %5257 = vmatmul.mubr.f32.gmra.mrb[0].mxu0 %v5188
    %v5258 = vpop.f32.mrb[0].mxu0
    %v5259 = vadd.f32 0.0, %v5258
    %v5260 = vpop.f32.mrb[0].mxu0
    %5261 = vdwg.mxu0
    %5262 = vrot.lane.b32.xlu0 %v418, 56
    %v5263 = vpop.permute.xlu0 %5262
    %v5265 = vsel %vm1836, %v4486, 0
    %v5267 = vsel %vm1840, %v5263, 0
    %5269 = vmatprep.subr.mxu0 0.0
    %5270 = vmatpush1.msra.mxu0 %v5267
    %5271 = vmatprep.subr.mxu0 0.0
    %5272 = vmatpush1.msra.mxu0 0.0
    %5273 = vmatprep.subr.mxu0 0.0
    %5274 = vmatpush1.msra.mxu0 0.0
    %5275 = vmatprep.subr.mxu0 0.0
    %5276 = vmatpush1.msra.mxu0 0.0
    %5277 = vmatprep.subr.mxu0 0.0
    %5278 = vmatpush1.msra.mxu0 0.0
    %5279 = vmatprep.subr.mxu0 0.0
    %5280 = vmatpush1.msra.mxu0 0.0
    %5281 = vmatprep.subr.mxu0 0.0
    %5282 = vmatpush1.msra.mxu0 0.0
    %5283 = vmatprep.subr.mxu0 0.0
    %5284 = vmatpush1.msra.mxu0 0.0
    %5285 = vmatprep.subr.mxu0 0.0
    %5286 = vmatpush1.msra.mxu0 0.0
    %5287 = vmatprep.subr.mxu0 0.0
    %5288 = vmatpush1.msra.mxu0 0.0
    %5289 = vmatprep.subr.mxu0 0.0
    %5290 = vmatpush1.msra.mxu0 0.0
    %5291 = vmatprep.subr.mxu0 0.0
    %5292 = vmatpush1.msra.mxu0 0.0
    %5293 = vmatprep.subr.mxu0 0.0
    %5294 = vmatpush1.msra.mxu0 0.0
    %5295 = vmatprep.subr.mxu0 0.0
    %5296 = vmatpush1.msra.mxu0 0.0
    %5297 = vmatprep.subr.mxu0 0.0
    %5298 = vmatpush1.msra.mxu0 0.0
    %5299 = vmatprep.subr.mxu0 0.0
    %5300 = vmatpush1.msra.mxu0 0.0
    %5301 = vmatprep.subr.mxu0 0.0
    %5302 = vmatpush1.msra.mxu0 0.0
    %5303 = vmatprep.subr.mxu0 0.0
    %5304 = vmatpush1.msra.mxu0 0.0
    %5305 = vmatprep.subr.mxu0 0.0
    %5306 = vmatpush1.msra.mxu0 0.0
    %5307 = vmatprep.subr.mxu0 0.0
    %5308 = vmatpush1.msra.mxu0 0.0
    %5309 = vmatprep.subr.mxu0 0.0
    %5310 = vmatpush1.msra.mxu0 0.0
    %5311 = vmatprep.subr.mxu0 0.0
    %5312 = vmatpush1.msra.mxu0 0.0
    %5313 = vmatprep.subr.mxu0 0.0
    %5314 = vmatpush1.msra.mxu0 0.0
    %5315 = vmatprep.subr.mxu0 0.0
    %5316 = vmatpush1.msra.mxu0 0.0
    %5317 = vmatprep.subr.mxu0 0.0
    %5318 = vmatpush1.msra.mxu0 0.0
    %5319 = vmatprep.subr.mxu0 0.0
    %5320 = vmatpush1.msra.mxu0 0.0
    %5321 = vmatprep.subr.mxu0 0.0
    %5322 = vmatpush1.msra.mxu0 0.0
    %5323 = vmatprep.subr.mxu0 0.0
    %5324 = vmatpush1.msra.mxu0 0.0
    %5325 = vmatprep.subr.mxu0 0.0
    %5326 = vmatpush1.msra.mxu0 0.0
    %5327 = vmatprep.subr.mxu0 0.0
    %5328 = vmatpush1.msra.mxu0 0.0
    %5329 = vmatprep.subr.mxu0 0.0
    %5330 = vmatpush1.msra.mxu0 0.0
    %5331 = vmatprep.subr.mxu0 0.0
    %5332 = vmatpush1.msra.mxu0 0.0
    %5333 = vmatprep.mubr.f32.mxu0 0.0
    %5334 = vmatmul.mubr.f32.gmra.mrb[0].mxu0 %v5265
    %v5335 = vpop.f32.mrb[0].mxu0
    %v5336 = vadd.f32 0.0, %v5335
    %v5337 = vpop.f32.mrb[0].mxu0
    %5338 = vdwg.mxu0
    %5339 = vrot.lane.b32.xlu0 %v419, 56
    %v5340 = vpop.permute.xlu0 %5339
    %v5342 = vsel %vm1836, %v4487, 0
    %v5344 = vsel %vm1840, %v5340, 0
    %5346 = vmatprep.subr.mxu0 0.0
    %5347 = vmatpush1.msra.mxu0 %v5344
    %5348 = vmatprep.subr.mxu0 0.0
    %5349 = vmatpush1.msra.mxu0 0.0
    %5350 = vmatprep.subr.mxu0 0.0
    %5351 = vmatpush1.msra.mxu0 0.0
    %5352 = vmatprep.subr.mxu0 0.0
    %5353 = vmatpush1.msra.mxu0 0.0
    %5354 = vmatprep.subr.mxu0 0.0
    %5355 = vmatpush1.msra.mxu0 0.0
    %5356 = vmatprep.subr.mxu0 0.0
    %5357 = vmatpush1.msra.mxu0 0.0
    %5358 = vmatprep.subr.mxu0 0.0
    %5359 = vmatpush1.msra.mxu0 0.0
    %5360 = vmatprep.subr.mxu0 0.0
    %5361 = vmatpush1.msra.mxu0 0.0
    %5362 = vmatprep.subr.mxu0 0.0
    %5363 = vmatpush1.msra.mxu0 0.0
    %5364 = vmatprep.subr.mxu0 0.0
    %5365 = vmatpush1.msra.mxu0 0.0
    %5366 = vmatprep.subr.mxu0 0.0
    %5367 = vmatpush1.msra.mxu0 0.0
    %5368 = vmatprep.subr.mxu0 0.0
    %5369 = vmatpush1.msra.mxu0 0.0
    %5370 = vmatprep.subr.mxu0 0.0
    %5371 = vmatpush1.msra.mxu0 0.0
    %5372 = vmatprep.subr.mxu0 0.0
    %5373 = vmatpush1.msra.mxu0 0.0
    %5374 = vmatprep.subr.mxu0 0.0
    %5375 = vmatpush1.msra.mxu0 0.0
    %5376 = vmatprep.subr.mxu0 0.0
    %5377 = vmatpush1.msra.mxu0 0.0
    %5378 = vmatprep.subr.mxu0 0.0
    %5379 = vmatpush1.msra.mxu0 0.0
    %5380 = vmatprep.subr.mxu0 0.0
    %5381 = vmatpush1.msra.mxu0 0.0
    %5382 = vmatprep.subr.mxu0 0.0
    %5383 = vmatpush1.msra.mxu0 0.0
    %5384 = vmatprep.subr.mxu0 0.0
    %5385 = vmatpush1.msra.mxu0 0.0
    %5386 = vmatprep.subr.mxu0 0.0
    %5387 = vmatpush1.msra.mxu0 0.0
    %5388 = vmatprep.subr.mxu0 0.0
    %5389 = vmatpush1.msra.mxu0 0.0
    %5390 = vmatprep.subr.mxu0 0.0
    %5391 = vmatpush1.msra.mxu0 0.0
    %5392 = vmatprep.subr.mxu0 0.0
    %5393 = vmatpush1.msra.mxu0 0.0
    %5394 = vmatprep.subr.mxu0 0.0
    %5395 = vmatpush1.msra.mxu0 0.0
    %5396 = vmatprep.subr.mxu0 0.0
    %5397 = vmatpush1.msra.mxu0 0.0
    %5398 = vmatprep.subr.mxu0 0.0
    %5399 = vmatpush1.msra.mxu0 0.0
    %5400 = vmatprep.subr.mxu0 0.0
    %5401 = vmatpush1.msra.mxu0 0.0
    %5402 = vmatprep.subr.mxu0 0.0
    %5403 = vmatpush1.msra.mxu0 0.0
    %5404 = vmatprep.subr.mxu0 0.0
    %5405 = vmatpush1.msra.mxu0 0.0
    %5406 = vmatprep.subr.mxu0 0.0
    %5407 = vmatpush1.msra.mxu0 0.0
    %5408 = vmatprep.subr.mxu0 0.0
    %5409 = vmatpush1.msra.mxu0 0.0
    %5410 = vmatprep.mubr.f32.mxu0 0.0
    %5411 = vmatmul.mubr.f32.gmra.mrb[0].mxu0 %v5342
    %v5412 = vpop.f32.mrb[0].mxu0
    %v5413 = vadd.f32 0.0, %v5412
    %v5414 = vpop.f32.mrb[0].mxu0
    %5415 = vdwg.mxu0
    %5416 = vrot.lane.b32.xlu0 %v420, 56
    %v5417 = vpop.permute.xlu0 %5416
    %v5419 = vsel %vm1836, %v4488, 0
    %v5421 = vsel %vm1840, %v5417, 0
    %5423 = vmatprep.subr.mxu0 0.0
    %5424 = vmatpush1.msra.mxu0 %v5421
    %5425 = vmatprep.subr.mxu0 0.0
    %5426 = vmatpush1.msra.mxu0 0.0
    %5427 = vmatprep.subr.mxu0 0.0
    %5428 = vmatpush1.msra.mxu0 0.0
    %5429 = vmatprep.subr.mxu0 0.0
    %5430 = vmatpush1.msra.mxu0 0.0
    %5431 = vmatprep.subr.mxu0 0.0
    %5432 = vmatpush1.msra.mxu0 0.0
    %5433 = vmatprep.subr.mxu0 0.0
    %5434 = vmatpush1.msra.mxu0 0.0
    %5435 = vmatprep.subr.mxu0 0.0
    %5436 = vmatpush1.msra.mxu0 0.0
    %5437 = vmatprep.subr.mxu0 0.0
    %5438 = vmatpush1.msra.mxu0 0.0
    %5439 = vmatprep.subr.mxu0 0.0
    %5440 = vmatpush1.msra.mxu0 0.0
    %5441 = vmatprep.subr.mxu0 0.0
    %5442 = vmatpush1.msra.mxu0 0.0
    %5443 = vmatprep.subr.mxu0 0.0
    %5444 = vmatpush1.msra.mxu0 0.0
    %5445 = vmatprep.subr.mxu0 0.0
    %5446 = vmatpush1.msra.mxu0 0.0
    %5447 = vmatprep.subr.mxu0 0.0
    %5448 = vmatpush1.msra.mxu0 0.0
    %5449 = vmatprep.subr.mxu0 0.0
    %5450 = vmatpush1.msra.mxu0 0.0
    %5451 = vmatprep.subr.mxu0 0.0
    %5452 = vmatpush1.msra.mxu0 0.0
    %5453 = vmatprep.subr.mxu0 0.0
    %5454 = vmatpush1.msra.mxu0 0.0
    %5455 = vmatprep.subr.mxu0 0.0
    %5456 = vmatpush1.msra.mxu0 0.0
    %5457 = vmatprep.subr.mxu0 0.0
    %5458 = vmatpush1.msra.mxu0 0.0
    %5459 = vmatprep.subr.mxu0 0.0
    %5460 = vmatpush1.msra.mxu0 0.0
    %5461 = vmatprep.subr.mxu0 0.0
    %5462 = vmatpush1.msra.mxu0 0.0
    %5463 = vmatprep.subr.mxu0 0.0
    %5464 = vmatpush1.msra.mxu0 0.0
    %5465 = vmatprep.subr.mxu0 0.0
    %5466 = vmatpush1.msra.mxu0 0.0
    %5467 = vmatprep.subr.mxu0 0.0
    %5468 = vmatpush1.msra.mxu0 0.0
    %5469 = vmatprep.subr.mxu0 0.0
    %5470 = vmatpush1.msra.mxu0 0.0
    %5471 = vmatprep.subr.mxu0 0.0
    %5472 = vmatpush1.msra.mxu0 0.0
    %5473 = vmatprep.subr.mxu0 0.0
    %5474 = vmatpush1.msra.mxu0 0.0
    %5475 = vmatprep.subr.mxu0 0.0
    %5476 = vmatpush1.msra.mxu0 0.0
    %5477 = vmatprep.subr.mxu0 0.0
    %5478 = vmatpush1.msra.mxu0 0.0
    %5479 = vmatprep.subr.mxu0 0.0
    %5480 = vmatpush1.msra.mxu0 0.0
    %5481 = vmatprep.subr.mxu0 0.0
    %5482 = vmatpush1.msra.mxu0 0.0
    %5483 = vmatprep.subr.mxu0 0.0
    %5484 = vmatpush1.msra.mxu0 0.0
    %5485 = vmatprep.subr.mxu0 0.0
    %5486 = vmatpush1.msra.mxu0 0.0
    %5487 = vmatprep.mubr.f32.mxu0 0.0
    %5488 = vmatmul.mubr.f32.gmra.mrb[0].mxu0 %v5419
    %v5489 = vpop.f32.mrb[0].mxu0
    %v5490 = vadd.f32 0.0, %v5489
    %v5491 = vpop.f32.mrb[0].mxu0
    %5492 = vdwg.mxu0
    %5493 = vrot.lane.b32.xlu0 %v421, 56
    %v5494 = vpop.permute.xlu0 %5493
    %v5496 = vsel %vm1836, %v4489, 0
    %v5498 = vsel %vm1840, %v5494, 0
    %5500 = vmatprep.subr.mxu0 0.0
    %5501 = vmatpush1.msra.mxu0 %v5498
    %5502 = vmatprep.subr.mxu0 0.0
    %5503 = vmatpush1.msra.mxu0 0.0
    %5504 = vmatprep.subr.mxu0 0.0
    %5505 = vmatpush1.msra.mxu0 0.0
    %5506 = vmatprep.subr.mxu0 0.0
    %5507 = vmatpush1.msra.mxu0 0.0
    %5508 = vmatprep.subr.mxu0 0.0
    %5509 = vmatpush1.msra.mxu0 0.0
    %5510 = vmatprep.subr.mxu0 0.0
    %5511 = vmatpush1.msra.mxu0 0.0
    %5512 = vmatprep.subr.mxu0 0.0
    %5513 = vmatpush1.msra.mxu0 0.0
    %5514 = vmatprep.subr.mxu0 0.0
    %5515 = vmatpush1.msra.mxu0 0.0
    %5516 = vmatprep.subr.mxu0 0.0
    %5517 = vmatpush1.msra.mxu0 0.0
    %5518 = vmatprep.subr.mxu0 0.0
    %5519 = vmatpush1.msra.mxu0 0.0
    %5520 = vmatprep.subr.mxu0 0.0
    %5521 = vmatpush1.msra.mxu0 0.0
    %5522 = vmatprep.subr.mxu0 0.0
    %5523 = vmatpush1.msra.mxu0 0.0
    %5524 = vmatprep.subr.mxu0 0.0
    %5525 = vmatpush1.msra.mxu0 0.0
    %5526 = vmatprep.subr.mxu0 0.0
    %5527 = vmatpush1.msra.mxu0 0.0
    %5528 = vmatprep.subr.mxu0 0.0
    %5529 = vmatpush1.msra.mxu0 0.0
    %5530 = vmatprep.subr.mxu0 0.0
    %5531 = vmatpush1.msra.mxu0 0.0
    %5532 = vmatprep.subr.mxu0 0.0
    %5533 = vmatpush1.msra.mxu0 0.0
    %5534 = vmatprep.subr.mxu0 0.0
    %5535 = vmatpush1.msra.mxu0 0.0
    %5536 = vmatprep.subr.mxu0 0.0
    %5537 = vmatpush1.msra.mxu0 0.0
    %5538 = vmatprep.subr.mxu0 0.0
    %5539 = vmatpush1.msra.mxu0 0.0
    %5540 = vmatprep.subr.mxu0 0.0
    %5541 = vmatpush1.msra.mxu0 0.0
    %5542 = vmatprep.subr.mxu0 0.0
    %5543 = vmatpush1.msra.mxu0 0.0
    %5544 = vmatprep.subr.mxu0 0.0
    %5545 = vmatpush1.msra.mxu0 0.0
    %5546 = vmatprep.subr.mxu0 0.0
    %5547 = vmatpush1.msra.mxu0 0.0
    %5548 = vmatprep.subr.mxu0 0.0
    %5549 = vmatpush1.msra.mxu0 0.0
    %5550 = vmatprep.subr.mxu0 0.0
    %5551 = vmatpush1.msra.mxu0 0.0
    %5552 = vmatprep.subr.mxu0 0.0
    %5553 = vmatpush1.msra.mxu0 0.0
    %5554 = vmatprep.subr.mxu0 0.0
    %5555 = vmatpush1.msra.mxu0 0.0
    %5556 = vmatprep.subr.mxu0 0.0
    %5557 = vmatpush1.msra.mxu0 0.0
    %5558 = vmatprep.subr.mxu0 0.0
    %5559 = vmatpush1.msra.mxu0 0.0
    %5560 = vmatprep.subr.mxu0 0.0
    %5561 = vmatpush1.msra.mxu0 0.0
    %5562 = vmatprep.subr.mxu0 0.0
    %5563 = vmatpush1.msra.mxu0 0.0
    %5564 = vmatprep.mubr.f32.mxu0 0.0
    %5565 = vmatmul.mubr.f32.gmra.mrb[0].mxu0 %v5496
    %v5566 = vpop.f32.mrb[0].mxu0
    %v5567 = vadd.f32 0.0, %v5566
    %v5568 = vpop.f32.mrb[0].mxu0
    %5569 = vdwg.mxu0
    %5570 = vrot.lane.b32.xlu0 %v422, 56
    %v5571 = vpop.permute.xlu0 %5570
    %v5573 = vsel %vm1836, %v4490, 0
    %v5575 = vsel %vm1840, %v5571, 0
    %5577 = vmatprep.subr.mxu0 0.0
    %5578 = vmatpush1.msra.mxu0 %v5575
    %5579 = vmatprep.subr.mxu0 0.0
    %5580 = vmatpush1.msra.mxu0 0.0
    %5581 = vmatprep.subr.mxu0 0.0
    %5582 = vmatpush1.msra.mxu0 0.0
    %5583 = vmatprep.subr.mxu0 0.0
    %5584 = vmatpush1.msra.mxu0 0.0
    %5585 = vmatprep.subr.mxu0 0.0
    %5586 = vmatpush1.msra.mxu0 0.0
    %5587 = vmatprep.subr.mxu0 0.0
    %5588 = vmatpush1.msra.mxu0 0.0
    %5589 = vmatprep.subr.mxu0 0.0
    %5590 = vmatpush1.msra.mxu0 0.0
    %5591 = vmatprep.subr.mxu0 0.0
    %5592 = vmatpush1.msra.mxu0 0.0
    %5593 = vmatprep.subr.mxu0 0.0
    %5594 = vmatpush1.msra.mxu0 0.0
    %5595 = vmatprep.subr.mxu0 0.0
    %5596 = vmatpush1.msra.mxu0 0.0
    %5597 = vmatprep.subr.mxu0 0.0
    %5598 = vmatpush1.msra.mxu0 0.0
    %5599 = vmatprep.subr.mxu0 0.0
    %5600 = vmatpush1.msra.mxu0 0.0
    %5601 = vmatprep.subr.mxu0 0.0
    %5602 = vmatpush1.msra.mxu0 0.0
    %5603 = vmatprep.subr.mxu0 0.0
    %5604 = vmatpush1.msra.mxu0 0.0
    %5605 = vmatprep.subr.mxu0 0.0
    %5606 = vmatpush1.msra.mxu0 0.0
    %5607 = vmatprep.subr.mxu0 0.0
    %5608 = vmatpush1.msra.mxu0 0.0
    %5609 = vmatprep.subr.mxu0 0.0
    %5610 = vmatpush1.msra.mxu0 0.0
    %5611 = vmatprep.subr.mxu0 0.0
    %5612 = vmatpush1.msra.mxu0 0.0
    %5613 = vmatprep.subr.mxu0 0.0
    %5614 = vmatpush1.msra.mxu0 0.0
    %5615 = vmatprep.subr.mxu0 0.0
    %5616 = vmatpush1.msra.mxu0 0.0
    %5617 = vmatprep.subr.mxu0 0.0
    %5618 = vmatpush1.msra.mxu0 0.0
    %5619 = vmatprep.subr.mxu0 0.0
    %5620 = vmatpush1.msra.mxu0 0.0
    %5621 = vmatprep.subr.mxu0 0.0
    %5622 = vmatpush1.msra.mxu0 0.0
    %5623 = vmatprep.subr.mxu0 0.0
    %5624 = vmatpush1.msra.mxu0 0.0
    %5625 = vmatprep.subr.mxu0 0.0
    %5626 = vmatpush1.msra.mxu0 0.0
    %5627 = vmatprep.subr.mxu0 0.0
    %5628 = vmatpush1.msra.mxu0 0.0
    %5629 = vmatprep.subr.mxu0 0.0
    %5630 = vmatpush1.msra.mxu0 0.0
    %5631 = vmatprep.subr.mxu0 0.0
    %5632 = vmatpush1.msra.mxu0 0.0
    %5633 = vmatprep.subr.mxu0 0.0
    %5634 = vmatpush1.msra.mxu0 0.0
    %5635 = vmatprep.subr.mxu0 0.0
    %5636 = vmatpush1.msra.mxu0 0.0
    %5637 = vmatprep.subr.mxu0 0.0
    %5638 = vmatpush1.msra.mxu0 0.0
    %5639 = vmatprep.subr.mxu0 0.0
    %5640 = vmatpush1.msra.mxu0 0.0
    %5641 = vmatprep.mubr.f32.mxu0 0.0
    %5642 = vmatmul.mubr.f32.gmra.mrb[0].mxu0 %v5573
    %v5643 = vpop.f32.mrb[0].mxu0
    %v5644 = vadd.f32 0.0, %v5643
    %v5645 = vpop.f32.mrb[0].mxu0
    %5646 = vdwg.mxu0
    %5647 = vrot.lane.b32.xlu0 %v423, 56
    %v5648 = vpop.permute.xlu0 %5647
    %v5650 = vsel %vm1836, %v4491, 0
    %v5652 = vsel %vm1840, %v5648, 0
    %5654 = vmatprep.subr.mxu0 0.0
    %5655 = vmatpush1.msra.mxu0 %v5652
    %5656 = vmatprep.subr.mxu0 0.0
    %5657 = vmatpush1.msra.mxu0 0.0
    %5658 = vmatprep.subr.mxu0 0.0
    %5659 = vmatpush1.msra.mxu0 0.0
    %5660 = vmatprep.subr.mxu0 0.0
    %5661 = vmatpush1.msra.mxu0 0.0
    %5662 = vmatprep.subr.mxu0 0.0
    %5663 = vmatpush1.msra.mxu0 0.0
    %5664 = vmatprep.subr.mxu0 0.0
    %5665 = vmatpush1.msra.mxu0 0.0
    %5666 = vmatprep.subr.mxu0 0.0
    %5667 = vmatpush1.msra.mxu0 0.0
    %5668 = vmatprep.subr.mxu0 0.0
    %5669 = vmatpush1.msra.mxu0 0.0
    %5670 = vmatprep.subr.mxu0 0.0
    %5671 = vmatpush1.msra.mxu0 0.0
    %5672 = vmatprep.subr.mxu0 0.0
    %5673 = vmatpush1.msra.mxu0 0.0
    %5674 = vmatprep.subr.mxu0 0.0
    %5675 = vmatpush1.msra.mxu0 0.0
    %5676 = vmatprep.subr.mxu0 0.0
    %5677 = vmatpush1.msra.mxu0 0.0
    %5678 = vmatprep.subr.mxu0 0.0
    %5679 = vmatpush1.msra.mxu0 0.0
    %5680 = vmatprep.subr.mxu0 0.0
    %5681 = vmatpush1.msra.mxu0 0.0
    %5682 = vmatprep.subr.mxu0 0.0
    %5683 = vmatpush1.msra.mxu0 0.0
    %5684 = vmatprep.subr.mxu0 0.0
    %5685 = vmatpush1.msra.mxu0 0.0
    %5686 = vmatprep.subr.mxu0 0.0
    %5687 = vmatpush1.msra.mxu0 0.0
    %5688 = vmatprep.subr.mxu0 0.0
    %5689 = vmatpush1.msra.mxu0 0.0
    %5690 = vmatprep.subr.mxu0 0.0
    %5691 = vmatpush1.msra.mxu0 0.0
    %5692 = vmatprep.subr.mxu0 0.0
    %5693 = vmatpush1.msra.mxu0 0.0
    %5694 = vmatprep.subr.mxu0 0.0
    %5695 = vmatpush1.msra.mxu0 0.0
    %5696 = vmatprep.subr.mxu0 0.0
    %5697 = vmatpush1.msra.mxu0 0.0
    %5698 = vmatprep.subr.mxu0 0.0
    %5699 = vmatpush1.msra.mxu0 0.0
    %5700 = vmatprep.subr.mxu0 0.0
    %5701 = vmatpush1.msra.mxu0 0.0
    %5702 = vmatprep.subr.mxu0 0.0
    %5703 = vmatpush1.msra.mxu0 0.0
    %5704 = vmatprep.subr.mxu0 0.0
    %5705 = vmatpush1.msra.mxu0 0.0
    %5706 = vmatprep.subr.mxu0 0.0
    %5707 = vmatpush1.msra.mxu0 0.0
    %5708 = vmatprep.subr.mxu0 0.0
    %5709 = vmatpush1.msra.mxu0 0.0
    %5710 = vmatprep.subr.mxu0 0.0
    %5711 = vmatpush1.msra.mxu0 0.0
    %5712 = vmatprep.subr.mxu0 0.0
    %5713 = vmatpush1.msra.mxu0 0.0
    %5714 = vmatprep.subr.mxu0 0.0
    %5715 = vmatpush1.msra.mxu0 0.0
    %5716 = vmatprep.subr.mxu0 0.0
    %5717 = vmatpush1.msra.mxu0 0.0
    %5718 = vmatprep.mubr.f32.mxu0 0.0
    %5719 = vmatmul.mubr.f32.gmra.mrb[0].mxu0 %v5650
    %v5720 = vpop.f32.mrb[0].mxu0
    %v5721 = vadd.f32 0.0, %v5720
    %v5722 = vpop.f32.mrb[0].mxu0
    %5723 = vdwg.mxu0
    %5724 = vrot.lane.b32.xlu0 %v408, 112
    %v5725 = vpop.permute.xlu0 %5724
    %5726 = vrot.lane.b32.xlu0 %v408, 80
    %v5727 = vpop.permute.xlu0 %5726
    %v5728 = vsel %vm427, %v5725, 0
    %v5730 = vsel %vm427, %v5727, 0
    %5732 = vmatprep.subr.mxu0 0.0
    %5733 = vmatpush1.xpose.msra.mxu0 %v5730
    %5734 = vmatprep.subr.mxu0 0.0
    %5735 = vmatpush1.xpose.msra.mxu0 0.0
    %5736 = vmatprep.subr.mxu0 0.0
    %5737 = vmatpush1.xpose.msra.mxu0 0.0
    %5738 = vmatprep.subr.mxu0 0.0
    %5739 = vmatpush1.xpose.msra.mxu0 0.0
    %5740 = vmatprep.subr.mxu0 0.0
    %5741 = vmatpush1.xpose.msra.mxu0 0.0
    %5742 = vmatprep.subr.mxu0 0.0
    %5743 = vmatpush1.xpose.msra.mxu0 0.0
    %5744 = vmatprep.subr.mxu0 0.0
    %5745 = vmatpush1.xpose.msra.mxu0 0.0
    %5746 = vmatprep.subr.mxu0 0.0
    %5747 = vmatpush1.xpose.msra.mxu0 0.0
    %5748 = vmatprep.subr.mxu0 0.0
    %5749 = vmatpush1.xpose.msra.mxu0 0.0
    %5750 = vmatprep.subr.mxu0 0.0
    %5751 = vmatpush1.xpose.msra.mxu0 0.0
    %5752 = vmatprep.subr.mxu0 0.0
    %5753 = vmatpush1.xpose.msra.mxu0 0.0
    %5754 = vmatprep.subr.mxu0 0.0
    %5755 = vmatpush1.xpose.msra.mxu0 0.0
    %5756 = vmatprep.subr.mxu0 0.0
    %5757 = vmatpush1.xpose.msra.mxu0 0.0
    %5758 = vmatprep.subr.mxu0 0.0
    %5759 = vmatpush1.xpose.msra.mxu0 0.0
    %5760 = vmatprep.subr.mxu0 0.0
    %5761 = vmatpush1.xpose.msra.mxu0 0.0
    %5762 = vmatprep.subr.mxu0 0.0
    %5763 = vmatpush1.xpose.msra.mxu0 0.0
    %5764 = vmatprep.subr.mxu0 0.0
    %5765 = vmatpush1.xpose.msra.mxu0 0.0
    %5766 = vmatprep.subr.mxu0 0.0
    %5767 = vmatpush1.xpose.msra.mxu0 0.0
    %5768 = vmatprep.subr.mxu0 0.0
    %5769 = vmatpush1.xpose.msra.mxu0 0.0
    %5770 = vmatprep.subr.mxu0 0.0
    %5771 = vmatpush1.xpose.msra.mxu0 0.0
    %5772 = vmatprep.subr.mxu0 0.0
    %5773 = vmatpush1.xpose.msra.mxu0 0.0
    %5774 = vmatprep.subr.mxu0 0.0
    %5775 = vmatpush1.xpose.msra.mxu0 0.0
    %5776 = vmatprep.subr.mxu0 0.0
    %5777 = vmatpush1.xpose.msra.mxu0 0.0
    %5778 = vmatprep.subr.mxu0 0.0
    %5779 = vmatpush1.xpose.msra.mxu0 0.0
    %5780 = vmatprep.subr.mxu0 0.0
    %5781 = vmatpush1.xpose.msra.mxu0 0.0
    %5782 = vmatprep.subr.mxu0 0.0
    %5783 = vmatpush1.xpose.msra.mxu0 0.0
    %5784 = vmatprep.subr.mxu0 0.0
    %5785 = vmatpush1.xpose.msra.mxu0 0.0
    %5786 = vmatprep.subr.mxu0 0.0
    %5787 = vmatpush1.xpose.msra.mxu0 0.0
    %5788 = vmatprep.subr.mxu0 0.0
    %5789 = vmatpush1.xpose.msra.mxu0 0.0
    %5790 = vmatprep.subr.mxu0 0.0
    %5791 = vmatpush1.xpose.msra.mxu0 0.0
    %5792 = vmatprep.subr.mxu0 0.0
    %5793 = vmatpush1.xpose.msra.mxu0 0.0
    %5794 = vmatprep.subr.mxu0 0.0
    %5795 = vmatpush1.xpose.msra.mxu0 0.0
    %5796 = vmatprep.mubr.f32.mxu0 0.0
    %5797 = vmatmul.mubr.f32.gmra.mrb[0].mxu0 %v5728
    %v5798 = vpop.f32.mrb[0].mxu0
    %v5799 = vadd.f32 0.0, %v5798
    %v5800 = vpop.f32.mrb[0].mxu0
    %5801 = vdwg.mxu0
    %5802 = vrot.lane.b32.xlu0 %v409, 112
    %v5803 = vpop.permute.xlu0 %5802
    %5804 = vrot.lane.b32.xlu0 %v409, 80
    %v5805 = vpop.permute.xlu0 %5804
    %v5806 = vsel %vm427, %v5803, 0
    %v5808 = vsel %vm427, %v5805, 0
    %5810 = vmatprep.subr.mxu0 0.0
    %5811 = vmatpush1.xpose.msra.mxu0 %v5808
    %5812 = vmatprep.subr.mxu0 0.0
    %5813 = vmatpush1.xpose.msra.mxu0 0.0
    %5814 = vmatprep.subr.mxu0 0.0
    %5815 = vmatpush1.xpose.msra.mxu0 0.0
    %5816 = vmatprep.subr.mxu0 0.0
    %5817 = vmatpush1.xpose.msra.mxu0 0.0
    %5818 = vmatprep.subr.mxu0 0.0
    %5819 = vmatpush1.xpose.msra.mxu0 0.0
    %5820 = vmatprep.subr.mxu0 0.0
    %5821 = vmatpush1.xpose.msra.mxu0 0.0
    %5822 = vmatprep.subr.mxu0 0.0
    %5823 = vmatpush1.xpose.msra.mxu0 0.0
    %5824 = vmatprep.subr.mxu0 0.0
    %5825 = vmatpush1.xpose.msra.mxu0 0.0
    %5826 = vmatprep.subr.mxu0 0.0
    %5827 = vmatpush1.xpose.msra.mxu0 0.0
    %5828 = vmatprep.subr.mxu0 0.0
    %5829 = vmatpush1.xpose.msra.mxu0 0.0
    %5830 = vmatprep.subr.mxu0 0.0
    %5831 = vmatpush1.xpose.msra.mxu0 0.0
    %5832 = vmatprep.subr.mxu0 0.0
    %5833 = vmatpush1.xpose.msra.mxu0 0.0
    %5834 = vmatprep.subr.mxu0 0.0
    %5835 = vmatpush1.xpose.msra.mxu0 0.0
    %5836 = vmatprep.subr.mxu0 0.0
    %5837 = vmatpush1.xpose.msra.mxu0 0.0
    %5838 = vmatprep.subr.mxu0 0.0
    %5839 = vmatpush1.xpose.msra.mxu0 0.0
    %5840 = vmatprep.subr.mxu0 0.0
    %5841 = vmatpush1.xpose.msra.mxu0 0.0
    %5842 = vmatprep.subr.mxu0 0.0
    %5843 = vmatpush1.xpose.msra.mxu0 0.0
    %5844 = vmatprep.subr.mxu0 0.0
    %5845 = vmatpush1.xpose.msra.mxu0 0.0
    %5846 = vmatprep.subr.mxu0 0.0
    %5847 = vmatpush1.xpose.msra.mxu0 0.0
    %5848 = vmatprep.subr.mxu0 0.0
    %5849 = vmatpush1.xpose.msra.mxu0 0.0
    %5850 = vmatprep.subr.mxu0 0.0
    %5851 = vmatpush1.xpose.msra.mxu0 0.0
    %5852 = vmatprep.subr.mxu0 0.0
    %5853 = vmatpush1.xpose.msra.mxu0 0.0
    %5854 = vmatprep.subr.mxu0 0.0
    %5855 = vmatpush1.xpose.msra.mxu0 0.0
    %5856 = vmatprep.subr.mxu0 0.0
    %5857 = vmatpush1.xpose.msra.mxu0 0.0
    %5858 = vmatprep.subr.mxu0 0.0
    %5859 = vmatpush1.xpose.msra.mxu0 0.0
    %5860 = vmatprep.subr.mxu0 0.0
    %5861 = vmatpush1.xpose.msra.mxu0 0.0
    %5862 = vmatprep.subr.mxu0 0.0
    %5863 = vmatpush1.xpose.msra.mxu0 0.0
    %5864 = vmatprep.subr.mxu0 0.0
    %5865 = vmatpush1.xpose.msra.mxu0 0.0
    %5866 = vmatprep.subr.mxu0 0.0
    %5867 = vmatpush1.xpose.msra.mxu0 0.0
    %5868 = vmatprep.subr.mxu0 0.0
    %5869 = vmatpush1.xpose.msra.mxu0 0.0
    %5870 = vmatprep.subr.mxu0 0.0
    %5871 = vmatpush1.xpose.msra.mxu0 0.0
    %5872 = vmatprep.subr.mxu0 0.0
    %5873 = vmatpush1.xpose.msra.mxu0 0.0
    %5874 = vmatprep.mubr.f32.mxu0 0.0
    %5875 = vmatmul.mubr.f32.gmra.mrb[0].mxu0 %v5806
    %v5876 = vpop.f32.mrb[0].mxu0
    %v5877 = vadd.f32 0.0, %v5876
    %v5878 = vpop.f32.mrb[0].mxu0
    %5879 = vdwg.mxu0
    %5880 = vrot.lane.b32.xlu0 %v410, 112
    %v5881 = vpop.permute.xlu0 %5880
    %5882 = vrot.lane.b32.xlu0 %v410, 80
    %v5883 = vpop.permute.xlu0 %5882
    %v5884 = vsel %vm427, %v5881, 0
    %v5886 = vsel %vm427, %v5883, 0
    %5888 = vmatprep.subr.mxu0 0.0
    %5889 = vmatpush1.xpose.msra.mxu0 %v5886
    %5890 = vmatprep.subr.mxu0 0.0
    %5891 = vmatpush1.xpose.msra.mxu0 0.0
    %5892 = vmatprep.subr.mxu0 0.0
    %5893 = vmatpush1.xpose.msra.mxu0 0.0
    %5894 = vmatprep.subr.mxu0 0.0
    %5895 = vmatpush1.xpose.msra.mxu0 0.0
    %5896 = vmatprep.subr.mxu0 0.0
    %5897 = vmatpush1.xpose.msra.mxu0 0.0
    %5898 = vmatprep.subr.mxu0 0.0
    %5899 = vmatpush1.xpose.msra.mxu0 0.0
    %5900 = vmatprep.subr.mxu0 0.0
    %5901 = vmatpush1.xpose.msra.mxu0 0.0
    %5902 = vmatprep.subr.mxu0 0.0
    %5903 = vmatpush1.xpose.msra.mxu0 0.0
    %5904 = vmatprep.subr.mxu0 0.0
    %5905 = vmatpush1.xpose.msra.mxu0 0.0
    %5906 = vmatprep.subr.mxu0 0.0
    %5907 = vmatpush1.xpose.msra.mxu0 0.0
    %5908 = vmatprep.subr.mxu0 0.0
    %5909 = vmatpush1.xpose.msra.mxu0 0.0
    %5910 = vmatprep.subr.mxu0 0.0
    %5911 = vmatpush1.xpose.msra.mxu0 0.0
    %5912 = vmatprep.subr.mxu0 0.0
    %5913 = vmatpush1.xpose.msra.mxu0 0.0
    %5914 = vmatprep.subr.mxu0 0.0
    %5915 = vmatpush1.xpose.msra.mxu0 0.0
    %5916 = vmatprep.subr.mxu0 0.0
    %5917 = vmatpush1.xpose.msra.mxu0 0.0
    %5918 = vmatprep.subr.mxu0 0.0
    %5919 = vmatpush1.xpose.msra.mxu0 0.0
    %5920 = vmatprep.subr.mxu0 0.0
    %5921 = vmatpush1.xpose.msra.mxu0 0.0
    %5922 = vmatprep.subr.mxu0 0.0
    %5923 = vmatpush1.xpose.msra.mxu0 0.0
    %5924 = vmatprep.subr.mxu0 0.0
    %5925 = vmatpush1.xpose.msra.mxu0 0.0
    %5926 = vmatprep.subr.mxu0 0.0
    %5927 = vmatpush1.xpose.msra.mxu0 0.0
    %5928 = vmatprep.subr.mxu0 0.0
    %5929 = vmatpush1.xpose.msra.mxu0 0.0
    %5930 = vmatprep.subr.mxu0 0.0
    %5931 = vmatpush1.xpose.msra.mxu0 0.0
    %5932 = vmatprep.subr.mxu0 0.0
    %5933 = vmatpush1.xpose.msra.mxu0 0.0
    %5934 = vmatprep.subr.mxu0 0.0
    %5935 = vmatpush1.xpose.msra.mxu0 0.0
    %5936 = vmatprep.subr.mxu0 0.0
    %5937 = vmatpush1.xpose.msra.mxu0 0.0
    %5938 = vmatprep.subr.mxu0 0.0
    %5939 = vmatpush1.xpose.msra.mxu0 0.0
    %5940 = vmatprep.subr.mxu0 0.0
    %5941 = vmatpush1.xpose.msra.mxu0 0.0
    %5942 = vmatprep.subr.mxu0 0.0
    %5943 = vmatpush1.xpose.msra.mxu0 0.0
    %5944 = vmatprep.subr.mxu0 0.0
    %5945 = vmatpush1.xpose.msra.mxu0 0.0
    %5946 = vmatprep.subr.mxu0 0.0
    %5947 = vmatpush1.xpose.msra.mxu0 0.0
    %5948 = vmatprep.subr.mxu0 0.0
    %5949 = vmatpush1.xpose.msra.mxu0 0.0
    %5950 = vmatprep.subr.mxu0 0.0
    %5951 = vmatpush1.xpose.msra.mxu0 0.0
    %5952 = vmatprep.mubr.f32.mxu0 0.0
    %5953 = vmatmul.mubr.f32.gmra.mrb[0].mxu0 %v5884
    %v5954 = vpop.f32.mrb[0].mxu0
    %v5955 = vadd.f32 0.0, %v5954
    %v5956 = vpop.f32.mrb[0].mxu0
    %5957 = vdwg.mxu0
    %5958 = vrot.lane.b32.xlu0 %v411, 112
    %v5959 = vpop.permute.xlu0 %5958
    %5960 = vrot.lane.b32.xlu0 %v411, 80
    %v5961 = vpop.permute.xlu0 %5960
    %v5962 = vsel %vm427, %v5959, 0
    %v5964 = vsel %vm427, %v5961, 0
    %5966 = vmatprep.subr.mxu0 0.0
    %5967 = vmatpush1.xpose.msra.mxu0 %v5964
    %5968 = vmatprep.subr.mxu0 0.0
    %5969 = vmatpush1.xpose.msra.mxu0 0.0
    %5970 = vmatprep.subr.mxu0 0.0
    %5971 = vmatpush1.xpose.msra.mxu0 0.0
    %5972 = vmatprep.subr.mxu0 0.0
    %5973 = vmatpush1.xpose.msra.mxu0 0.0
    %5974 = vmatprep.subr.mxu0 0.0
    %5975 = vmatpush1.xpose.msra.mxu0 0.0
    %5976 = vmatprep.subr.mxu0 0.0
    %5977 = vmatpush1.xpose.msra.mxu0 0.0
    %5978 = vmatprep.subr.mxu0 0.0
    %5979 = vmatpush1.xpose.msra.mxu0 0.0
    %5980 = vmatprep.subr.mxu0 0.0
    %5981 = vmatpush1.xpose.msra.mxu0 0.0
    %5982 = vmatprep.subr.mxu0 0.0
    %5983 = vmatpush1.xpose.msra.mxu0 0.0
    %5984 = vmatprep.subr.mxu0 0.0
    %5985 = vmatpush1.xpose.msra.mxu0 0.0
    %5986 = vmatprep.subr.mxu0 0.0
    %5987 = vmatpush1.xpose.msra.mxu0 0.0
    %5988 = vmatprep.subr.mxu0 0.0
    %5989 = vmatpush1.xpose.msra.mxu0 0.0
    %5990 = vmatprep.subr.mxu0 0.0
    %5991 = vmatpush1.xpose.msra.mxu0 0.0
    %5992 = vmatprep.subr.mxu0 0.0
    %5993 = vmatpush1.xpose.msra.mxu0 0.0
    %5994 = vmatprep.subr.mxu0 0.0
    %5995 = vmatpush1.xpose.msra.mxu0 0.0
    %5996 = vmatprep.subr.mxu0 0.0
    %5997 = vmatpush1.xpose.msra.mxu0 0.0
    %5998 = vmatprep.subr.mxu0 0.0
    %5999 = vmatpush1.xpose.msra.mxu0 0.0
    %6000 = vmatprep.subr.mxu0 0.0
    %6001 = vmatpush1.xpose.msra.mxu0 0.0
    %6002 = vmatprep.subr.mxu0 0.0
    %6003 = vmatpush1.xpose.msra.mxu0 0.0
    %6004 = vmatprep.subr.mxu0 0.0
    %6005 = vmatpush1.xpose.msra.mxu0 0.0
    %6006 = vmatprep.subr.mxu0 0.0
    %6007 = vmatpush1.xpose.msra.mxu0 0.0
    %6008 = vmatprep.subr.mxu0 0.0
    %6009 = vmatpush1.xpose.msra.mxu0 0.0
    %6010 = vmatprep.subr.mxu0 0.0
    %6011 = vmatpush1.xpose.msra.mxu0 0.0
    %6012 = vmatprep.subr.mxu0 0.0
    %6013 = vmatpush1.xpose.msra.mxu0 0.0
    %6014 = vmatprep.subr.mxu0 0.0
    %6015 = vmatpush1.xpose.msra.mxu0 0.0
    %6016 = vmatprep.subr.mxu0 0.0
    %6017 = vmatpush1.xpose.msra.mxu0 0.0
    %6018 = vmatprep.subr.mxu0 0.0
    %6019 = vmatpush1.xpose.msra.mxu0 0.0
    %6020 = vmatprep.subr.mxu0 0.0
    %6021 = vmatpush1.xpose.msra.mxu0 0.0
    %6022 = vmatprep.subr.mxu0 0.0
    %6023 = vmatpush1.xpose.msra.mxu0 0.0
    %6024 = vmatprep.subr.mxu0 0.0
    %6025 = vmatpush1.xpose.msra.mxu0 0.0
    %6026 = vmatprep.subr.mxu0 0.0
    %6027 = vmatpush1.xpose.msra.mxu0 0.0
    %6028 = vmatprep.subr.mxu0 0.0
    %6029 = vmatpush1.xpose.msra.mxu0 0.0
    %6030 = vmatprep.mubr.f32.mxu0 0.0
    %6031 = vmatmul.mubr.f32.gmra.mrb[0].mxu0 %v5962
    %v6032 = vpop.f32.mrb[0].mxu0
    %v6033 = vadd.f32 0.0, %v6032
    %v6034 = vpop.f32.mrb[0].mxu0
    %6035 = vdwg.mxu0
    %6036 = vrot.lane.b32.xlu0 %v412, 112
    %v6037 = vpop.permute.xlu0 %6036
    %6038 = vrot.lane.b32.xlu0 %v412, 80
    %v6039 = vpop.permute.xlu0 %6038
    %v6040 = vsel %vm427, %v6037, 0
    %v6042 = vsel %vm427, %v6039, 0
    %6044 = vmatprep.subr.mxu0 0.0
    %6045 = vmatpush1.xpose.msra.mxu0 %v6042
    %6046 = vmatprep.subr.mxu0 0.0
    %6047 = vmatpush1.xpose.msra.mxu0 0.0
    %6048 = vmatprep.subr.mxu0 0.0
    %6049 = vmatpush1.xpose.msra.mxu0 0.0
    %6050 = vmatprep.subr.mxu0 0.0
    %6051 = vmatpush1.xpose.msra.mxu0 0.0
    %6052 = vmatprep.subr.mxu0 0.0
    %6053 = vmatpush1.xpose.msra.mxu0 0.0
    %6054 = vmatprep.subr.mxu0 0.0
    %6055 = vmatpush1.xpose.msra.mxu0 0.0
    %6056 = vmatprep.subr.mxu0 0.0
    %6057 = vmatpush1.xpose.msra.mxu0 0.0
    %6058 = vmatprep.subr.mxu0 0.0
    %6059 = vmatpush1.xpose.msra.mxu0 0.0
    %6060 = vmatprep.subr.mxu0 0.0
    %6061 = vmatpush1.xpose.msra.mxu0 0.0
    %6062 = vmatprep.subr.mxu0 0.0
    %6063 = vmatpush1.xpose.msra.mxu0 0.0
    %6064 = vmatprep.subr.mxu0 0.0
    %6065 = vmatpush1.xpose.msra.mxu0 0.0
    %6066 = vmatprep.subr.mxu0 0.0
    %6067 = vmatpush1.xpose.msra.mxu0 0.0
    %6068 = vmatprep.subr.mxu0 0.0
    %6069 = vmatpush1.xpose.msra.mxu0 0.0
    %6070 = vmatprep.subr.mxu0 0.0
    %6071 = vmatpush1.xpose.msra.mxu0 0.0
    %6072 = vmatprep.subr.mxu0 0.0
    %6073 = vmatpush1.xpose.msra.mxu0 0.0
    %6074 = vmatprep.subr.mxu0 0.0
    %6075 = vmatpush1.xpose.msra.mxu0 0.0
    %6076 = vmatprep.subr.mxu0 0.0
    %6077 = vmatpush1.xpose.msra.mxu0 0.0
    %6078 = vmatprep.subr.mxu0 0.0
    %6079 = vmatpush1.xpose.msra.mxu0 0.0
    %6080 = vmatprep.subr.mxu0 0.0
    %6081 = vmatpush1.xpose.msra.mxu0 0.0
    %6082 = vmatprep.subr.mxu0 0.0
    %6083 = vmatpush1.xpose.msra.mxu0 0.0
    %6084 = vmatprep.subr.mxu0 0.0
    %6085 = vmatpush1.xpose.msra.mxu0 0.0
    %6086 = vmatprep.subr.mxu0 0.0
    %6087 = vmatpush1.xpose.msra.mxu0 0.0
    %6088 = vmatprep.subr.mxu0 0.0
    %6089 = vmatpush1.xpose.msra.mxu0 0.0
    %6090 = vmatprep.subr.mxu0 0.0
    %6091 = vmatpush1.xpose.msra.mxu0 0.0
    %6092 = vmatprep.subr.mxu0 0.0
    %6093 = vmatpush1.xpose.msra.mxu0 0.0
    %6094 = vmatprep.subr.mxu0 0.0
    %6095 = vmatpush1.xpose.msra.mxu0 0.0
    %6096 = vmatprep.subr.mxu0 0.0
    %6097 = vmatpush1.xpose.msra.mxu0 0.0
    %6098 = vmatprep.subr.mxu0 0.0
    %6099 = vmatpush1.xpose.msra.mxu0 0.0
    %6100 = vmatprep.subr.mxu0 0.0
    %6101 = vmatpush1.xpose.msra.mxu0 0.0
    %6102 = vmatprep.subr.mxu0 0.0
    %6103 = vmatpush1.xpose.msra.mxu0 0.0
    %6104 = vmatprep.subr.mxu0 0.0
    %6105 = vmatpush1.xpose.msra.mxu0 0.0
    %6106 = vmatprep.subr.mxu0 0.0
    %6107 = vmatpush1.xpose.msra.mxu0 0.0
    %6108 = vmatprep.mubr.f32.mxu0 0.0
    %6109 = vmatmul.mubr.f32.gmra.mrb[0].mxu0 %v6040
    %v6110 = vpop.f32.mrb[0].mxu0
    %v6111 = vadd.f32 0.0, %v6110
    %v6112 = vpop.f32.mrb[0].mxu0
    %6113 = vdwg.mxu0
    %6114 = vrot.lane.b32.xlu0 %v413, 112
    %v6115 = vpop.permute.xlu0 %6114
    %6116 = vrot.lane.b32.xlu0 %v413, 80
    %v6117 = vpop.permute.xlu0 %6116
    %v6118 = vsel %vm427, %v6115, 0
    %v6120 = vsel %vm427, %v6117, 0
    %6122 = vmatprep.subr.mxu0 0.0
    %6123 = vmatpush1.xpose.msra.mxu0 %v6120
    %6124 = vmatprep.subr.mxu0 0.0
    %6125 = vmatpush1.xpose.msra.mxu0 0.0
    %6126 = vmatprep.subr.mxu0 0.0
    %6127 = vmatpush1.xpose.msra.mxu0 0.0
    %6128 = vmatprep.subr.mxu0 0.0
    %6129 = vmatpush1.xpose.msra.mxu0 0.0
    %6130 = vmatprep.subr.mxu0 0.0
    %6131 = vmatpush1.xpose.msra.mxu0 0.0
    %6132 = vmatprep.subr.mxu0 0.0
    %6133 = vmatpush1.xpose.msra.mxu0 0.0
    %6134 = vmatprep.subr.mxu0 0.0
    %6135 = vmatpush1.xpose.msra.mxu0 0.0
    %6136 = vmatprep.subr.mxu0 0.0
    %6137 = vmatpush1.xpose.msra.mxu0 0.0
    %6138 = vmatprep.subr.mxu0 0.0
    %6139 = vmatpush1.xpose.msra.mxu0 0.0
    %6140 = vmatprep.subr.mxu0 0.0
    %6141 = vmatpush1.xpose.msra.mxu0 0.0
    %6142 = vmatprep.subr.mxu0 0.0
    %6143 = vmatpush1.xpose.msra.mxu0 0.0
    %6144 = vmatprep.subr.mxu0 0.0
    %6145 = vmatpush1.xpose.msra.mxu0 0.0
    %6146 = vmatprep.subr.mxu0 0.0
    %6147 = vmatpush1.xpose.msra.mxu0 0.0
    %6148 = vmatprep.subr.mxu0 0.0
    %6149 = vmatpush1.xpose.msra.mxu0 0.0
    %6150 = vmatprep.subr.mxu0 0.0
    %6151 = vmatpush1.xpose.msra.mxu0 0.0
    %6152 = vmatprep.subr.mxu0 0.0
    %6153 = vmatpush1.xpose.msra.mxu0 0.0
    %6154 = vmatprep.subr.mxu0 0.0
    %6155 = vmatpush1.xpose.msra.mxu0 0.0
    %6156 = vmatprep.subr.mxu0 0.0
    %6157 = vmatpush1.xpose.msra.mxu0 0.0
    %6158 = vmatprep.subr.mxu0 0.0
    %6159 = vmatpush1.xpose.msra.mxu0 0.0
    %6160 = vmatprep.subr.mxu0 0.0
    %6161 = vmatpush1.xpose.msra.mxu0 0.0
    %6162 = vmatprep.subr.mxu0 0.0
    %6163 = vmatpush1.xpose.msra.mxu0 0.0
    %6164 = vmatprep.subr.mxu0 0.0
    %6165 = vmatpush1.xpose.msra.mxu0 0.0
    %6166 = vmatprep.subr.mxu0 0.0
    %6167 = vmatpush1.xpose.msra.mxu0 0.0
    %6168 = vmatprep.subr.mxu0 0.0
    %6169 = vmatpush1.xpose.msra.mxu0 0.0
    %6170 = vmatprep.subr.mxu0 0.0
    %6171 = vmatpush1.xpose.msra.mxu0 0.0
    %6172 = vmatprep.subr.mxu0 0.0
    %6173 = vmatpush1.xpose.msra.mxu0 0.0
    %6174 = vmatprep.subr.mxu0 0.0
    %6175 = vmatpush1.xpose.msra.mxu0 0.0
    %6176 = vmatprep.subr.mxu0 0.0
    %6177 = vmatpush1.xpose.msra.mxu0 0.0
    %6178 = vmatprep.subr.mxu0 0.0
    %6179 = vmatpush1.xpose.msra.mxu0 0.0
    %6180 = vmatprep.subr.mxu0 0.0
    %6181 = vmatpush1.xpose.msra.mxu0 0.0
    %6182 = vmatprep.subr.mxu0 0.0
    %6183 = vmatpush1.xpose.msra.mxu0 0.0
    %6184 = vmatprep.subr.mxu0 0.0
    %6185 = vmatpush1.xpose.msra.mxu0 0.0
    %6186 = vmatprep.mubr.f32.mxu0 0.0
    %6187 = vmatmul.mubr.f32.gmra.mrb[0].mxu0 %v6118
    %v6188 = vpop.f32.mrb[0].mxu0
    %v6189 = vadd.f32 0.0, %v6188
    %v6190 = vpop.f32.mrb[0].mxu0
    %6191 = vdwg.mxu0
    %6192 = vrot.lane.b32.xlu0 %v414, 112
    %v6193 = vpop.permute.xlu0 %6192
    %6194 = vrot.lane.b32.xlu0 %v414, 80
    %v6195 = vpop.permute.xlu0 %6194
    %v6196 = vsel %vm427, %v6193, 0
    %v6198 = vsel %vm427, %v6195, 0
    %6200 = vmatprep.subr.mxu0 0.0
    %6201 = vmatpush1.xpose.msra.mxu0 %v6198
    %6202 = vmatprep.subr.mxu0 0.0
    %6203 = vmatpush1.xpose.msra.mxu0 0.0
    %6204 = vmatprep.subr.mxu0 0.0
    %6205 = vmatpush1.xpose.msra.mxu0 0.0
    %6206 = vmatprep.subr.mxu0 0.0
    %6207 = vmatpush1.xpose.msra.mxu0 0.0
    %6208 = vmatprep.subr.mxu0 0.0
    %6209 = vmatpush1.xpose.msra.mxu0 0.0
    %6210 = vmatprep.subr.mxu0 0.0
    %6211 = vmatpush1.xpose.msra.mxu0 0.0
    %6212 = vmatprep.subr.mxu0 0.0
    %6213 = vmatpush1.xpose.msra.mxu0 0.0
    %6214 = vmatprep.subr.mxu0 0.0
    %6215 = vmatpush1.xpose.msra.mxu0 0.0
    %6216 = vmatprep.subr.mxu0 0.0
    %6217 = vmatpush1.xpose.msra.mxu0 0.0
    %6218 = vmatprep.subr.mxu0 0.0
    %6219 = vmatpush1.xpose.msra.mxu0 0.0
    %6220 = vmatprep.subr.mxu0 0.0
    %6221 = vmatpush1.xpose.msra.mxu0 0.0
    %6222 = vmatprep.subr.mxu0 0.0
    %6223 = vmatpush1.xpose.msra.mxu0 0.0
    %6224 = vmatprep.subr.mxu0 0.0
    %6225 = vmatpush1.xpose.msra.mxu0 0.0
    %6226 = vmatprep.subr.mxu0 0.0
    %6227 = vmatpush1.xpose.msra.mxu0 0.0
    %6228 = vmatprep.subr.mxu0 0.0
    %6229 = vmatpush1.xpose.msra.mxu0 0.0
    %6230 = vmatprep.subr.mxu0 0.0
    %6231 = vmatpush1.xpose.msra.mxu0 0.0
    %6232 = vmatprep.subr.mxu0 0.0
    %6233 = vmatpush1.xpose.msra.mxu0 0.0
    %6234 = vmatprep.subr.mxu0 0.0
    %6235 = vmatpush1.xpose.msra.mxu0 0.0
    %6236 = vmatprep.subr.mxu0 0.0
    %6237 = vmatpush1.xpose.msra.mxu0 0.0
    %6238 = vmatprep.subr.mxu0 0.0
    %6239 = vmatpush1.xpose.msra.mxu0 0.0
    %6240 = vmatprep.subr.mxu0 0.0
    %6241 = vmatpush1.xpose.msra.mxu0 0.0
    %6242 = vmatprep.subr.mxu0 0.0
    %6243 = vmatpush1.xpose.msra.mxu0 0.0
    %6244 = vmatprep.subr.mxu0 0.0
    %6245 = vmatpush1.xpose.msra.mxu0 0.0
    %6246 = vmatprep.subr.mxu0 0.0
    %6247 = vmatpush1.xpose.msra.mxu0 0.0
    %6248 = vmatprep.subr.mxu0 0.0
    %6249 = vmatpush1.xpose.msra.mxu0 0.0
    %6250 = vmatprep.subr.mxu0 0.0
    %6251 = vmatpush1.xpose.msra.mxu0 0.0
    %6252 = vmatprep.subr.mxu0 0.0
    %6253 = vmatpush1.xpose.msra.mxu0 0.0
    %6254 = vmatprep.subr.mxu0 0.0
    %6255 = vmatpush1.xpose.msra.mxu0 0.0
    %6256 = vmatprep.subr.mxu0 0.0
    %6257 = vmatpush1.xpose.msra.mxu0 0.0
    %6258 = vmatprep.subr.mxu0 0.0
    %6259 = vmatpush1.xpose.msra.mxu0 0.0
    %6260 = vmatprep.subr.mxu0 0.0
    %6261 = vmatpush1.xpose.msra.mxu0 0.0
    %6262 = vmatprep.subr.mxu0 0.0
    %6263 = vmatpush1.xpose.msra.mxu0 0.0
    %6264 = vmatprep.mubr.f32.mxu0 0.0
    %6265 = vmatmul.mubr.f32.gmra.mrb[0].mxu0 %v6196
    %v6266 = vpop.f32.mrb[0].mxu0
    %v6267 = vadd.f32 0.0, %v6266
    %v6268 = vpop.f32.mrb[0].mxu0
    %6269 = vdwg.mxu0
    %6270 = vrot.lane.b32.xlu0 %v415, 112
    %v6271 = vpop.permute.xlu0 %6270
    %6272 = vrot.lane.b32.xlu0 %v415, 80
    %v6273 = vpop.permute.xlu0 %6272
    %v6274 = vsel %vm427, %v6271, 0
    %v6276 = vsel %vm427, %v6273, 0
    %6278 = vmatprep.subr.mxu0 0.0
    %6279 = vmatpush1.xpose.msra.mxu0 %v6276
    %6280 = vmatprep.subr.mxu0 0.0
    %6281 = vmatpush1.xpose.msra.mxu0 0.0
    %6282 = vmatprep.subr.mxu0 0.0
    %6283 = vmatpush1.xpose.msra.mxu0 0.0
    %6284 = vmatprep.subr.mxu0 0.0
    %6285 = vmatpush1.xpose.msra.mxu0 0.0
    %6286 = vmatprep.subr.mxu0 0.0
    %6287 = vmatpush1.xpose.msra.mxu0 0.0
    %6288 = vmatprep.subr.mxu0 0.0
    %6289 = vmatpush1.xpose.msra.mxu0 0.0
    %6290 = vmatprep.subr.mxu0 0.0
    %6291 = vmatpush1.xpose.msra.mxu0 0.0
    %6292 = vmatprep.subr.mxu0 0.0
    %6293 = vmatpush1.xpose.msra.mxu0 0.0
    %6294 = vmatprep.subr.mxu0 0.0
    %6295 = vmatpush1.xpose.msra.mxu0 0.0
    %6296 = vmatprep.subr.mxu0 0.0
    %6297 = vmatpush1.xpose.msra.mxu0 0.0
    %6298 = vmatprep.subr.mxu0 0.0
    %6299 = vmatpush1.xpose.msra.mxu0 0.0
    %6300 = vmatprep.subr.mxu0 0.0
    %6301 = vmatpush1.xpose.msra.mxu0 0.0
    %6302 = vmatprep.subr.mxu0 0.0
    %6303 = vmatpush1.xpose.msra.mxu0 0.0
    %6304 = vmatprep.subr.mxu0 0.0
    %6305 = vmatpush1.xpose.msra.mxu0 0.0
    %6306 = vmatprep.subr.mxu0 0.0
    %6307 = vmatpush1.xpose.msra.mxu0 0.0
    %6308 = vmatprep.subr.mxu0 0.0
    %6309 = vmatpush1.xpose.msra.mxu0 0.0
    %6310 = vmatprep.subr.mxu0 0.0
    %6311 = vmatpush1.xpose.msra.mxu0 0.0
    %6312 = vmatprep.subr.mxu0 0.0
    %6313 = vmatpush1.xpose.msra.mxu0 0.0
    %6314 = vmatprep.subr.mxu0 0.0
    %6315 = vmatpush1.xpose.msra.mxu0 0.0
    %6316 = vmatprep.subr.mxu0 0.0
    %6317 = vmatpush1.xpose.msra.mxu0 0.0
    %6318 = vmatprep.subr.mxu0 0.0
    %6319 = vmatpush1.xpose.msra.mxu0 0.0
    %6320 = vmatprep.subr.mxu0 0.0
    %6321 = vmatpush1.xpose.msra.mxu0 0.0
    %6322 = vmatprep.subr.mxu0 0.0
    %6323 = vmatpush1.xpose.msra.mxu0 0.0
    %6324 = vmatprep.subr.mxu0 0.0
    %6325 = vmatpush1.xpose.msra.mxu0 0.0
    %6326 = vmatprep.subr.mxu0 0.0
    %6327 = vmatpush1.xpose.msra.mxu0 0.0
    %6328 = vmatprep.subr.mxu0 0.0
    %6329 = vmatpush1.xpose.msra.mxu0 0.0
    %6330 = vmatprep.subr.mxu0 0.0
    %6331 = vmatpush1.xpose.msra.mxu0 0.0
    %6332 = vmatprep.subr.mxu0 0.0
    %6333 = vmatpush1.xpose.msra.mxu0 0.0
    %6334 = vmatprep.subr.mxu0 0.0
    %6335 = vmatpush1.xpose.msra.mxu0 0.0
    %6336 = vmatprep.subr.mxu0 0.0
    %6337 = vmatpush1.xpose.msra.mxu0 0.0
    %6338 = vmatprep.subr.mxu0 0.0
    %6339 = vmatpush1.xpose.msra.mxu0 0.0
    %6340 = vmatprep.subr.mxu0 0.0
    %6341 = vmatpush1.xpose.msra.mxu0 0.0
    %6342 = vmatprep.mubr.f32.mxu0 0.0
    %6343 = vmatmul.mubr.f32.gmra.mrb[0].mxu0 %v6274
    %v6344 = vpop.f32.mrb[0].mxu0
    %v6345 = vadd.f32 0.0, %v6344
    %v6346 = vpop.f32.mrb[0].mxu0
    %6347 = vdwg.mxu0
    %6348 = vrot.lane.b32.xlu0 %v416, 112
    %v6349 = vpop.permute.xlu0 %6348
    %6350 = vrot.lane.b32.xlu0 %v416, 80
    %v6351 = vpop.permute.xlu0 %6350
    %v6352 = vsel %vm427, %v6349, 0
    %v6354 = vsel %vm427, %v6351, 0
    %6356 = vmatprep.subr.mxu0 0.0
    %6357 = vmatpush1.xpose.msra.mxu0 %v6354
    %6358 = vmatprep.subr.mxu0 0.0
    %6359 = vmatpush1.xpose.msra.mxu0 0.0
    %6360 = vmatprep.subr.mxu0 0.0
    %6361 = vmatpush1.xpose.msra.mxu0 0.0
    %6362 = vmatprep.subr.mxu0 0.0
    %6363 = vmatpush1.xpose.msra.mxu0 0.0
    %6364 = vmatprep.subr.mxu0 0.0
    %6365 = vmatpush1.xpose.msra.mxu0 0.0
    %6366 = vmatprep.subr.mxu0 0.0
    %6367 = vmatpush1.xpose.msra.mxu0 0.0
    %6368 = vmatprep.subr.mxu0 0.0
    %6369 = vmatpush1.xpose.msra.mxu0 0.0
    %6370 = vmatprep.subr.mxu0 0.0
    %6371 = vmatpush1.xpose.msra.mxu0 0.0
    %6372 = vmatprep.subr.mxu0 0.0
    %6373 = vmatpush1.xpose.msra.mxu0 0.0
    %6374 = vmatprep.subr.mxu0 0.0
    %6375 = vmatpush1.xpose.msra.mxu0 0.0
    %6376 = vmatprep.subr.mxu0 0.0
    %6377 = vmatpush1.xpose.msra.mxu0 0.0
    %6378 = vmatprep.subr.mxu0 0.0
    %6379 = vmatpush1.xpose.msra.mxu0 0.0
    %6380 = vmatprep.subr.mxu0 0.0
    %6381 = vmatpush1.xpose.msra.mxu0 0.0
    %6382 = vmatprep.subr.mxu0 0.0
    %6383 = vmatpush1.xpose.msra.mxu0 0.0
    %6384 = vmatprep.subr.mxu0 0.0
    %6385 = vmatpush1.xpose.msra.mxu0 0.0
    %6386 = vmatprep.subr.mxu0 0.0
    %6387 = vmatpush1.xpose.msra.mxu0 0.0
    %6388 = vmatprep.subr.mxu0 0.0
    %6389 = vmatpush1.xpose.msra.mxu0 0.0
    %6390 = vmatprep.subr.mxu0 0.0
    %6391 = vmatpush1.xpose.msra.mxu0 0.0
    %6392 = vmatprep.subr.mxu0 0.0
    %6393 = vmatpush1.xpose.msra.mxu0 0.0
    %6394 = vmatprep.subr.mxu0 0.0
    %6395 = vmatpush1.xpose.msra.mxu0 0.0
    %6396 = vmatprep.subr.mxu0 0.0
    %6397 = vmatpush1.xpose.msra.mxu0 0.0
    %6398 = vmatprep.subr.mxu0 0.0
    %6399 = vmatpush1.xpose.msra.mxu0 0.0
    %6400 = vmatprep.subr.mxu0 0.0
    %6401 = vmatpush1.xpose.msra.mxu0 0.0
    %6402 = vmatprep.subr.mxu0 0.0
    %6403 = vmatpush1.xpose.msra.mxu0 0.0
    %6404 = vmatprep.subr.mxu0 0.0
    %6405 = vmatpush1.xpose.msra.mxu0 0.0
    %6406 = vmatprep.subr.mxu0 0.0
    %6407 = vmatpush1.xpose.msra.mxu0 0.0
    %6408 = vmatprep.subr.mxu0 0.0
    %6409 = vmatpush1.xpose.msra.mxu0 0.0
    %6410 = vmatprep.subr.mxu0 0.0
    %6411 = vmatpush1.xpose.msra.mxu0 0.0
    %6412 = vmatprep.subr.mxu0 0.0
    %6413 = vmatpush1.xpose.msra.mxu0 0.0
    %6414 = vmatprep.subr.mxu0 0.0
    %6415 = vmatpush1.xpose.msra.mxu0 0.0
    %6416 = vmatprep.subr.mxu0 0.0
    %6417 = vmatpush1.xpose.msra.mxu0 0.0
    %6418 = vmatprep.subr.mxu0 0.0
    %6419 = vmatpush1.xpose.msra.mxu0 0.0
    %6420 = vmatprep.mubr.f32.mxu0 0.0
    %6421 = vmatmul.mubr.f32.gmra.mrb[0].mxu0 %v6352
    %v6422 = vpop.f32.mrb[0].mxu0
    %v6423 = vadd.f32 0.0, %v6422
    %v6424 = vpop.f32.mrb[0].mxu0
    %6425 = vdwg.mxu0
    %6426 = vrot.lane.b32.xlu0 %v417, 112
    %v6427 = vpop.permute.xlu0 %6426
    %6428 = vrot.lane.b32.xlu0 %v417, 80
    %v6429 = vpop.permute.xlu0 %6428
    %v6430 = vsel %vm427, %v6427, 0
    %v6432 = vsel %vm427, %v6429, 0
    %6434 = vmatprep.subr.mxu0 0.0
    %6435 = vmatpush1.xpose.msra.mxu0 %v6432
    %6436 = vmatprep.subr.mxu0 0.0
    %6437 = vmatpush1.xpose.msra.mxu0 0.0
    %6438 = vmatprep.subr.mxu0 0.0
    %6439 = vmatpush1.xpose.msra.mxu0 0.0
    %6440 = vmatprep.subr.mxu0 0.0
    %6441 = vmatpush1.xpose.msra.mxu0 0.0
    %6442 = vmatprep.subr.mxu0 0.0
    %6443 = vmatpush1.xpose.msra.mxu0 0.0
    %6444 = vmatprep.subr.mxu0 0.0
    %6445 = vmatpush1.xpose.msra.mxu0 0.0
    %6446 = vmatprep.subr.mxu0 0.0
    %6447 = vmatpush1.xpose.msra.mxu0 0.0
    %6448 = vmatprep.subr.mxu0 0.0
    %6449 = vmatpush1.xpose.msra.mxu0 0.0
    %6450 = vmatprep.subr.mxu0 0.0
    %6451 = vmatpush1.xpose.msra.mxu0 0.0
    %6452 = vmatprep.subr.mxu0 0.0
    %6453 = vmatpush1.xpose.msra.mxu0 0.0
    %6454 = vmatprep.subr.mxu0 0.0
    %6455 = vmatpush1.xpose.msra.mxu0 0.0
    %6456 = vmatprep.subr.mxu0 0.0
    %6457 = vmatpush1.xpose.msra.mxu0 0.0
    %6458 = vmatprep.subr.mxu0 0.0
    %6459 = vmatpush1.xpose.msra.mxu0 0.0
    %6460 = vmatprep.subr.mxu0 0.0
    %6461 = vmatpush1.xpose.msra.mxu0 0.0
    %6462 = vmatprep.subr.mxu0 0.0
    %6463 = vmatpush1.xpose.msra.mxu0 0.0
    %6464 = vmatprep.subr.mxu0 0.0
    %6465 = vmatpush1.xpose.msra.mxu0 0.0
    %6466 = vmatprep.subr.mxu0 0.0
    %6467 = vmatpush1.xpose.msra.mxu0 0.0
    %6468 = vmatprep.subr.mxu0 0.0
    %6469 = vmatpush1.xpose.msra.mxu0 0.0
    %6470 = vmatprep.subr.mxu0 0.0
    %6471 = vmatpush1.xpose.msra.mxu0 0.0
    %6472 = vmatprep.subr.mxu0 0.0
    %6473 = vmatpush1.xpose.msra.mxu0 0.0
    %6474 = vmatprep.subr.mxu0 0.0
    %6475 = vmatpush1.xpose.msra.mxu0 0.0
    %6476 = vmatprep.subr.mxu0 0.0
    %6477 = vmatpush1.xpose.msra.mxu0 0.0
    %6478 = vmatprep.subr.mxu0 0.0
    %6479 = vmatpush1.xpose.msra.mxu0 0.0
    %6480 = vmatprep.subr.mxu0 0.0
    %6481 = vmatpush1.xpose.msra.mxu0 0.0
    %6482 = vmatprep.subr.mxu0 0.0
    %6483 = vmatpush1.xpose.msra.mxu0 0.0
    %6484 = vmatprep.subr.mxu0 0.0
    %6485 = vmatpush1.xpose.msra.mxu0 0.0
    %6486 = vmatprep.subr.mxu0 0.0
    %6487 = vmatpush1.xpose.msra.mxu0 0.0
    %6488 = vmatprep.subr.mxu0 0.0
    %6489 = vmatpush1.xpose.msra.mxu0 0.0
    %6490 = vmatprep.subr.mxu0 0.0
    %6491 = vmatpush1.xpose.msra.mxu0 0.0
    %6492 = vmatprep.subr.mxu0 0.0
    %6493 = vmatpush1.xpose.msra.mxu0 0.0
    %6494 = vmatprep.subr.mxu0 0.0
    %6495 = vmatpush1.xpose.msra.mxu0 0.0
    %6496 = vmatprep.subr.mxu0 0.0
    %6497 = vmatpush1.xpose.msra.mxu0 0.0
    %6498 = vmatprep.mubr.f32.mxu0 0.0
    %6499 = vmatmul.mubr.f32.gmra.mrb[0].mxu0 %v6430
    %v6500 = vpop.f32.mrb[0].mxu0
    %v6501 = vadd.f32 0.0, %v6500
    %v6502 = vpop.f32.mrb[0].mxu0
    %6503 = vdwg.mxu0
    %6504 = vrot.lane.b32.xlu0 %v418, 112
    %v6505 = vpop.permute.xlu0 %6504
    %6506 = vrot.lane.b32.xlu0 %v418, 80
    %v6507 = vpop.permute.xlu0 %6506
    %v6508 = vsel %vm427, %v6505, 0
    %v6510 = vsel %vm427, %v6507, 0
    %6512 = vmatprep.subr.mxu0 0.0
    %6513 = vmatpush1.xpose.msra.mxu0 %v6510
    %6514 = vmatprep.subr.mxu0 0.0
    %6515 = vmatpush1.xpose.msra.mxu0 0.0
    %6516 = vmatprep.subr.mxu0 0.0
    %6517 = vmatpush1.xpose.msra.mxu0 0.0
    %6518 = vmatprep.subr.mxu0 0.0
    %6519 = vmatpush1.xpose.msra.mxu0 0.0
    %6520 = vmatprep.subr.mxu0 0.0
    %6521 = vmatpush1.xpose.msra.mxu0 0.0
    %6522 = vmatprep.subr.mxu0 0.0
    %6523 = vmatpush1.xpose.msra.mxu0 0.0
    %6524 = vmatprep.subr.mxu0 0.0
    %6525 = vmatpush1.xpose.msra.mxu0 0.0
    %6526 = vmatprep.subr.mxu0 0.0
    %6527 = vmatpush1.xpose.msra.mxu0 0.0
    %6528 = vmatprep.subr.mxu0 0.0
    %6529 = vmatpush1.xpose.msra.mxu0 0.0
    %6530 = vmatprep.subr.mxu0 0.0
    %6531 = vmatpush1.xpose.msra.mxu0 0.0
    %6532 = vmatprep.subr.mxu0 0.0
    %6533 = vmatpush1.xpose.msra.mxu0 0.0
    %6534 = vmatprep.subr.mxu0 0.0
    %6535 = vmatpush1.xpose.msra.mxu0 0.0
    %6536 = vmatprep.subr.mxu0 0.0
    %6537 = vmatpush1.xpose.msra.mxu0 0.0
    %6538 = vmatprep.subr.mxu0 0.0
    %6539 = vmatpush1.xpose.msra.mxu0 0.0
    %6540 = vmatprep.subr.mxu0 0.0
    %6541 = vmatpush1.xpose.msra.mxu0 0.0
    %6542 = vmatprep.subr.mxu0 0.0
    %6543 = vmatpush1.xpose.msra.mxu0 0.0
    %6544 = vmatprep.subr.mxu0 0.0
    %6545 = vmatpush1.xpose.msra.mxu0 0.0
    %6546 = vmatprep.subr.mxu0 0.0
    %6547 = vmatpush1.xpose.msra.mxu0 0.0
    %6548 = vmatprep.subr.mxu0 0.0
    %6549 = vmatpush1.xpose.msra.mxu0 0.0
    %6550 = vmatprep.subr.mxu0 0.0
    %6551 = vmatpush1.xpose.msra.mxu0 0.0
    %6552 = vmatprep.subr.mxu0 0.0
    %6553 = vmatpush1.xpose.msra.mxu0 0.0
    %6554 = vmatprep.subr.mxu0 0.0
    %6555 = vmatpush1.xpose.msra.mxu0 0.0
    %6556 = vmatprep.subr.mxu0 0.0
    %6557 = vmatpush1.xpose.msra.mxu0 0.0
    %6558 = vmatprep.subr.mxu0 0.0
    %6559 = vmatpush1.xpose.msra.mxu0 0.0
    %6560 = vmatprep.subr.mxu0 0.0
    %6561 = vmatpush1.xpose.msra.mxu0 0.0
    %6562 = vmatprep.subr.mxu0 0.0
    %6563 = vmatpush1.xpose.msra.mxu0 0.0
    %6564 = vmatprep.subr.mxu0 0.0
    %6565 = vmatpush1.xpose.msra.mxu0 0.0
    %6566 = vmatprep.subr.mxu0 0.0
    %6567 = vmatpush1.xpose.msra.mxu0 0.0
    %6568 = vmatprep.subr.mxu0 0.0
    %6569 = vmatpush1.xpose.msra.mxu0 0.0
    %6570 = vmatprep.subr.mxu0 0.0
    %6571 = vmatpush1.xpose.msra.mxu0 0.0
    %6572 = vmatprep.subr.mxu0 0.0
    %6573 = vmatpush1.xpose.msra.mxu0 0.0
    %6574 = vmatprep.subr.mxu0 0.0
    %6575 = vmatpush1.xpose.msra.mxu0 0.0
    %6576 = vmatprep.mubr.f32.mxu0 0.0
    %6577 = vmatmul.mubr.f32.gmra.mrb[0].mxu0 %v6508
    %v6578 = vpop.f32.mrb[0].mxu0
    %v6579 = vadd.f32 0.0, %v6578
    %v6580 = vpop.f32.mrb[0].mxu0
    %6581 = vdwg.mxu0
    %6582 = vrot.lane.b32.xlu0 %v419, 112
    %v6583 = vpop.permute.xlu0 %6582
    %6584 = vrot.lane.b32.xlu0 %v419, 80
    %v6585 = vpop.permute.xlu0 %6584
    %v6586 = vsel %vm427, %v6583, 0
    %v6588 = vsel %vm427, %v6585, 0
    %6590 = vmatprep.subr.mxu0 0.0
    %6591 = vmatpush1.xpose.msra.mxu0 %v6588
    %6592 = vmatprep.subr.mxu0 0.0
    %6593 = vmatpush1.xpose.msra.mxu0 0.0
    %6594 = vmatprep.subr.mxu0 0.0
    %6595 = vmatpush1.xpose.msra.mxu0 0.0
    %6596 = vmatprep.subr.mxu0 0.0
    %6597 = vmatpush1.xpose.msra.mxu0 0.0
    %6598 = vmatprep.subr.mxu0 0.0
    %6599 = vmatpush1.xpose.msra.mxu0 0.0
    %6600 = vmatprep.subr.mxu0 0.0
    %6601 = vmatpush1.xpose.msra.mxu0 0.0
    %6602 = vmatprep.subr.mxu0 0.0
    %6603 = vmatpush1.xpose.msra.mxu0 0.0
    %6604 = vmatprep.subr.mxu0 0.0
    %6605 = vmatpush1.xpose.msra.mxu0 0.0
    %6606 = vmatprep.subr.mxu0 0.0
    %6607 = vmatpush1.xpose.msra.mxu0 0.0
    %6608 = vmatprep.subr.mxu0 0.0
    %6609 = vmatpush1.xpose.msra.mxu0 0.0
    %6610 = vmatprep.subr.mxu0 0.0
    %6611 = vmatpush1.xpose.msra.mxu0 0.0
    %6612 = vmatprep.subr.mxu0 0.0
    %6613 = vmatpush1.xpose.msra.mxu0 0.0
    %6614 = vmatprep.subr.mxu0 0.0
    %6615 = vmatpush1.xpose.msra.mxu0 0.0
    %6616 = vmatprep.subr.mxu0 0.0
    %6617 = vmatpush1.xpose.msra.mxu0 0.0
    %6618 = vmatprep.subr.mxu0 0.0
    %6619 = vmatpush1.xpose.msra.mxu0 0.0
    %6620 = vmatprep.subr.mxu0 0.0
    %6621 = vmatpush1.xpose.msra.mxu0 0.0
    %6622 = vmatprep.subr.mxu0 0.0
    %6623 = vmatpush1.xpose.msra.mxu0 0.0
    %6624 = vmatprep.subr.mxu0 0.0
    %6625 = vmatpush1.xpose.msra.mxu0 0.0
    %6626 = vmatprep.subr.mxu0 0.0
    %6627 = vmatpush1.xpose.msra.mxu0 0.0
    %6628 = vmatprep.subr.mxu0 0.0
    %6629 = vmatpush1.xpose.msra.mxu0 0.0
    %6630 = vmatprep.subr.mxu0 0.0
    %6631 = vmatpush1.xpose.msra.mxu0 0.0
    %6632 = vmatprep.subr.mxu0 0.0
    %6633 = vmatpush1.xpose.msra.mxu0 0.0
    %6634 = vmatprep.subr.mxu0 0.0
    %6635 = vmatpush1.xpose.msra.mxu0 0.0
    %6636 = vmatprep.subr.mxu0 0.0
    %6637 = vmatpush1.xpose.msra.mxu0 0.0
    %6638 = vmatprep.subr.mxu0 0.0
    %6639 = vmatpush1.xpose.msra.mxu0 0.0
    %6640 = vmatprep.subr.mxu0 0.0
    %6641 = vmatpush1.xpose.msra.mxu0 0.0
    %6642 = vmatprep.subr.mxu0 0.0
    %6643 = vmatpush1.xpose.msra.mxu0 0.0
    %6644 = vmatprep.subr.mxu0 0.0
    %6645 = vmatpush1.xpose.msra.mxu0 0.0
    %6646 = vmatprep.subr.mxu0 0.0
    %6647 = vmatpush1.xpose.msra.mxu0 0.0
    %6648 = vmatprep.subr.mxu0 0.0
    %6649 = vmatpush1.xpose.msra.mxu0 0.0
    %6650 = vmatprep.subr.mxu0 0.0
    %6651 = vmatpush1.xpose.msra.mxu0 0.0
    %6652 = vmatprep.subr.mxu0 0.0
    %6653 = vmatpush1.xpose.msra.mxu0 0.0
    %6654 = vmatprep.mubr.f32.mxu0 0.0
    %6655 = vmatmul.mubr.f32.gmra.mrb[0].mxu0 %v6586
    %v6656 = vpop.f32.mrb[0].mxu0
    %v6657 = vadd.f32 0.0, %v6656
    %v6658 = vpop.f32.mrb[0].mxu0
    %6659 = vdwg.mxu0
    %6660 = vrot.lane.b32.xlu0 %v420, 112
    %v6661 = vpop.permute.xlu0 %6660
    %6662 = vrot.lane.b32.xlu0 %v420, 80
    %v6663 = vpop.permute.xlu0 %6662
    %v6664 = vsel %vm427, %v6661, 0
    %v6666 = vsel %vm427, %v6663, 0
    %6668 = vmatprep.subr.mxu0 0.0
    %6669 = vmatpush1.xpose.msra.mxu0 %v6666
    %6670 = vmatprep.subr.mxu0 0.0
    %6671 = vmatpush1.xpose.msra.mxu0 0.0
    %6672 = vmatprep.subr.mxu0 0.0
    %6673 = vmatpush1.xpose.msra.mxu0 0.0
    %6674 = vmatprep.subr.mxu0 0.0
    %6675 = vmatpush1.xpose.msra.mxu0 0.0
    %6676 = vmatprep.subr.mxu0 0.0
    %6677 = vmatpush1.xpose.msra.mxu0 0.0
    %6678 = vmatprep.subr.mxu0 0.0
    %6679 = vmatpush1.xpose.msra.mxu0 0.0
    %6680 = vmatprep.subr.mxu0 0.0
    %6681 = vmatpush1.xpose.msra.mxu0 0.0
    %6682 = vmatprep.subr.mxu0 0.0
    %6683 = vmatpush1.xpose.msra.mxu0 0.0
    %6684 = vmatprep.subr.mxu0 0.0
    %6685 = vmatpush1.xpose.msra.mxu0 0.0
    %6686 = vmatprep.subr.mxu0 0.0
    %6687 = vmatpush1.xpose.msra.mxu0 0.0
    %6688 = vmatprep.subr.mxu0 0.0
    %6689 = vmatpush1.xpose.msra.mxu0 0.0
    %6690 = vmatprep.subr.mxu0 0.0
    %6691 = vmatpush1.xpose.msra.mxu0 0.0
    %6692 = vmatprep.subr.mxu0 0.0
    %6693 = vmatpush1.xpose.msra.mxu0 0.0
    %6694 = vmatprep.subr.mxu0 0.0
    %6695 = vmatpush1.xpose.msra.mxu0 0.0
    %6696 = vmatprep.subr.mxu0 0.0
    %6697 = vmatpush1.xpose.msra.mxu0 0.0
    %6698 = vmatprep.subr.mxu0 0.0
    %6699 = vmatpush1.xpose.msra.mxu0 0.0
    %6700 = vmatprep.subr.mxu0 0.0
    %6701 = vmatpush1.xpose.msra.mxu0 0.0
    %6702 = vmatprep.subr.mxu0 0.0
    %6703 = vmatpush1.xpose.msra.mxu0 0.0
    %6704 = vmatprep.subr.mxu0 0.0
    %6705 = vmatpush1.xpose.msra.mxu0 0.0
    %6706 = vmatprep.subr.mxu0 0.0
    %6707 = vmatpush1.xpose.msra.mxu0 0.0
    %6708 = vmatprep.subr.mxu0 0.0
    %6709 = vmatpush1.xpose.msra.mxu0 0.0
    %6710 = vmatprep.subr.mxu0 0.0
    %6711 = vmatpush1.xpose.msra.mxu0 0.0
    %6712 = vmatprep.subr.mxu0 0.0
    %6713 = vmatpush1.xpose.msra.mxu0 0.0
    %6714 = vmatprep.subr.mxu0 0.0
    %6715 = vmatpush1.xpose.msra.mxu0 0.0
    %6716 = vmatprep.subr.mxu0 0.0
    %6717 = vmatpush1.xpose.msra.mxu0 0.0
    %6718 = vmatprep.subr.mxu0 0.0
    %6719 = vmatpush1.xpose.msra.mxu0 0.0
    %6720 = vmatprep.subr.mxu0 0.0
    %6721 = vmatpush1.xpose.msra.mxu0 0.0
    %6722 = vmatprep.subr.mxu0 0.0
    %6723 = vmatpush1.xpose.msra.mxu0 0.0
    %6724 = vmatprep.subr.mxu0 0.0
    %6725 = vmatpush1.xpose.msra.mxu0 0.0
    %6726 = vmatprep.subr.mxu0 0.0
    %6727 = vmatpush1.xpose.msra.mxu0 0.0
    %6728 = vmatprep.subr.mxu0 0.0
    %6729 = vmatpush1.xpose.msra.mxu0 0.0
    %6730 = vmatprep.subr.mxu0 0.0
    %6731 = vmatpush1.xpose.msra.mxu0 0.0
    %6732 = vmatprep.mubr.f32.mxu0 0.0
    %6733 = vmatmul.mubr.f32.gmra.mrb[0].mxu0 %v6664
    %v6734 = vpop.f32.mrb[0].mxu0
    %v6735 = vadd.f32 0.0, %v6734
    %v6736 = vpop.f32.mrb[0].mxu0
    %6737 = vdwg.mxu0
    %6738 = vrot.lane.b32.xlu0 %v421, 112
    %v6739 = vpop.permute.xlu0 %6738
    %6740 = vrot.lane.b32.xlu0 %v421, 80
    %v6741 = vpop.permute.xlu0 %6740
    %v6742 = vsel %vm427, %v6739, 0
    %v6744 = vsel %vm427, %v6741, 0
    %6746 = vmatprep.subr.mxu0 0.0
    %6747 = vmatpush1.xpose.msra.mxu0 %v6744
    %6748 = vmatprep.subr.mxu0 0.0
    %6749 = vmatpush1.xpose.msra.mxu0 0.0
    %6750 = vmatprep.subr.mxu0 0.0
    %6751 = vmatpush1.xpose.msra.mxu0 0.0
    %6752 = vmatprep.subr.mxu0 0.0
    %6753 = vmatpush1.xpose.msra.mxu0 0.0
    %6754 = vmatprep.subr.mxu0 0.0
    %6755 = vmatpush1.xpose.msra.mxu0 0.0
    %6756 = vmatprep.subr.mxu0 0.0
    %6757 = vmatpush1.xpose.msra.mxu0 0.0
    %6758 = vmatprep.subr.mxu0 0.0
    %6759 = vmatpush1.xpose.msra.mxu0 0.0
    %6760 = vmatprep.subr.mxu0 0.0
    %6761 = vmatpush1.xpose.msra.mxu0 0.0
    %6762 = vmatprep.subr.mxu0 0.0
    %6763 = vmatpush1.xpose.msra.mxu0 0.0
    %6764 = vmatprep.subr.mxu0 0.0
    %6765 = vmatpush1.xpose.msra.mxu0 0.0
    %6766 = vmatprep.subr.mxu0 0.0
    %6767 = vmatpush1.xpose.msra.mxu0 0.0
    %6768 = vmatprep.subr.mxu0 0.0
    %6769 = vmatpush1.xpose.msra.mxu0 0.0
    %6770 = vmatprep.subr.mxu0 0.0
    %6771 = vmatpush1.xpose.msra.mxu0 0.0
    %6772 = vmatprep.subr.mxu0 0.0
    %6773 = vmatpush1.xpose.msra.mxu0 0.0
    %6774 = vmatprep.subr.mxu0 0.0
    %6775 = vmatpush1.xpose.msra.mxu0 0.0
    %6776 = vmatprep.subr.mxu0 0.0
    %6777 = vmatpush1.xpose.msra.mxu0 0.0
    %6778 = vmatprep.subr.mxu0 0.0
    %6779 = vmatpush1.xpose.msra.mxu0 0.0
    %6780 = vmatprep.subr.mxu0 0.0
    %6781 = vmatpush1.xpose.msra.mxu0 0.0
    %6782 = vmatprep.subr.mxu0 0.0
    %6783 = vmatpush1.xpose.msra.mxu0 0.0
    %6784 = vmatprep.subr.mxu0 0.0
    %6785 = vmatpush1.xpose.msra.mxu0 0.0
    %6786 = vmatprep.subr.mxu0 0.0
    %6787 = vmatpush1.xpose.msra.mxu0 0.0
    %6788 = vmatprep.subr.mxu0 0.0
    %6789 = vmatpush1.xpose.msra.mxu0 0.0
    %6790 = vmatprep.subr.mxu0 0.0
    %6791 = vmatpush1.xpose.msra.mxu0 0.0
    %6792 = vmatprep.subr.mxu0 0.0
    %6793 = vmatpush1.xpose.msra.mxu0 0.0
    %6794 = vmatprep.subr.mxu0 0.0
    %6795 = vmatpush1.xpose.msra.mxu0 0.0
    %6796 = vmatprep.subr.mxu0 0.0
    %6797 = vmatpush1.xpose.msra.mxu0 0.0
    %6798 = vmatprep.subr.mxu0 0.0
    %6799 = vmatpush1.xpose.msra.mxu0 0.0
    %6800 = vmatprep.subr.mxu0 0.0
    %6801 = vmatpush1.xpose.msra.mxu0 0.0
    %6802 = vmatprep.subr.mxu0 0.0
    %6803 = vmatpush1.xpose.msra.mxu0 0.0
    %6804 = vmatprep.subr.mxu0 0.0
    %6805 = vmatpush1.xpose.msra.mxu0 0.0
    %6806 = vmatprep.subr.mxu0 0.0
    %6807 = vmatpush1.xpose.msra.mxu0 0.0
    %6808 = vmatprep.subr.mxu0 0.0
    %6809 = vmatpush1.xpose.msra.mxu0 0.0
    %6810 = vmatprep.mubr.f32.mxu0 0.0
    %6811 = vmatmul.mubr.f32.gmra.mrb[0].mxu0 %v6742
    %v6812 = vpop.f32.mrb[0].mxu0
    %v6813 = vadd.f32 0.0, %v6812
    %v6814 = vpop.f32.mrb[0].mxu0
    %6815 = vdwg.mxu0
    %6816 = vrot.lane.b32.xlu0 %v422, 112
    %v6817 = vpop.permute.xlu0 %6816
    %6818 = vrot.lane.b32.xlu0 %v422, 80
    %v6819 = vpop.permute.xlu0 %6818
    %v6820 = vsel %vm427, %v6817, 0
    %v6822 = vsel %vm427, %v6819, 0
    %6824 = vmatprep.subr.mxu0 0.0
    %6825 = vmatpush1.xpose.msra.mxu0 %v6822
    %6826 = vmatprep.subr.mxu0 0.0
    %6827 = vmatpush1.xpose.msra.mxu0 0.0
    %6828 = vmatprep.subr.mxu0 0.0
    %6829 = vmatpush1.xpose.msra.mxu0 0.0
    %6830 = vmatprep.subr.mxu0 0.0
    %6831 = vmatpush1.xpose.msra.mxu0 0.0
    %6832 = vmatprep.subr.mxu0 0.0
    %6833 = vmatpush1.xpose.msra.mxu0 0.0
    %6834 = vmatprep.subr.mxu0 0.0
    %6835 = vmatpush1.xpose.msra.mxu0 0.0
    %6836 = vmatprep.subr.mxu0 0.0
    %6837 = vmatpush1.xpose.msra.mxu0 0.0
    %6838 = vmatprep.subr.mxu0 0.0
    %6839 = vmatpush1.xpose.msra.mxu0 0.0
    %6840 = vmatprep.subr.mxu0 0.0
    %6841 = vmatpush1.xpose.msra.mxu0 0.0
    %6842 = vmatprep.subr.mxu0 0.0
    %6843 = vmatpush1.xpose.msra.mxu0 0.0
    %6844 = vmatprep.subr.mxu0 0.0
    %6845 = vmatpush1.xpose.msra.mxu0 0.0
    %6846 = vmatprep.subr.mxu0 0.0
    %6847 = vmatpush1.xpose.msra.mxu0 0.0
    %6848 = vmatprep.subr.mxu0 0.0
    %6849 = vmatpush1.xpose.msra.mxu0 0.0
    %6850 = vmatprep.subr.mxu0 0.0
    %6851 = vmatpush1.xpose.msra.mxu0 0.0
    %6852 = vmatprep.subr.mxu0 0.0
    %6853 = vmatpush1.xpose.msra.mxu0 0.0
    %6854 = vmatprep.subr.mxu0 0.0
    %6855 = vmatpush1.xpose.msra.mxu0 0.0
    %6856 = vmatprep.subr.mxu0 0.0
    %6857 = vmatpush1.xpose.msra.mxu0 0.0
    %6858 = vmatprep.subr.mxu0 0.0
    %6859 = vmatpush1.xpose.msra.mxu0 0.0
    %6860 = vmatprep.subr.mxu0 0.0
    %6861 = vmatpush1.xpose.msra.mxu0 0.0
    %6862 = vmatprep.subr.mxu0 0.0
    %6863 = vmatpush1.xpose.msra.mxu0 0.0
    %6864 = vmatprep.subr.mxu0 0.0
    %6865 = vmatpush1.xpose.msra.mxu0 0.0
    %6866 = vmatprep.subr.mxu0 0.0
    %6867 = vmatpush1.xpose.msra.mxu0 0.0
    %6868 = vmatprep.subr.mxu0 0.0
    %6869 = vmatpush1.xpose.msra.mxu0 0.0
    %6870 = vmatprep.subr.mxu0 0.0
    %6871 = vmatpush1.xpose.msra.mxu0 0.0
    %6872 = vmatprep.subr.mxu0 0.0
    %6873 = vmatpush1.xpose.msra.mxu0 0.0
    %6874 = vmatprep.subr.mxu0 0.0
    %6875 = vmatpush1.xpose.msra.mxu0 0.0
    %6876 = vmatprep.subr.mxu0 0.0
    %6877 = vmatpush1.xpose.msra.mxu0 0.0
    %6878 = vmatprep.subr.mxu0 0.0
    %6879 = vmatpush1.xpose.msra.mxu0 0.0
    %6880 = vmatprep.subr.mxu0 0.0
    %6881 = vmatpush1.xpose.msra.mxu0 0.0
    %6882 = vmatprep.subr.mxu0 0.0
    %6883 = vmatpush1.xpose.msra.mxu0 0.0
    %6884 = vmatprep.subr.mxu0 0.0
    %6885 = vmatpush1.xpose.msra.mxu0 0.0
    %6886 = vmatprep.subr.mxu0 0.0
    %6887 = vmatpush1.xpose.msra.mxu0 0.0
    %6888 = vmatprep.mubr.f32.mxu0 0.0
    %6889 = vmatmul.mubr.f32.gmra.mrb[0].mxu0 %v6820
    %v6890 = vpop.f32.mrb[0].mxu0
    %v6891 = vadd.f32 0.0, %v6890
    %v6892 = vpop.f32.mrb[0].mxu0
    %6893 = vdwg.mxu0
    %6894 = vrot.lane.b32.xlu0 %v423, 112
    %v6895 = vpop.permute.xlu0 %6894
    %6896 = vrot.lane.b32.xlu0 %v423, 80
    %v6897 = vpop.permute.xlu0 %6896
    %v6898 = vsel %vm427, %v6895, 0
    %v6900 = vsel %vm427, %v6897, 0
    %6902 = vmatprep.subr.mxu0 0.0
    %6903 = vmatpush1.xpose.msra.mxu0 %v6900
    %6904 = vmatprep.subr.mxu0 0.0
    %6905 = vmatpush1.xpose.msra.mxu0 0.0
    %6906 = vmatprep.subr.mxu0 0.0
    %6907 = vmatpush1.xpose.msra.mxu0 0.0
    %6908 = vmatprep.subr.mxu0 0.0
    %6909 = vmatpush1.xpose.msra.mxu0 0.0
    %6910 = vmatprep.subr.mxu0 0.0
    %6911 = vmatpush1.xpose.msra.mxu0 0.0
    %6912 = vmatprep.subr.mxu0 0.0
    %6913 = vmatpush1.xpose.msra.mxu0 0.0
    %6914 = vmatprep.subr.mxu0 0.0
    %6915 = vmatpush1.xpose.msra.mxu0 0.0
    %6916 = vmatprep.subr.mxu0 0.0
    %6917 = vmatpush1.xpose.msra.mxu0 0.0
    %6918 = vmatprep.subr.mxu0 0.0
    %6919 = vmatpush1.xpose.msra.mxu0 0.0
    %6920 = vmatprep.subr.mxu0 0.0
    %6921 = vmatpush1.xpose.msra.mxu0 0.0
    %6922 = vmatprep.subr.mxu0 0.0
    %6923 = vmatpush1.xpose.msra.mxu0 0.0
    %6924 = vmatprep.subr.mxu0 0.0
    %6925 = vmatpush1.xpose.msra.mxu0 0.0
    %6926 = vmatprep.subr.mxu0 0.0
    %6927 = vmatpush1.xpose.msra.mxu0 0.0
    %6928 = vmatprep.subr.mxu0 0.0
    %6929 = vmatpush1.xpose.msra.mxu0 0.0
    %6930 = vmatprep.subr.mxu0 0.0
    %6931 = vmatpush1.xpose.msra.mxu0 0.0
    %6932 = vmatprep.subr.mxu0 0.0
    %6933 = vmatpush1.xpose.msra.mxu0 0.0
    %6934 = vmatprep.subr.mxu0 0.0
    %6935 = vmatpush1.xpose.msra.mxu0 0.0
    %6936 = vmatprep.subr.mxu0 0.0
    %6937 = vmatpush1.xpose.msra.mxu0 0.0
    %6938 = vmatprep.subr.mxu0 0.0
    %6939 = vmatpush1.xpose.msra.mxu0 0.0
    %6940 = vmatprep.subr.mxu0 0.0
    %6941 = vmatpush1.xpose.msra.mxu0 0.0
    %6942 = vmatprep.subr.mxu0 0.0
    %6943 = vmatpush1.xpose.msra.mxu0 0.0
    %6944 = vmatprep.subr.mxu0 0.0
    %6945 = vmatpush1.xpose.msra.mxu0 0.0
    %6946 = vmatprep.subr.mxu0 0.0
    %6947 = vmatpush1.xpose.msra.mxu0 0.0
    %6948 = vmatprep.subr.mxu0 0.0
    %6949 = vmatpush1.xpose.msra.mxu0 0.0
    %6950 = vmatprep.subr.mxu0 0.0
    %6951 = vmatpush1.xpose.msra.mxu0 0.0
    %6952 = vmatprep.subr.mxu0 0.0
    %6953 = vmatpush1.xpose.msra.mxu0 0.0
    %6954 = vmatprep.subr.mxu0 0.0
    %6955 = vmatpush1.xpose.msra.mxu0 0.0
    %6956 = vmatprep.subr.mxu0 0.0
    %6957 = vmatpush1.xpose.msra.mxu0 0.0
    %6958 = vmatprep.subr.mxu0 0.0
    %6959 = vmatpush1.xpose.msra.mxu0 0.0
    %6960 = vmatprep.subr.mxu0 0.0
    %6961 = vmatpush1.xpose.msra.mxu0 0.0
    %6962 = vmatprep.subr.mxu0 0.0
    %6963 = vmatpush1.xpose.msra.mxu0 0.0
    %6964 = vmatprep.subr.mxu0 0.0
    %6965 = vmatpush1.xpose.msra.mxu0 0.0
    %6966 = vmatprep.mubr.f32.mxu0 0.0
    %6967 = vmatmul.mubr.f32.gmra.mrb[0].mxu0 %v6898
    %v6968 = vpop.f32.mrb[0].mxu0
    %v6969 = vadd.f32 0.0, %v6968
    %v6970 = vpop.f32.mrb[0].mxu0
    %6971 = vdwg.mxu0
    %v6972 = vsel %vm1657, %v5799, -inf
    %6973 = vmax.xlane.f32.xlu0 %v6972
    %v6974 = vpop.xlane.xlu0 %6973
    %v6975 = vsel %vm1657, %v5877, -inf
    %6976 = vmax.xlane.f32.xlu0 %v6975
    %v6977 = vpop.xlane.xlu0 %6976
    %v6978 = vsel %vm1657, %v5955, -inf
    %6979 = vmax.xlane.f32.xlu0 %v6978
    %v6980 = vpop.xlane.xlu0 %6979
    %v6981 = vsel %vm1657, %v6033, -inf
    %6982 = vmax.xlane.f32.xlu0 %v6981
    %v6983 = vpop.xlane.xlu0 %6982
    %v6984 = vsel %vm1657, %v6111, -inf
    %6985 = vmax.xlane.f32.xlu0 %v6984
    %v6986 = vpop.xlane.xlu0 %6985
    %v6987 = vsel %vm1657, %v6189, -inf
    %6988 = vmax.xlane.f32.xlu0 %v6987
    %v6989 = vpop.xlane.xlu0 %6988
    %v6990 = vsel %vm1657, %v6267, -inf
    %6991 = vmax.xlane.f32.xlu0 %v6990
    %v6992 = vpop.xlane.xlu0 %6991
    %v6993 = vsel %vm1657, %v6345, -inf
    %6994 = vmax.xlane.f32.xlu0 %v6993
    %v6995 = vpop.xlane.xlu0 %6994
    %v6996 = vsel %vm1657, %v6423, -inf
    %6997 = vmax.xlane.f32.xlu0 %v6996
    %v6998 = vpop.xlane.xlu0 %6997
    %v6999 = vsel %vm1657, %v6501, -inf
    %7000 = vmax.xlane.f32.xlu0 %v6999
    %v7001 = vpop.xlane.xlu0 %7000
    %v7002 = vsel %vm1657, %v6579, -inf
    %7003 = vmax.xlane.f32.xlu0 %v7002
    %v7004 = vpop.xlane.xlu0 %7003
    %v7005 = vsel %vm1657, %v6657, -inf
    %7006 = vmax.xlane.f32.xlu0 %v7005
    %v7007 = vpop.xlane.xlu0 %7006
    %v7008 = vsel %vm1657, %v6735, -inf
    %7009 = vmax.xlane.f32.xlu0 %v7008
    %v7010 = vpop.xlane.xlu0 %7009
    %v7011 = vsel %vm1657, %v6813, -inf
    %7012 = vmax.xlane.f32.xlu0 %v7011
    %v7013 = vpop.xlane.xlu0 %7012
    %v7014 = vsel %vm1657, %v6891, -inf
    %7015 = vmax.xlane.f32.xlu0 %v7014
    %v7016 = vpop.xlane.xlu0 %7015
    %v7017 = vsel %vm1657, %v6969, -inf
    %7018 = vmax.xlane.f32.xlu0 %v7017
    %v7019 = vpop.xlane.xlu0 %7018
    %v7020 = vsub.f32 %v5799, %v6974
    %v7021 = vsub.f32 %v5877, %v6977
    %v7022 = vsub.f32 %v5955, %v6980
    %v7023 = vsub.f32 %v6033, %v6983
    %v7024 = vsub.f32 %v6111, %v6986
    %v7025 = vsub.f32 %v6189, %v6989
    %v7026 = vsub.f32 %v6267, %v6992
    %v7027 = vsub.f32 %v6345, %v6995
    %v7028 = vsub.f32 %v6423, %v6998
    %v7029 = vsub.f32 %v6501, %v7001
    %v7030 = vsub.f32 %v6579, %v7004
    %v7031 = vsub.f32 %v6657, %v7007
    %v7032 = vsub.f32 %v6735, %v7010
    %v7033 = vsub.f32 %v6813, %v7013
    %v7034 = vsub.f32 %v6891, %v7016
    %v7035 = vsub.f32 %v6969, %v7019
    %v7036 = vmul.f32 %v7020, 1.442695
    %v7037 = vpow.pop %v7036
    %v7038 = vmul.f32 %v7021, 1.442695
    %v7039 = vpow.pop %v7038
    %v7040 = vmul.f32 %v7022, 1.442695
    %v7041 = vpow.pop %v7040
    %v7042 = vmul.f32 %v7023, 1.442695
    %v7043 = vpow.pop %v7042
    %v7044 = vmul.f32 %v7024, 1.442695
    %v7045 = vpow.pop %v7044
    %v7046 = vmul.f32 %v7025, 1.442695
    %v7047 = vpow.pop %v7046
    %v7048 = vmul.f32 %v7026, 1.442695
    %v7049 = vpow.pop %v7048
    %v7050 = vmul.f32 %v7027, 1.442695
    %v7051 = vpow.pop %v7050
    %v7052 = vmul.f32 %v7028, 1.442695
    %v7053 = vpow.pop %v7052
    %v7054 = vmul.f32 %v7029, 1.442695
    %v7055 = vpow.pop %v7054
    %v7056 = vmul.f32 %v7030, 1.442695
    %v7057 = vpow.pop %v7056
    %v7058 = vmul.f32 %v7031, 1.442695
    %v7059 = vpow.pop %v7058
    %v7060 = vmul.f32 %v7032, 1.442695
    %v7061 = vpow.pop %v7060
    %v7062 = vmul.f32 %v7033, 1.442695
    %v7063 = vpow.pop %v7062
    %v7064 = vmul.f32 %v7034, 1.442695
    %v7065 = vpow.pop %v7064
    %v7066 = vmul.f32 %v7035, 1.442695
    %v7067 = vpow.pop %v7066
    %v7068 = vsel %vm1657, %v7037, 0.0
    %7069 = vadd.xlane.f32.xlu0 %v7068
    %v7070 = vpop.xlane.xlu0 %7069
    %v7071 = vsel %vm1657, %v7039, 0.0
    %7072 = vadd.xlane.f32.xlu0 %v7071
    %v7073 = vpop.xlane.xlu0 %7072
    %v7074 = vsel %vm1657, %v7041, 0.0
    %7075 = vadd.xlane.f32.xlu0 %v7074
    %v7076 = vpop.xlane.xlu0 %7075
    %v7077 = vsel %vm1657, %v7043, 0.0
    %7078 = vadd.xlane.f32.xlu0 %v7077
    %v7079 = vpop.xlane.xlu0 %7078
    %v7080 = vsel %vm1657, %v7045, 0.0
    %7081 = vadd.xlane.f32.xlu0 %v7080
    %v7082 = vpop.xlane.xlu0 %7081
    %v7083 = vsel %vm1657, %v7047, 0.0
    %7084 = vadd.xlane.f32.xlu0 %v7083
    %v7085 = vpop.xlane.xlu0 %7084
    %v7086 = vsel %vm1657, %v7049, 0.0
    %7087 = vadd.xlane.f32.xlu0 %v7086
    %v7088 = vpop.xlane.xlu0 %7087
    %v7089 = vsel %vm1657, %v7051, 0.0
    %7090 = vadd.xlane.f32.xlu0 %v7089
    %v7091 = vpop.xlane.xlu0 %7090
    %v7092 = vsel %vm1657, %v7053, 0.0
    %7093 = vadd.xlane.f32.xlu0 %v7092
    %v7094 = vpop.xlane.xlu0 %7093
    %v7095 = vsel %vm1657, %v7055, 0.0
    %7096 = vadd.xlane.f32.xlu0 %v7095
    %v7097 = vpop.xlane.xlu0 %7096
    %v7098 = vsel %vm1657, %v7057, 0.0
    %7099 = vadd.xlane.f32.xlu0 %v7098
    %v7100 = vpop.xlane.xlu0 %7099
    %v7101 = vsel %vm1657, %v7059, 0.0
    %7102 = vadd.xlane.f32.xlu0 %v7101
    %v7103 = vpop.xlane.xlu0 %7102
    %v7104 = vsel %vm1657, %v7061, 0.0
    %7105 = vadd.xlane.f32.xlu0 %v7104
    %v7106 = vpop.xlane.xlu0 %7105
    %v7107 = vsel %vm1657, %v7063, 0.0
    %7108 = vadd.xlane.f32.xlu0 %v7107
    %v7109 = vpop.xlane.xlu0 %7108
    %v7110 = vsel %vm1657, %v7065, 0.0
    %7111 = vadd.xlane.f32.xlu0 %v7110
    %v7112 = vpop.xlane.xlu0 %7111
    %v7113 = vsel %vm1657, %v7067, 0.0
    %7114 = vadd.xlane.f32.xlu0 %v7113
    %v7115 = vpop.xlane.xlu0 %7114
    %v7116 = vrcp.pop %v7070
    %v7117 = vrcp.pop %v7073
    %v7118 = vrcp.pop %v7076
    %v7119 = vrcp.pop %v7079
    %v7120 = vrcp.pop %v7082
    %v7121 = vrcp.pop %v7085
    %v7122 = vrcp.pop %v7088
    %v7123 = vrcp.pop %v7091
    %v7124 = vrcp.pop %v7094
    %v7125 = vrcp.pop %v7097
    %v7126 = vrcp.pop %v7100
    %v7127 = vrcp.pop %v7103
    %v7128 = vrcp.pop %v7106
    %v7129 = vrcp.pop %v7109
    %v7130 = vrcp.pop %v7112
    %v7131 = vrcp.pop %v7115
    %v7132 = vmul.f32 %v7037, %v7116
    %v7133 = vmul.f32 %v7039, %v7117
    %v7134 = vmul.f32 %v7041, %v7118
    %v7135 = vmul.f32 %v7043, %v7119
    %v7136 = vmul.f32 %v7045, %v7120
    %v7137 = vmul.f32 %v7047, %v7121
    %v7138 = vmul.f32 %v7049, %v7122
    %v7139 = vmul.f32 %v7051, %v7123
    %v7140 = vmul.f32 %v7053, %v7124
    %v7141 = vmul.f32 %v7055, %v7125
    %v7142 = vmul.f32 %v7057, %v7126
    %v7143 = vmul.f32 %v7059, %v7127
    %v7144 = vmul.f32 %v7061, %v7128
    %v7145 = vmul.f32 %v7063, %v7129
    %v7146 = vmul.f32 %v7065, %v7130
    %v7147 = vmul.f32 %v7067, %v7131
    %7148 = vrot.lane.b32.xlu0 %v408, 48
    %v7149 = vpop.permute.xlu0 %7148
    %v7151 = vsel %vm1836, %v7132, 0
    %v7153 = vsel %vm1840, %v7149, 0
    %7155 = vmatprep.subr.mxu0 0.0
    %7156 = vmatpush1.msra.mxu0 %v7153
    %7157 = vmatprep.subr.mxu0 0.0
    %7158 = vmatpush1.msra.mxu0 0.0
    %7159 = vmatprep.subr.mxu0 0.0
    %7160 = vmatpush1.msra.mxu0 0.0
    %7161 = vmatprep.subr.mxu0 0.0
    %7162 = vmatpush1.msra.mxu0 0.0
    %7163 = vmatprep.subr.mxu0 0.0
    %7164 = vmatpush1.msra.mxu0 0.0
    %7165 = vmatprep.subr.mxu0 0.0
    %7166 = vmatpush1.msra.mxu0 0.0
    %7167 = vmatprep.subr.mxu0 0.0
    %7168 = vmatpush1.msra.mxu0 0.0
    %7169 = vmatprep.subr.mxu0 0.0
    %7170 = vmatpush1.msra.mxu0 0.0
    %7171 = vmatprep.subr.mxu0 0.0
    %7172 = vmatpush1.msra.mxu0 0.0
    %7173 = vmatprep.subr.mxu0 0.0
    %7174 = vmatpush1.msra.mxu0 0.0
    %7175 = vmatprep.subr.mxu0 0.0
    %7176 = vmatpush1.msra.mxu0 0.0
    %7177 = vmatprep.subr.mxu0 0.0
    %7178 = vmatpush1.msra.mxu0 0.0
    %7179 = vmatprep.subr.mxu0 0.0
    %7180 = vmatpush1.msra.mxu0 0.0
    %7181 = vmatprep.subr.mxu0 0.0
    %7182 = vmatpush1.msra.mxu0 0.0
    %7183 = vmatprep.subr.mxu0 0.0
    %7184 = vmatpush1.msra.mxu0 0.0
    %7185 = vmatprep.subr.mxu0 0.0
    %7186 = vmatpush1.msra.mxu0 0.0
    %7187 = vmatprep.subr.mxu0 0.0
    %7188 = vmatpush1.msra.mxu0 0.0
    %7189 = vmatprep.subr.mxu0 0.0
    %7190 = vmatpush1.msra.mxu0 0.0
    %7191 = vmatprep.subr.mxu0 0.0
    %7192 = vmatpush1.msra.mxu0 0.0
    %7193 = vmatprep.subr.mxu0 0.0
    %7194 = vmatpush1.msra.mxu0 0.0
    %7195 = vmatprep.subr.mxu0 0.0
    %7196 = vmatpush1.msra.mxu0 0.0
    %7197 = vmatprep.subr.mxu0 0.0
    %7198 = vmatpush1.msra.mxu0 0.0
    %7199 = vmatprep.subr.mxu0 0.0
    %7200 = vmatpush1.msra.mxu0 0.0
    %7201 = vmatprep.subr.mxu0 0.0
    %7202 = vmatpush1.msra.mxu0 0.0
    %7203 = vmatprep.subr.mxu0 0.0
    %7204 = vmatpush1.msra.mxu0 0.0
    %7205 = vmatprep.subr.mxu0 0.0
    %7206 = vmatpush1.msra.mxu0 0.0
    %7207 = vmatprep.subr.mxu0 0.0
    %7208 = vmatpush1.msra.mxu0 0.0
    %7209 = vmatprep.subr.mxu0 0.0
    %7210 = vmatpush1.msra.mxu0 0.0
    %7211 = vmatprep.subr.mxu0 0.0
    %7212 = vmatpush1.msra.mxu0 0.0
    %7213 = vmatprep.subr.mxu0 0.0
    %7214 = vmatpush1.msra.mxu0 0.0
    %7215 = vmatprep.subr.mxu0 0.0
    %7216 = vmatpush1.msra.mxu0 0.0
    %7217 = vmatprep.subr.mxu0 0.0
    %7218 = vmatpush1.msra.mxu0 0.0
    %7219 = vmatprep.mubr.f32.mxu0 0.0
    %7220 = vmatmul.mubr.f32.gmra.mrb[0].mxu0 %v7151
    %v7221 = vpop.f32.mrb[0].mxu0
    %v7222 = vadd.f32 0.0, %v7221
    %v7223 = vpop.f32.mrb[0].mxu0
    %7224 = vdwg.mxu0
    %7225 = vrot.lane.b32.xlu0 %v409, 48
    %v7226 = vpop.permute.xlu0 %7225
    %v7228 = vsel %vm1836, %v7133, 0
    %v7230 = vsel %vm1840, %v7226, 0
    %7232 = vmatprep.subr.mxu0 0.0
    %7233 = vmatpush1.msra.mxu0 %v7230
    %7234 = vmatprep.subr.mxu0 0.0
    %7235 = vmatpush1.msra.mxu0 0.0
    %7236 = vmatprep.subr.mxu0 0.0
    %7237 = vmatpush1.msra.mxu0 0.0
    %7238 = vmatprep.subr.mxu0 0.0
    %7239 = vmatpush1.msra.mxu0 0.0
    %7240 = vmatprep.subr.mxu0 0.0
    %7241 = vmatpush1.msra.mxu0 0.0
    %7242 = vmatprep.subr.mxu0 0.0
    %7243 = vmatpush1.msra.mxu0 0.0
    %7244 = vmatprep.subr.mxu0 0.0
    %7245 = vmatpush1.msra.mxu0 0.0
    %7246 = vmatprep.subr.mxu0 0.0
    %7247 = vmatpush1.msra.mxu0 0.0
    %7248 = vmatprep.subr.mxu0 0.0
    %7249 = vmatpush1.msra.mxu0 0.0
    %7250 = vmatprep.subr.mxu0 0.0
    %7251 = vmatpush1.msra.mxu0 0.0
    %7252 = vmatprep.subr.mxu0 0.0
    %7253 = vmatpush1.msra.mxu0 0.0
    %7254 = vmatprep.subr.mxu0 0.0
    %7255 = vmatpush1.msra.mxu0 0.0
    %7256 = vmatprep.subr.mxu0 0.0
    %7257 = vmatpush1.msra.mxu0 0.0
    %7258 = vmatprep.subr.mxu0 0.0
    %7259 = vmatpush1.msra.mxu0 0.0
    %7260 = vmatprep.subr.mxu0 0.0
    %7261 = vmatpush1.msra.mxu0 0.0
    %7262 = vmatprep.subr.mxu0 0.0
    %7263 = vmatpush1.msra.mxu0 0.0
    %7264 = vmatprep.subr.mxu0 0.0
    %7265 = vmatpush1.msra.mxu0 0.0
    %7266 = vmatprep.subr.mxu0 0.0
    %7267 = vmatpush1.msra.mxu0 0.0
    %7268 = vmatprep.subr.mxu0 0.0
    %7269 = vmatpush1.msra.mxu0 0.0
    %7270 = vmatprep.subr.mxu0 0.0
    %7271 = vmatpush1.msra.mxu0 0.0
    %7272 = vmatprep.subr.mxu0 0.0
    %7273 = vmatpush1.msra.mxu0 0.0
    %7274 = vmatprep.subr.mxu0 0.0
    %7275 = vmatpush1.msra.mxu0 0.0
    %7276 = vmatprep.subr.mxu0 0.0
    %7277 = vmatpush1.msra.mxu0 0.0
    %7278 = vmatprep.subr.mxu0 0.0
    %7279 = vmatpush1.msra.mxu0 0.0
    %7280 = vmatprep.subr.mxu0 0.0
    %7281 = vmatpush1.msra.mxu0 0.0
    %7282 = vmatprep.subr.mxu0 0.0
    %7283 = vmatpush1.msra.mxu0 0.0
    %7284 = vmatprep.subr.mxu0 0.0
    %7285 = vmatpush1.msra.mxu0 0.0
    %7286 = vmatprep.subr.mxu0 0.0
    %7287 = vmatpush1.msra.mxu0 0.0
    %7288 = vmatprep.subr.mxu0 0.0
    %7289 = vmatpush1.msra.mxu0 0.0
    %7290 = vmatprep.subr.mxu0 0.0
    %7291 = vmatpush1.msra.mxu0 0.0
    %7292 = vmatprep.subr.mxu0 0.0
    %7293 = vmatpush1.msra.mxu0 0.0
    %7294 = vmatprep.subr.mxu0 0.0
    %7295 = vmatpush1.msra.mxu0 0.0
    %7296 = vmatprep.mubr.f32.mxu0 0.0
    %7297 = vmatmul.mubr.f32.gmra.mrb[0].mxu0 %v7228
    %v7298 = vpop.f32.mrb[0].mxu0
    %v7299 = vadd.f32 0.0, %v7298
    %v7300 = vpop.f32.mrb[0].mxu0
    %7301 = vdwg.mxu0
    %7302 = vrot.lane.b32.xlu0 %v410, 48
    %v7303 = vpop.permute.xlu0 %7302
    %v7305 = vsel %vm1836, %v7134, 0
    %v7307 = vsel %vm1840, %v7303, 0
    %7309 = vmatprep.subr.mxu0 0.0
    %7310 = vmatpush1.msra.mxu0 %v7307
    %7311 = vmatprep.subr.mxu0 0.0
    %7312 = vmatpush1.msra.mxu0 0.0
    %7313 = vmatprep.subr.mxu0 0.0
    %7314 = vmatpush1.msra.mxu0 0.0
    %7315 = vmatprep.subr.mxu0 0.0
    %7316 = vmatpush1.msra.mxu0 0.0
    %7317 = vmatprep.subr.mxu0 0.0
    %7318 = vmatpush1.msra.mxu0 0.0
    %7319 = vmatprep.subr.mxu0 0.0
    %7320 = vmatpush1.msra.mxu0 0.0
    %7321 = vmatprep.subr.mxu0 0.0
    %7322 = vmatpush1.msra.mxu0 0.0
    %7323 = vmatprep.subr.mxu0 0.0
    %7324 = vmatpush1.msra.mxu0 0.0
    %7325 = vmatprep.subr.mxu0 0.0
    %7326 = vmatpush1.msra.mxu0 0.0
    %7327 = vmatprep.subr.mxu0 0.0
    %7328 = vmatpush1.msra.mxu0 0.0
    %7329 = vmatprep.subr.mxu0 0.0
    %7330 = vmatpush1.msra.mxu0 0.0
    %7331 = vmatprep.subr.mxu0 0.0
    %7332 = vmatpush1.msra.mxu0 0.0
    %7333 = vmatprep.subr.mxu0 0.0
    %7334 = vmatpush1.msra.mxu0 0.0
    %7335 = vmatprep.subr.mxu0 0.0
    %7336 = vmatpush1.msra.mxu0 0.0
    %7337 = vmatprep.subr.mxu0 0.0
    %7338 = vmatpush1.msra.mxu0 0.0
    %7339 = vmatprep.subr.mxu0 0.0
    %7340 = vmatpush1.msra.mxu0 0.0
    %7341 = vmatprep.subr.mxu0 0.0
    %7342 = vmatpush1.msra.mxu0 0.0
    %7343 = vmatprep.subr.mxu0 0.0
    %7344 = vmatpush1.msra.mxu0 0.0
    %7345 = vmatprep.subr.mxu0 0.0
    %7346 = vmatpush1.msra.mxu0 0.0
    %7347 = vmatprep.subr.mxu0 0.0
    %7348 = vmatpush1.msra.mxu0 0.0
    %7349 = vmatprep.subr.mxu0 0.0
    %7350 = vmatpush1.msra.mxu0 0.0
    %7351 = vmatprep.subr.mxu0 0.0
    %7352 = vmatpush1.msra.mxu0 0.0
    %7353 = vmatprep.subr.mxu0 0.0
    %7354 = vmatpush1.msra.mxu0 0.0
    %7355 = vmatprep.subr.mxu0 0.0
    %7356 = vmatpush1.msra.mxu0 0.0
    %7357 = vmatprep.subr.mxu0 0.0
    %7358 = vmatpush1.msra.mxu0 0.0
    %7359 = vmatprep.subr.mxu0 0.0
    %7360 = vmatpush1.msra.mxu0 0.0
    %7361 = vmatprep.subr.mxu0 0.0
    %7362 = vmatpush1.msra.mxu0 0.0
    %7363 = vmatprep.subr.mxu0 0.0
    %7364 = vmatpush1.msra.mxu0 0.0
    %7365 = vmatprep.subr.mxu0 0.0
    %7366 = vmatpush1.msra.mxu0 0.0
    %7367 = vmatprep.subr.mxu0 0.0
    %7368 = vmatpush1.msra.mxu0 0.0
    %7369 = vmatprep.subr.mxu0 0.0
    %7370 = vmatpush1.msra.mxu0 0.0
    %7371 = vmatprep.subr.mxu0 0.0
    %7372 = vmatpush1.msra.mxu0 0.0
    %7373 = vmatprep.mubr.f32.mxu0 0.0
    %7374 = vmatmul.mubr.f32.gmra.mrb[0].mxu0 %v7305
    %v7375 = vpop.f32.mrb[0].mxu0
    %v7376 = vadd.f32 0.0, %v7375
    %v7377 = vpop.f32.mrb[0].mxu0
    %7378 = vdwg.mxu0
    %7379 = vrot.lane.b32.xlu0 %v411, 48
    %v7380 = vpop.permute.xlu0 %7379
    %v7382 = vsel %vm1836, %v7135, 0
    %v7384 = vsel %vm1840, %v7380, 0
    %7386 = vmatprep.subr.mxu0 0.0
    %7387 = vmatpush1.msra.mxu0 %v7384
    %7388 = vmatprep.subr.mxu0 0.0
    %7389 = vmatpush1.msra.mxu0 0.0
    %7390 = vmatprep.subr.mxu0 0.0
    %7391 = vmatpush1.msra.mxu0 0.0
    %7392 = vmatprep.subr.mxu0 0.0
    %7393 = vmatpush1.msra.mxu0 0.0
    %7394 = vmatprep.subr.mxu0 0.0
    %7395 = vmatpush1.msra.mxu0 0.0
    %7396 = vmatprep.subr.mxu0 0.0
    %7397 = vmatpush1.msra.mxu0 0.0
    %7398 = vmatprep.subr.mxu0 0.0
    %7399 = vmatpush1.msra.mxu0 0.0
    %7400 = vmatprep.subr.mxu0 0.0
    %7401 = vmatpush1.msra.mxu0 0.0
    %7402 = vmatprep.subr.mxu0 0.0
    %7403 = vmatpush1.msra.mxu0 0.0
    %7404 = vmatprep.subr.mxu0 0.0
    %7405 = vmatpush1.msra.mxu0 0.0
    %7406 = vmatprep.subr.mxu0 0.0
    %7407 = vmatpush1.msra.mxu0 0.0
    %7408 = vmatprep.subr.mxu0 0.0
    %7409 = vmatpush1.msra.mxu0 0.0
    %7410 = vmatprep.subr.mxu0 0.0
    %7411 = vmatpush1.msra.mxu0 0.0
    %7412 = vmatprep.subr.mxu0 0.0
    %7413 = vmatpush1.msra.mxu0 0.0
    %7414 = vmatprep.subr.mxu0 0.0
    %7415 = vmatpush1.msra.mxu0 0.0
    %7416 = vmatprep.subr.mxu0 0.0
    %7417 = vmatpush1.msra.mxu0 0.0
    %7418 = vmatprep.subr.mxu0 0.0
    %7419 = vmatpush1.msra.mxu0 0.0
    %7420 = vmatprep.subr.mxu0 0.0
    %7421 = vmatpush1.msra.mxu0 0.0
    %7422 = vmatprep.subr.mxu0 0.0
    %7423 = vmatpush1.msra.mxu0 0.0
    %7424 = vmatprep.subr.mxu0 0.0
    %7425 = vmatpush1.msra.mxu0 0.0
    %7426 = vmatprep.subr.mxu0 0.0
    %7427 = vmatpush1.msra.mxu0 0.0
    %7428 = vmatprep.subr.mxu0 0.0
    %7429 = vmatpush1.msra.mxu0 0.0
    %7430 = vmatprep.subr.mxu0 0.0
    %7431 = vmatpush1.msra.mxu0 0.0
    %7432 = vmatprep.subr.mxu0 0.0
    %7433 = vmatpush1.msra.mxu0 0.0
    %7434 = vmatprep.subr.mxu0 0.0
    %7435 = vmatpush1.msra.mxu0 0.0
    %7436 = vmatprep.subr.mxu0 0.0
    %7437 = vmatpush1.msra.mxu0 0.0
    %7438 = vmatprep.subr.mxu0 0.0
    %7439 = vmatpush1.msra.mxu0 0.0
    %7440 = vmatprep.subr.mxu0 0.0
    %7441 = vmatpush1.msra.mxu0 0.0
    %7442 = vmatprep.subr.mxu0 0.0
    %7443 = vmatpush1.msra.mxu0 0.0
    %7444 = vmatprep.subr.mxu0 0.0
    %7445 = vmatpush1.msra.mxu0 0.0
    %7446 = vmatprep.subr.mxu0 0.0
    %7447 = vmatpush1.msra.mxu0 0.0
    %7448 = vmatprep.subr.mxu0 0.0
    %7449 = vmatpush1.msra.mxu0 0.0
    %7450 = vmatprep.mubr.f32.mxu0 0.0
    %7451 = vmatmul.mubr.f32.gmra.mrb[0].mxu0 %v7382
    %v7452 = vpop.f32.mrb[0].mxu0
    %v7453 = vadd.f32 0.0, %v7452
    %v7454 = vpop.f32.mrb[0].mxu0
    %7455 = vdwg.mxu0
    %7456 = vrot.lane.b32.xlu0 %v412, 48
    %v7457 = vpop.permute.xlu0 %7456
    %v7459 = vsel %vm1836, %v7136, 0
    %v7461 = vsel %vm1840, %v7457, 0
    %7463 = vmatprep.subr.mxu0 0.0
    %7464 = vmatpush1.msra.mxu0 %v7461
    %7465 = vmatprep.subr.mxu0 0.0
    %7466 = vmatpush1.msra.mxu0 0.0
    %7467 = vmatprep.subr.mxu0 0.0
    %7468 = vmatpush1.msra.mxu0 0.0
    %7469 = vmatprep.subr.mxu0 0.0
    %7470 = vmatpush1.msra.mxu0 0.0
    %7471 = vmatprep.subr.mxu0 0.0
    %7472 = vmatpush1.msra.mxu0 0.0
    %7473 = vmatprep.subr.mxu0 0.0
    %7474 = vmatpush1.msra.mxu0 0.0
    %7475 = vmatprep.subr.mxu0 0.0
    %7476 = vmatpush1.msra.mxu0 0.0
    %7477 = vmatprep.subr.mxu0 0.0
    %7478 = vmatpush1.msra.mxu0 0.0
    %7479 = vmatprep.subr.mxu0 0.0
    %7480 = vmatpush1.msra.mxu0 0.0
    %7481 = vmatprep.subr.mxu0 0.0
    %7482 = vmatpush1.msra.mxu0 0.0
    %7483 = vmatprep.subr.mxu0 0.0
    %7484 = vmatpush1.msra.mxu0 0.0
    %7485 = vmatprep.subr.mxu0 0.0
    %7486 = vmatpush1.msra.mxu0 0.0
    %7487 = vmatprep.subr.mxu0 0.0
    %7488 = vmatpush1.msra.mxu0 0.0
    %7489 = vmatprep.subr.mxu0 0.0
    %7490 = vmatpush1.msra.mxu0 0.0
    %7491 = vmatprep.subr.mxu0 0.0
    %7492 = vmatpush1.msra.mxu0 0.0
    %7493 = vmatprep.subr.mxu0 0.0
    %7494 = vmatpush1.msra.mxu0 0.0
    %7495 = vmatprep.subr.mxu0 0.0
    %7496 = vmatpush1.msra.mxu0 0.0
    %7497 = vmatprep.subr.mxu0 0.0
    %7498 = vmatpush1.msra.mxu0 0.0
    %7499 = vmatprep.subr.mxu0 0.0
    %7500 = vmatpush1.msra.mxu0 0.0
    %7501 = vmatprep.subr.mxu0 0.0
    %7502 = vmatpush1.msra.mxu0 0.0
    %7503 = vmatprep.subr.mxu0 0.0
    %7504 = vmatpush1.msra.mxu0 0.0
    %7505 = vmatprep.subr.mxu0 0.0
    %7506 = vmatpush1.msra.mxu0 0.0
    %7507 = vmatprep.subr.mxu0 0.0
    %7508 = vmatpush1.msra.mxu0 0.0
    %7509 = vmatprep.subr.mxu0 0.0
    %7510 = vmatpush1.msra.mxu0 0.0
    %7511 = vmatprep.subr.mxu0 0.0
    %7512 = vmatpush1.msra.mxu0 0.0
    %7513 = vmatprep.subr.mxu0 0.0
    %7514 = vmatpush1.msra.mxu0 0.0
    %7515 = vmatprep.subr.mxu0 0.0
    %7516 = vmatpush1.msra.mxu0 0.0
    %7517 = vmatprep.subr.mxu0 0.0
    %7518 = vmatpush1.msra.mxu0 0.0
    %7519 = vmatprep.subr.mxu0 0.0
    %7520 = vmatpush1.msra.mxu0 0.0
    %7521 = vmatprep.subr.mxu0 0.0
    %7522 = vmatpush1.msra.mxu0 0.0
    %7523 = vmatprep.subr.mxu0 0.0
    %7524 = vmatpush1.msra.mxu0 0.0
    %7525 = vmatprep.subr.mxu0 0.0
    %7526 = vmatpush1.msra.mxu0 0.0
    %7527 = vmatprep.mubr.f32.mxu0 0.0
    %7528 = vmatmul.mubr.f32.gmra.mrb[0].mxu0 %v7459
    %v7529 = vpop.f32.mrb[0].mxu0
    %v7530 = vadd.f32 0.0, %v7529
    %v7531 = vpop.f32.mrb[0].mxu0
    %7532 = vdwg.mxu0
    %7533 = vrot.lane.b32.xlu0 %v413, 48
    %v7534 = vpop.permute.xlu0 %7533
    %v7536 = vsel %vm1836, %v7137, 0
    %v7538 = vsel %vm1840, %v7534, 0
    %7540 = vmatprep.subr.mxu0 0.0
    %7541 = vmatpush1.msra.mxu0 %v7538
    %7542 = vmatprep.subr.mxu0 0.0
    %7543 = vmatpush1.msra.mxu0 0.0
    %7544 = vmatprep.subr.mxu0 0.0
    %7545 = vmatpush1.msra.mxu0 0.0
    %7546 = vmatprep.subr.mxu0 0.0
    %7547 = vmatpush1.msra.mxu0 0.0
    %7548 = vmatprep.subr.mxu0 0.0
    %7549 = vmatpush1.msra.mxu0 0.0
    %7550 = vmatprep.subr.mxu0 0.0
    %7551 = vmatpush1.msra.mxu0 0.0
    %7552 = vmatprep.subr.mxu0 0.0
    %7553 = vmatpush1.msra.mxu0 0.0
    %7554 = vmatprep.subr.mxu0 0.0
    %7555 = vmatpush1.msra.mxu0 0.0
    %7556 = vmatprep.subr.mxu0 0.0
    %7557 = vmatpush1.msra.mxu0 0.0
    %7558 = vmatprep.subr.mxu0 0.0
    %7559 = vmatpush1.msra.mxu0 0.0
    %7560 = vmatprep.subr.mxu0 0.0
    %7561 = vmatpush1.msra.mxu0 0.0
    %7562 = vmatprep.subr.mxu0 0.0
    %7563 = vmatpush1.msra.mxu0 0.0
    %7564 = vmatprep.subr.mxu0 0.0
    %7565 = vmatpush1.msra.mxu0 0.0
    %7566 = vmatprep.subr.mxu0 0.0
    %7567 = vmatpush1.msra.mxu0 0.0
    %7568 = vmatprep.subr.mxu0 0.0
    %7569 = vmatpush1.msra.mxu0 0.0
    %7570 = vmatprep.subr.mxu0 0.0
    %7571 = vmatpush1.msra.mxu0 0.0
    %7572 = vmatprep.subr.mxu0 0.0
    %7573 = vmatpush1.msra.mxu0 0.0
    %7574 = vmatprep.subr.mxu0 0.0
    %7575 = vmatpush1.msra.mxu0 0.0
    %7576 = vmatprep.subr.mxu0 0.0
    %7577 = vmatpush1.msra.mxu0 0.0
    %7578 = vmatprep.subr.mxu0 0.0
    %7579 = vmatpush1.msra.mxu0 0.0
    %7580 = vmatprep.subr.mxu0 0.0
    %7581 = vmatpush1.msra.mxu0 0.0
    %7582 = vmatprep.subr.mxu0 0.0
    %7583 = vmatpush1.msra.mxu0 0.0
    %7584 = vmatprep.subr.mxu0 0.0
    %7585 = vmatpush1.msra.mxu0 0.0
    %7586 = vmatprep.subr.mxu0 0.0
    %7587 = vmatpush1.msra.mxu0 0.0
    %7588 = vmatprep.subr.mxu0 0.0
    %7589 = vmatpush1.msra.mxu0 0.0
    %7590 = vmatprep.subr.mxu0 0.0
    %7591 = vmatpush1.msra.mxu0 0.0
    %7592 = vmatprep.subr.mxu0 0.0
    %7593 = vmatpush1.msra.mxu0 0.0
    %7594 = vmatprep.subr.mxu0 0.0
    %7595 = vmatpush1.msra.mxu0 0.0
    %7596 = vmatprep.subr.mxu0 0.0
    %7597 = vmatpush1.msra.mxu0 0.0
    %7598 = vmatprep.subr.mxu0 0.0
    %7599 = vmatpush1.msra.mxu0 0.0
    %7600 = vmatprep.subr.mxu0 0.0
    %7601 = vmatpush1.msra.mxu0 0.0
    %7602 = vmatprep.subr.mxu0 0.0
    %7603 = vmatpush1.msra.mxu0 0.0
    %7604 = vmatprep.mubr.f32.mxu0 0.0
    %7605 = vmatmul.mubr.f32.gmra.mrb[0].mxu0 %v7536
    %v7606 = vpop.f32.mrb[0].mxu0
    %v7607 = vadd.f32 0.0, %v7606
    %v7608 = vpop.f32.mrb[0].mxu0
    %7609 = vdwg.mxu0
    %7610 = vrot.lane.b32.xlu0 %v414, 48
    %v7611 = vpop.permute.xlu0 %7610
    %v7613 = vsel %vm1836, %v7138, 0
    %v7615 = vsel %vm1840, %v7611, 0
    %7617 = vmatprep.subr.mxu0 0.0
    %7618 = vmatpush1.msra.mxu0 %v7615
    %7619 = vmatprep.subr.mxu0 0.0
    %7620 = vmatpush1.msra.mxu0 0.0
    %7621 = vmatprep.subr.mxu0 0.0
    %7622 = vmatpush1.msra.mxu0 0.0
    %7623 = vmatprep.subr.mxu0 0.0
    %7624 = vmatpush1.msra.mxu0 0.0
    %7625 = vmatprep.subr.mxu0 0.0
    %7626 = vmatpush1.msra.mxu0 0.0
    %7627 = vmatprep.subr.mxu0 0.0
    %7628 = vmatpush1.msra.mxu0 0.0
    %7629 = vmatprep.subr.mxu0 0.0
    %7630 = vmatpush1.msra.mxu0 0.0
    %7631 = vmatprep.subr.mxu0 0.0
    %7632 = vmatpush1.msra.mxu0 0.0
    %7633 = vmatprep.subr.mxu0 0.0
    %7634 = vmatpush1.msra.mxu0 0.0
    %7635 = vmatprep.subr.mxu0 0.0
    %7636 = vmatpush1.msra.mxu0 0.0
    %7637 = vmatprep.subr.mxu0 0.0
    %7638 = vmatpush1.msra.mxu0 0.0
    %7639 = vmatprep.subr.mxu0 0.0
    %7640 = vmatpush1.msra.mxu0 0.0
    %7641 = vmatprep.subr.mxu0 0.0
    %7642 = vmatpush1.msra.mxu0 0.0
    %7643 = vmatprep.subr.mxu0 0.0
    %7644 = vmatpush1.msra.mxu0 0.0
    %7645 = vmatprep.subr.mxu0 0.0
    %7646 = vmatpush1.msra.mxu0 0.0
    %7647 = vmatprep.subr.mxu0 0.0
    %7648 = vmatpush1.msra.mxu0 0.0
    %7649 = vmatprep.subr.mxu0 0.0
    %7650 = vmatpush1.msra.mxu0 0.0
    %7651 = vmatprep.subr.mxu0 0.0
    %7652 = vmatpush1.msra.mxu0 0.0
    %7653 = vmatprep.subr.mxu0 0.0
    %7654 = vmatpush1.msra.mxu0 0.0
    %7655 = vmatprep.subr.mxu0 0.0
    %7656 = vmatpush1.msra.mxu0 0.0
    %7657 = vmatprep.subr.mxu0 0.0
    %7658 = vmatpush1.msra.mxu0 0.0
    %7659 = vmatprep.subr.mxu0 0.0
    %7660 = vmatpush1.msra.mxu0 0.0
    %7661 = vmatprep.subr.mxu0 0.0
    %7662 = vmatpush1.msra.mxu0 0.0
    %7663 = vmatprep.subr.mxu0 0.0
    %7664 = vmatpush1.msra.mxu0 0.0
    %7665 = vmatprep.subr.mxu0 0.0
    %7666 = vmatpush1.msra.mxu0 0.0
    %7667 = vmatprep.subr.mxu0 0.0
    %7668 = vmatpush1.msra.mxu0 0.0
    %7669 = vmatprep.subr.mxu0 0.0
    %7670 = vmatpush1.msra.mxu0 0.0
    %7671 = vmatprep.subr.mxu0 0.0
    %7672 = vmatpush1.msra.mxu0 0.0
    %7673 = vmatprep.subr.mxu0 0.0
    %7674 = vmatpush1.msra.mxu0 0.0
    %7675 = vmatprep.subr.mxu0 0.0
    %7676 = vmatpush1.msra.mxu0 0.0
    %7677 = vmatprep.subr.mxu0 0.0
    %7678 = vmatpush1.msra.mxu0 0.0
    %7679 = vmatprep.subr.mxu0 0.0
    %7680 = vmatpush1.msra.mxu0 0.0
    %7681 = vmatprep.mubr.f32.mxu0 0.0
    %7682 = vmatmul.mubr.f32.gmra.mrb[0].mxu0 %v7613
    %v7683 = vpop.f32.mrb[0].mxu0
    %v7684 = vadd.f32 0.0, %v7683
    %v7685 = vpop.f32.mrb[0].mxu0
    %7686 = vdwg.mxu0
    %7687 = vrot.lane.b32.xlu0 %v415, 48
    %v7688 = vpop.permute.xlu0 %7687
    %v7690 = vsel %vm1836, %v7139, 0
    %v7692 = vsel %vm1840, %v7688, 0
    %7694 = vmatprep.subr.mxu0 0.0
    %7695 = vmatpush1.msra.mxu0 %v7692
    %7696 = vmatprep.subr.mxu0 0.0
    %7697 = vmatpush1.msra.mxu0 0.0
    %7698 = vmatprep.subr.mxu0 0.0
    %7699 = vmatpush1.msra.mxu0 0.0
    %7700 = vmatprep.subr.mxu0 0.0
    %7701 = vmatpush1.msra.mxu0 0.0
    %7702 = vmatprep.subr.mxu0 0.0
    %7703 = vmatpush1.msra.mxu0 0.0
    %7704 = vmatprep.subr.mxu0 0.0
    %7705 = vmatpush1.msra.mxu0 0.0
    %7706 = vmatprep.subr.mxu0 0.0
    %7707 = vmatpush1.msra.mxu0 0.0
    %7708 = vmatprep.subr.mxu0 0.0
    %7709 = vmatpush1.msra.mxu0 0.0
    %7710 = vmatprep.subr.mxu0 0.0
    %7711 = vmatpush1.msra.mxu0 0.0
    %7712 = vmatprep.subr.mxu0 0.0
    %7713 = vmatpush1.msra.mxu0 0.0
    %7714 = vmatprep.subr.mxu0 0.0
    %7715 = vmatpush1.msra.mxu0 0.0
    %7716 = vmatprep.subr.mxu0 0.0
    %7717 = vmatpush1.msra.mxu0 0.0
    %7718 = vmatprep.subr.mxu0 0.0
    %7719 = vmatpush1.msra.mxu0 0.0
    %7720 = vmatprep.subr.mxu0 0.0
    %7721 = vmatpush1.msra.mxu0 0.0
    %7722 = vmatprep.subr.mxu0 0.0
    %7723 = vmatpush1.msra.mxu0 0.0
    %7724 = vmatprep.subr.mxu0 0.0
    %7725 = vmatpush1.msra.mxu0 0.0
    %7726 = vmatprep.subr.mxu0 0.0
    %7727 = vmatpush1.msra.mxu0 0.0
    %7728 = vmatprep.subr.mxu0 0.0
    %7729 = vmatpush1.msra.mxu0 0.0
    %7730 = vmatprep.subr.mxu0 0.0
    %7731 = vmatpush1.msra.mxu0 0.0
    %7732 = vmatprep.subr.mxu0 0.0
    %7733 = vmatpush1.msra.mxu0 0.0
    %7734 = vmatprep.subr.mxu0 0.0
    %7735 = vmatpush1.msra.mxu0 0.0
    %7736 = vmatprep.subr.mxu0 0.0
    %7737 = vmatpush1.msra.mxu0 0.0
    %7738 = vmatprep.subr.mxu0 0.0
    %7739 = vmatpush1.msra.mxu0 0.0
    %7740 = vmatprep.subr.mxu0 0.0
    %7741 = vmatpush1.msra.mxu0 0.0
    %7742 = vmatprep.subr.mxu0 0.0
    %7743 = vmatpush1.msra.mxu0 0.0
    %7744 = vmatprep.subr.mxu0 0.0
    %7745 = vmatpush1.msra.mxu0 0.0
    %7746 = vmatprep.subr.mxu0 0.0
    %7747 = vmatpush1.msra.mxu0 0.0
    %7748 = vmatprep.subr.mxu0 0.0
    %7749 = vmatpush1.msra.mxu0 0.0
    %7750 = vmatprep.subr.mxu0 0.0
    %7751 = vmatpush1.msra.mxu0 0.0
    %7752 = vmatprep.subr.mxu0 0.0
    %7753 = vmatpush1.msra.mxu0 0.0
    %7754 = vmatprep.subr.mxu0 0.0
    %7755 = vmatpush1.msra.mxu0 0.0
    %7756 = vmatprep.subr.mxu0 0.0
    %7757 = vmatpush1.msra.mxu0 0.0
    %7758 = vmatprep.mubr.f32.mxu0 0.0
    %7759 = vmatmul.mubr.f32.gmra.mrb[0].mxu0 %v7690
    %v7760 = vpop.f32.mrb[0].mxu0
    %v7761 = vadd.f32 0.0, %v7760
    %v7762 = vpop.f32.mrb[0].mxu0
    %7763 = vdwg.mxu0
    %7764 = vrot.lane.b32.xlu0 %v416, 48
    %v7765 = vpop.permute.xlu0 %7764
    %v7767 = vsel %vm1836, %v7140, 0
    %v7769 = vsel %vm1840, %v7765, 0
    %7771 = vmatprep.subr.mxu0 0.0
    %7772 = vmatpush1.msra.mxu0 %v7769
    %7773 = vmatprep.subr.mxu0 0.0
    %7774 = vmatpush1.msra.mxu0 0.0
    %7775 = vmatprep.subr.mxu0 0.0
    %7776 = vmatpush1.msra.mxu0 0.0
    %7777 = vmatprep.subr.mxu0 0.0
    %7778 = vmatpush1.msra.mxu0 0.0
    %7779 = vmatprep.subr.mxu0 0.0
    %7780 = vmatpush1.msra.mxu0 0.0
    %7781 = vmatprep.subr.mxu0 0.0
    %7782 = vmatpush1.msra.mxu0 0.0
    %7783 = vmatprep.subr.mxu0 0.0
    %7784 = vmatpush1.msra.mxu0 0.0
    %7785 = vmatprep.subr.mxu0 0.0
    %7786 = vmatpush1.msra.mxu0 0.0
    %7787 = vmatprep.subr.mxu0 0.0
    %7788 = vmatpush1.msra.mxu0 0.0
    %7789 = vmatprep.subr.mxu0 0.0
    %7790 = vmatpush1.msra.mxu0 0.0
    %7791 = vmatprep.subr.mxu0 0.0
    %7792 = vmatpush1.msra.mxu0 0.0
    %7793 = vmatprep.subr.mxu0 0.0
    %7794 = vmatpush1.msra.mxu0 0.0
    %7795 = vmatprep.subr.mxu0 0.0
    %7796 = vmatpush1.msra.mxu0 0.0
    %7797 = vmatprep.subr.mxu0 0.0
    %7798 = vmatpush1.msra.mxu0 0.0
    %7799 = vmatprep.subr.mxu0 0.0
    %7800 = vmatpush1.msra.mxu0 0.0
    %7801 = vmatprep.subr.mxu0 0.0
    %7802 = vmatpush1.msra.mxu0 0.0
    %7803 = vmatprep.subr.mxu0 0.0
    %7804 = vmatpush1.msra.mxu0 0.0
    %7805 = vmatprep.subr.mxu0 0.0
    %7806 = vmatpush1.msra.mxu0 0.0
    %7807 = vmatprep.subr.mxu0 0.0
    %7808 = vmatpush1.msra.mxu0 0.0
    %7809 = vmatprep.subr.mxu0 0.0
    %7810 = vmatpush1.msra.mxu0 0.0
    %7811 = vmatprep.subr.mxu0 0.0
    %7812 = vmatpush1.msra.mxu0 0.0
    %7813 = vmatprep.subr.mxu0 0.0
    %7814 = vmatpush1.msra.mxu0 0.0
    %7815 = vmatprep.subr.mxu0 0.0
    %7816 = vmatpush1.msra.mxu0 0.0
    %7817 = vmatprep.subr.mxu0 0.0
    %7818 = vmatpush1.msra.mxu0 0.0
    %7819 = vmatprep.subr.mxu0 0.0
    %7820 = vmatpush1.msra.mxu0 0.0
    %7821 = vmatprep.subr.mxu0 0.0
    %7822 = vmatpush1.msra.mxu0 0.0
    %7823 = vmatprep.subr.mxu0 0.0
    %7824 = vmatpush1.msra.mxu0 0.0
    %7825 = vmatprep.subr.mxu0 0.0
    %7826 = vmatpush1.msra.mxu0 0.0
    %7827 = vmatprep.subr.mxu0 0.0
    %7828 = vmatpush1.msra.mxu0 0.0
    %7829 = vmatprep.subr.mxu0 0.0
    %7830 = vmatpush1.msra.mxu0 0.0
    %7831 = vmatprep.subr.mxu0 0.0
    %7832 = vmatpush1.msra.mxu0 0.0
    %7833 = vmatprep.subr.mxu0 0.0
    %7834 = vmatpush1.msra.mxu0 0.0
    %7835 = vmatprep.mubr.f32.mxu0 0.0
    %7836 = vmatmul.mubr.f32.gmra.mrb[0].mxu0 %v7767
    %v7837 = vpop.f32.mrb[0].mxu0
    %v7838 = vadd.f32 0.0, %v7837
    %v7839 = vpop.f32.mrb[0].mxu0
    %7840 = vdwg.mxu0
    %7841 = vrot.lane.b32.xlu0 %v417, 48
    %v7842 = vpop.permute.xlu0 %7841
    %v7844 = vsel %vm1836, %v7141, 0
    %v7846 = vsel %vm1840, %v7842, 0
    %7848 = vmatprep.subr.mxu0 0.0
    %7849 = vmatpush1.msra.mxu0 %v7846
    %7850 = vmatprep.subr.mxu0 0.0
    %7851 = vmatpush1.msra.mxu0 0.0
    %7852 = vmatprep.subr.mxu0 0.0
    %7853 = vmatpush1.msra.mxu0 0.0
    %7854 = vmatprep.subr.mxu0 0.0
    %7855 = vmatpush1.msra.mxu0 0.0
    %7856 = vmatprep.subr.mxu0 0.0
    %7857 = vmatpush1.msra.mxu0 0.0
    %7858 = vmatprep.subr.mxu0 0.0
    %7859 = vmatpush1.msra.mxu0 0.0
    %7860 = vmatprep.subr.mxu0 0.0
    %7861 = vmatpush1.msra.mxu0 0.0
    %7862 = vmatprep.subr.mxu0 0.0
    %7863 = vmatpush1.msra.mxu0 0.0
    %7864 = vmatprep.subr.mxu0 0.0
    %7865 = vmatpush1.msra.mxu0 0.0
    %7866 = vmatprep.subr.mxu0 0.0
    %7867 = vmatpush1.msra.mxu0 0.0
    %7868 = vmatprep.subr.mxu0 0.0
    %7869 = vmatpush1.msra.mxu0 0.0
    %7870 = vmatprep.subr.mxu0 0.0
    %7871 = vmatpush1.msra.mxu0 0.0
    %7872 = vmatprep.subr.mxu0 0.0
    %7873 = vmatpush1.msra.mxu0 0.0
    %7874 = vmatprep.subr.mxu0 0.0
    %7875 = vmatpush1.msra.mxu0 0.0
    %7876 = vmatprep.subr.mxu0 0.0
    %7877 = vmatpush1.msra.mxu0 0.0
    %7878 = vmatprep.subr.mxu0 0.0
    %7879 = vmatpush1.msra.mxu0 0.0
    %7880 = vmatprep.subr.mxu0 0.0
    %7881 = vmatpush1.msra.mxu0 0.0
    %7882 = vmatprep.subr.mxu0 0.0
    %7883 = vmatpush1.msra.mxu0 0.0
    %7884 = vmatprep.subr.mxu0 0.0
    %7885 = vmatpush1.msra.mxu0 0.0
    %7886 = vmatprep.subr.mxu0 0.0
    %7887 = vmatpush1.msra.mxu0 0.0
    %7888 = vmatprep.subr.mxu0 0.0
    %7889 = vmatpush1.msra.mxu0 0.0
    %7890 = vmatprep.subr.mxu0 0.0
    %7891 = vmatpush1.msra.mxu0 0.0
    %7892 = vmatprep.subr.mxu0 0.0
    %7893 = vmatpush1.msra.mxu0 0.0
    %7894 = vmatprep.subr.mxu0 0.0
    %7895 = vmatpush1.msra.mxu0 0.0
    %7896 = vmatprep.subr.mxu0 0.0
    %7897 = vmatpush1.msra.mxu0 0.0
    %7898 = vmatprep.subr.mxu0 0.0
    %7899 = vmatpush1.msra.mxu0 0.0
    %7900 = vmatprep.subr.mxu0 0.0
    %7901 = vmatpush1.msra.mxu0 0.0
    %7902 = vmatprep.subr.mxu0 0.0
    %7903 = vmatpush1.msra.mxu0 0.0
    %7904 = vmatprep.subr.mxu0 0.0
    %7905 = vmatpush1.msra.mxu0 0.0
    %7906 = vmatprep.subr.mxu0 0.0
    %7907 = vmatpush1.msra.mxu0 0.0
    %7908 = vmatprep.subr.mxu0 0.0
    %7909 = vmatpush1.msra.mxu0 0.0
    %7910 = vmatprep.subr.mxu0 0.0
    %7911 = vmatpush1.msra.mxu0 0.0
    %7912 = vmatprep.mubr.f32.mxu0 0.0
    %7913 = vmatmul.mubr.f32.gmra.mrb[0].mxu0 %v7844
    %v7914 = vpop.f32.mrb[0].mxu0
    %v7915 = vadd.f32 0.0, %v7914
    %v7916 = vpop.f32.mrb[0].mxu0
    %7917 = vdwg.mxu0
    %7918 = vrot.lane.b32.xlu0 %v418, 48
    %v7919 = vpop.permute.xlu0 %7918
    %v7921 = vsel %vm1836, %v7142, 0
    %v7923 = vsel %vm1840, %v7919, 0
    %7925 = vmatprep.subr.mxu0 0.0
    %7926 = vmatpush1.msra.mxu0 %v7923
    %7927 = vmatprep.subr.mxu0 0.0
    %7928 = vmatpush1.msra.mxu0 0.0
    %7929 = vmatprep.subr.mxu0 0.0
    %7930 = vmatpush1.msra.mxu0 0.0
    %7931 = vmatprep.subr.mxu0 0.0
    %7932 = vmatpush1.msra.mxu0 0.0
    %7933 = vmatprep.subr.mxu0 0.0
    %7934 = vmatpush1.msra.mxu0 0.0
    %7935 = vmatprep.subr.mxu0 0.0
    %7936 = vmatpush1.msra.mxu0 0.0
    %7937 = vmatprep.subr.mxu0 0.0
    %7938 = vmatpush1.msra.mxu0 0.0
    %7939 = vmatprep.subr.mxu0 0.0
    %7940 = vmatpush1.msra.mxu0 0.0
    %7941 = vmatprep.subr.mxu0 0.0
    %7942 = vmatpush1.msra.mxu0 0.0
    %7943 = vmatprep.subr.mxu0 0.0
    %7944 = vmatpush1.msra.mxu0 0.0
    %7945 = vmatprep.subr.mxu0 0.0
    %7946 = vmatpush1.msra.mxu0 0.0
    %7947 = vmatprep.subr.mxu0 0.0
    %7948 = vmatpush1.msra.mxu0 0.0
    %7949 = vmatprep.subr.mxu0 0.0
    %7950 = vmatpush1.msra.mxu0 0.0
    %7951 = vmatprep.subr.mxu0 0.0
    %7952 = vmatpush1.msra.mxu0 0.0
    %7953 = vmatprep.subr.mxu0 0.0
    %7954 = vmatpush1.msra.mxu0 0.0
    %7955 = vmatprep.subr.mxu0 0.0
    %7956 = vmatpush1.msra.mxu0 0.0
    %7957 = vmatprep.subr.mxu0 0.0
    %7958 = vmatpush1.msra.mxu0 0.0
    %7959 = vmatprep.subr.mxu0 0.0
    %7960 = vmatpush1.msra.mxu0 0.0
    %7961 = vmatprep.subr.mxu0 0.0
    %7962 = vmatpush1.msra.mxu0 0.0
    %7963 = vmatprep.subr.mxu0 0.0
    %7964 = vmatpush1.msra.mxu0 0.0
    %7965 = vmatprep.subr.mxu0 0.0
    %7966 = vmatpush1.msra.mxu0 0.0
    %7967 = vmatprep.subr.mxu0 0.0
    %7968 = vmatpush1.msra.mxu0 0.0
    %7969 = vmatprep.subr.mxu0 0.0
    %7970 = vmatpush1.msra.mxu0 0.0
    %7971 = vmatprep.subr.mxu0 0.0
    %7972 = vmatpush1.msra.mxu0 0.0
    %7973 = vmatprep.subr.mxu0 0.0
    %7974 = vmatpush1.msra.mxu0 0.0
    %7975 = vmatprep.subr.mxu0 0.0
    %7976 = vmatpush1.msra.mxu0 0.0
    %7977 = vmatprep.subr.mxu0 0.0
    %7978 = vmatpush1.msra.mxu0 0.0
    %7979 = vmatprep.subr.mxu0 0.0
    %7980 = vmatpush1.msra.mxu0 0.0
    %7981 = vmatprep.subr.mxu0 0.0
    %7982 = vmatpush1.msra.mxu0 0.0
    %7983 = vmatprep.subr.mxu0 0.0
    %7984 = vmatpush1.msra.mxu0 0.0
    %7985 = vmatprep.subr.mxu0 0.0
    %7986 = vmatpush1.msra.mxu0 0.0
    %7987 = vmatprep.subr.mxu0 0.0
    %7988 = vmatpush1.msra.mxu0 0.0
    %7989 = vmatprep.mubr.f32.mxu0 0.0
    %7990 = vmatmul.mubr.f32.gmra.mrb[0].mxu0 %v7921
    %v7991 = vpop.f32.mrb[0].mxu0
    %v7992 = vadd.f32 0.0, %v7991
    %v7993 = vpop.f32.mrb[0].mxu0
    %7994 = vdwg.mxu0
    %7995 = vrot.lane.b32.xlu0 %v419, 48
    %v7996 = vpop.permute.xlu0 %7995
    %v7998 = vsel %vm1836, %v7143, 0
    %v8000 = vsel %vm1840, %v7996, 0
    %8002 = vmatprep.subr.mxu0 0.0
    %8003 = vmatpush1.msra.mxu0 %v8000
    %8004 = vmatprep.subr.mxu0 0.0
    %8005 = vmatpush1.msra.mxu0 0.0
    %8006 = vmatprep.subr.mxu0 0.0
    %8007 = vmatpush1.msra.mxu0 0.0
    %8008 = vmatprep.subr.mxu0 0.0
    %8009 = vmatpush1.msra.mxu0 0.0
    %8010 = vmatprep.subr.mxu0 0.0
    %8011 = vmatpush1.msra.mxu0 0.0
    %8012 = vmatprep.subr.mxu0 0.0
    %8013 = vmatpush1.msra.mxu0 0.0
    %8014 = vmatprep.subr.mxu0 0.0
    %8015 = vmatpush1.msra.mxu0 0.0
    %8016 = vmatprep.subr.mxu0 0.0
    %8017 = vmatpush1.msra.mxu0 0.0
    %8018 = vmatprep.subr.mxu0 0.0
    %8019 = vmatpush1.msra.mxu0 0.0
    %8020 = vmatprep.subr.mxu0 0.0
    %8021 = vmatpush1.msra.mxu0 0.0
    %8022 = vmatprep.subr.mxu0 0.0
    %8023 = vmatpush1.msra.mxu0 0.0
    %8024 = vmatprep.subr.mxu0 0.0
    %8025 = vmatpush1.msra.mxu0 0.0
    %8026 = vmatprep.subr.mxu0 0.0
    %8027 = vmatpush1.msra.mxu0 0.0
    %8028 = vmatprep.subr.mxu0 0.0
    %8029 = vmatpush1.msra.mxu0 0.0
    %8030 = vmatprep.subr.mxu0 0.0
    %8031 = vmatpush1.msra.mxu0 0.0
    %8032 = vmatprep.subr.mxu0 0.0
    %8033 = vmatpush1.msra.mxu0 0.0
    %8034 = vmatprep.subr.mxu0 0.0
    %8035 = vmatpush1.msra.mxu0 0.0
    %8036 = vmatprep.subr.mxu0 0.0
    %8037 = vmatpush1.msra.mxu0 0.0
    %8038 = vmatprep.subr.mxu0 0.0
    %8039 = vmatpush1.msra.mxu0 0.0
    %8040 = vmatprep.subr.mxu0 0.0
    %8041 = vmatpush1.msra.mxu0 0.0
    %8042 = vmatprep.subr.mxu0 0.0
    %8043 = vmatpush1.msra.mxu0 0.0
    %8044 = vmatprep.subr.mxu0 0.0
    %8045 = vmatpush1.msra.mxu0 0.0
    %8046 = vmatprep.subr.mxu0 0.0
    %8047 = vmatpush1.msra.mxu0 0.0
    %8048 = vmatprep.subr.mxu0 0.0
    %8049 = vmatpush1.msra.mxu0 0.0
    %8050 = vmatprep.subr.mxu0 0.0
    %8051 = vmatpush1.msra.mxu0 0.0
    %8052 = vmatprep.subr.mxu0 0.0
    %8053 = vmatpush1.msra.mxu0 0.0
    %8054 = vmatprep.subr.mxu0 0.0
    %8055 = vmatpush1.msra.mxu0 0.0
    %8056 = vmatprep.subr.mxu0 0.0
    %8057 = vmatpush1.msra.mxu0 0.0
    %8058 = vmatprep.subr.mxu0 0.0
    %8059 = vmatpush1.msra.mxu0 0.0
    %8060 = vmatprep.subr.mxu0 0.0
    %8061 = vmatpush1.msra.mxu0 0.0
    %8062 = vmatprep.subr.mxu0 0.0
    %8063 = vmatpush1.msra.mxu0 0.0
    %8064 = vmatprep.subr.mxu0 0.0
    %8065 = vmatpush1.msra.mxu0 0.0
    %8066 = vmatprep.mubr.f32.mxu0 0.0
    %8067 = vmatmul.mubr.f32.gmra.mrb[0].mxu0 %v7998
    %v8068 = vpop.f32.mrb[0].mxu0
    %v8069 = vadd.f32 0.0, %v8068
    %v8070 = vpop.f32.mrb[0].mxu0
    %8071 = vdwg.mxu0
    %8072 = vrot.lane.b32.xlu0 %v420, 48
    %v8073 = vpop.permute.xlu0 %8072
    %v8075 = vsel %vm1836, %v7144, 0
    %v8077 = vsel %vm1840, %v8073, 0
    %8079 = vmatprep.subr.mxu0 0.0
    %8080 = vmatpush1.msra.mxu0 %v8077
    %8081 = vmatprep.subr.mxu0 0.0
    %8082 = vmatpush1.msra.mxu0 0.0
    %8083 = vmatprep.subr.mxu0 0.0
    %8084 = vmatpush1.msra.mxu0 0.0
    %8085 = vmatprep.subr.mxu0 0.0
    %8086 = vmatpush1.msra.mxu0 0.0
    %8087 = vmatprep.subr.mxu0 0.0
    %8088 = vmatpush1.msra.mxu0 0.0
    %8089 = vmatprep.subr.mxu0 0.0
    %8090 = vmatpush1.msra.mxu0 0.0
    %8091 = vmatprep.subr.mxu0 0.0
    %8092 = vmatpush1.msra.mxu0 0.0
    %8093 = vmatprep.subr.mxu0 0.0
    %8094 = vmatpush1.msra.mxu0 0.0
    %8095 = vmatprep.subr.mxu0 0.0
    %8096 = vmatpush1.msra.mxu0 0.0
    %8097 = vmatprep.subr.mxu0 0.0
    %8098 = vmatpush1.msra.mxu0 0.0
    %8099 = vmatprep.subr.mxu0 0.0
    %8100 = vmatpush1.msra.mxu0 0.0
    %8101 = vmatprep.subr.mxu0 0.0
    %8102 = vmatpush1.msra.mxu0 0.0
    %8103 = vmatprep.subr.mxu0 0.0
    %8104 = vmatpush1.msra.mxu0 0.0
    %8105 = vmatprep.subr.mxu0 0.0
    %8106 = vmatpush1.msra.mxu0 0.0
    %8107 = vmatprep.subr.mxu0 0.0
    %8108 = vmatpush1.msra.mxu0 0.0
    %8109 = vmatprep.subr.mxu0 0.0
    %8110 = vmatpush1.msra.mxu0 0.0
    %8111 = vmatprep.subr.mxu0 0.0
    %8112 = vmatpush1.msra.mxu0 0.0
    %8113 = vmatprep.subr.mxu0 0.0
    %8114 = vmatpush1.msra.mxu0 0.0
    %8115 = vmatprep.subr.mxu0 0.0
    %8116 = vmatpush1.msra.mxu0 0.0
    %8117 = vmatprep.subr.mxu0 0.0
    %8118 = vmatpush1.msra.mxu0 0.0
    %8119 = vmatprep.subr.mxu0 0.0
    %8120 = vmatpush1.msra.mxu0 0.0
    %8121 = vmatprep.subr.mxu0 0.0
    %8122 = vmatpush1.msra.mxu0 0.0
    %8123 = vmatprep.subr.mxu0 0.0
    %8124 = vmatpush1.msra.mxu0 0.0
    %8125 = vmatprep.subr.mxu0 0.0
    %8126 = vmatpush1.msra.mxu0 0.0
    %8127 = vmatprep.subr.mxu0 0.0
    %8128 = vmatpush1.msra.mxu0 0.0
    %8129 = vmatprep.subr.mxu0 0.0
    %8130 = vmatpush1.msra.mxu0 0.0
    %8131 = vmatprep.subr.mxu0 0.0
    %8132 = vmatpush1.msra.mxu0 0.0
    %8133 = vmatprep.subr.mxu0 0.0
    %8134 = vmatpush1.msra.mxu0 0.0
    %8135 = vmatprep.subr.mxu0 0.0
    %8136 = vmatpush1.msra.mxu0 0.0
    %8137 = vmatprep.subr.mxu0 0.0
    %8138 = vmatpush1.msra.mxu0 0.0
    %8139 = vmatprep.subr.mxu0 0.0
    %8140 = vmatpush1.msra.mxu0 0.0
    %8141 = vmatprep.subr.mxu0 0.0
    %8142 = vmatpush1.msra.mxu0 0.0
    %8143 = vmatprep.mubr.f32.mxu0 0.0
    %8144 = vmatmul.mubr.f32.gmra.mrb[0].mxu0 %v8075
    %v8145 = vpop.f32.mrb[0].mxu0
    %v8146 = vadd.f32 0.0, %v8145
    %v8147 = vpop.f32.mrb[0].mxu0
    %8148 = vdwg.mxu0
    %8149 = vrot.lane.b32.xlu0 %v421, 48
    %v8150 = vpop.permute.xlu0 %8149
    %v8152 = vsel %vm1836, %v7145, 0
    %v8154 = vsel %vm1840, %v8150, 0
    %8156 = vmatprep.subr.mxu0 0.0
    %8157 = vmatpush1.msra.mxu0 %v8154
    %8158 = vmatprep.subr.mxu0 0.0
    %8159 = vmatpush1.msra.mxu0 0.0
    %8160 = vmatprep.subr.mxu0 0.0
    %8161 = vmatpush1.msra.mxu0 0.0
    %8162 = vmatprep.subr.mxu0 0.0
    %8163 = vmatpush1.msra.mxu0 0.0
    %8164 = vmatprep.subr.mxu0 0.0
    %8165 = vmatpush1.msra.mxu0 0.0
    %8166 = vmatprep.subr.mxu0 0.0
    %8167 = vmatpush1.msra.mxu0 0.0
    %8168 = vmatprep.subr.mxu0 0.0
    %8169 = vmatpush1.msra.mxu0 0.0
    %8170 = vmatprep.subr.mxu0 0.0
    %8171 = vmatpush1.msra.mxu0 0.0
    %8172 = vmatprep.subr.mxu0 0.0
    %8173 = vmatpush1.msra.mxu0 0.0
    %8174 = vmatprep.subr.mxu0 0.0
    %8175 = vmatpush1.msra.mxu0 0.0
    %8176 = vmatprep.subr.mxu0 0.0
    %8177 = vmatpush1.msra.mxu0 0.0
    %8178 = vmatprep.subr.mxu0 0.0
    %8179 = vmatpush1.msra.mxu0 0.0
    %8180 = vmatprep.subr.mxu0 0.0
    %8181 = vmatpush1.msra.mxu0 0.0
    %8182 = vmatprep.subr.mxu0 0.0
    %8183 = vmatpush1.msra.mxu0 0.0
    %8184 = vmatprep.subr.mxu0 0.0
    %8185 = vmatpush1.msra.mxu0 0.0
    %8186 = vmatprep.subr.mxu0 0.0
    %8187 = vmatpush1.msra.mxu0 0.0
    %8188 = vmatprep.subr.mxu0 0.0
    %8189 = vmatpush1.msra.mxu0 0.0
    %8190 = vmatprep.subr.mxu0 0.0
    %8191 = vmatpush1.msra.mxu0 0.0
    %8192 = vmatprep.subr.mxu0 0.0
    %8193 = vmatpush1.msra.mxu0 0.0
    %8194 = vmatprep.subr.mxu0 0.0
    %8195 = vmatpush1.msra.mxu0 0.0
    %8196 = vmatprep.subr.mxu0 0.0
    %8197 = vmatpush1.msra.mxu0 0.0
    %8198 = vmatprep.subr.mxu0 0.0
    %8199 = vmatpush1.msra.mxu0 0.0
    %8200 = vmatprep.subr.mxu0 0.0
    %8201 = vmatpush1.msra.mxu0 0.0
    %8202 = vmatprep.subr.mxu0 0.0
    %8203 = vmatpush1.msra.mxu0 0.0
    %8204 = vmatprep.subr.mxu0 0.0
    %8205 = vmatpush1.msra.mxu0 0.0
    %8206 = vmatprep.subr.mxu0 0.0
    %8207 = vmatpush1.msra.mxu0 0.0
    %8208 = vmatprep.subr.mxu0 0.0
    %8209 = vmatpush1.msra.mxu0 0.0
    %8210 = vmatprep.subr.mxu0 0.0
    %8211 = vmatpush1.msra.mxu0 0.0
    %8212 = vmatprep.subr.mxu0 0.0
    %8213 = vmatpush1.msra.mxu0 0.0
    %8214 = vmatprep.subr.mxu0 0.0
    %8215 = vmatpush1.msra.mxu0 0.0
    %8216 = vmatprep.subr.mxu0 0.0
    %8217 = vmatpush1.msra.mxu0 0.0
    %8218 = vmatprep.subr.mxu0 0.0
    %8219 = vmatpush1.msra.mxu0 0.0
    %8220 = vmatprep.mubr.f32.mxu0 0.0
    %8221 = vmatmul.mubr.f32.gmra.mrb[0].mxu0 %v8152
    %v8222 = vpop.f32.mrb[0].mxu0
    %v8223 = vadd.f32 0.0, %v8222
    %v8224 = vpop.f32.mrb[0].mxu0
    %8225 = vdwg.mxu0
    %8226 = vrot.lane.b32.xlu0 %v422, 48
    %v8227 = vpop.permute.xlu0 %8226
    %v8229 = vsel %vm1836, %v7146, 0
    %v8231 = vsel %vm1840, %v8227, 0
    %8233 = vmatprep.subr.mxu0 0.0
    %8234 = vmatpush1.msra.mxu0 %v8231
    %8235 = vmatprep.subr.mxu0 0.0
    %8236 = vmatpush1.msra.mxu0 0.0
    %8237 = vmatprep.subr.mxu0 0.0
    %8238 = vmatpush1.msra.mxu0 0.0
    %8239 = vmatprep.subr.mxu0 0.0
    %8240 = vmatpush1.msra.mxu0 0.0
    %8241 = vmatprep.subr.mxu0 0.0
    %8242 = vmatpush1.msra.mxu0 0.0
    %8243 = vmatprep.subr.mxu0 0.0
    %8244 = vmatpush1.msra.mxu0 0.0
    %8245 = vmatprep.subr.mxu0 0.0
    %8246 = vmatpush1.msra.mxu0 0.0
    %8247 = vmatprep.subr.mxu0 0.0
    %8248 = vmatpush1.msra.mxu0 0.0
    %8249 = vmatprep.subr.mxu0 0.0
    %8250 = vmatpush1.msra.mxu0 0.0
    %8251 = vmatprep.subr.mxu0 0.0
    %8252 = vmatpush1.msra.mxu0 0.0
    %8253 = vmatprep.subr.mxu0 0.0
    %8254 = vmatpush1.msra.mxu0 0.0
    %8255 = vmatprep.subr.mxu0 0.0
    %8256 = vmatpush1.msra.mxu0 0.0
    %8257 = vmatprep.subr.mxu0 0.0
    %8258 = vmatpush1.msra.mxu0 0.0
    %8259 = vmatprep.subr.mxu0 0.0
    %8260 = vmatpush1.msra.mxu0 0.0
    %8261 = vmatprep.subr.mxu0 0.0
    %8262 = vmatpush1.msra.mxu0 0.0
    %8263 = vmatprep.subr.mxu0 0.0
    %8264 = vmatpush1.msra.mxu0 0.0
    %8265 = vmatprep.subr.mxu0 0.0
    %8266 = vmatpush1.msra.mxu0 0.0
    %8267 = vmatprep.subr.mxu0 0.0
    %8268 = vmatpush1.msra.mxu0 0.0
    %8269 = vmatprep.subr.mxu0 0.0
    %8270 = vmatpush1.msra.mxu0 0.0
    %8271 = vmatprep.subr.mxu0 0.0
    %8272 = vmatpush1.msra.mxu0 0.0
    %8273 = vmatprep.subr.mxu0 0.0
    %8274 = vmatpush1.msra.mxu0 0.0
    %8275 = vmatprep.subr.mxu0 0.0
    %8276 = vmatpush1.msra.mxu0 0.0
    %8277 = vmatprep.subr.mxu0 0.0
    %8278 = vmatpush1.msra.mxu0 0.0
    %8279 = vmatprep.subr.mxu0 0.0
    %8280 = vmatpush1.msra.mxu0 0.0
    %8281 = vmatprep.subr.mxu0 0.0
    %8282 = vmatpush1.msra.mxu0 0.0
    %8283 = vmatprep.subr.mxu0 0.0
    %8284 = vmatpush1.msra.mxu0 0.0
    %8285 = vmatprep.subr.mxu0 0.0
    %8286 = vmatpush1.msra.mxu0 0.0
    %8287 = vmatprep.subr.mxu0 0.0
    %8288 = vmatpush1.msra.mxu0 0.0
    %8289 = vmatprep.subr.mxu0 0.0
    %8290 = vmatpush1.msra.mxu0 0.0
    %8291 = vmatprep.subr.mxu0 0.0
    %8292 = vmatpush1.msra.mxu0 0.0
    %8293 = vmatprep.subr.mxu0 0.0
    %8294 = vmatpush1.msra.mxu0 0.0
    %8295 = vmatprep.subr.mxu0 0.0
    %8296 = vmatpush1.msra.mxu0 0.0
    %8297 = vmatprep.mubr.f32.mxu0 0.0
    %8298 = vmatmul.mubr.f32.gmra.mrb[0].mxu0 %v8229
    %v8299 = vpop.f32.mrb[0].mxu0
    %v8300 = vadd.f32 0.0, %v8299
    %v8301 = vpop.f32.mrb[0].mxu0
    %8302 = vdwg.mxu0
    %8303 = vrot.lane.b32.xlu0 %v423, 48
    %v8304 = vpop.permute.xlu0 %8303
    %v8306 = vsel %vm1836, %v7147, 0
    %v8308 = vsel %vm1840, %v8304, 0
    %8310 = vmatprep.subr.mxu0 0.0
    %8311 = vmatpush1.msra.mxu0 %v8308
    %8312 = vmatprep.subr.mxu0 0.0
    %8313 = vmatpush1.msra.mxu0 0.0
    %8314 = vmatprep.subr.mxu0 0.0
    %8315 = vmatpush1.msra.mxu0 0.0
    %8316 = vmatprep.subr.mxu0 0.0
    %8317 = vmatpush1.msra.mxu0 0.0
    %8318 = vmatprep.subr.mxu0 0.0
    %8319 = vmatpush1.msra.mxu0 0.0
    %8320 = vmatprep.subr.mxu0 0.0
    %8321 = vmatpush1.msra.mxu0 0.0
    %8322 = vmatprep.subr.mxu0 0.0
    %8323 = vmatpush1.msra.mxu0 0.0
    %8324 = vmatprep.subr.mxu0 0.0
    %8325 = vmatpush1.msra.mxu0 0.0
    %8326 = vmatprep.subr.mxu0 0.0
    %8327 = vmatpush1.msra.mxu0 0.0
    %8328 = vmatprep.subr.mxu0 0.0
    %8329 = vmatpush1.msra.mxu0 0.0
    %8330 = vmatprep.subr.mxu0 0.0
    %8331 = vmatpush1.msra.mxu0 0.0
    %8332 = vmatprep.subr.mxu0 0.0
    %8333 = vmatpush1.msra.mxu0 0.0
    %8334 = vmatprep.subr.mxu0 0.0
    %8335 = vmatpush1.msra.mxu0 0.0
    %8336 = vmatprep.subr.mxu0 0.0
    %8337 = vmatpush1.msra.mxu0 0.0
    %8338 = vmatprep.subr.mxu0 0.0
    %8339 = vmatpush1.msra.mxu0 0.0
    %8340 = vmatprep.subr.mxu0 0.0
    %8341 = vmatpush1.msra.mxu0 0.0
    %8342 = vmatprep.subr.mxu0 0.0
    %8343 = vmatpush1.msra.mxu0 0.0
    %8344 = vmatprep.subr.mxu0 0.0
    %8345 = vmatpush1.msra.mxu0 0.0
    %8346 = vmatprep.subr.mxu0 0.0
    %8347 = vmatpush1.msra.mxu0 0.0
    %8348 = vmatprep.subr.mxu0 0.0
    %8349 = vmatpush1.msra.mxu0 0.0
    %8350 = vmatprep.subr.mxu0 0.0
    %8351 = vmatpush1.msra.mxu0 0.0
    %8352 = vmatprep.subr.mxu0 0.0
    %8353 = vmatpush1.msra.mxu0 0.0
    %8354 = vmatprep.subr.mxu0 0.0
    %8355 = vmatpush1.msra.mxu0 0.0
    %8356 = vmatprep.subr.mxu0 0.0
    %8357 = vmatpush1.msra.mxu0 0.0
    %8358 = vmatprep.subr.mxu0 0.0
    %8359 = vmatpush1.msra.mxu0 0.0
    %8360 = vmatprep.subr.mxu0 0.0
    %8361 = vmatpush1.msra.mxu0 0.0
    %8362 = vmatprep.subr.mxu0 0.0
    %8363 = vmatpush1.msra.mxu0 0.0
    %8364 = vmatprep.subr.mxu0 0.0
    %8365 = vmatpush1.msra.mxu0 0.0
    %8366 = vmatprep.subr.mxu0 0.0
    %8367 = vmatpush1.msra.mxu0 0.0
    %8368 = vmatprep.subr.mxu0 0.0
    %8369 = vmatpush1.msra.mxu0 0.0
    %8370 = vmatprep.subr.mxu0 0.0
    %8371 = vmatpush1.msra.mxu0 0.0
    %8372 = vmatprep.subr.mxu0 0.0
    %8373 = vmatpush1.msra.mxu0 0.0
    %8374 = vmatprep.mubr.f32.mxu0 0.0
    %8375 = vmatmul.mubr.f32.gmra.mrb[0].mxu0 %v8306
    %v8376 = vpop.f32.mrb[0].mxu0
    %v8377 = vadd.f32 0.0, %v8376
    %v8378 = vpop.f32.mrb[0].mxu0
    %8379 = vdwg.mxu0
    %8380 = vrot.lane.b32.xlu0 %v408, 104
    %v8381 = vpop.permute.xlu0 %8380
    %8382 = vrot.lane.b32.xlu0 %v408, 72
    %v8383 = vpop.permute.xlu0 %8382
    %v8384 = vsel %vm427, %v8381, 0
    %v8386 = vsel %vm427, %v8383, 0
    %8388 = vmatprep.subr.mxu0 0.0
    %8389 = vmatpush1.xpose.msra.mxu0 %v8386
    %8390 = vmatprep.subr.mxu0 0.0
    %8391 = vmatpush1.xpose.msra.mxu0 0.0
    %8392 = vmatprep.subr.mxu0 0.0
    %8393 = vmatpush1.xpose.msra.mxu0 0.0
    %8394 = vmatprep.subr.mxu0 0.0
    %8395 = vmatpush1.xpose.msra.mxu0 0.0
    %8396 = vmatprep.subr.mxu0 0.0
    %8397 = vmatpush1.xpose.msra.mxu0 0.0
    %8398 = vmatprep.subr.mxu0 0.0
    %8399 = vmatpush1.xpose.msra.mxu0 0.0
    %8400 = vmatprep.subr.mxu0 0.0
    %8401 = vmatpush1.xpose.msra.mxu0 0.0
    %8402 = vmatprep.subr.mxu0 0.0
    %8403 = vmatpush1.xpose.msra.mxu0 0.0
    %8404 = vmatprep.subr.mxu0 0.0
    %8405 = vmatpush1.xpose.msra.mxu0 0.0
    %8406 = vmatprep.subr.mxu0 0.0
    %8407 = vmatpush1.xpose.msra.mxu0 0.0
    %8408 = vmatprep.subr.mxu0 0.0
    %8409 = vmatpush1.xpose.msra.mxu0 0.0
    %8410 = vmatprep.subr.mxu0 0.0
    %8411 = vmatpush1.xpose.msra.mxu0 0.0
    %8412 = vmatprep.subr.mxu0 0.0
    %8413 = vmatpush1.xpose.msra.mxu0 0.0
    %8414 = vmatprep.subr.mxu0 0.0
    %8415 = vmatpush1.xpose.msra.mxu0 0.0
    %8416 = vmatprep.subr.mxu0 0.0
    %8417 = vmatpush1.xpose.msra.mxu0 0.0
    %8418 = vmatprep.subr.mxu0 0.0
    %8419 = vmatpush1.xpose.msra.mxu0 0.0
    %8420 = vmatprep.subr.mxu0 0.0
    %8421 = vmatpush1.xpose.msra.mxu0 0.0
    %8422 = vmatprep.subr.mxu0 0.0
    %8423 = vmatpush1.xpose.msra.mxu0 0.0
    %8424 = vmatprep.subr.mxu0 0.0
    %8425 = vmatpush1.xpose.msra.mxu0 0.0
    %8426 = vmatprep.subr.mxu0 0.0
    %8427 = vmatpush1.xpose.msra.mxu0 0.0
    %8428 = vmatprep.subr.mxu0 0.0
    %8429 = vmatpush1.xpose.msra.mxu0 0.0
    %8430 = vmatprep.subr.mxu0 0.0
    %8431 = vmatpush1.xpose.msra.mxu0 0.0
    %8432 = vmatprep.subr.mxu0 0.0
    %8433 = vmatpush1.xpose.msra.mxu0 0.0
    %8434 = vmatprep.subr.mxu0 0.0
    %8435 = vmatpush1.xpose.msra.mxu0 0.0
    %8436 = vmatprep.subr.mxu0 0.0
    %8437 = vmatpush1.xpose.msra.mxu0 0.0
    %8438 = vmatprep.subr.mxu0 0.0
    %8439 = vmatpush1.xpose.msra.mxu0 0.0
    %8440 = vmatprep.subr.mxu0 0.0
    %8441 = vmatpush1.xpose.msra.mxu0 0.0
    %8442 = vmatprep.subr.mxu0 0.0
    %8443 = vmatpush1.xpose.msra.mxu0 0.0
    %8444 = vmatprep.subr.mxu0 0.0
    %8445 = vmatpush1.xpose.msra.mxu0 0.0
    %8446 = vmatprep.subr.mxu0 0.0
    %8447 = vmatpush1.xpose.msra.mxu0 0.0
    %8448 = vmatprep.subr.mxu0 0.0
    %8449 = vmatpush1.xpose.msra.mxu0 0.0
    %8450 = vmatprep.subr.mxu0 0.0
    %8451 = vmatpush1.xpose.msra.mxu0 0.0
    %8452 = vmatprep.mubr.f32.mxu0 0.0
    %8453 = vmatmul.mubr.f32.gmra.mrb[0].mxu0 %v8384
    %v8454 = vpop.f32.mrb[0].mxu0
    %v8455 = vadd.f32 0.0, %v8454
    %v8456 = vpop.f32.mrb[0].mxu0
    %8457 = vdwg.mxu0
    %8458 = vrot.lane.b32.xlu0 %v409, 104
    %v8459 = vpop.permute.xlu0 %8458
    %8460 = vrot.lane.b32.xlu0 %v409, 72
    %v8461 = vpop.permute.xlu0 %8460
    %v8462 = vsel %vm427, %v8459, 0
    %v8464 = vsel %vm427, %v8461, 0
    %8466 = vmatprep.subr.mxu0 0.0
    %8467 = vmatpush1.xpose.msra.mxu0 %v8464
    %8468 = vmatprep.subr.mxu0 0.0
    %8469 = vmatpush1.xpose.msra.mxu0 0.0
    %8470 = vmatprep.subr.mxu0 0.0
    %8471 = vmatpush1.xpose.msra.mxu0 0.0
    %8472 = vmatprep.subr.mxu0 0.0
    %8473 = vmatpush1.xpose.msra.mxu0 0.0
    %8474 = vmatprep.subr.mxu0 0.0
    %8475 = vmatpush1.xpose.msra.mxu0 0.0
    %8476 = vmatprep.subr.mxu0 0.0
    %8477 = vmatpush1.xpose.msra.mxu0 0.0
    %8478 = vmatprep.subr.mxu0 0.0
    %8479 = vmatpush1.xpose.msra.mxu0 0.0
    %8480 = vmatprep.subr.mxu0 0.0
    %8481 = vmatpush1.xpose.msra.mxu0 0.0
    %8482 = vmatprep.subr.mxu0 0.0
    %8483 = vmatpush1.xpose.msra.mxu0 0.0
    %8484 = vmatprep.subr.mxu0 0.0
    %8485 = vmatpush1.xpose.msra.mxu0 0.0
    %8486 = vmatprep.subr.mxu0 0.0
    %8487 = vmatpush1.xpose.msra.mxu0 0.0
    %8488 = vmatprep.subr.mxu0 0.0
    %8489 = vmatpush1.xpose.msra.mxu0 0.0
    %8490 = vmatprep.subr.mxu0 0.0
    %8491 = vmatpush1.xpose.msra.mxu0 0.0
    %8492 = vmatprep.subr.mxu0 0.0
    %8493 = vmatpush1.xpose.msra.mxu0 0.0
    %8494 = vmatprep.subr.mxu0 0.0
    %8495 = vmatpush1.xpose.msra.mxu0 0.0
    %8496 = vmatprep.subr.mxu0 0.0
    %8497 = vmatpush1.xpose.msra.mxu0 0.0
    %8498 = vmatprep.subr.mxu0 0.0
    %8499 = vmatpush1.xpose.msra.mxu0 0.0
    %8500 = vmatprep.subr.mxu0 0.0
    %8501 = vmatpush1.xpose.msra.mxu0 0.0
    %8502 = vmatprep.subr.mxu0 0.0
    %8503 = vmatpush1.xpose.msra.mxu0 0.0
    %8504 = vmatprep.subr.mxu0 0.0
    %8505 = vmatpush1.xpose.msra.mxu0 0.0
    %8506 = vmatprep.subr.mxu0 0.0
    %8507 = vmatpush1.xpose.msra.mxu0 0.0
    %8508 = vmatprep.subr.mxu0 0.0
    %8509 = vmatpush1.xpose.msra.mxu0 0.0
    %8510 = vmatprep.subr.mxu0 0.0
    %8511 = vmatpush1.xpose.msra.mxu0 0.0
    %8512 = vmatprep.subr.mxu0 0.0
    %8513 = vmatpush1.xpose.msra.mxu0 0.0
    %8514 = vmatprep.subr.mxu0 0.0
    %8515 = vmatpush1.xpose.msra.mxu0 0.0
    %8516 = vmatprep.subr.mxu0 0.0
    %8517 = vmatpush1.xpose.msra.mxu0 0.0
    %8518 = vmatprep.subr.mxu0 0.0
    %8519 = vmatpush1.xpose.msra.mxu0 0.0
    %8520 = vmatprep.subr.mxu0 0.0
    %8521 = vmatpush1.xpose.msra.mxu0 0.0
    %8522 = vmatprep.subr.mxu0 0.0
    %8523 = vmatpush1.xpose.msra.mxu0 0.0
    %8524 = vmatprep.subr.mxu0 0.0
    %8525 = vmatpush1.xpose.msra.mxu0 0.0
    %8526 = vmatprep.subr.mxu0 0.0
    %8527 = vmatpush1.xpose.msra.mxu0 0.0
    %8528 = vmatprep.subr.mxu0 0.0
    %8529 = vmatpush1.xpose.msra.mxu0 0.0
    %8530 = vmatprep.mubr.f32.mxu0 0.0
    %8531 = vmatmul.mubr.f32.gmra.mrb[0].mxu0 %v8462
    %v8532 = vpop.f32.mrb[0].mxu0
    %v8533 = vadd.f32 0.0, %v8532
    %v8534 = vpop.f32.mrb[0].mxu0
    %8535 = vdwg.mxu0
    %8536 = vrot.lane.b32.xlu0 %v410, 104
    %v8537 = vpop.permute.xlu0 %8536
    %8538 = vrot.lane.b32.xlu0 %v410, 72
    %v8539 = vpop.permute.xlu0 %8538
    %v8540 = vsel %vm427, %v8537, 0
    %v8542 = vsel %vm427, %v8539, 0
    %8544 = vmatprep.subr.mxu0 0.0
    %8545 = vmatpush1.xpose.msra.mxu0 %v8542
    %8546 = vmatprep.subr.mxu0 0.0
    %8547 = vmatpush1.xpose.msra.mxu0 0.0
    %8548 = vmatprep.subr.mxu0 0.0
    %8549 = vmatpush1.xpose.msra.mxu0 0.0
    %8550 = vmatprep.subr.mxu0 0.0
    %8551 = vmatpush1.xpose.msra.mxu0 0.0
    %8552 = vmatprep.subr.mxu0 0.0
    %8553 = vmatpush1.xpose.msra.mxu0 0.0
    %8554 = vmatprep.subr.mxu0 0.0
    %8555 = vmatpush1.xpose.msra.mxu0 0.0
    %8556 = vmatprep.subr.mxu0 0.0
    %8557 = vmatpush1.xpose.msra.mxu0 0.0
    %8558 = vmatprep.subr.mxu0 0.0
    %8559 = vmatpush1.xpose.msra.mxu0 0.0
    %8560 = vmatprep.subr.mxu0 0.0
    %8561 = vmatpush1.xpose.msra.mxu0 0.0
    %8562 = vmatprep.subr.mxu0 0.0
    %8563 = vmatpush1.xpose.msra.mxu0 0.0
    %8564 = vmatprep.subr.mxu0 0.0
    %8565 = vmatpush1.xpose.msra.mxu0 0.0
    %8566 = vmatprep.subr.mxu0 0.0
    %8567 = vmatpush1.xpose.msra.mxu0 0.0
    %8568 = vmatprep.subr.mxu0 0.0
    %8569 = vmatpush1.xpose.msra.mxu0 0.0
    %8570 = vmatprep.subr.mxu0 0.0
    %8571 = vmatpush1.xpose.msra.mxu0 0.0
    %8572 = vmatprep.subr.mxu0 0.0
    %8573 = vmatpush1.xpose.msra.mxu0 0.0
    %8574 = vmatprep.subr.mxu0 0.0
    %8575 = vmatpush1.xpose.msra.mxu0 0.0
    %8576 = vmatprep.subr.mxu0 0.0
    %8577 = vmatpush1.xpose.msra.mxu0 0.0
    %8578 = vmatprep.subr.mxu0 0.0
    %8579 = vmatpush1.xpose.msra.mxu0 0.0
    %8580 = vmatprep.subr.mxu0 0.0
    %8581 = vmatpush1.xpose.msra.mxu0 0.0
    %8582 = vmatprep.subr.mxu0 0.0
    %8583 = vmatpush1.xpose.msra.mxu0 0.0
    %8584 = vmatprep.subr.mxu0 0.0
    %8585 = vmatpush1.xpose.msra.mxu0 0.0
    %8586 = vmatprep.subr.mxu0 0.0
    %8587 = vmatpush1.xpose.msra.mxu0 0.0
    %8588 = vmatprep.subr.mxu0 0.0
    %8589 = vmatpush1.xpose.msra.mxu0 0.0
    %8590 = vmatprep.subr.mxu0 0.0
    %8591 = vmatpush1.xpose.msra.mxu0 0.0
    %8592 = vmatprep.subr.mxu0 0.0
    %8593 = vmatpush1.xpose.msra.mxu0 0.0
    %8594 = vmatprep.subr.mxu0 0.0
    %8595 = vmatpush1.xpose.msra.mxu0 0.0
    %8596 = vmatprep.subr.mxu0 0.0
    %8597 = vmatpush1.xpose.msra.mxu0 0.0
    %8598 = vmatprep.subr.mxu0 0.0
    %8599 = vmatpush1.xpose.msra.mxu0 0.0
    %8600 = vmatprep.subr.mxu0 0.0
    %8601 = vmatpush1.xpose.msra.mxu0 0.0
    %8602 = vmatprep.subr.mxu0 0.0
    %8603 = vmatpush1.xpose.msra.mxu0 0.0
    %8604 = vmatprep.subr.mxu0 0.0
    %8605 = vmatpush1.xpose.msra.mxu0 0.0
    %8606 = vmatprep.subr.mxu0 0.0
    %8607 = vmatpush1.xpose.msra.mxu0 0.0
    %8608 = vmatprep.mubr.f32.mxu0 0.0
    %8609 = vmatmul.mubr.f32.gmra.mrb[0].mxu0 %v8540
    %v8610 = vpop.f32.mrb[0].mxu0
    %v8611 = vadd.f32 0.0, %v8610
    %v8612 = vpop.f32.mrb[0].mxu0
    %8613 = vdwg.mxu0
    %8614 = vrot.lane.b32.xlu0 %v411, 104
    %v8615 = vpop.permute.xlu0 %8614
    %8616 = vrot.lane.b32.xlu0 %v411, 72
    %v8617 = vpop.permute.xlu0 %8616
    %v8618 = vsel %vm427, %v8615, 0
    %v8620 = vsel %vm427, %v8617, 0
    %8622 = vmatprep.subr.mxu0 0.0
    %8623 = vmatpush1.xpose.msra.mxu0 %v8620
    %8624 = vmatprep.subr.mxu0 0.0
    %8625 = vmatpush1.xpose.msra.mxu0 0.0
    %8626 = vmatprep.subr.mxu0 0.0
    %8627 = vmatpush1.xpose.msra.mxu0 0.0
    %8628 = vmatprep.subr.mxu0 0.0
    %8629 = vmatpush1.xpose.msra.mxu0 0.0
    %8630 = vmatprep.subr.mxu0 0.0
    %8631 = vmatpush1.xpose.msra.mxu0 0.0
    %8632 = vmatprep.subr.mxu0 0.0
    %8633 = vmatpush1.xpose.msra.mxu0 0.0
    %8634 = vmatprep.subr.mxu0 0.0
    %8635 = vmatpush1.xpose.msra.mxu0 0.0
    %8636 = vmatprep.subr.mxu0 0.0
    %8637 = vmatpush1.xpose.msra.mxu0 0.0
    %8638 = vmatprep.subr.mxu0 0.0
    %8639 = vmatpush1.xpose.msra.mxu0 0.0
    %8640 = vmatprep.subr.mxu0 0.0
    %8641 = vmatpush1.xpose.msra.mxu0 0.0
    %8642 = vmatprep.subr.mxu0 0.0
    %8643 = vmatpush1.xpose.msra.mxu0 0.0
    %8644 = vmatprep.subr.mxu0 0.0
    %8645 = vmatpush1.xpose.msra.mxu0 0.0
    %8646 = vmatprep.subr.mxu0 0.0
    %8647 = vmatpush1.xpose.msra.mxu0 0.0
    %8648 = vmatprep.subr.mxu0 0.0
    %8649 = vmatpush1.xpose.msra.mxu0 0.0
    %8650 = vmatprep.subr.mxu0 0.0
    %8651 = vmatpush1.xpose.msra.mxu0 0.0
    %8652 = vmatprep.subr.mxu0 0.0
    %8653 = vmatpush1.xpose.msra.mxu0 0.0
    %8654 = vmatprep.subr.mxu0 0.0
    %8655 = vmatpush1.xpose.msra.mxu0 0.0
    %8656 = vmatprep.subr.mxu0 0.0
    %8657 = vmatpush1.xpose.msra.mxu0 0.0
    %8658 = vmatprep.subr.mxu0 0.0
    %8659 = vmatpush1.xpose.msra.mxu0 0.0
    %8660 = vmatprep.subr.mxu0 0.0
    %8661 = vmatpush1.xpose.msra.mxu0 0.0
    %8662 = vmatprep.subr.mxu0 0.0
    %8663 = vmatpush1.xpose.msra.mxu0 0.0
    %8664 = vmatprep.subr.mxu0 0.0
    %8665 = vmatpush1.xpose.msra.mxu0 0.0
    %8666 = vmatprep.subr.mxu0 0.0
    %8667 = vmatpush1.xpose.msra.mxu0 0.0
    %8668 = vmatprep.subr.mxu0 0.0
    %8669 = vmatpush1.xpose.msra.mxu0 0.0
    %8670 = vmatprep.subr.mxu0 0.0
    %8671 = vmatpush1.xpose.msra.mxu0 0.0
    %8672 = vmatprep.subr.mxu0 0.0
    %8673 = vmatpush1.xpose.msra.mxu0 0.0
    %8674 = vmatprep.subr.mxu0 0.0
    %8675 = vmatpush1.xpose.msra.mxu0 0.0
    %8676 = vmatprep.subr.mxu0 0.0
    %8677 = vmatpush1.xpose.msra.mxu0 0.0
    %8678 = vmatprep.subr.mxu0 0.0
    %8679 = vmatpush1.xpose.msra.mxu0 0.0
    %8680 = vmatprep.subr.mxu0 0.0
    %8681 = vmatpush1.xpose.msra.mxu0 0.0
    %8682 = vmatprep.subr.mxu0 0.0
    %8683 = vmatpush1.xpose.msra.mxu0 0.0
    %8684 = vmatprep.subr.mxu0 0.0
    %8685 = vmatpush1.xpose.msra.mxu0 0.0
    %8686 = vmatprep.mubr.f32.mxu0 0.0
    %8687 = vmatmul.mubr.f32.gmra.mrb[0].mxu0 %v8618
    %v8688 = vpop.f32.mrb[0].mxu0
    %v8689 = vadd.f32 0.0, %v8688
    %v8690 = vpop.f32.mrb[0].mxu0
    %8691 = vdwg.mxu0
    %8692 = vrot.lane.b32.xlu0 %v412, 104
    %v8693 = vpop.permute.xlu0 %8692
    %8694 = vrot.lane.b32.xlu0 %v412, 72
    %v8695 = vpop.permute.xlu0 %8694
    %v8696 = vsel %vm427, %v8693, 0
    %v8698 = vsel %vm427, %v8695, 0
    %8700 = vmatprep.subr.mxu0 0.0
    %8701 = vmatpush1.xpose.msra.mxu0 %v8698
    %8702 = vmatprep.subr.mxu0 0.0
    %8703 = vmatpush1.xpose.msra.mxu0 0.0
    %8704 = vmatprep.subr.mxu0 0.0
    %8705 = vmatpush1.xpose.msra.mxu0 0.0
    %8706 = vmatprep.subr.mxu0 0.0
    %8707 = vmatpush1.xpose.msra.mxu0 0.0
    %8708 = vmatprep.subr.mxu0 0.0
    %8709 = vmatpush1.xpose.msra.mxu0 0.0
    %8710 = vmatprep.subr.mxu0 0.0
    %8711 = vmatpush1.xpose.msra.mxu0 0.0
    %8712 = vmatprep.subr.mxu0 0.0
    %8713 = vmatpush1.xpose.msra.mxu0 0.0
    %8714 = vmatprep.subr.mxu0 0.0
    %8715 = vmatpush1.xpose.msra.mxu0 0.0
    %8716 = vmatprep.subr.mxu0 0.0
    %8717 = vmatpush1.xpose.msra.mxu0 0.0
    %8718 = vmatprep.subr.mxu0 0.0
    %8719 = vmatpush1.xpose.msra.mxu0 0.0
    %8720 = vmatprep.subr.mxu0 0.0
    %8721 = vmatpush1.xpose.msra.mxu0 0.0
    %8722 = vmatprep.subr.mxu0 0.0
    %8723 = vmatpush1.xpose.msra.mxu0 0.0
    %8724 = vmatprep.subr.mxu0 0.0
    %8725 = vmatpush1.xpose.msra.mxu0 0.0
    %8726 = vmatprep.subr.mxu0 0.0
    %8727 = vmatpush1.xpose.msra.mxu0 0.0
    %8728 = vmatprep.subr.mxu0 0.0
    %8729 = vmatpush1.xpose.msra.mxu0 0.0
    %8730 = vmatprep.subr.mxu0 0.0
    %8731 = vmatpush1.xpose.msra.mxu0 0.0
    %8732 = vmatprep.subr.mxu0 0.0
    %8733 = vmatpush1.xpose.msra.mxu0 0.0
    %8734 = vmatprep.subr.mxu0 0.0
    %8735 = vmatpush1.xpose.msra.mxu0 0.0
    %8736 = vmatprep.subr.mxu0 0.0
    %8737 = vmatpush1.xpose.msra.mxu0 0.0
    %8738 = vmatprep.subr.mxu0 0.0
    %8739 = vmatpush1.xpose.msra.mxu0 0.0
    %8740 = vmatprep.subr.mxu0 0.0
    %8741 = vmatpush1.xpose.msra.mxu0 0.0
    %8742 = vmatprep.subr.mxu0 0.0
    %8743 = vmatpush1.xpose.msra.mxu0 0.0
    %8744 = vmatprep.subr.mxu0 0.0
    %8745 = vmatpush1.xpose.msra.mxu0 0.0
    %8746 = vmatprep.subr.mxu0 0.0
    %8747 = vmatpush1.xpose.msra.mxu0 0.0
    %8748 = vmatprep.subr.mxu0 0.0
    %8749 = vmatpush1.xpose.msra.mxu0 0.0
    %8750 = vmatprep.subr.mxu0 0.0
    %8751 = vmatpush1.xpose.msra.mxu0 0.0
    %8752 = vmatprep.subr.mxu0 0.0
    %8753 = vmatpush1.xpose.msra.mxu0 0.0
    %8754 = vmatprep.subr.mxu0 0.0
    %8755 = vmatpush1.xpose.msra.mxu0 0.0
    %8756 = vmatprep.subr.mxu0 0.0
    %8757 = vmatpush1.xpose.msra.mxu0 0.0
    %8758 = vmatprep.subr.mxu0 0.0
    %8759 = vmatpush1.xpose.msra.mxu0 0.0
    %8760 = vmatprep.subr.mxu0 0.0
    %8761 = vmatpush1.xpose.msra.mxu0 0.0
    %8762 = vmatprep.subr.mxu0 0.0
    %8763 = vmatpush1.xpose.msra.mxu0 0.0
    %8764 = vmatprep.mubr.f32.mxu0 0.0
    %8765 = vmatmul.mubr.f32.gmra.mrb[0].mxu0 %v8696
    %v8766 = vpop.f32.mrb[0].mxu0
    %v8767 = vadd.f32 0.0, %v8766
    %v8768 = vpop.f32.mrb[0].mxu0
    %8769 = vdwg.mxu0
    %8770 = vrot.lane.b32.xlu0 %v413, 104
    %v8771 = vpop.permute.xlu0 %8770
    %8772 = vrot.lane.b32.xlu0 %v413, 72
    %v8773 = vpop.permute.xlu0 %8772
    %v8774 = vsel %vm427, %v8771, 0
    %v8776 = vsel %vm427, %v8773, 0
    %8778 = vmatprep.subr.mxu0 0.0
    %8779 = vmatpush1.xpose.msra.mxu0 %v8776
    %8780 = vmatprep.subr.mxu0 0.0
    %8781 = vmatpush1.xpose.msra.mxu0 0.0
    %8782 = vmatprep.subr.mxu0 0.0
    %8783 = vmatpush1.xpose.msra.mxu0 0.0
    %8784 = vmatprep.subr.mxu0 0.0
    %8785 = vmatpush1.xpose.msra.mxu0 0.0
    %8786 = vmatprep.subr.mxu0 0.0
    %8787 = vmatpush1.xpose.msra.mxu0 0.0
    %8788 = vmatprep.subr.mxu0 0.0
    %8789 = vmatpush1.xpose.msra.mxu0 0.0
    %8790 = vmatprep.subr.mxu0 0.0
    %8791 = vmatpush1.xpose.msra.mxu0 0.0
    %8792 = vmatprep.subr.mxu0 0.0
    %8793 = vmatpush1.xpose.msra.mxu0 0.0
    %8794 = vmatprep.subr.mxu0 0.0
    %8795 = vmatpush1.xpose.msra.mxu0 0.0
    %8796 = vmatprep.subr.mxu0 0.0
    %8797 = vmatpush1.xpose.msra.mxu0 0.0
    %8798 = vmatprep.subr.mxu0 0.0
    %8799 = vmatpush1.xpose.msra.mxu0 0.0
    %8800 = vmatprep.subr.mxu0 0.0
    %8801 = vmatpush1.xpose.msra.mxu0 0.0
    %8802 = vmatprep.subr.mxu0 0.0
    %8803 = vmatpush1.xpose.msra.mxu0 0.0
    %8804 = vmatprep.subr.mxu0 0.0
    %8805 = vmatpush1.xpose.msra.mxu0 0.0
    %8806 = vmatprep.subr.mxu0 0.0
    %8807 = vmatpush1.xpose.msra.mxu0 0.0
    %8808 = vmatprep.subr.mxu0 0.0
    %8809 = vmatpush1.xpose.msra.mxu0 0.0
    %8810 = vmatprep.subr.mxu0 0.0
    %8811 = vmatpush1.xpose.msra.mxu0 0.0
    %8812 = vmatprep.subr.mxu0 0.0
    %8813 = vmatpush1.xpose.msra.mxu0 0.0
    %8814 = vmatprep.subr.mxu0 0.0
    %8815 = vmatpush1.xpose.msra.mxu0 0.0
    %8816 = vmatprep.subr.mxu0 0.0
    %8817 = vmatpush1.xpose.msra.mxu0 0.0
    %8818 = vmatprep.subr.mxu0 0.0
    %8819 = vmatpush1.xpose.msra.mxu0 0.0
    %8820 = vmatprep.subr.mxu0 0.0
    %8821 = vmatpush1.xpose.msra.mxu0 0.0
    %8822 = vmatprep.subr.mxu0 0.0
    %8823 = vmatpush1.xpose.msra.mxu0 0.0
    %8824 = vmatprep.subr.mxu0 0.0
    %8825 = vmatpush1.xpose.msra.mxu0 0.0
    %8826 = vmatprep.subr.mxu0 0.0
    %8827 = vmatpush1.xpose.msra.mxu0 0.0
    %8828 = vmatprep.subr.mxu0 0.0
    %8829 = vmatpush1.xpose.msra.mxu0 0.0
    %8830 = vmatprep.subr.mxu0 0.0
    %8831 = vmatpush1.xpose.msra.mxu0 0.0
    %8832 = vmatprep.subr.mxu0 0.0
    %8833 = vmatpush1.xpose.msra.mxu0 0.0
    %8834 = vmatprep.subr.mxu0 0.0
    %8835 = vmatpush1.xpose.msra.mxu0 0.0
    %8836 = vmatprep.subr.mxu0 0.0
    %8837 = vmatpush1.xpose.msra.mxu0 0.0
    %8838 = vmatprep.subr.mxu0 0.0
    %8839 = vmatpush1.xpose.msra.mxu0 0.0
    %8840 = vmatprep.subr.mxu0 0.0
    %8841 = vmatpush1.xpose.msra.mxu0 0.0
    %8842 = vmatprep.mubr.f32.mxu0 0.0
    %8843 = vmatmul.mubr.f32.gmra.mrb[0].mxu0 %v8774
    %v8844 = vpop.f32.mrb[0].mxu0
    %v8845 = vadd.f32 0.0, %v8844
    %v8846 = vpop.f32.mrb[0].mxu0
    %8847 = vdwg.mxu0
    %8848 = vrot.lane.b32.xlu0 %v414, 104
    %v8849 = vpop.permute.xlu0 %8848
    %8850 = vrot.lane.b32.xlu0 %v414, 72
    %v8851 = vpop.permute.xlu0 %8850
    %v8852 = vsel %vm427, %v8849, 0
    %v8854 = vsel %vm427, %v8851, 0
    %8856 = vmatprep.subr.mxu0 0.0
    %8857 = vmatpush1.xpose.msra.mxu0 %v8854
    %8858 = vmatprep.subr.mxu0 0.0
    %8859 = vmatpush1.xpose.msra.mxu0 0.0
    %8860 = vmatprep.subr.mxu0 0.0
    %8861 = vmatpush1.xpose.msra.mxu0 0.0
    %8862 = vmatprep.subr.mxu0 0.0
    %8863 = vmatpush1.xpose.msra.mxu0 0.0
    %8864 = vmatprep.subr.mxu0 0.0
    %8865 = vmatpush1.xpose.msra.mxu0 0.0
    %8866 = vmatprep.subr.mxu0 0.0
    %8867 = vmatpush1.xpose.msra.mxu0 0.0
    %8868 = vmatprep.subr.mxu0 0.0
    %8869 = vmatpush1.xpose.msra.mxu0 0.0
    %8870 = vmatprep.subr.mxu0 0.0
    %8871 = vmatpush1.xpose.msra.mxu0 0.0
    %8872 = vmatprep.subr.mxu0 0.0
    %8873 = vmatpush1.xpose.msra.mxu0 0.0
    %8874 = vmatprep.subr.mxu0 0.0
    %8875 = vmatpush1.xpose.msra.mxu0 0.0
    %8876 = vmatprep.subr.mxu0 0.0
    %8877 = vmatpush1.xpose.msra.mxu0 0.0
    %8878 = vmatprep.subr.mxu0 0.0
    %8879 = vmatpush1.xpose.msra.mxu0 0.0
    %8880 = vmatprep.subr.mxu0 0.0
    %8881 = vmatpush1.xpose.msra.mxu0 0.0
    %8882 = vmatprep.subr.mxu0 0.0
    %8883 = vmatpush1.xpose.msra.mxu0 0.0
    %8884 = vmatprep.subr.mxu0 0.0
    %8885 = vmatpush1.xpose.msra.mxu0 0.0
    %8886 = vmatprep.subr.mxu0 0.0
    %8887 = vmatpush1.xpose.msra.mxu0 0.0
    %8888 = vmatprep.subr.mxu0 0.0
    %8889 = vmatpush1.xpose.msra.mxu0 0.0
    %8890 = vmatprep.subr.mxu0 0.0
    %8891 = vmatpush1.xpose.msra.mxu0 0.0
    %8892 = vmatprep.subr.mxu0 0.0
    %8893 = vmatpush1.xpose.msra.mxu0 0.0
    %8894 = vmatprep.subr.mxu0 0.0
    %8895 = vmatpush1.xpose.msra.mxu0 0.0
    %8896 = vmatprep.subr.mxu0 0.0
    %8897 = vmatpush1.xpose.msra.mxu0 0.0
    %8898 = vmatprep.subr.mxu0 0.0
    %8899 = vmatpush1.xpose.msra.mxu0 0.0
    %8900 = vmatprep.subr.mxu0 0.0
    %8901 = vmatpush1.xpose.msra.mxu0 0.0
    %8902 = vmatprep.subr.mxu0 0.0
    %8903 = vmatpush1.xpose.msra.mxu0 0.0
    %8904 = vmatprep.subr.mxu0 0.0
    %8905 = vmatpush1.xpose.msra.mxu0 0.0
    %8906 = vmatprep.subr.mxu0 0.0
    %8907 = vmatpush1.xpose.msra.mxu0 0.0
    %8908 = vmatprep.subr.mxu0 0.0
    %8909 = vmatpush1.xpose.msra.mxu0 0.0
    %8910 = vmatprep.subr.mxu0 0.0
    %8911 = vmatpush1.xpose.msra.mxu0 0.0
    %8912 = vmatprep.subr.mxu0 0.0
    %8913 = vmatpush1.xpose.msra.mxu0 0.0
    %8914 = vmatprep.subr.mxu0 0.0
    %8915 = vmatpush1.xpose.msra.mxu0 0.0
    %8916 = vmatprep.subr.mxu0 0.0
    %8917 = vmatpush1.xpose.msra.mxu0 0.0
    %8918 = vmatprep.subr.mxu0 0.0
    %8919 = vmatpush1.xpose.msra.mxu0 0.0
    %8920 = vmatprep.mubr.f32.mxu0 0.0
    %8921 = vmatmul.mubr.f32.gmra.mrb[0].mxu0 %v8852
    %v8922 = vpop.f32.mrb[0].mxu0
    %v8923 = vadd.f32 0.0, %v8922
    %v8924 = vpop.f32.mrb[0].mxu0
    %8925 = vdwg.mxu0
    %8926 = vrot.lane.b32.xlu0 %v415, 104
    %v8927 = vpop.permute.xlu0 %8926
    %8928 = vrot.lane.b32.xlu0 %v415, 72
    %v8929 = vpop.permute.xlu0 %8928
    %v8930 = vsel %vm427, %v8927, 0
    %v8932 = vsel %vm427, %v8929, 0
    %8934 = vmatprep.subr.mxu0 0.0
    %8935 = vmatpush1.xpose.msra.mxu0 %v8932
    %8936 = vmatprep.subr.mxu0 0.0
    %8937 = vmatpush1.xpose.msra.mxu0 0.0
    %8938 = vmatprep.subr.mxu0 0.0
    %8939 = vmatpush1.xpose.msra.mxu0 0.0
    %8940 = vmatprep.subr.mxu0 0.0
    %8941 = vmatpush1.xpose.msra.mxu0 0.0
    %8942 = vmatprep.subr.mxu0 0.0
    %8943 = vmatpush1.xpose.msra.mxu0 0.0
    %8944 = vmatprep.subr.mxu0 0.0
    %8945 = vmatpush1.xpose.msra.mxu0 0.0
    %8946 = vmatprep.subr.mxu0 0.0
    %8947 = vmatpush1.xpose.msra.mxu0 0.0
    %8948 = vmatprep.subr.mxu0 0.0
    %8949 = vmatpush1.xpose.msra.mxu0 0.0
    %8950 = vmatprep.subr.mxu0 0.0
    %8951 = vmatpush1.xpose.msra.mxu0 0.0
    %8952 = vmatprep.subr.mxu0 0.0
    %8953 = vmatpush1.xpose.msra.mxu0 0.0
    %8954 = vmatprep.subr.mxu0 0.0
    %8955 = vmatpush1.xpose.msra.mxu0 0.0
    %8956 = vmatprep.subr.mxu0 0.0
    %8957 = vmatpush1.xpose.msra.mxu0 0.0
    %8958 = vmatprep.subr.mxu0 0.0
    %8959 = vmatpush1.xpose.msra.mxu0 0.0
    %8960 = vmatprep.subr.mxu0 0.0
    %8961 = vmatpush1.xpose.msra.mxu0 0.0
    %8962 = vmatprep.subr.mxu0 0.0
    %8963 = vmatpush1.xpose.msra.mxu0 0.0
    %8964 = vmatprep.subr.mxu0 0.0
    %8965 = vmatpush1.xpose.msra.mxu0 0.0
    %8966 = vmatprep.subr.mxu0 0.0
    %8967 = vmatpush1.xpose.msra.mxu0 0.0
    %8968 = vmatprep.subr.mxu0 0.0
    %8969 = vmatpush1.xpose.msra.mxu0 0.0
    %8970 = vmatprep.subr.mxu0 0.0
    %8971 = vmatpush1.xpose.msra.mxu0 0.0
    %8972 = vmatprep.subr.mxu0 0.0
    %8973 = vmatpush1.xpose.msra.mxu0 0.0
    %8974 = vmatprep.subr.mxu0 0.0
    %8975 = vmatpush1.xpose.msra.mxu0 0.0
    %8976 = vmatprep.subr.mxu0 0.0
    %8977 = vmatpush1.xpose.msra.mxu0 0.0
    %8978 = vmatprep.subr.mxu0 0.0
    %8979 = vmatpush1.xpose.msra.mxu0 0.0
    %8980 = vmatprep.subr.mxu0 0.0
    %8981 = vmatpush1.xpose.msra.mxu0 0.0
    %8982 = vmatprep.subr.mxu0 0.0
    %8983 = vmatpush1.xpose.msra.mxu0 0.0
    %8984 = vmatprep.subr.mxu0 0.0
    %8985 = vmatpush1.xpose.msra.mxu0 0.0
    %8986 = vmatprep.subr.mxu0 0.0
    %8987 = vmatpush1.xpose.msra.mxu0 0.0
    %8988 = vmatprep.subr.mxu0 0.0
    %8989 = vmatpush1.xpose.msra.mxu0 0.0
    %8990 = vmatprep.subr.mxu0 0.0
    %8991 = vmatpush1.xpose.msra.mxu0 0.0
    %8992 = vmatprep.subr.mxu0 0.0
    %8993 = vmatpush1.xpose.msra.mxu0 0.0
    %8994 = vmatprep.subr.mxu0 0.0
    %8995 = vmatpush1.xpose.msra.mxu0 0.0
    %8996 = vmatprep.subr.mxu0 0.0
    %8997 = vmatpush1.xpose.msra.mxu0 0.0
    %8998 = vmatprep.mubr.f32.mxu0 0.0
    %8999 = vmatmul.mubr.f32.gmra.mrb[0].mxu0 %v8930
    %v9000 = vpop.f32.mrb[0].mxu0
    %v9001 = vadd.f32 0.0, %v9000
    %v9002 = vpop.f32.mrb[0].mxu0
    %9003 = vdwg.mxu0
    %9004 = vrot.lane.b32.xlu0 %v416, 104
    %v9005 = vpop.permute.xlu0 %9004
    %9006 = vrot.lane.b32.xlu0 %v416, 72
    %v9007 = vpop.permute.xlu0 %9006
    %v9008 = vsel %vm427, %v9005, 0
    %v9010 = vsel %vm427, %v9007, 0
    %9012 = vmatprep.subr.mxu0 0.0
    %9013 = vmatpush1.xpose.msra.mxu0 %v9010
    %9014 = vmatprep.subr.mxu0 0.0
    %9015 = vmatpush1.xpose.msra.mxu0 0.0
    %9016 = vmatprep.subr.mxu0 0.0
    %9017 = vmatpush1.xpose.msra.mxu0 0.0
    %9018 = vmatprep.subr.mxu0 0.0
    %9019 = vmatpush1.xpose.msra.mxu0 0.0
    %9020 = vmatprep.subr.mxu0 0.0
    %9021 = vmatpush1.xpose.msra.mxu0 0.0
    %9022 = vmatprep.subr.mxu0 0.0
    %9023 = vmatpush1.xpose.msra.mxu0 0.0
    %9024 = vmatprep.subr.mxu0 0.0
    %9025 = vmatpush1.xpose.msra.mxu0 0.0
    %9026 = vmatprep.subr.mxu0 0.0
    %9027 = vmatpush1.xpose.msra.mxu0 0.0
    %9028 = vmatprep.subr.mxu0 0.0
    %9029 = vmatpush1.xpose.msra.mxu0 0.0
    %9030 = vmatprep.subr.mxu0 0.0
    %9031 = vmatpush1.xpose.msra.mxu0 0.0
    %9032 = vmatprep.subr.mxu0 0.0
    %9033 = vmatpush1.xpose.msra.mxu0 0.0
    %9034 = vmatprep.subr.mxu0 0.0
    %9035 = vmatpush1.xpose.msra.mxu0 0.0
    %9036 = vmatprep.subr.mxu0 0.0
    %9037 = vmatpush1.xpose.msra.mxu0 0.0
    %9038 = vmatprep.subr.mxu0 0.0
    %9039 = vmatpush1.xpose.msra.mxu0 0.0
    %9040 = vmatprep.subr.mxu0 0.0
    %9041 = vmatpush1.xpose.msra.mxu0 0.0
    %9042 = vmatprep.subr.mxu0 0.0
    %9043 = vmatpush1.xpose.msra.mxu0 0.0
    %9044 = vmatprep.subr.mxu0 0.0
    %9045 = vmatpush1.xpose.msra.mxu0 0.0
    %9046 = vmatprep.subr.mxu0 0.0
    %9047 = vmatpush1.xpose.msra.mxu0 0.0
    %9048 = vmatprep.subr.mxu0 0.0
    %9049 = vmatpush1.xpose.msra.mxu0 0.0
    %9050 = vmatprep.subr.mxu0 0.0
    %9051 = vmatpush1.xpose.msra.mxu0 0.0
    %9052 = vmatprep.subr.mxu0 0.0
    %9053 = vmatpush1.xpose.msra.mxu0 0.0
    %9054 = vmatprep.subr.mxu0 0.0
    %9055 = vmatpush1.xpose.msra.mxu0 0.0
    %9056 = vmatprep.subr.mxu0 0.0
    %9057 = vmatpush1.xpose.msra.mxu0 0.0
    %9058 = vmatprep.subr.mxu0 0.0
    %9059 = vmatpush1.xpose.msra.mxu0 0.0
    %9060 = vmatprep.subr.mxu0 0.0
    %9061 = vmatpush1.xpose.msra.mxu0 0.0
    %9062 = vmatprep.subr.mxu0 0.0
    %9063 = vmatpush1.xpose.msra.mxu0 0.0
    %9064 = vmatprep.subr.mxu0 0.0
    %9065 = vmatpush1.xpose.msra.mxu0 0.0
    %9066 = vmatprep.subr.mxu0 0.0
    %9067 = vmatpush1.xpose.msra.mxu0 0.0
    %9068 = vmatprep.subr.mxu0 0.0
    %9069 = vmatpush1.xpose.msra.mxu0 0.0
    %9070 = vmatprep.subr.mxu0 0.0
    %9071 = vmatpush1.xpose.msra.mxu0 0.0
    %9072 = vmatprep.subr.mxu0 0.0
    %9073 = vmatpush1.xpose.msra.mxu0 0.0
    %9074 = vmatprep.subr.mxu0 0.0
    %9075 = vmatpush1.xpose.msra.mxu0 0.0
    %9076 = vmatprep.mubr.f32.mxu0 0.0
    %9077 = vmatmul.mubr.f32.gmra.mrb[0].mxu0 %v9008
    %v9078 = vpop.f32.mrb[0].mxu0
    %v9079 = vadd.f32 0.0, %v9078
    %v9080 = vpop.f32.mrb[0].mxu0
    %9081 = vdwg.mxu0
    %9082 = vrot.lane.b32.xlu0 %v417, 104
    %v9083 = vpop.permute.xlu0 %9082
    %9084 = vrot.lane.b32.xlu0 %v417, 72
    %v9085 = vpop.permute.xlu0 %9084
    %v9086 = vsel %vm427, %v9083, 0
    %v9088 = vsel %vm427, %v9085, 0
    %9090 = vmatprep.subr.mxu0 0.0
    %9091 = vmatpush1.xpose.msra.mxu0 %v9088
    %9092 = vmatprep.subr.mxu0 0.0
    %9093 = vmatpush1.xpose.msra.mxu0 0.0
    %9094 = vmatprep.subr.mxu0 0.0
    %9095 = vmatpush1.xpose.msra.mxu0 0.0
    %9096 = vmatprep.subr.mxu0 0.0
    %9097 = vmatpush1.xpose.msra.mxu0 0.0
    %9098 = vmatprep.subr.mxu0 0.0
    %9099 = vmatpush1.xpose.msra.mxu0 0.0
    %9100 = vmatprep.subr.mxu0 0.0
    %9101 = vmatpush1.xpose.msra.mxu0 0.0
    %9102 = vmatprep.subr.mxu0 0.0
    %9103 = vmatpush1.xpose.msra.mxu0 0.0
    %9104 = vmatprep.subr.mxu0 0.0
    %9105 = vmatpush1.xpose.msra.mxu0 0.0
    %9106 = vmatprep.subr.mxu0 0.0
    %9107 = vmatpush1.xpose.msra.mxu0 0.0
    %9108 = vmatprep.subr.mxu0 0.0
    %9109 = vmatpush1.xpose.msra.mxu0 0.0
    %9110 = vmatprep.subr.mxu0 0.0
    %9111 = vmatpush1.xpose.msra.mxu0 0.0
    %9112 = vmatprep.subr.mxu0 0.0
    %9113 = vmatpush1.xpose.msra.mxu0 0.0
    %9114 = vmatprep.subr.mxu0 0.0
    %9115 = vmatpush1.xpose.msra.mxu0 0.0
    %9116 = vmatprep.subr.mxu0 0.0
    %9117 = vmatpush1.xpose.msra.mxu0 0.0
    %9118 = vmatprep.subr.mxu0 0.0
    %9119 = vmatpush1.xpose.msra.mxu0 0.0
    %9120 = vmatprep.subr.mxu0 0.0
    %9121 = vmatpush1.xpose.msra.mxu0 0.0
    %9122 = vmatprep.subr.mxu0 0.0
    %9123 = vmatpush1.xpose.msra.mxu0 0.0
    %9124 = vmatprep.subr.mxu0 0.0
    %9125 = vmatpush1.xpose.msra.mxu0 0.0
    %9126 = vmatprep.subr.mxu0 0.0
    %9127 = vmatpush1.xpose.msra.mxu0 0.0
    %9128 = vmatprep.subr.mxu0 0.0
    %9129 = vmatpush1.xpose.msra.mxu0 0.0
    %9130 = vmatprep.subr.mxu0 0.0
    %9131 = vmatpush1.xpose.msra.mxu0 0.0
    %9132 = vmatprep.subr.mxu0 0.0
    %9133 = vmatpush1.xpose.msra.mxu0 0.0
    %9134 = vmatprep.subr.mxu0 0.0
    %9135 = vmatpush1.xpose.msra.mxu0 0.0
    %9136 = vmatprep.subr.mxu0 0.0
    %9137 = vmatpush1.xpose.msra.mxu0 0.0
    %9138 = vmatprep.subr.mxu0 0.0
    %9139 = vmatpush1.xpose.msra.mxu0 0.0
    %9140 = vmatprep.subr.mxu0 0.0
    %9141 = vmatpush1.xpose.msra.mxu0 0.0
    %9142 = vmatprep.subr.mxu0 0.0
    %9143 = vmatpush1.xpose.msra.mxu0 0.0
    %9144 = vmatprep.subr.mxu0 0.0
    %9145 = vmatpush1.xpose.msra.mxu0 0.0
    %9146 = vmatprep.subr.mxu0 0.0
    %9147 = vmatpush1.xpose.msra.mxu0 0.0
    %9148 = vmatprep.subr.mxu0 0.0
    %9149 = vmatpush1.xpose.msra.mxu0 0.0
    %9150 = vmatprep.subr.mxu0 0.0
    %9151 = vmatpush1.xpose.msra.mxu0 0.0
    %9152 = vmatprep.subr.mxu0 0.0
    %9153 = vmatpush1.xpose.msra.mxu0 0.0
    %9154 = vmatprep.mubr.f32.mxu0 0.0
    %9155 = vmatmul.mubr.f32.gmra.mrb[0].mxu0 %v9086
    %v9156 = vpop.f32.mrb[0].mxu0
    %v9157 = vadd.f32 0.0, %v9156
    %v9158 = vpop.f32.mrb[0].mxu0
    %9159 = vdwg.mxu0
    %9160 = vrot.lane.b32.xlu0 %v418, 104
    %v9161 = vpop.permute.xlu0 %9160
    %9162 = vrot.lane.b32.xlu0 %v418, 72
    %v9163 = vpop.permute.xlu0 %9162
    %v9164 = vsel %vm427, %v9161, 0
    %v9166 = vsel %vm427, %v9163, 0
    %9168 = vmatprep.subr.mxu0 0.0
    %9169 = vmatpush1.xpose.msra.mxu0 %v9166
    %9170 = vmatprep.subr.mxu0 0.0
    %9171 = vmatpush1.xpose.msra.mxu0 0.0
    %9172 = vmatprep.subr.mxu0 0.0
    %9173 = vmatpush1.xpose.msra.mxu0 0.0
    %9174 = vmatprep.subr.mxu0 0.0
    %9175 = vmatpush1.xpose.msra.mxu0 0.0
    %9176 = vmatprep.subr.mxu0 0.0
    %9177 = vmatpush1.xpose.msra.mxu0 0.0
    %9178 = vmatprep.subr.mxu0 0.0
    %9179 = vmatpush1.xpose.msra.mxu0 0.0
    %9180 = vmatprep.subr.mxu0 0.0
    %9181 = vmatpush1.xpose.msra.mxu0 0.0
    %9182 = vmatprep.subr.mxu0 0.0
    %9183 = vmatpush1.xpose.msra.mxu0 0.0
    %9184 = vmatprep.subr.mxu0 0.0
    %9185 = vmatpush1.xpose.msra.mxu0 0.0
    %9186 = vmatprep.subr.mxu0 0.0
    %9187 = vmatpush1.xpose.msra.mxu0 0.0
    %9188 = vmatprep.subr.mxu0 0.0
    %9189 = vmatpush1.xpose.msra.mxu0 0.0
    %9190 = vmatprep.subr.mxu0 0.0
    %9191 = vmatpush1.xpose.msra.mxu0 0.0
    %9192 = vmatprep.subr.mxu0 0.0
    %9193 = vmatpush1.xpose.msra.mxu0 0.0
    %9194 = vmatprep.subr.mxu0 0.0
    %9195 = vmatpush1.xpose.msra.mxu0 0.0
    %9196 = vmatprep.subr.mxu0 0.0
    %9197 = vmatpush1.xpose.msra.mxu0 0.0
    %9198 = vmatprep.subr.mxu0 0.0
    %9199 = vmatpush1.xpose.msra.mxu0 0.0
    %9200 = vmatprep.subr.mxu0 0.0
    %9201 = vmatpush1.xpose.msra.mxu0 0.0
    %9202 = vmatprep.subr.mxu0 0.0
    %9203 = vmatpush1.xpose.msra.mxu0 0.0
    %9204 = vmatprep.subr.mxu0 0.0
    %9205 = vmatpush1.xpose.msra.mxu0 0.0
    %9206 = vmatprep.subr.mxu0 0.0
    %9207 = vmatpush1.xpose.msra.mxu0 0.0
    %9208 = vmatprep.subr.mxu0 0.0
    %9209 = vmatpush1.xpose.msra.mxu0 0.0
    %9210 = vmatprep.subr.mxu0 0.0
    %9211 = vmatpush1.xpose.msra.mxu0 0.0
    %9212 = vmatprep.subr.mxu0 0.0
    %9213 = vmatpush1.xpose.msra.mxu0 0.0
    %9214 = vmatprep.subr.mxu0 0.0
    %9215 = vmatpush1.xpose.msra.mxu0 0.0
    %9216 = vmatprep.subr.mxu0 0.0
    %9217 = vmatpush1.xpose.msra.mxu0 0.0
    %9218 = vmatprep.subr.mxu0 0.0
    %9219 = vmatpush1.xpose.msra.mxu0 0.0
    %9220 = vmatprep.subr.mxu0 0.0
    %9221 = vmatpush1.xpose.msra.mxu0 0.0
    %9222 = vmatprep.subr.mxu0 0.0
    %9223 = vmatpush1.xpose.msra.mxu0 0.0
    %9224 = vmatprep.subr.mxu0 0.0
    %9225 = vmatpush1.xpose.msra.mxu0 0.0
    %9226 = vmatprep.subr.mxu0 0.0
    %9227 = vmatpush1.xpose.msra.mxu0 0.0
    %9228 = vmatprep.subr.mxu0 0.0
    %9229 = vmatpush1.xpose.msra.mxu0 0.0
    %9230 = vmatprep.subr.mxu0 0.0
    %9231 = vmatpush1.xpose.msra.mxu0 0.0
    %9232 = vmatprep.mubr.f32.mxu0 0.0
    %9233 = vmatmul.mubr.f32.gmra.mrb[0].mxu0 %v9164
    %v9234 = vpop.f32.mrb[0].mxu0
    %v9235 = vadd.f32 0.0, %v9234
    %v9236 = vpop.f32.mrb[0].mxu0
    %9237 = vdwg.mxu0
    %9238 = vrot.lane.b32.xlu0 %v419, 104
    %v9239 = vpop.permute.xlu0 %9238
    %9240 = vrot.lane.b32.xlu0 %v419, 72
    %v9241 = vpop.permute.xlu0 %9240
    %v9242 = vsel %vm427, %v9239, 0
    %v9244 = vsel %vm427, %v9241, 0
    %9246 = vmatprep.subr.mxu0 0.0
    %9247 = vmatpush1.xpose.msra.mxu0 %v9244
    %9248 = vmatprep.subr.mxu0 0.0
    %9249 = vmatpush1.xpose.msra.mxu0 0.0
    %9250 = vmatprep.subr.mxu0 0.0
    %9251 = vmatpush1.xpose.msra.mxu0 0.0
    %9252 = vmatprep.subr.mxu0 0.0
    %9253 = vmatpush1.xpose.msra.mxu0 0.0
    %9254 = vmatprep.subr.mxu0 0.0
    %9255 = vmatpush1.xpose.msra.mxu0 0.0
    %9256 = vmatprep.subr.mxu0 0.0
    %9257 = vmatpush1.xpose.msra.mxu0 0.0
    %9258 = vmatprep.subr.mxu0 0.0
    %9259 = vmatpush1.xpose.msra.mxu0 0.0
    %9260 = vmatprep.subr.mxu0 0.0
    %9261 = vmatpush1.xpose.msra.mxu0 0.0
    %9262 = vmatprep.subr.mxu0 0.0
    %9263 = vmatpush1.xpose.msra.mxu0 0.0
    %9264 = vmatprep.subr.mxu0 0.0
    %9265 = vmatpush1.xpose.msra.mxu0 0.0
    %9266 = vmatprep.subr.mxu0 0.0
    %9267 = vmatpush1.xpose.msra.mxu0 0.0
    %9268 = vmatprep.subr.mxu0 0.0
    %9269 = vmatpush1.xpose.msra.mxu0 0.0
    %9270 = vmatprep.subr.mxu0 0.0
    %9271 = vmatpush1.xpose.msra.mxu0 0.0
    %9272 = vmatprep.subr.mxu0 0.0
    %9273 = vmatpush1.xpose.msra.mxu0 0.0
    %9274 = vmatprep.subr.mxu0 0.0
    %9275 = vmatpush1.xpose.msra.mxu0 0.0
    %9276 = vmatprep.subr.mxu0 0.0
    %9277 = vmatpush1.xpose.msra.mxu0 0.0
    %9278 = vmatprep.subr.mxu0 0.0
    %9279 = vmatpush1.xpose.msra.mxu0 0.0
    %9280 = vmatprep.subr.mxu0 0.0
    %9281 = vmatpush1.xpose.msra.mxu0 0.0
    %9282 = vmatprep.subr.mxu0 0.0
    %9283 = vmatpush1.xpose.msra.mxu0 0.0
    %9284 = vmatprep.subr.mxu0 0.0
    %9285 = vmatpush1.xpose.msra.mxu0 0.0
    %9286 = vmatprep.subr.mxu0 0.0
    %9287 = vmatpush1.xpose.msra.mxu0 0.0
    %9288 = vmatprep.subr.mxu0 0.0
    %9289 = vmatpush1.xpose.msra.mxu0 0.0
    %9290 = vmatprep.subr.mxu0 0.0
    %9291 = vmatpush1.xpose.msra.mxu0 0.0
    %9292 = vmatprep.subr.mxu0 0.0
    %9293 = vmatpush1.xpose.msra.mxu0 0.0
    %9294 = vmatprep.subr.mxu0 0.0
    %9295 = vmatpush1.xpose.msra.mxu0 0.0
    %9296 = vmatprep.subr.mxu0 0.0
    %9297 = vmatpush1.xpose.msra.mxu0 0.0
    %9298 = vmatprep.subr.mxu0 0.0
    %9299 = vmatpush1.xpose.msra.mxu0 0.0
    %9300 = vmatprep.subr.mxu0 0.0
    %9301 = vmatpush1.xpose.msra.mxu0 0.0
    %9302 = vmatprep.subr.mxu0 0.0
    %9303 = vmatpush1.xpose.msra.mxu0 0.0
    %9304 = vmatprep.subr.mxu0 0.0
    %9305 = vmatpush1.xpose.msra.mxu0 0.0
    %9306 = vmatprep.subr.mxu0 0.0
    %9307 = vmatpush1.xpose.msra.mxu0 0.0
    %9308 = vmatprep.subr.mxu0 0.0
    %9309 = vmatpush1.xpose.msra.mxu0 0.0
    %9310 = vmatprep.mubr.f32.mxu0 0.0
    %9311 = vmatmul.mubr.f32.gmra.mrb[0].mxu0 %v9242
    %v9312 = vpop.f32.mrb[0].mxu0
    %v9313 = vadd.f32 0.0, %v9312
    %v9314 = vpop.f32.mrb[0].mxu0
    %9315 = vdwg.mxu0
    %9316 = vrot.lane.b32.xlu0 %v420, 104
    %v9317 = vpop.permute.xlu0 %9316
    %9318 = vrot.lane.b32.xlu0 %v420, 72
    %v9319 = vpop.permute.xlu0 %9318
    %v9320 = vsel %vm427, %v9317, 0
    %v9322 = vsel %vm427, %v9319, 0
    %9324 = vmatprep.subr.mxu0 0.0
    %9325 = vmatpush1.xpose.msra.mxu0 %v9322
    %9326 = vmatprep.subr.mxu0 0.0
    %9327 = vmatpush1.xpose.msra.mxu0 0.0
    %9328 = vmatprep.subr.mxu0 0.0
    %9329 = vmatpush1.xpose.msra.mxu0 0.0
    %9330 = vmatprep.subr.mxu0 0.0
    %9331 = vmatpush1.xpose.msra.mxu0 0.0
    %9332 = vmatprep.subr.mxu0 0.0
    %9333 = vmatpush1.xpose.msra.mxu0 0.0
    %9334 = vmatprep.subr.mxu0 0.0
    %9335 = vmatpush1.xpose.msra.mxu0 0.0
    %9336 = vmatprep.subr.mxu0 0.0
    %9337 = vmatpush1.xpose.msra.mxu0 0.0
    %9338 = vmatprep.subr.mxu0 0.0
    %9339 = vmatpush1.xpose.msra.mxu0 0.0
    %9340 = vmatprep.subr.mxu0 0.0
    %9341 = vmatpush1.xpose.msra.mxu0 0.0
    %9342 = vmatprep.subr.mxu0 0.0
    %9343 = vmatpush1.xpose.msra.mxu0 0.0
    %9344 = vmatprep.subr.mxu0 0.0
    %9345 = vmatpush1.xpose.msra.mxu0 0.0
    %9346 = vmatprep.subr.mxu0 0.0
    %9347 = vmatpush1.xpose.msra.mxu0 0.0
    %9348 = vmatprep.subr.mxu0 0.0
    %9349 = vmatpush1.xpose.msra.mxu0 0.0
    %9350 = vmatprep.subr.mxu0 0.0
    %9351 = vmatpush1.xpose.msra.mxu0 0.0
    %9352 = vmatprep.subr.mxu0 0.0
    %9353 = vmatpush1.xpose.msra.mxu0 0.0
    %9354 = vmatprep.subr.mxu0 0.0
    %9355 = vmatpush1.xpose.msra.mxu0 0.0
    %9356 = vmatprep.subr.mxu0 0.0
    %9357 = vmatpush1.xpose.msra.mxu0 0.0
    %9358 = vmatprep.subr.mxu0 0.0
    %9359 = vmatpush1.xpose.msra.mxu0 0.0
    %9360 = vmatprep.subr.mxu0 0.0
    %9361 = vmatpush1.xpose.msra.mxu0 0.0
    %9362 = vmatprep.subr.mxu0 0.0
    %9363 = vmatpush1.xpose.msra.mxu0 0.0
    %9364 = vmatprep.subr.mxu0 0.0
    %9365 = vmatpush1.xpose.msra.mxu0 0.0
    %9366 = vmatprep.subr.mxu0 0.0
    %9367 = vmatpush1.xpose.msra.mxu0 0.0
    %9368 = vmatprep.subr.mxu0 0.0
    %9369 = vmatpush1.xpose.msra.mxu0 0.0
    %9370 = vmatprep.subr.mxu0 0.0
    %9371 = vmatpush1.xpose.msra.mxu0 0.0
    %9372 = vmatprep.subr.mxu0 0.0
    %9373 = vmatpush1.xpose.msra.mxu0 0.0
    %9374 = vmatprep.subr.mxu0 0.0
    %9375 = vmatpush1.xpose.msra.mxu0 0.0
    %9376 = vmatprep.subr.mxu0 0.0
    %9377 = vmatpush1.xpose.msra.mxu0 0.0
    %9378 = vmatprep.subr.mxu0 0.0
    %9379 = vmatpush1.xpose.msra.mxu0 0.0
    %9380 = vmatprep.subr.mxu0 0.0
    %9381 = vmatpush1.xpose.msra.mxu0 0.0
    %9382 = vmatprep.subr.mxu0 0.0
    %9383 = vmatpush1.xpose.msra.mxu0 0.0
    %9384 = vmatprep.subr.mxu0 0.0
    %9385 = vmatpush1.xpose.msra.mxu0 0.0
    %9386 = vmatprep.subr.mxu0 0.0
    %9387 = vmatpush1.xpose.msra.mxu0 0.0
    %9388 = vmatprep.mubr.f32.mxu0 0.0
    %9389 = vmatmul.mubr.f32.gmra.mrb[0].mxu0 %v9320
    %v9390 = vpop.f32.mrb[0].mxu0
    %v9391 = vadd.f32 0.0, %v9390
    %v9392 = vpop.f32.mrb[0].mxu0
    %9393 = vdwg.mxu0
    %9394 = vrot.lane.b32.xlu0 %v421, 104
    %v9395 = vpop.permute.xlu0 %9394
    %9396 = vrot.lane.b32.xlu0 %v421, 72
    %v9397 = vpop.permute.xlu0 %9396
    %v9398 = vsel %vm427, %v9395, 0
    %v9400 = vsel %vm427, %v9397, 0
    %9402 = vmatprep.subr.mxu0 0.0
    %9403 = vmatpush1.xpose.msra.mxu0 %v9400
    %9404 = vmatprep.subr.mxu0 0.0
    %9405 = vmatpush1.xpose.msra.mxu0 0.0
    %9406 = vmatprep.subr.mxu0 0.0
    %9407 = vmatpush1.xpose.msra.mxu0 0.0
    %9408 = vmatprep.subr.mxu0 0.0
    %9409 = vmatpush1.xpose.msra.mxu0 0.0
    %9410 = vmatprep.subr.mxu0 0.0
    %9411 = vmatpush1.xpose.msra.mxu0 0.0
    %9412 = vmatprep.subr.mxu0 0.0
    %9413 = vmatpush1.xpose.msra.mxu0 0.0
    %9414 = vmatprep.subr.mxu0 0.0
    %9415 = vmatpush1.xpose.msra.mxu0 0.0
    %9416 = vmatprep.subr.mxu0 0.0
    %9417 = vmatpush1.xpose.msra.mxu0 0.0
    %9418 = vmatprep.subr.mxu0 0.0
    %9419 = vmatpush1.xpose.msra.mxu0 0.0
    %9420 = vmatprep.subr.mxu0 0.0
    %9421 = vmatpush1.xpose.msra.mxu0 0.0
    %9422 = vmatprep.subr.mxu0 0.0
    %9423 = vmatpush1.xpose.msra.mxu0 0.0
    %9424 = vmatprep.subr.mxu0 0.0
    %9425 = vmatpush1.xpose.msra.mxu0 0.0
    %9426 = vmatprep.subr.mxu0 0.0
    %9427 = vmatpush1.xpose.msra.mxu0 0.0
    %9428 = vmatprep.subr.mxu0 0.0
    %9429 = vmatpush1.xpose.msra.mxu0 0.0
    %9430 = vmatprep.subr.mxu0 0.0
    %9431 = vmatpush1.xpose.msra.mxu0 0.0
    %9432 = vmatprep.subr.mxu0 0.0
    %9433 = vmatpush1.xpose.msra.mxu0 0.0
    %9434 = vmatprep.subr.mxu0 0.0
    %9435 = vmatpush1.xpose.msra.mxu0 0.0
    %9436 = vmatprep.subr.mxu0 0.0
    %9437 = vmatpush1.xpose.msra.mxu0 0.0
    %9438 = vmatprep.subr.mxu0 0.0
    %9439 = vmatpush1.xpose.msra.mxu0 0.0
    %9440 = vmatprep.subr.mxu0 0.0
    %9441 = vmatpush1.xpose.msra.mxu0 0.0
    %9442 = vmatprep.subr.mxu0 0.0
    %9443 = vmatpush1.xpose.msra.mxu0 0.0
    %9444 = vmatprep.subr.mxu0 0.0
    %9445 = vmatpush1.xpose.msra.mxu0 0.0
    %9446 = vmatprep.subr.mxu0 0.0
    %9447 = vmatpush1.xpose.msra.mxu0 0.0
    %9448 = vmatprep.subr.mxu0 0.0
    %9449 = vmatpush1.xpose.msra.mxu0 0.0
    %9450 = vmatprep.subr.mxu0 0.0
    %9451 = vmatpush1.xpose.msra.mxu0 0.0
    %9452 = vmatprep.subr.mxu0 0.0
    %9453 = vmatpush1.xpose.msra.mxu0 0.0
    %9454 = vmatprep.subr.mxu0 0.0
    %9455 = vmatpush1.xpose.msra.mxu0 0.0
    %9456 = vmatprep.subr.mxu0 0.0
    %9457 = vmatpush1.xpose.msra.mxu0 0.0
    %9458 = vmatprep.subr.mxu0 0.0
    %9459 = vmatpush1.xpose.msra.mxu0 0.0
    %9460 = vmatprep.subr.mxu0 0.0
    %9461 = vmatpush1.xpose.msra.mxu0 0.0
    %9462 = vmatprep.subr.mxu0 0.0
    %9463 = vmatpush1.xpose.msra.mxu0 0.0
    %9464 = vmatprep.subr.mxu0 0.0
    %9465 = vmatpush1.xpose.msra.mxu0 0.0
    %9466 = vmatprep.mubr.f32.mxu0 0.0
    %9467 = vmatmul.mubr.f32.gmra.mrb[0].mxu0 %v9398
    %v9468 = vpop.f32.mrb[0].mxu0
    %v9469 = vadd.f32 0.0, %v9468
    %v9470 = vpop.f32.mrb[0].mxu0
    %9471 = vdwg.mxu0
    %9472 = vrot.lane.b32.xlu0 %v422, 104
    %v9473 = vpop.permute.xlu0 %9472
    %9474 = vrot.lane.b32.xlu0 %v422, 72
    %v9475 = vpop.permute.xlu0 %9474
    %v9476 = vsel %vm427, %v9473, 0
    %v9478 = vsel %vm427, %v9475, 0
    %9480 = vmatprep.subr.mxu0 0.0
    %9481 = vmatpush1.xpose.msra.mxu0 %v9478
    %9482 = vmatprep.subr.mxu0 0.0
    %9483 = vmatpush1.xpose.msra.mxu0 0.0
    %9484 = vmatprep.subr.mxu0 0.0
    %9485 = vmatpush1.xpose.msra.mxu0 0.0
    %9486 = vmatprep.subr.mxu0 0.0
    %9487 = vmatpush1.xpose.msra.mxu0 0.0
    %9488 = vmatprep.subr.mxu0 0.0
    %9489 = vmatpush1.xpose.msra.mxu0 0.0
    %9490 = vmatprep.subr.mxu0 0.0
    %9491 = vmatpush1.xpose.msra.mxu0 0.0
    %9492 = vmatprep.subr.mxu0 0.0
    %9493 = vmatpush1.xpose.msra.mxu0 0.0
    %9494 = vmatprep.subr.mxu0 0.0
    %9495 = vmatpush1.xpose.msra.mxu0 0.0
    %9496 = vmatprep.subr.mxu0 0.0
    %9497 = vmatpush1.xpose.msra.mxu0 0.0
    %9498 = vmatprep.subr.mxu0 0.0
    %9499 = vmatpush1.xpose.msra.mxu0 0.0
    %9500 = vmatprep.subr.mxu0 0.0
    %9501 = vmatpush1.xpose.msra.mxu0 0.0
    %9502 = vmatprep.subr.mxu0 0.0
    %9503 = vmatpush1.xpose.msra.mxu0 0.0
    %9504 = vmatprep.subr.mxu0 0.0
    %9505 = vmatpush1.xpose.msra.mxu0 0.0
    %9506 = vmatprep.subr.mxu0 0.0
    %9507 = vmatpush1.xpose.msra.mxu0 0.0
    %9508 = vmatprep.subr.mxu0 0.0
    %9509 = vmatpush1.xpose.msra.mxu0 0.0
    %9510 = vmatprep.subr.mxu0 0.0
    %9511 = vmatpush1.xpose.msra.mxu0 0.0
    %9512 = vmatprep.subr.mxu0 0.0
    %9513 = vmatpush1.xpose.msra.mxu0 0.0
    %9514 = vmatprep.subr.mxu0 0.0
    %9515 = vmatpush1.xpose.msra.mxu0 0.0
    %9516 = vmatprep.subr.mxu0 0.0
    %9517 = vmatpush1.xpose.msra.mxu0 0.0
    %9518 = vmatprep.subr.mxu0 0.0
    %9519 = vmatpush1.xpose.msra.mxu0 0.0
    %9520 = vmatprep.subr.mxu0 0.0
    %9521 = vmatpush1.xpose.msra.mxu0 0.0
    %9522 = vmatprep.subr.mxu0 0.0
    %9523 = vmatpush1.xpose.msra.mxu0 0.0
    %9524 = vmatprep.subr.mxu0 0.0
    %9525 = vmatpush1.xpose.msra.mxu0 0.0
    %9526 = vmatprep.subr.mxu0 0.0
    %9527 = vmatpush1.xpose.msra.mxu0 0.0
    %9528 = vmatprep.subr.mxu0 0.0
    %9529 = vmatpush1.xpose.msra.mxu0 0.0
    %9530 = vmatprep.subr.mxu0 0.0
    %9531 = vmatpush1.xpose.msra.mxu0 0.0
    %9532 = vmatprep.subr.mxu0 0.0
    %9533 = vmatpush1.xpose.msra.mxu0 0.0
    %9534 = vmatprep.subr.mxu0 0.0
    %9535 = vmatpush1.xpose.msra.mxu0 0.0
    %9536 = vmatprep.subr.mxu0 0.0
    %9537 = vmatpush1.xpose.msra.mxu0 0.0
    %9538 = vmatprep.subr.mxu0 0.0
    %9539 = vmatpush1.xpose.msra.mxu0 0.0
    %9540 = vmatprep.subr.mxu0 0.0
    %9541 = vmatpush1.xpose.msra.mxu0 0.0
    %9542 = vmatprep.subr.mxu0 0.0
    %9543 = vmatpush1.xpose.msra.mxu0 0.0
    %9544 = vmatprep.mubr.f32.mxu0 0.0
    %9545 = vmatmul.mubr.f32.gmra.mrb[0].mxu0 %v9476
    %v9546 = vpop.f32.mrb[0].mxu0
    %v9547 = vadd.f32 0.0, %v9546
    %v9548 = vpop.f32.mrb[0].mxu0
    %9549 = vdwg.mxu0
    %9550 = vrot.lane.b32.xlu0 %v423, 104
    %v9551 = vpop.permute.xlu0 %9550
    %9552 = vrot.lane.b32.xlu0 %v423, 72
    %v9553 = vpop.permute.xlu0 %9552
    %v9554 = vsel %vm427, %v9551, 0
    %v9556 = vsel %vm427, %v9553, 0
    %9558 = vmatprep.subr.mxu0 0.0
    %9559 = vmatpush1.xpose.msra.mxu0 %v9556
    %9560 = vmatprep.subr.mxu0 0.0
    %9561 = vmatpush1.xpose.msra.mxu0 0.0
    %9562 = vmatprep.subr.mxu0 0.0
    %9563 = vmatpush1.xpose.msra.mxu0 0.0
    %9564 = vmatprep.subr.mxu0 0.0
    %9565 = vmatpush1.xpose.msra.mxu0 0.0
    %9566 = vmatprep.subr.mxu0 0.0
    %9567 = vmatpush1.xpose.msra.mxu0 0.0
    %9568 = vmatprep.subr.mxu0 0.0
    %9569 = vmatpush1.xpose.msra.mxu0 0.0
    %9570 = vmatprep.subr.mxu0 0.0
    %9571 = vmatpush1.xpose.msra.mxu0 0.0
    %9572 = vmatprep.subr.mxu0 0.0
    %9573 = vmatpush1.xpose.msra.mxu0 0.0
    %9574 = vmatprep.subr.mxu0 0.0
    %9575 = vmatpush1.xpose.msra.mxu0 0.0
    %9576 = vmatprep.subr.mxu0 0.0
    %9577 = vmatpush1.xpose.msra.mxu0 0.0
    %9578 = vmatprep.subr.mxu0 0.0
    %9579 = vmatpush1.xpose.msra.mxu0 0.0
    %9580 = vmatprep.subr.mxu0 0.0
    %9581 = vmatpush1.xpose.msra.mxu0 0.0
    %9582 = vmatprep.subr.mxu0 0.0
    %9583 = vmatpush1.xpose.msra.mxu0 0.0
    %9584 = vmatprep.subr.mxu0 0.0
    %9585 = vmatpush1.xpose.msra.mxu0 0.0
    %9586 = vmatprep.subr.mxu0 0.0
    %9587 = vmatpush1.xpose.msra.mxu0 0.0
    %9588 = vmatprep.subr.mxu0 0.0
    %9589 = vmatpush1.xpose.msra.mxu0 0.0
    %9590 = vmatprep.subr.mxu0 0.0
    %9591 = vmatpush1.xpose.msra.mxu0 0.0
    %9592 = vmatprep.subr.mxu0 0.0
    %9593 = vmatpush1.xpose.msra.mxu0 0.0
    %9594 = vmatprep.subr.mxu0 0.0
    %9595 = vmatpush1.xpose.msra.mxu0 0.0
    %9596 = vmatprep.subr.mxu0 0.0
    %9597 = vmatpush1.xpose.msra.mxu0 0.0
    %9598 = vmatprep.subr.mxu0 0.0
    %9599 = vmatpush1.xpose.msra.mxu0 0.0
    %9600 = vmatprep.subr.mxu0 0.0
    %9601 = vmatpush1.xpose.msra.mxu0 0.0
    %9602 = vmatprep.subr.mxu0 0.0
    %9603 = vmatpush1.xpose.msra.mxu0 0.0
    %9604 = vmatprep.subr.mxu0 0.0
    %9605 = vmatpush1.xpose.msra.mxu0 0.0
    %9606 = vmatprep.subr.mxu0 0.0
    %9607 = vmatpush1.xpose.msra.mxu0 0.0
    %9608 = vmatprep.subr.mxu0 0.0
    %9609 = vmatpush1.xpose.msra.mxu0 0.0
    %9610 = vmatprep.subr.mxu0 0.0
    %9611 = vmatpush1.xpose.msra.mxu0 0.0
    %9612 = vmatprep.subr.mxu0 0.0
    %9613 = vmatpush1.xpose.msra.mxu0 0.0
    %9614 = vmatprep.subr.mxu0 0.0
    %9615 = vmatpush1.xpose.msra.mxu0 0.0
    %9616 = vmatprep.subr.mxu0 0.0
    %9617 = vmatpush1.xpose.msra.mxu0 0.0
    %9618 = vmatprep.subr.mxu0 0.0
    %9619 = vmatpush1.xpose.msra.mxu0 0.0
    %9620 = vmatprep.subr.mxu0 0.0
    %9621 = vmatpush1.xpose.msra.mxu0 0.0
    %9622 = vmatprep.mubr.f32.mxu0 0.0
    %9623 = vmatmul.mubr.f32.gmra.mrb[0].mxu0 %v9554
    %v9624 = vpop.f32.mrb[0].mxu0
    %v9625 = vadd.f32 0.0, %v9624
    %v9626 = vpop.f32.mrb[0].mxu0
    %9627 = vdwg.mxu0
    %v9628 = vsel %vm1657, %v8455, -inf
    %9629 = vmax.xlane.f32.xlu0 %v9628
    %v9630 = vpop.xlane.xlu0 %9629
    %v9631 = vsel %vm1657, %v8533, -inf
    %9632 = vmax.xlane.f32.xlu0 %v9631
    %v9633 = vpop.xlane.xlu0 %9632
    %v9634 = vsel %vm1657, %v8611, -inf
    %9635 = vmax.xlane.f32.xlu0 %v9634
    %v9636 = vpop.xlane.xlu0 %9635
    %v9637 = vsel %vm1657, %v8689, -inf
    %9638 = vmax.xlane.f32.xlu0 %v9637
    %v9639 = vpop.xlane.xlu0 %9638
    %v9640 = vsel %vm1657, %v8767, -inf
    %9641 = vmax.xlane.f32.xlu0 %v9640
    %v9642 = vpop.xlane.xlu0 %9641
    %v9643 = vsel %vm1657, %v8845, -inf
    %9644 = vmax.xlane.f32.xlu0 %v9643
    %v9645 = vpop.xlane.xlu0 %9644
    %v9646 = vsel %vm1657, %v8923, -inf
    %9647 = vmax.xlane.f32.xlu0 %v9646
    %v9648 = vpop.xlane.xlu0 %9647
    %v9649 = vsel %vm1657, %v9001, -inf
    %9650 = vmax.xlane.f32.xlu0 %v9649
    %v9651 = vpop.xlane.xlu0 %9650
    %v9652 = vsel %vm1657, %v9079, -inf
    %9653 = vmax.xlane.f32.xlu0 %v9652
    %v9654 = vpop.xlane.xlu0 %9653
    %v9655 = vsel %vm1657, %v9157, -inf
    %9656 = vmax.xlane.f32.xlu0 %v9655
    %v9657 = vpop.xlane.xlu0 %9656
    %v9658 = vsel %vm1657, %v9235, -inf
    %9659 = vmax.xlane.f32.xlu0 %v9658
    %v9660 = vpop.xlane.xlu0 %9659
    %v9661 = vsel %vm1657, %v9313, -inf
    %9662 = vmax.xlane.f32.xlu0 %v9661
    %v9663 = vpop.xlane.xlu0 %9662
    %v9664 = vsel %vm1657, %v9391, -inf
    %9665 = vmax.xlane.f32.xlu0 %v9664
    %v9666 = vpop.xlane.xlu0 %9665
    %v9667 = vsel %vm1657, %v9469, -inf
    %9668 = vmax.xlane.f32.xlu0 %v9667
    %v9669 = vpop.xlane.xlu0 %9668
    %v9670 = vsel %vm1657, %v9547, -inf
    %9671 = vmax.xlane.f32.xlu0 %v9670
    %v9672 = vpop.xlane.xlu0 %9671
    %v9673 = vsel %vm1657, %v9625, -inf
    %9674 = vmax.xlane.f32.xlu0 %v9673
    %v9675 = vpop.xlane.xlu0 %9674
    %v9676 = vsub.f32 %v8455, %v9630
    %v9677 = vsub.f32 %v8533, %v9633
    %v9678 = vsub.f32 %v8611, %v9636
    %v9679 = vsub.f32 %v8689, %v9639
    %v9680 = vsub.f32 %v8767, %v9642
    %v9681 = vsub.f32 %v8845, %v9645
    %v9682 = vsub.f32 %v8923, %v9648
    %v9683 = vsub.f32 %v9001, %v9651
    %v9684 = vsub.f32 %v9079, %v9654
    %v9685 = vsub.f32 %v9157, %v9657
    %v9686 = vsub.f32 %v9235, %v9660
    %v9687 = vsub.f32 %v9313, %v9663
    %v9688 = vsub.f32 %v9391, %v9666
    %v9689 = vsub.f32 %v9469, %v9669
    %v9690 = vsub.f32 %v9547, %v9672
    %v9691 = vsub.f32 %v9625, %v9675
    %v9692 = vmul.f32 %v9676, 1.442695
    %v9693 = vpow.pop %v9692
    %v9694 = vmul.f32 %v9677, 1.442695
    %v9695 = vpow.pop %v9694
    %v9696 = vmul.f32 %v9678, 1.442695
    %v9697 = vpow.pop %v9696
    %v9698 = vmul.f32 %v9679, 1.442695
    %v9699 = vpow.pop %v9698
    %v9700 = vmul.f32 %v9680, 1.442695
    %v9701 = vpow.pop %v9700
    %v9702 = vmul.f32 %v9681, 1.442695
    %v9703 = vpow.pop %v9702
    %v9704 = vmul.f32 %v9682, 1.442695
    %v9705 = vpow.pop %v9704
    %v9706 = vmul.f32 %v9683, 1.442695
    %v9707 = vpow.pop %v9706
    %v9708 = vmul.f32 %v9684, 1.442695
    %v9709 = vpow.pop %v9708
    %v9710 = vmul.f32 %v9685, 1.442695
    %v9711 = vpow.pop %v9710
    %v9712 = vmul.f32 %v9686, 1.442695
    %v9713 = vpow.pop %v9712
    %v9714 = vmul.f32 %v9687, 1.442695
    %v9715 = vpow.pop %v9714
    %v9716 = vmul.f32 %v9688, 1.442695
    %v9717 = vpow.pop %v9716
    %v9718 = vmul.f32 %v9689, 1.442695
    %v9719 = vpow.pop %v9718
    %v9720 = vmul.f32 %v9690, 1.442695
    %v9721 = vpow.pop %v9720
    %v9722 = vmul.f32 %v9691, 1.442695
    %v9723 = vpow.pop %v9722
    %v9724 = vsel %vm1657, %v9693, 0.0
    %9725 = vadd.xlane.f32.xlu0 %v9724
    %v9726 = vpop.xlane.xlu0 %9725
    %v9727 = vsel %vm1657, %v9695, 0.0
    %9728 = vadd.xlane.f32.xlu0 %v9727
    %v9729 = vpop.xlane.xlu0 %9728
    %v9730 = vsel %vm1657, %v9697, 0.0
    %9731 = vadd.xlane.f32.xlu0 %v9730
    %v9732 = vpop.xlane.xlu0 %9731
    %v9733 = vsel %vm1657, %v9699, 0.0
    %9734 = vadd.xlane.f32.xlu0 %v9733
    %v9735 = vpop.xlane.xlu0 %9734
    %v9736 = vsel %vm1657, %v9701, 0.0
    %9737 = vadd.xlane.f32.xlu0 %v9736
    %v9738 = vpop.xlane.xlu0 %9737
    %v9739 = vsel %vm1657, %v9703, 0.0
    %9740 = vadd.xlane.f32.xlu0 %v9739
    %v9741 = vpop.xlane.xlu0 %9740
    %v9742 = vsel %vm1657, %v9705, 0.0
    %9743 = vadd.xlane.f32.xlu0 %v9742
    %v9744 = vpop.xlane.xlu0 %9743
    %v9745 = vsel %vm1657, %v9707, 0.0
    %9746 = vadd.xlane.f32.xlu0 %v9745
    %v9747 = vpop.xlane.xlu0 %9746
    %v9748 = vsel %vm1657, %v9709, 0.0
    %9749 = vadd.xlane.f32.xlu0 %v9748
    %v9750 = vpop.xlane.xlu0 %9749
    %v9751 = vsel %vm1657, %v9711, 0.0
    %9752 = vadd.xlane.f32.xlu0 %v9751
    %v9753 = vpop.xlane.xlu0 %9752
    %v9754 = vsel %vm1657, %v9713, 0.0
    %9755 = vadd.xlane.f32.xlu0 %v9754
    %v9756 = vpop.xlane.xlu0 %9755
    %v9757 = vsel %vm1657, %v9715, 0.0
    %9758 = vadd.xlane.f32.xlu0 %v9757
    %v9759 = vpop.xlane.xlu0 %9758
    %v9760 = vsel %vm1657, %v9717, 0.0
    %9761 = vadd.xlane.f32.xlu0 %v9760
    %v9762 = vpop.xlane.xlu0 %9761
    %v9763 = vsel %vm1657, %v9719, 0.0
    %9764 = vadd.xlane.f32.xlu0 %v9763
    %v9765 = vpop.xlane.xlu0 %9764
    %v9766 = vsel %vm1657, %v9721, 0.0
    %9767 = vadd.xlane.f32.xlu0 %v9766
    %v9768 = vpop.xlane.xlu0 %9767
    %v9769 = vsel %vm1657, %v9723, 0.0
    %9770 = vadd.xlane.f32.xlu0 %v9769
    %v9771 = vpop.xlane.xlu0 %9770
    %v9772 = vrcp.pop %v9726
    %v9773 = vrcp.pop %v9729
    %v9774 = vrcp.pop %v9732
    %v9775 = vrcp.pop %v9735
    %v9776 = vrcp.pop %v9738
    %v9777 = vrcp.pop %v9741
    %v9778 = vrcp.pop %v9744
    %v9779 = vrcp.pop %v9747
    %v9780 = vrcp.pop %v9750
    %v9781 = vrcp.pop %v9753
    %v9782 = vrcp.pop %v9756
    %v9783 = vrcp.pop %v9759
    %v9784 = vrcp.pop %v9762
    %v9785 = vrcp.pop %v9765
    %v9786 = vrcp.pop %v9768
    %v9787 = vrcp.pop %v9771
    %v9788 = vmul.f32 %v9693, %v9772
    %v9789 = vmul.f32 %v9695, %v9773
    %v9790 = vmul.f32 %v9697, %v9774
    %v9791 = vmul.f32 %v9699, %v9775
    %v9792 = vmul.f32 %v9701, %v9776
    %v9793 = vmul.f32 %v9703, %v9777
    %v9794 = vmul.f32 %v9705, %v9778
    %v9795 = vmul.f32 %v9707, %v9779
    %v9796 = vmul.f32 %v9709, %v9780
    %v9797 = vmul.f32 %v9711, %v9781
    %v9798 = vmul.f32 %v9713, %v9782
    %v9799 = vmul.f32 %v9715, %v9783
    %v9800 = vmul.f32 %v9717, %v9784
    %v9801 = vmul.f32 %v9719, %v9785
    %v9802 = vmul.f32 %v9721, %v9786
    %v9803 = vmul.f32 %v9723, %v9787
    %9804 = vrot.lane.b32.xlu0 %v408, 40
    %v9805 = vpop.permute.xlu0 %9804
    %v9807 = vsel %vm1836, %v9788, 0
    %v9809 = vsel %vm1840, %v9805, 0
    %9811 = vmatprep.subr.mxu0 0.0
    %9812 = vmatpush1.msra.mxu0 %v9809
    %9813 = vmatprep.subr.mxu0 0.0
    %9814 = vmatpush1.msra.mxu0 0.0
    %9815 = vmatprep.subr.mxu0 0.0
    %9816 = vmatpush1.msra.mxu0 0.0
    %9817 = vmatprep.subr.mxu0 0.0
    %9818 = vmatpush1.msra.mxu0 0.0
    %9819 = vmatprep.subr.mxu0 0.0
    %9820 = vmatpush1.msra.mxu0 0.0
    %9821 = vmatprep.subr.mxu0 0.0
    %9822 = vmatpush1.msra.mxu0 0.0
    %9823 = vmatprep.subr.mxu0 0.0
    %9824 = vmatpush1.msra.mxu0 0.0
    %9825 = vmatprep.subr.mxu0 0.0
    %9826 = vmatpush1.msra.mxu0 0.0
    %9827 = vmatprep.subr.mxu0 0.0
    %9828 = vmatpush1.msra.mxu0 0.0
    %9829 = vmatprep.subr.mxu0 0.0
    %9830 = vmatpush1.msra.mxu0 0.0
    %9831 = vmatprep.subr.mxu0 0.0
    %9832 = vmatpush1.msra.mxu0 0.0
    %9833 = vmatprep.subr.mxu0 0.0
    %9834 = vmatpush1.msra.mxu0 0.0
    %9835 = vmatprep.subr.mxu0 0.0
    %9836 = vmatpush1.msra.mxu0 0.0
    %9837 = vmatprep.subr.mxu0 0.0
    %9838 = vmatpush1.msra.mxu0 0.0
    %9839 = vmatprep.subr.mxu0 0.0
    %9840 = vmatpush1.msra.mxu0 0.0
    %9841 = vmatprep.subr.mxu0 0.0
    %9842 = vmatpush1.msra.mxu0 0.0
    %9843 = vmatprep.subr.mxu0 0.0
    %9844 = vmatpush1.msra.mxu0 0.0
    %9845 = vmatprep.subr.mxu0 0.0
    %9846 = vmatpush1.msra.mxu0 0.0
    %9847 = vmatprep.subr.mxu0 0.0
    %9848 = vmatpush1.msra.mxu0 0.0
    %9849 = vmatprep.subr.mxu0 0.0
    %9850 = vmatpush1.msra.mxu0 0.0
    %9851 = vmatprep.subr.mxu0 0.0
    %9852 = vmatpush1.msra.mxu0 0.0
    %9853 = vmatprep.subr.mxu0 0.0
    %9854 = vmatpush1.msra.mxu0 0.0
    %9855 = vmatprep.subr.mxu0 0.0
    %9856 = vmatpush1.msra.mxu0 0.0
    %9857 = vmatprep.subr.mxu0 0.0
    %9858 = vmatpush1.msra.mxu0 0.0
    %9859 = vmatprep.subr.mxu0 0.0
    %9860 = vmatpush1.msra.mxu0 0.0
    %9861 = vmatprep.subr.mxu0 0.0
    %9862 = vmatpush1.msra.mxu0 0.0
    %9863 = vmatprep.subr.mxu0 0.0
    %9864 = vmatpush1.msra.mxu0 0.0
    %9865 = vmatprep.subr.mxu0 0.0
    %9866 = vmatpush1.msra.mxu0 0.0
    %9867 = vmatprep.subr.mxu0 0.0
    %9868 = vmatpush1.msra.mxu0 0.0
    %9869 = vmatprep.subr.mxu0 0.0
    %9870 = vmatpush1.msra.mxu0 0.0
    %9871 = vmatprep.subr.mxu0 0.0
    %9872 = vmatpush1.msra.mxu0 0.0
    %9873 = vmatprep.subr.mxu0 0.0
    %9874 = vmatpush1.msra.mxu0 0.0
    %9875 = vmatprep.mubr.f32.mxu0 0.0
    %9876 = vmatmul.mubr.f32.gmra.mrb[0].mxu0 %v9807
    %v9877 = vpop.f32.mrb[0].mxu0
    %v9878 = vadd.f32 0.0, %v9877
    %v9879 = vpop.f32.mrb[0].mxu0
    %9880 = vdwg.mxu0
    %9881 = vrot.lane.b32.xlu0 %v409, 40
    %v9882 = vpop.permute.xlu0 %9881
    %v9884 = vsel %vm1836, %v9789, 0
    %v9886 = vsel %vm1840, %v9882, 0
    %9888 = vmatprep.subr.mxu0 0.0
    %9889 = vmatpush1.msra.mxu0 %v9886
    %9890 = vmatprep.subr.mxu0 0.0
    %9891 = vmatpush1.msra.mxu0 0.0
    %9892 = vmatprep.subr.mxu0 0.0
    %9893 = vmatpush1.msra.mxu0 0.0
    %9894 = vmatprep.subr.mxu0 0.0
    %9895 = vmatpush1.msra.mxu0 0.0
    %9896 = vmatprep.subr.mxu0 0.0
    %9897 = vmatpush1.msra.mxu0 0.0
    %9898 = vmatprep.subr.mxu0 0.0
    %9899 = vmatpush1.msra.mxu0 0.0
    %9900 = vmatprep.subr.mxu0 0.0
    %9901 = vmatpush1.msra.mxu0 0.0
    %9902 = vmatprep.subr.mxu0 0.0
    %9903 = vmatpush1.msra.mxu0 0.0
    %9904 = vmatprep.subr.mxu0 0.0
    %9905 = vmatpush1.msra.mxu0 0.0
    %9906 = vmatprep.subr.mxu0 0.0
    %9907 = vmatpush1.msra.mxu0 0.0
    %9908 = vmatprep.subr.mxu0 0.0
    %9909 = vmatpush1.msra.mxu0 0.0
    %9910 = vmatprep.subr.mxu0 0.0
    %9911 = vmatpush1.msra.mxu0 0.0
    %9912 = vmatprep.subr.mxu0 0.0
    %9913 = vmatpush1.msra.mxu0 0.0
    %9914 = vmatprep.subr.mxu0 0.0
    %9915 = vmatpush1.msra.mxu0 0.0
    %9916 = vmatprep.subr.mxu0 0.0
    %9917 = vmatpush1.msra.mxu0 0.0
    %9918 = vmatprep.subr.mxu0 0.0
    %9919 = vmatpush1.msra.mxu0 0.0
    %9920 = vmatprep.subr.mxu0 0.0
    %9921 = vmatpush1.msra.mxu0 0.0
    %9922 = vmatprep.subr.mxu0 0.0
    %9923 = vmatpush1.msra.mxu0 0.0
    %9924 = vmatprep.subr.mxu0 0.0
    %9925 = vmatpush1.msra.mxu0 0.0
    %9926 = vmatprep.subr.mxu0 0.0
    %9927 = vmatpush1.msra.mxu0 0.0
    %9928 = vmatprep.subr.mxu0 0.0
    %9929 = vmatpush1.msra.mxu0 0.0
    %9930 = vmatprep.subr.mxu0 0.0
    %9931 = vmatpush1.msra.mxu0 0.0
    %9932 = vmatprep.subr.mxu0 0.0
    %9933 = vmatpush1.msra.mxu0 0.0
    %9934 = vmatprep.subr.mxu0 0.0
    %9935 = vmatpush1.msra.mxu0 0.0
    %9936 = vmatprep.subr.mxu0 0.0
    %9937 = vmatpush1.msra.mxu0 0.0
    %9938 = vmatprep.subr.mxu0 0.0
    %9939 = vmatpush1.msra.mxu0 0.0
    %9940 = vmatprep.subr.mxu0 0.0
    %9941 = vmatpush1.msra.mxu0 0.0
    %9942 = vmatprep.subr.mxu0 0.0
    %9943 = vmatpush1.msra.mxu0 0.0
    %9944 = vmatprep.subr.mxu0 0.0
    %9945 = vmatpush1.msra.mxu0 0.0
    %9946 = vmatprep.subr.mxu0 0.0
    %9947 = vmatpush1.msra.mxu0 0.0
    %9948 = vmatprep.subr.mxu0 0.0
    %9949 = vmatpush1.msra.mxu0 0.0
    %9950 = vmatprep.subr.mxu0 0.0
    %9951 = vmatpush1.msra.mxu0 0.0
    %9952 = vmatprep.mubr.f32.mxu0 0.0
    %9953 = vmatmul.mubr.f32.gmra.mrb[0].mxu0 %v9884
    %v9954 = vpop.f32.mrb[0].mxu0
    %v9955 = vadd.f32 0.0, %v9954
    %v9956 = vpop.f32.mrb[0].mxu0
    %9957 = vdwg.mxu0
    %9958 = vrot.lane.b32.xlu0 %v410, 40
    %v9959 = vpop.permute.xlu0 %9958
    %v9961 = vsel %vm1836, %v9790, 0
    %v9963 = vsel %vm1840, %v9959, 0
    %9965 = vmatprep.subr.mxu0 0.0
    %9966 = vmatpush1.msra.mxu0 %v9963
    %9967 = vmatprep.subr.mxu0 0.0
    %9968 = vmatpush1.msra.mxu0 0.0
    %9969 = vmatprep.subr.mxu0 0.0
    %9970 = vmatpush1.msra.mxu0 0.0
    %9971 = vmatprep.subr.mxu0 0.0
    %9972 = vmatpush1.msra.mxu0 0.0
    %9973 = vmatprep.subr.mxu0 0.0
    %9974 = vmatpush1.msra.mxu0 0.0
    %9975 = vmatprep.subr.mxu0 0.0
    %9976 = vmatpush1.msra.mxu0 0.0
    %9977 = vmatprep.subr.mxu0 0.0
    %9978 = vmatpush1.msra.mxu0 0.0
    %9979 = vmatprep.subr.mxu0 0.0
    %9980 = vmatpush1.msra.mxu0 0.0
    %9981 = vmatprep.subr.mxu0 0.0
    %9982 = vmatpush1.msra.mxu0 0.0
    %9983 = vmatprep.subr.mxu0 0.0
    %9984 = vmatpush1.msra.mxu0 0.0
    %9985 = vmatprep.subr.mxu0 0.0
    %9986 = vmatpush1.msra.mxu0 0.0
    %9987 = vmatprep.subr.mxu0 0.0
    %9988 = vmatpush1.msra.mxu0 0.0
    %9989 = vmatprep.subr.mxu0 0.0
    %9990 = vmatpush1.msra.mxu0 0.0
    %9991 = vmatprep.subr.mxu0 0.0
    %9992 = vmatpush1.msra.mxu0 0.0
    %9993 = vmatprep.subr.mxu0 0.0
    %9994 = vmatpush1.msra.mxu0 0.0
    %9995 = vmatprep.subr.mxu0 0.0
    %9996 = vmatpush1.msra.mxu0 0.0
    %9997 = vmatprep.subr.mxu0 0.0
    %9998 = vmatpush1.msra.mxu0 0.0
    %9999 = vmatprep.subr.mxu0 0.0
    %10000 = vmatpush1.msra.mxu0 0.0
    %10001 = vmatprep.subr.mxu0 0.0
    %10002 = vmatpush1.msra.mxu0 0.0
    %10003 = vmatprep.subr.mxu0 0.0
    %10004 = vmatpush1.msra.mxu0 0.0
    %10005 = vmatprep.subr.mxu0 0.0
    %10006 = vmatpush1.msra.mxu0 0.0
    %10007 = vmatprep.subr.mxu0 0.0
    %10008 = vmatpush1.msra.mxu0 0.0
    %10009 = vmatprep.subr.mxu0 0.0
    %10010 = vmatpush1.msra.mxu0 0.0
    %10011 = vmatprep.subr.mxu0 0.0
    %10012 = vmatpush1.msra.mxu0 0.0
    %10013 = vmatprep.subr.mxu0 0.0
    %10014 = vmatpush1.msra.mxu0 0.0
    %10015 = vmatprep.subr.mxu0 0.0
    %10016 = vmatpush1.msra.mxu0 0.0
    %10017 = vmatprep.subr.mxu0 0.0
    %10018 = vmatpush1.msra.mxu0 0.0
    %10019 = vmatprep.subr.mxu0 0.0
    %10020 = vmatpush1.msra.mxu0 0.0
    %10021 = vmatprep.subr.mxu0 0.0
    %10022 = vmatpush1.msra.mxu0 0.0
    %10023 = vmatprep.subr.mxu0 0.0
    %10024 = vmatpush1.msra.mxu0 0.0
    %10025 = vmatprep.subr.mxu0 0.0
    %10026 = vmatpush1.msra.mxu0 0.0
    %10027 = vmatprep.subr.mxu0 0.0
    %10028 = vmatpush1.msra.mxu0 0.0
    %10029 = vmatprep.mubr.f32.mxu0 0.0
    %10030 = vmatmul.mubr.f32.gmra.mrb[0].mxu0 %v9961
    %v10031 = vpop.f32.mrb[0].mxu0
    %v10032 = vadd.f32 0.0, %v10031
    %v10033 = vpop.f32.mrb[0].mxu0
    %10034 = vdwg.mxu0
    %10035 = vrot.lane.b32.xlu0 %v411, 40
    %v10036 = vpop.permute.xlu0 %10035
    %v10038 = vsel %vm1836, %v9791, 0
    %v10040 = vsel %vm1840, %v10036, 0
    %10042 = vmatprep.subr.mxu0 0.0
    %10043 = vmatpush1.msra.mxu0 %v10040
    %10044 = vmatprep.subr.mxu0 0.0
    %10045 = vmatpush1.msra.mxu0 0.0
    %10046 = vmatprep.subr.mxu0 0.0
    %10047 = vmatpush1.msra.mxu0 0.0
    %10048 = vmatprep.subr.mxu0 0.0
    %10049 = vmatpush1.msra.mxu0 0.0
    %10050 = vmatprep.subr.mxu0 0.0
    %10051 = vmatpush1.msra.mxu0 0.0
    %10052 = vmatprep.subr.mxu0 0.0
    %10053 = vmatpush1.msra.mxu0 0.0
    %10054 = vmatprep.subr.mxu0 0.0
    %10055 = vmatpush1.msra.mxu0 0.0
    %10056 = vmatprep.subr.mxu0 0.0
    %10057 = vmatpush1.msra.mxu0 0.0
    %10058 = vmatprep.subr.mxu0 0.0
    %10059 = vmatpush1.msra.mxu0 0.0
    %10060 = vmatprep.subr.mxu0 0.0
    %10061 = vmatpush1.msra.mxu0 0.0
    %10062 = vmatprep.subr.mxu0 0.0
    %10063 = vmatpush1.msra.mxu0 0.0
    %10064 = vmatprep.subr.mxu0 0.0
    %10065 = vmatpush1.msra.mxu0 0.0
    %10066 = vmatprep.subr.mxu0 0.0
    %10067 = vmatpush1.msra.mxu0 0.0
    %10068 = vmatprep.subr.mxu0 0.0
    %10069 = vmatpush1.msra.mxu0 0.0
    %10070 = vmatprep.subr.mxu0 0.0
    %10071 = vmatpush1.msra.mxu0 0.0
    %10072 = vmatprep.subr.mxu0 0.0
    %10073 = vmatpush1.msra.mxu0 0.0
    %10074 = vmatprep.subr.mxu0 0.0
    %10075 = vmatpush1.msra.mxu0 0.0
    %10076 = vmatprep.subr.mxu0 0.0
    %10077 = vmatpush1.msra.mxu0 0.0
    %10078 = vmatprep.subr.mxu0 0.0
    %10079 = vmatpush1.msra.mxu0 0.0
    %10080 = vmatprep.subr.mxu0 0.0
    %10081 = vmatpush1.msra.mxu0 0.0
    %10082 = vmatprep.subr.mxu0 0.0
    %10083 = vmatpush1.msra.mxu0 0.0
    %10084 = vmatprep.subr.mxu0 0.0
    %10085 = vmatpush1.msra.mxu0 0.0
    %10086 = vmatprep.subr.mxu0 0.0
    %10087 = vmatpush1.msra.mxu0 0.0
    %10088 = vmatprep.subr.mxu0 0.0
    %10089 = vmatpush1.msra.mxu0 0.0
    %10090 = vmatprep.subr.mxu0 0.0
    %10091 = vmatpush1.msra.mxu0 0.0
    %10092 = vmatprep.subr.mxu0 0.0
    %10093 = vmatpush1.msra.mxu0 0.0
    %10094 = vmatprep.subr.mxu0 0.0
    %10095 = vmatpush1.msra.mxu0 0.0
    %10096 = vmatprep.subr.mxu0 0.0
    %10097 = vmatpush1.msra.mxu0 0.0
    %10098 = vmatprep.subr.mxu0 0.0
    %10099 = vmatpush1.msra.mxu0 0.0
    %10100 = vmatprep.subr.mxu0 0.0
    %10101 = vmatpush1.msra.mxu0 0.0
    %10102 = vmatprep.subr.mxu0 0.0
    %10103 = vmatpush1.msra.mxu0 0.0
    %10104 = vmatprep.subr.mxu0 0.0
    %10105 = vmatpush1.msra.mxu0 0.0
    %10106 = vmatprep.mubr.f32.mxu0 0.0
    %10107 = vmatmul.mubr.f32.gmra.mrb[0].mxu0 %v10038
    %v10108 = vpop.f32.mrb[0].mxu0
    %v10109 = vadd.f32 0.0, %v10108
    %v10110 = vpop.f32.mrb[0].mxu0
    %10111 = vdwg.mxu0
    %10112 = vrot.lane.b32.xlu0 %v412, 40
    %v10113 = vpop.permute.xlu0 %10112
    %v10115 = vsel %vm1836, %v9792, 0
    %v10117 = vsel %vm1840, %v10113, 0
    %10119 = vmatprep.subr.mxu0 0.0
    %10120 = vmatpush1.msra.mxu0 %v10117
    %10121 = vmatprep.subr.mxu0 0.0
    %10122 = vmatpush1.msra.mxu0 0.0
    %10123 = vmatprep.subr.mxu0 0.0
    %10124 = vmatpush1.msra.mxu0 0.0
    %10125 = vmatprep.subr.mxu0 0.0
    %10126 = vmatpush1.msra.mxu0 0.0
    %10127 = vmatprep.subr.mxu0 0.0
    %10128 = vmatpush1.msra.mxu0 0.0
    %10129 = vmatprep.subr.mxu0 0.0
    %10130 = vmatpush1.msra.mxu0 0.0
    %10131 = vmatprep.subr.mxu0 0.0
    %10132 = vmatpush1.msra.mxu0 0.0
    %10133 = vmatprep.subr.mxu0 0.0
    %10134 = vmatpush1.msra.mxu0 0.0
    %10135 = vmatprep.subr.mxu0 0.0
    %10136 = vmatpush1.msra.mxu0 0.0
    %10137 = vmatprep.subr.mxu0 0.0
    %10138 = vmatpush1.msra.mxu0 0.0
    %10139 = vmatprep.subr.mxu0 0.0
    %10140 = vmatpush1.msra.mxu0 0.0
    %10141 = vmatprep.subr.mxu0 0.0
    %10142 = vmatpush1.msra.mxu0 0.0
    %10143 = vmatprep.subr.mxu0 0.0
    %10144 = vmatpush1.msra.mxu0 0.0
    %10145 = vmatprep.subr.mxu0 0.0
    %10146 = vmatpush1.msra.mxu0 0.0
    %10147 = vmatprep.subr.mxu0 0.0
    %10148 = vmatpush1.msra.mxu0 0.0
    %10149 = vmatprep.subr.mxu0 0.0
    %10150 = vmatpush1.msra.mxu0 0.0
    %10151 = vmatprep.subr.mxu0 0.0
    %10152 = vmatpush1.msra.mxu0 0.0
    %10153 = vmatprep.subr.mxu0 0.0
    %10154 = vmatpush1.msra.mxu0 0.0
    %10155 = vmatprep.subr.mxu0 0.0
    %10156 = vmatpush1.msra.mxu0 0.0
    %10157 = vmatprep.subr.mxu0 0.0
    %10158 = vmatpush1.msra.mxu0 0.0
    %10159 = vmatprep.subr.mxu0 0.0
    %10160 = vmatpush1.msra.mxu0 0.0
    %10161 = vmatprep.subr.mxu0 0.0
    %10162 = vmatpush1.msra.mxu0 0.0
    %10163 = vmatprep.subr.mxu0 0.0
    %10164 = vmatpush1.msra.mxu0 0.0
    %10165 = vmatprep.subr.mxu0 0.0
    %10166 = vmatpush1.msra.mxu0 0.0
    %10167 = vmatprep.subr.mxu0 0.0
    %10168 = vmatpush1.msra.mxu0 0.0
    %10169 = vmatprep.subr.mxu0 0.0
    %10170 = vmatpush1.msra.mxu0 0.0
    %10171 = vmatprep.subr.mxu0 0.0
    %10172 = vmatpush1.msra.mxu0 0.0
    %10173 = vmatprep.subr.mxu0 0.0
    %10174 = vmatpush1.msra.mxu0 0.0
    %10175 = vmatprep.subr.mxu0 0.0
    %10176 = vmatpush1.msra.mxu0 0.0
    %10177 = vmatprep.subr.mxu0 0.0
    %10178 = vmatpush1.msra.mxu0 0.0
    %10179 = vmatprep.subr.mxu0 0.0
    %10180 = vmatpush1.msra.mxu0 0.0
    %10181 = vmatprep.subr.mxu0 0.0
    %10182 = vmatpush1.msra.mxu0 0.0
    %10183 = vmatprep.mubr.f32.mxu0 0.0
    %10184 = vmatmul.mubr.f32.gmra.mrb[0].mxu0 %v10115
    %v10185 = vpop.f32.mrb[0].mxu0
    %v10186 = vadd.f32 0.0, %v10185
    %v10187 = vpop.f32.mrb[0].mxu0
    %10188 = vdwg.mxu0
    %10189 = vrot.lane.b32.xlu0 %v413, 40
    %v10190 = vpop.permute.xlu0 %10189
    %v10192 = vsel %vm1836, %v9793, 0
    %v10194 = vsel %vm1840, %v10190, 0
    %10196 = vmatprep.subr.mxu0 0.0
    %10197 = vmatpush1.msra.mxu0 %v10194
    %10198 = vmatprep.subr.mxu0 0.0
    %10199 = vmatpush1.msra.mxu0 0.0
    %10200 = vmatprep.subr.mxu0 0.0
    %10201 = vmatpush1.msra.mxu0 0.0
    %10202 = vmatprep.subr.mxu0 0.0
    %10203 = vmatpush1.msra.mxu0 0.0
    %10204 = vmatprep.subr.mxu0 0.0
    %10205 = vmatpush1.msra.mxu0 0.0
    %10206 = vmatprep.subr.mxu0 0.0
    %10207 = vmatpush1.msra.mxu0 0.0
    %10208 = vmatprep.subr.mxu0 0.0
    %10209 = vmatpush1.msra.mxu0 0.0
    %10210 = vmatprep.subr.mxu0 0.0
    %10211 = vmatpush1.msra.mxu0 0.0
    %10212 = vmatprep.subr.mxu0 0.0
    %10213 = vmatpush1.msra.mxu0 0.0
    %10214 = vmatprep.subr.mxu0 0.0
    %10215 = vmatpush1.msra.mxu0 0.0
    %10216 = vmatprep.subr.mxu0 0.0
    %10217 = vmatpush1.msra.mxu0 0.0
    %10218 = vmatprep.subr.mxu0 0.0
    %10219 = vmatpush1.msra.mxu0 0.0
    %10220 = vmatprep.subr.mxu0 0.0
    %10221 = vmatpush1.msra.mxu0 0.0
    %10222 = vmatprep.subr.mxu0 0.0
    %10223 = vmatpush1.msra.mxu0 0.0
    %10224 = vmatprep.subr.mxu0 0.0
    %10225 = vmatpush1.msra.mxu0 0.0
    %10226 = vmatprep.subr.mxu0 0.0
    %10227 = vmatpush1.msra.mxu0 0.0
    %10228 = vmatprep.subr.mxu0 0.0
    %10229 = vmatpush1.msra.mxu0 0.0
    %10230 = vmatprep.subr.mxu0 0.0
    %10231 = vmatpush1.msra.mxu0 0.0
    %10232 = vmatprep.subr.mxu0 0.0
    %10233 = vmatpush1.msra.mxu0 0.0
    %10234 = vmatprep.subr.mxu0 0.0
    %10235 = vmatpush1.msra.mxu0 0.0
    %10236 = vmatprep.subr.mxu0 0.0
    %10237 = vmatpush1.msra.mxu0 0.0
    %10238 = vmatprep.subr.mxu0 0.0
    %10239 = vmatpush1.msra.mxu0 0.0
    %10240 = vmatprep.subr.mxu0 0.0
    %10241 = vmatpush1.msra.mxu0 0.0
    %10242 = vmatprep.subr.mxu0 0.0
    %10243 = vmatpush1.msra.mxu0 0.0
    %10244 = vmatprep.subr.mxu0 0.0
    %10245 = vmatpush1.msra.mxu0 0.0
    %10246 = vmatprep.subr.mxu0 0.0
    %10247 = vmatpush1.msra.mxu0 0.0
    %10248 = vmatprep.subr.mxu0 0.0
    %10249 = vmatpush1.msra.mxu0 0.0
    %10250 = vmatprep.subr.mxu0 0.0
    %10251 = vmatpush1.msra.mxu0 0.0
    %10252 = vmatprep.subr.mxu0 0.0
    %10253 = vmatpush1.msra.mxu0 0.0
    %10254 = vmatprep.subr.mxu0 0.0
    %10255 = vmatpush1.msra.mxu0 0.0
    %10256 = vmatprep.subr.mxu0 0.0
    %10257 = vmatpush1.msra.mxu0 0.0
    %10258 = vmatprep.subr.mxu0 0.0
    %10259 = vmatpush1.msra.mxu0 0.0
    %10260 = vmatprep.mubr.f32.mxu0 0.0
    %10261 = vmatmul.mubr.f32.gmra.mrb[0].mxu0 %v10192
    %v10262 = vpop.f32.mrb[0].mxu0
    %v10263 = vadd.f32 0.0, %v10262
    %v10264 = vpop.f32.mrb[0].mxu0
    %10265 = vdwg.mxu0
    %10266 = vrot.lane.b32.xlu0 %v414, 40
    %v10267 = vpop.permute.xlu0 %10266
    %v10269 = vsel %vm1836, %v9794, 0
    %v10271 = vsel %vm1840, %v10267, 0
    %10273 = vmatprep.subr.mxu0 0.0
    %10274 = vmatpush1.msra.mxu0 %v10271
    %10275 = vmatprep.subr.mxu0 0.0
    %10276 = vmatpush1.msra.mxu0 0.0
    %10277 = vmatprep.subr.mxu0 0.0
    %10278 = vmatpush1.msra.mxu0 0.0
    %10279 = vmatprep.subr.mxu0 0.0
    %10280 = vmatpush1.msra.mxu0 0.0
    %10281 = vmatprep.subr.mxu0 0.0
    %10282 = vmatpush1.msra.mxu0 0.0
    %10283 = vmatprep.subr.mxu0 0.0
    %10284 = vmatpush1.msra.mxu0 0.0
    %10285 = vmatprep.subr.mxu0 0.0
    %10286 = vmatpush1.msra.mxu0 0.0
    %10287 = vmatprep.subr.mxu0 0.0
    %10288 = vmatpush1.msra.mxu0 0.0
    %10289 = vmatprep.subr.mxu0 0.0
    %10290 = vmatpush1.msra.mxu0 0.0
    %10291 = vmatprep.subr.mxu0 0.0
    %10292 = vmatpush1.msra.mxu0 0.0
    %10293 = vmatprep.subr.mxu0 0.0
    %10294 = vmatpush1.msra.mxu0 0.0
    %10295 = vmatprep.subr.mxu0 0.0
    %10296 = vmatpush1.msra.mxu0 0.0
    %10297 = vmatprep.subr.mxu0 0.0
    %10298 = vmatpush1.msra.mxu0 0.0
    %10299 = vmatprep.subr.mxu0 0.0
    %10300 = vmatpush1.msra.mxu0 0.0
    %10301 = vmatprep.subr.mxu0 0.0
    %10302 = vmatpush1.msra.mxu0 0.0
    %10303 = vmatprep.subr.mxu0 0.0
    %10304 = vmatpush1.msra.mxu0 0.0
    %10305 = vmatprep.subr.mxu0 0.0
    %10306 = vmatpush1.msra.mxu0 0.0
    %10307 = vmatprep.subr.mxu0 0.0
    %10308 = vmatpush1.msra.mxu0 0.0
    %10309 = vmatprep.subr.mxu0 0.0
    %10310 = vmatpush1.msra.mxu0 0.0
    %10311 = vmatprep.subr.mxu0 0.0
    %10312 = vmatpush1.msra.mxu0 0.0
    %10313 = vmatprep.subr.mxu0 0.0
    %10314 = vmatpush1.msra.mxu0 0.0
    %10315 = vmatprep.subr.mxu0 0.0
    %10316 = vmatpush1.msra.mxu0 0.0
    %10317 = vmatprep.subr.mxu0 0.0
    %10318 = vmatpush1.msra.mxu0 0.0
    %10319 = vmatprep.subr.mxu0 0.0
    %10320 = vmatpush1.msra.mxu0 0.0
    %10321 = vmatprep.subr.mxu0 0.0
    %10322 = vmatpush1.msra.mxu0 0.0
    %10323 = vmatprep.subr.mxu0 0.0
    %10324 = vmatpush1.msra.mxu0 0.0
    %10325 = vmatprep.subr.mxu0 0.0
    %10326 = vmatpush1.msra.mxu0 0.0
    %10327 = vmatprep.subr.mxu0 0.0
    %10328 = vmatpush1.msra.mxu0 0.0
    %10329 = vmatprep.subr.mxu0 0.0
    %10330 = vmatpush1.msra.mxu0 0.0
    %10331 = vmatprep.subr.mxu0 0.0
    %10332 = vmatpush1.msra.mxu0 0.0
    %10333 = vmatprep.subr.mxu0 0.0
    %10334 = vmatpush1.msra.mxu0 0.0
    %10335 = vmatprep.subr.mxu0 0.0
    %10336 = vmatpush1.msra.mxu0 0.0
    %10337 = vmatprep.mubr.f32.mxu0 0.0
    %10338 = vmatmul.mubr.f32.gmra.mrb[0].mxu0 %v10269
    %v10339 = vpop.f32.mrb[0].mxu0
    %v10340 = vadd.f32 0.0, %v10339
    %v10341 = vpop.f32.mrb[0].mxu0
    %10342 = vdwg.mxu0
    %10343 = vrot.lane.b32.xlu0 %v415, 40
    %v10344 = vpop.permute.xlu0 %10343
    %v10346 = vsel %vm1836, %v9795, 0
    %v10348 = vsel %vm1840, %v10344, 0
    %10350 = vmatprep.subr.mxu0 0.0
    %10351 = vmatpush1.msra.mxu0 %v10348
    %10352 = vmatprep.subr.mxu0 0.0
    %10353 = vmatpush1.msra.mxu0 0.0
    %10354 = vmatprep.subr.mxu0 0.0
    %10355 = vmatpush1.msra.mxu0 0.0
    %10356 = vmatprep.subr.mxu0 0.0
    %10357 = vmatpush1.msra.mxu0 0.0
    %10358 = vmatprep.subr.mxu0 0.0
    %10359 = vmatpush1.msra.mxu0 0.0
    %10360 = vmatprep.subr.mxu0 0.0
    %10361 = vmatpush1.msra.mxu0 0.0
    %10362 = vmatprep.subr.mxu0 0.0
    %10363 = vmatpush1.msra.mxu0 0.0
    %10364 = vmatprep.subr.mxu0 0.0
    %10365 = vmatpush1.msra.mxu0 0.0
    %10366 = vmatprep.subr.mxu0 0.0
    %10367 = vmatpush1.msra.mxu0 0.0
    %10368 = vmatprep.subr.mxu0 0.0
    %10369 = vmatpush1.msra.mxu0 0.0
    %10370 = vmatprep.subr.mxu0 0.0
    %10371 = vmatpush1.msra.mxu0 0.0
    %10372 = vmatprep.subr.mxu0 0.0
    %10373 = vmatpush1.msra.mxu0 0.0
    %10374 = vmatprep.subr.mxu0 0.0
    %10375 = vmatpush1.msra.mxu0 0.0
    %10376 = vmatprep.subr.mxu0 0.0
    %10377 = vmatpush1.msra.mxu0 0.0
    %10378 = vmatprep.subr.mxu0 0.0
    %10379 = vmatpush1.msra.mxu0 0.0
    %10380 = vmatprep.subr.mxu0 0.0
    %10381 = vmatpush1.msra.mxu0 0.0
    %10382 = vmatprep.subr.mxu0 0.0
    %10383 = vmatpush1.msra.mxu0 0.0
    %10384 = vmatprep.subr.mxu0 0.0
    %10385 = vmatpush1.msra.mxu0 0.0
    %10386 = vmatprep.subr.mxu0 0.0
    %10387 = vmatpush1.msra.mxu0 0.0
    %10388 = vmatprep.subr.mxu0 0.0
    %10389 = vmatpush1.msra.mxu0 0.0
    %10390 = vmatprep.subr.mxu0 0.0
    %10391 = vmatpush1.msra.mxu0 0.0
    %10392 = vmatprep.subr.mxu0 0.0
    %10393 = vmatpush1.msra.mxu0 0.0
    %10394 = vmatprep.subr.mxu0 0.0
    %10395 = vmatpush1.msra.mxu0 0.0
    %10396 = vmatprep.subr.mxu0 0.0
    %10397 = vmatpush1.msra.mxu0 0.0
    %10398 = vmatprep.subr.mxu0 0.0
    %10399 = vmatpush1.msra.mxu0 0.0
    %10400 = vmatprep.subr.mxu0 0.0
    %10401 = vmatpush1.msra.mxu0 0.0
    %10402 = vmatprep.subr.mxu0 0.0
    %10403 = vmatpush1.msra.mxu0 0.0
    %10404 = vmatprep.subr.mxu0 0.0
    %10405 = vmatpush1.msra.mxu0 0.0
    %10406 = vmatprep.subr.mxu0 0.0
    %10407 = vmatpush1.msra.mxu0 0.0
    %10408 = vmatprep.subr.mxu0 0.0
    %10409 = vmatpush1.msra.mxu0 0.0
    %10410 = vmatprep.subr.mxu0 0.0
    %10411 = vmatpush1.msra.mxu0 0.0
    %10412 = vmatprep.subr.mxu0 0.0
    %10413 = vmatpush1.msra.mxu0 0.0
    %10414 = vmatprep.mubr.f32.mxu0 0.0
    %10415 = vmatmul.mubr.f32.gmra.mrb[0].mxu0 %v10346
    %v10416 = vpop.f32.mrb[0].mxu0
    %v10417 = vadd.f32 0.0, %v10416
    %v10418 = vpop.f32.mrb[0].mxu0
    %10419 = vdwg.mxu0
    %10420 = vrot.lane.b32.xlu0 %v416, 40
    %v10421 = vpop.permute.xlu0 %10420
    %v10423 = vsel %vm1836, %v9796, 0
    %v10425 = vsel %vm1840, %v10421, 0
    %10427 = vmatprep.subr.mxu0 0.0
    %10428 = vmatpush1.msra.mxu0 %v10425
    %10429 = vmatprep.subr.mxu0 0.0
    %10430 = vmatpush1.msra.mxu0 0.0
    %10431 = vmatprep.subr.mxu0 0.0
    %10432 = vmatpush1.msra.mxu0 0.0
    %10433 = vmatprep.subr.mxu0 0.0
    %10434 = vmatpush1.msra.mxu0 0.0
    %10435 = vmatprep.subr.mxu0 0.0
    %10436 = vmatpush1.msra.mxu0 0.0
    %10437 = vmatprep.subr.mxu0 0.0
    %10438 = vmatpush1.msra.mxu0 0.0
    %10439 = vmatprep.subr.mxu0 0.0
    %10440 = vmatpush1.msra.mxu0 0.0
    %10441 = vmatprep.subr.mxu0 0.0
    %10442 = vmatpush1.msra.mxu0 0.0
    %10443 = vmatprep.subr.mxu0 0.0
    %10444 = vmatpush1.msra.mxu0 0.0
    %10445 = vmatprep.subr.mxu0 0.0
    %10446 = vmatpush1.msra.mxu0 0.0
    %10447 = vmatprep.subr.mxu0 0.0
    %10448 = vmatpush1.msra.mxu0 0.0
    %10449 = vmatprep.subr.mxu0 0.0
    %10450 = vmatpush1.msra.mxu0 0.0
    %10451 = vmatprep.subr.mxu0 0.0
    %10452 = vmatpush1.msra.mxu0 0.0
    %10453 = vmatprep.subr.mxu0 0.0
    %10454 = vmatpush1.msra.mxu0 0.0
    %10455 = vmatprep.subr.mxu0 0.0
    %10456 = vmatpush1.msra.mxu0 0.0
    %10457 = vmatprep.subr.mxu0 0.0
    %10458 = vmatpush1.msra.mxu0 0.0
    %10459 = vmatprep.subr.mxu0 0.0
    %10460 = vmatpush1.msra.mxu0 0.0
    %10461 = vmatprep.subr.mxu0 0.0
    %10462 = vmatpush1.msra.mxu0 0.0
    %10463 = vmatprep.subr.mxu0 0.0
    %10464 = vmatpush1.msra.mxu0 0.0
    %10465 = vmatprep.subr.mxu0 0.0
    %10466 = vmatpush1.msra.mxu0 0.0
    %10467 = vmatprep.subr.mxu0 0.0
    %10468 = vmatpush1.msra.mxu0 0.0
    %10469 = vmatprep.subr.mxu0 0.0
    %10470 = vmatpush1.msra.mxu0 0.0
    %10471 = vmatprep.subr.mxu0 0.0
    %10472 = vmatpush1.msra.mxu0 0.0
    %10473 = vmatprep.subr.mxu0 0.0
    %10474 = vmatpush1.msra.mxu0 0.0
    %10475 = vmatprep.subr.mxu0 0.0
    %10476 = vmatpush1.msra.mxu0 0.0
    %10477 = vmatprep.subr.mxu0 0.0
    %10478 = vmatpush1.msra.mxu0 0.0
    %10479 = vmatprep.subr.mxu0 0.0
    %10480 = vmatpush1.msra.mxu0 0.0
    %10481 = vmatprep.subr.mxu0 0.0
    %10482 = vmatpush1.msra.mxu0 0.0
    %10483 = vmatprep.subr.mxu0 0.0
    %10484 = vmatpush1.msra.mxu0 0.0
    %10485 = vmatprep.subr.mxu0 0.0
    %10486 = vmatpush1.msra.mxu0 0.0
    %10487 = vmatprep.subr.mxu0 0.0
    %10488 = vmatpush1.msra.mxu0 0.0
    %10489 = vmatprep.subr.mxu0 0.0
    %10490 = vmatpush1.msra.mxu0 0.0
    %10491 = vmatprep.mubr.f32.mxu0 0.0
    %10492 = vmatmul.mubr.f32.gmra.mrb[0].mxu0 %v10423
    %v10493 = vpop.f32.mrb[0].mxu0
    %v10494 = vadd.f32 0.0, %v10493
    %v10495 = vpop.f32.mrb[0].mxu0
    %10496 = vdwg.mxu0
    %10497 = vrot.lane.b32.xlu0 %v417, 40
    %v10498 = vpop.permute.xlu0 %10497
    %v10500 = vsel %vm1836, %v9797, 0
    %v10502 = vsel %vm1840, %v10498, 0
    %10504 = vmatprep.subr.mxu0 0.0
    %10505 = vmatpush1.msra.mxu0 %v10502
    %10506 = vmatprep.subr.mxu0 0.0
    %10507 = vmatpush1.msra.mxu0 0.0
    %10508 = vmatprep.subr.mxu0 0.0
    %10509 = vmatpush1.msra.mxu0 0.0
    %10510 = vmatprep.subr.mxu0 0.0
    %10511 = vmatpush1.msra.mxu0 0.0
    %10512 = vmatprep.subr.mxu0 0.0
    %10513 = vmatpush1.msra.mxu0 0.0
    %10514 = vmatprep.subr.mxu0 0.0
    %10515 = vmatpush1.msra.mxu0 0.0
    %10516 = vmatprep.subr.mxu0 0.0
    %10517 = vmatpush1.msra.mxu0 0.0
    %10518 = vmatprep.subr.mxu0 0.0
    %10519 = vmatpush1.msra.mxu0 0.0
    %10520 = vmatprep.subr.mxu0 0.0
    %10521 = vmatpush1.msra.mxu0 0.0
    %10522 = vmatprep.subr.mxu0 0.0
    %10523 = vmatpush1.msra.mxu0 0.0
    %10524 = vmatprep.subr.mxu0 0.0
    %10525 = vmatpush1.msra.mxu0 0.0
    %10526 = vmatprep.subr.mxu0 0.0
    %10527 = vmatpush1.msra.mxu0 0.0
    %10528 = vmatprep.subr.mxu0 0.0
    %10529 = vmatpush1.msra.mxu0 0.0
    %10530 = vmatprep.subr.mxu0 0.0
    %10531 = vmatpush1.msra.mxu0 0.0
    %10532 = vmatprep.subr.mxu0 0.0
    %10533 = vmatpush1.msra.mxu0 0.0
    %10534 = vmatprep.subr.mxu0 0.0
    %10535 = vmatpush1.msra.mxu0 0.0
    %10536 = vmatprep.subr.mxu0 0.0
    %10537 = vmatpush1.msra.mxu0 0.0
    %10538 = vmatprep.subr.mxu0 0.0
    %10539 = vmatpush1.msra.mxu0 0.0
    %10540 = vmatprep.subr.mxu0 0.0
    %10541 = vmatpush1.msra.mxu0 0.0
    %10542 = vmatprep.subr.mxu0 0.0
    %10543 = vmatpush1.msra.mxu0 0.0
    %10544 = vmatprep.subr.mxu0 0.0
    %10545 = vmatpush1.msra.mxu0 0.0
    %10546 = vmatprep.subr.mxu0 0.0
    %10547 = vmatpush1.msra.mxu0 0.0
    %10548 = vmatprep.subr.mxu0 0.0
    %10549 = vmatpush1.msra.mxu0 0.0
    %10550 = vmatprep.subr.mxu0 0.0
    %10551 = vmatpush1.msra.mxu0 0.0
    %10552 = vmatprep.subr.mxu0 0.0
    %10553 = vmatpush1.msra.mxu0 0.0
    %10554 = vmatprep.subr.mxu0 0.0
    %10555 = vmatpush1.msra.mxu0 0.0
    %10556 = vmatprep.subr.mxu0 0.0
    %10557 = vmatpush1.msra.mxu0 0.0
    %10558 = vmatprep.subr.mxu0 0.0
    %10559 = vmatpush1.msra.mxu0 0.0
    %10560 = vmatprep.subr.mxu0 0.0
    %10561 = vmatpush1.msra.mxu0 0.0
    %10562 = vmatprep.subr.mxu0 0.0
    %10563 = vmatpush1.msra.mxu0 0.0
    %10564 = vmatprep.subr.mxu0 0.0
    %10565 = vmatpush1.msra.mxu0 0.0
    %10566 = vmatprep.subr.mxu0 0.0
    %10567 = vmatpush1.msra.mxu0 0.0
    %10568 = vmatprep.mubr.f32.mxu0 0.0
    %10569 = vmatmul.mubr.f32.gmra.mrb[0].mxu0 %v10500
    %v10570 = vpop.f32.mrb[0].mxu0
    %v10571 = vadd.f32 0.0, %v10570
    %v10572 = vpop.f32.mrb[0].mxu0
    %10573 = vdwg.mxu0
    %10574 = vrot.lane.b32.xlu0 %v418, 40
    %v10575 = vpop.permute.xlu0 %10574
    %v10577 = vsel %vm1836, %v9798, 0
    %v10579 = vsel %vm1840, %v10575, 0
    %10581 = vmatprep.subr.mxu0 0.0
    %10582 = vmatpush1.msra.mxu0 %v10579
    %10583 = vmatprep.subr.mxu0 0.0
    %10584 = vmatpush1.msra.mxu0 0.0
    %10585 = vmatprep.subr.mxu0 0.0
    %10586 = vmatpush1.msra.mxu0 0.0
    %10587 = vmatprep.subr.mxu0 0.0
    %10588 = vmatpush1.msra.mxu0 0.0
    %10589 = vmatprep.subr.mxu0 0.0
    %10590 = vmatpush1.msra.mxu0 0.0
    %10591 = vmatprep.subr.mxu0 0.0
    %10592 = vmatpush1.msra.mxu0 0.0
    %10593 = vmatprep.subr.mxu0 0.0
    %10594 = vmatpush1.msra.mxu0 0.0
    %10595 = vmatprep.subr.mxu0 0.0
    %10596 = vmatpush1.msra.mxu0 0.0
    %10597 = vmatprep.subr.mxu0 0.0
    %10598 = vmatpush1.msra.mxu0 0.0
    %10599 = vmatprep.subr.mxu0 0.0
    %10600 = vmatpush1.msra.mxu0 0.0
    %10601 = vmatprep.subr.mxu0 0.0
    %10602 = vmatpush1.msra.mxu0 0.0
    %10603 = vmatprep.subr.mxu0 0.0
    %10604 = vmatpush1.msra.mxu0 0.0
    %10605 = vmatprep.subr.mxu0 0.0
    %10606 = vmatpush1.msra.mxu0 0.0
    %10607 = vmatprep.subr.mxu0 0.0
    %10608 = vmatpush1.msra.mxu0 0.0
    %10609 = vmatprep.subr.mxu0 0.0
    %10610 = vmatpush1.msra.mxu0 0.0
    %10611 = vmatprep.subr.mxu0 0.0
    %10612 = vmatpush1.msra.mxu0 0.0
    %10613 = vmatprep.subr.mxu0 0.0
    %10614 = vmatpush1.msra.mxu0 0.0
    %10615 = vmatprep.subr.mxu0 0.0
    %10616 = vmatpush1.msra.mxu0 0.0
    %10617 = vmatprep.subr.mxu0 0.0
    %10618 = vmatpush1.msra.mxu0 0.0
    %10619 = vmatprep.subr.mxu0 0.0
    %10620 = vmatpush1.msra.mxu0 0.0
    %10621 = vmatprep.subr.mxu0 0.0
    %10622 = vmatpush1.msra.mxu0 0.0
    %10623 = vmatprep.subr.mxu0 0.0
    %10624 = vmatpush1.msra.mxu0 0.0
    %10625 = vmatprep.subr.mxu0 0.0
    %10626 = vmatpush1.msra.mxu0 0.0
    %10627 = vmatprep.subr.mxu0 0.0
    %10628 = vmatpush1.msra.mxu0 0.0
    %10629 = vmatprep.subr.mxu0 0.0
    %10630 = vmatpush1.msra.mxu0 0.0
    %10631 = vmatprep.subr.mxu0 0.0
    %10632 = vmatpush1.msra.mxu0 0.0
    %10633 = vmatprep.subr.mxu0 0.0
    %10634 = vmatpush1.msra.mxu0 0.0
    %10635 = vmatprep.subr.mxu0 0.0
    %10636 = vmatpush1.msra.mxu0 0.0
    %10637 = vmatprep.subr.mxu0 0.0
    %10638 = vmatpush1.msra.mxu0 0.0
    %10639 = vmatprep.subr.mxu0 0.0
    %10640 = vmatpush1.msra.mxu0 0.0
    %10641 = vmatprep.subr.mxu0 0.0
    %10642 = vmatpush1.msra.mxu0 0.0
    %10643 = vmatprep.subr.mxu0 0.0
    %10644 = vmatpush1.msra.mxu0 0.0
    %10645 = vmatprep.mubr.f32.mxu0 0.0
    %10646 = vmatmul.mubr.f32.gmra.mrb[0].mxu0 %v10577
    %v10647 = vpop.f32.mrb[0].mxu0
    %v10648 = vadd.f32 0.0, %v10647
    %v10649 = vpop.f32.mrb[0].mxu0
    %10650 = vdwg.mxu0
    %10651 = vrot.lane.b32.xlu0 %v419, 40
    %v10652 = vpop.permute.xlu0 %10651
    %v10654 = vsel %vm1836, %v9799, 0
    %v10656 = vsel %vm1840, %v10652, 0
    %10658 = vmatprep.subr.mxu0 0.0
    %10659 = vmatpush1.msra.mxu0 %v10656
    %10660 = vmatprep.subr.mxu0 0.0
    %10661 = vmatpush1.msra.mxu0 0.0
    %10662 = vmatprep.subr.mxu0 0.0
    %10663 = vmatpush1.msra.mxu0 0.0
    %10664 = vmatprep.subr.mxu0 0.0
    %10665 = vmatpush1.msra.mxu0 0.0
    %10666 = vmatprep.subr.mxu0 0.0
    %10667 = vmatpush1.msra.mxu0 0.0
    %10668 = vmatprep.subr.mxu0 0.0
    %10669 = vmatpush1.msra.mxu0 0.0
    %10670 = vmatprep.subr.mxu0 0.0
    %10671 = vmatpush1.msra.mxu0 0.0
    %10672 = vmatprep.subr.mxu0 0.0
    %10673 = vmatpush1.msra.mxu0 0.0
    %10674 = vmatprep.subr.mxu0 0.0
    %10675 = vmatpush1.msra.mxu0 0.0
    %10676 = vmatprep.subr.mxu0 0.0
    %10677 = vmatpush1.msra.mxu0 0.0
    %10678 = vmatprep.subr.mxu0 0.0
    %10679 = vmatpush1.msra.mxu0 0.0
    %10680 = vmatprep.subr.mxu0 0.0
    %10681 = vmatpush1.msra.mxu0 0.0
    %10682 = vmatprep.subr.mxu0 0.0
    %10683 = vmatpush1.msra.mxu0 0.0
    %10684 = vmatprep.subr.mxu0 0.0
    %10685 = vmatpush1.msra.mxu0 0.0
    %10686 = vmatprep.subr.mxu0 0.0
    %10687 = vmatpush1.msra.mxu0 0.0
    %10688 = vmatprep.subr.mxu0 0.0
    %10689 = vmatpush1.msra.mxu0 0.0
    %10690 = vmatprep.subr.mxu0 0.0
    %10691 = vmatpush1.msra.mxu0 0.0
    %10692 = vmatprep.subr.mxu0 0.0
    %10693 = vmatpush1.msra.mxu0 0.0
    %10694 = vmatprep.subr.mxu0 0.0
    %10695 = vmatpush1.msra.mxu0 0.0
    %10696 = vmatprep.subr.mxu0 0.0
    %10697 = vmatpush1.msra.mxu0 0.0
    %10698 = vmatprep.subr.mxu0 0.0
    %10699 = vmatpush1.msra.mxu0 0.0
    %10700 = vmatprep.subr.mxu0 0.0
    %10701 = vmatpush1.msra.mxu0 0.0
    %10702 = vmatprep.subr.mxu0 0.0
    %10703 = vmatpush1.msra.mxu0 0.0
    %10704 = vmatprep.subr.mxu0 0.0
    %10705 = vmatpush1.msra.mxu0 0.0
    %10706 = vmatprep.subr.mxu0 0.0
    %10707 = vmatpush1.msra.mxu0 0.0
    %10708 = vmatprep.subr.mxu0 0.0
    %10709 = vmatpush1.msra.mxu0 0.0
    %10710 = vmatprep.subr.mxu0 0.0
    %10711 = vmatpush1.msra.mxu0 0.0
    %10712 = vmatprep.subr.mxu0 0.0
    %10713 = vmatpush1.msra.mxu0 0.0
    %10714 = vmatprep.subr.mxu0 0.0
    %10715 = vmatpush1.msra.mxu0 0.0
    %10716 = vmatprep.subr.mxu0 0.0
    %10717 = vmatpush1.msra.mxu0 0.0
    %10718 = vmatprep.subr.mxu0 0.0
    %10719 = vmatpush1.msra.mxu0 0.0
    %10720 = vmatprep.subr.mxu0 0.0
    %10721 = vmatpush1.msra.mxu0 0.0
    %10722 = vmatprep.mubr.f32.mxu0 0.0
    %10723 = vmatmul.mubr.f32.gmra.mrb[0].mxu0 %v10654
    %v10724 = vpop.f32.mrb[0].mxu0
    %v10725 = vadd.f32 0.0, %v10724
    %v10726 = vpop.f32.mrb[0].mxu0
    %10727 = vdwg.mxu0
    %10728 = vrot.lane.b32.xlu0 %v420, 40
    %v10729 = vpop.permute.xlu0 %10728
    %v10731 = vsel %vm1836, %v9800, 0
    %v10733 = vsel %vm1840, %v10729, 0
    %10735 = vmatprep.subr.mxu0 0.0
    %10736 = vmatpush1.msra.mxu0 %v10733
    %10737 = vmatprep.subr.mxu0 0.0
    %10738 = vmatpush1.msra.mxu0 0.0
    %10739 = vmatprep.subr.mxu0 0.0
    %10740 = vmatpush1.msra.mxu0 0.0
    %10741 = vmatprep.subr.mxu0 0.0
    %10742 = vmatpush1.msra.mxu0 0.0
    %10743 = vmatprep.subr.mxu0 0.0
    %10744 = vmatpush1.msra.mxu0 0.0
    %10745 = vmatprep.subr.mxu0 0.0
    %10746 = vmatpush1.msra.mxu0 0.0
    %10747 = vmatprep.subr.mxu0 0.0
    %10748 = vmatpush1.msra.mxu0 0.0
    %10749 = vmatprep.subr.mxu0 0.0
    %10750 = vmatpush1.msra.mxu0 0.0
    %10751 = vmatprep.subr.mxu0 0.0
    %10752 = vmatpush1.msra.mxu0 0.0
    %10753 = vmatprep.subr.mxu0 0.0
    %10754 = vmatpush1.msra.mxu0 0.0
    %10755 = vmatprep.subr.mxu0 0.0
    %10756 = vmatpush1.msra.mxu0 0.0
    %10757 = vmatprep.subr.mxu0 0.0
    %10758 = vmatpush1.msra.mxu0 0.0
    %10759 = vmatprep.subr.mxu0 0.0
    %10760 = vmatpush1.msra.mxu0 0.0
    %10761 = vmatprep.subr.mxu0 0.0
    %10762 = vmatpush1.msra.mxu0 0.0
    %10763 = vmatprep.subr.mxu0 0.0
    %10764 = vmatpush1.msra.mxu0 0.0
    %10765 = vmatprep.subr.mxu0 0.0
    %10766 = vmatpush1.msra.mxu0 0.0
    %10767 = vmatprep.subr.mxu0 0.0
    %10768 = vmatpush1.msra.mxu0 0.0
    %10769 = vmatprep.subr.mxu0 0.0
    %10770 = vmatpush1.msra.mxu0 0.0
    %10771 = vmatprep.subr.mxu0 0.0
    %10772 = vmatpush1.msra.mxu0 0.0
    %10773 = vmatprep.subr.mxu0 0.0
    %10774 = vmatpush1.msra.mxu0 0.0
    %10775 = vmatprep.subr.mxu0 0.0
    %10776 = vmatpush1.msra.mxu0 0.0
    %10777 = vmatprep.subr.mxu0 0.0
    %10778 = vmatpush1.msra.mxu0 0.0
    %10779 = vmatprep.subr.mxu0 0.0
    %10780 = vmatpush1.msra.mxu0 0.0
    %10781 = vmatprep.subr.mxu0 0.0
    %10782 = vmatpush1.msra.mxu0 0.0
    %10783 = vmatprep.subr.mxu0 0.0
    %10784 = vmatpush1.msra.mxu0 0.0
    %10785 = vmatprep.subr.mxu0 0.0
    %10786 = vmatpush1.msra.mxu0 0.0
    %10787 = vmatprep.subr.mxu0 0.0
    %10788 = vmatpush1.msra.mxu0 0.0
    %10789 = vmatprep.subr.mxu0 0.0
    %10790 = vmatpush1.msra.mxu0 0.0
    %10791 = vmatprep.subr.mxu0 0.0
    %10792 = vmatpush1.msra.mxu0 0.0
    %10793 = vmatprep.subr.mxu0 0.0
    %10794 = vmatpush1.msra.mxu0 0.0
    %10795 = vmatprep.subr.mxu0 0.0
    %10796 = vmatpush1.msra.mxu0 0.0
    %10797 = vmatprep.subr.mxu0 0.0
    %10798 = vmatpush1.msra.mxu0 0.0
    %10799 = vmatprep.mubr.f32.mxu0 0.0
    %10800 = vmatmul.mubr.f32.gmra.mrb[0].mxu0 %v10731
    %v10801 = vpop.f32.mrb[0].mxu0
    %v10802 = vadd.f32 0.0, %v10801
    %v10803 = vpop.f32.mrb[0].mxu0
    %10804 = vdwg.mxu0
    %10805 = vrot.lane.b32.xlu0 %v421, 40
    %v10806 = vpop.permute.xlu0 %10805
    %v10808 = vsel %vm1836, %v9801, 0
    %v10810 = vsel %vm1840, %v10806, 0
    %10812 = vmatprep.subr.mxu0 0.0
    %10813 = vmatpush1.msra.mxu0 %v10810
    %10814 = vmatprep.subr.mxu0 0.0
    %10815 = vmatpush1.msra.mxu0 0.0
    %10816 = vmatprep.subr.mxu0 0.0
    %10817 = vmatpush1.msra.mxu0 0.0
    %10818 = vmatprep.subr.mxu0 0.0
    %10819 = vmatpush1.msra.mxu0 0.0
    %10820 = vmatprep.subr.mxu0 0.0
    %10821 = vmatpush1.msra.mxu0 0.0
    %10822 = vmatprep.subr.mxu0 0.0
    %10823 = vmatpush1.msra.mxu0 0.0
    %10824 = vmatprep.subr.mxu0 0.0
    %10825 = vmatpush1.msra.mxu0 0.0
    %10826 = vmatprep.subr.mxu0 0.0
    %10827 = vmatpush1.msra.mxu0 0.0
    %10828 = vmatprep.subr.mxu0 0.0
    %10829 = vmatpush1.msra.mxu0 0.0
    %10830 = vmatprep.subr.mxu0 0.0
    %10831 = vmatpush1.msra.mxu0 0.0
    %10832 = vmatprep.subr.mxu0 0.0
    %10833 = vmatpush1.msra.mxu0 0.0
    %10834 = vmatprep.subr.mxu0 0.0
    %10835 = vmatpush1.msra.mxu0 0.0
    %10836 = vmatprep.subr.mxu0 0.0
    %10837 = vmatpush1.msra.mxu0 0.0
    %10838 = vmatprep.subr.mxu0 0.0
    %10839 = vmatpush1.msra.mxu0 0.0
    %10840 = vmatprep.subr.mxu0 0.0
    %10841 = vmatpush1.msra.mxu0 0.0
    %10842 = vmatprep.subr.mxu0 0.0
    %10843 = vmatpush1.msra.mxu0 0.0
    %10844 = vmatprep.subr.mxu0 0.0
    %10845 = vmatpush1.msra.mxu0 0.0
    %10846 = vmatprep.subr.mxu0 0.0
    %10847 = vmatpush1.msra.mxu0 0.0
    %10848 = vmatprep.subr.mxu0 0.0
    %10849 = vmatpush1.msra.mxu0 0.0
    %10850 = vmatprep.subr.mxu0 0.0
    %10851 = vmatpush1.msra.mxu0 0.0
    %10852 = vmatprep.subr.mxu0 0.0
    %10853 = vmatpush1.msra.mxu0 0.0
    %10854 = vmatprep.subr.mxu0 0.0
    %10855 = vmatpush1.msra.mxu0 0.0
    %10856 = vmatprep.subr.mxu0 0.0
    %10857 = vmatpush1.msra.mxu0 0.0
    %10858 = vmatprep.subr.mxu0 0.0
    %10859 = vmatpush1.msra.mxu0 0.0
    %10860 = vmatprep.subr.mxu0 0.0
    %10861 = vmatpush1.msra.mxu0 0.0
    %10862 = vmatprep.subr.mxu0 0.0
    %10863 = vmatpush1.msra.mxu0 0.0
    %10864 = vmatprep.subr.mxu0 0.0
    %10865 = vmatpush1.msra.mxu0 0.0
    %10866 = vmatprep.subr.mxu0 0.0
    %10867 = vmatpush1.msra.mxu0 0.0
    %10868 = vmatprep.subr.mxu0 0.0
    %10869 = vmatpush1.msra.mxu0 0.0
    %10870 = vmatprep.subr.mxu0 0.0
    %10871 = vmatpush1.msra.mxu0 0.0
    %10872 = vmatprep.subr.mxu0 0.0
    %10873 = vmatpush1.msra.mxu0 0.0
    %10874 = vmatprep.subr.mxu0 0.0
    %10875 = vmatpush1.msra.mxu0 0.0
    %10876 = vmatprep.mubr.f32.mxu0 0.0
    %10877 = vmatmul.mubr.f32.gmra.mrb[0].mxu0 %v10808
    %v10878 = vpop.f32.mrb[0].mxu0
    %v10879 = vadd.f32 0.0, %v10878
    %v10880 = vpop.f32.mrb[0].mxu0
    %10881 = vdwg.mxu0
    %10882 = vrot.lane.b32.xlu0 %v422, 40
    %v10883 = vpop.permute.xlu0 %10882
    %v10885 = vsel %vm1836, %v9802, 0
    %v10887 = vsel %vm1840, %v10883, 0
    %10889 = vmatprep.subr.mxu0 0.0
    %10890 = vmatpush1.msra.mxu0 %v10887
    %10891 = vmatprep.subr.mxu0 0.0
    %10892 = vmatpush1.msra.mxu0 0.0
    %10893 = vmatprep.subr.mxu0 0.0
    %10894 = vmatpush1.msra.mxu0 0.0
    %10895 = vmatprep.subr.mxu0 0.0
    %10896 = vmatpush1.msra.mxu0 0.0
    %10897 = vmatprep.subr.mxu0 0.0
    %10898 = vmatpush1.msra.mxu0 0.0
    %10899 = vmatprep.subr.mxu0 0.0
    %10900 = vmatpush1.msra.mxu0 0.0
    %10901 = vmatprep.subr.mxu0 0.0
    %10902 = vmatpush1.msra.mxu0 0.0
    %10903 = vmatprep.subr.mxu0 0.0
    %10904 = vmatpush1.msra.mxu0 0.0
    %10905 = vmatprep.subr.mxu0 0.0
    %10906 = vmatpush1.msra.mxu0 0.0
    %10907 = vmatprep.subr.mxu0 0.0
    %10908 = vmatpush1.msra.mxu0 0.0
    %10909 = vmatprep.subr.mxu0 0.0
    %10910 = vmatpush1.msra.mxu0 0.0
    %10911 = vmatprep.subr.mxu0 0.0
    %10912 = vmatpush1.msra.mxu0 0.0
    %10913 = vmatprep.subr.mxu0 0.0
    %10914 = vmatpush1.msra.mxu0 0.0
    %10915 = vmatprep.subr.mxu0 0.0
    %10916 = vmatpush1.msra.mxu0 0.0
    %10917 = vmatprep.subr.mxu0 0.0
    %10918 = vmatpush1.msra.mxu0 0.0
    %10919 = vmatprep.subr.mxu0 0.0
    %10920 = vmatpush1.msra.mxu0 0.0
    %10921 = vmatprep.subr.mxu0 0.0
    %10922 = vmatpush1.msra.mxu0 0.0
    %10923 = vmatprep.subr.mxu0 0.0
    %10924 = vmatpush1.msra.mxu0 0.0
    %10925 = vmatprep.subr.mxu0 0.0
    %10926 = vmatpush1.msra.mxu0 0.0
    %10927 = vmatprep.subr.mxu0 0.0
    %10928 = vmatpush1.msra.mxu0 0.0
    %10929 = vmatprep.subr.mxu0 0.0
    %10930 = vmatpush1.msra.mxu0 0.0
    %10931 = vmatprep.subr.mxu0 0.0
    %10932 = vmatpush1.msra.mxu0 0.0
    %10933 = vmatprep.subr.mxu0 0.0
    %10934 = vmatpush1.msra.mxu0 0.0
    %10935 = vmatprep.subr.mxu0 0.0
    %10936 = vmatpush1.msra.mxu0 0.0
    %10937 = vmatprep.subr.mxu0 0.0
    %10938 = vmatpush1.msra.mxu0 0.0
    %10939 = vmatprep.subr.mxu0 0.0
    %10940 = vmatpush1.msra.mxu0 0.0
    %10941 = vmatprep.subr.mxu0 0.0
    %10942 = vmatpush1.msra.mxu0 0.0
    %10943 = vmatprep.subr.mxu0 0.0
    %10944 = vmatpush1.msra.mxu0 0.0
    %10945 = vmatprep.subr.mxu0 0.0
    %10946 = vmatpush1.msra.mxu0 0.0
    %10947 = vmatprep.subr.mxu0 0.0
    %10948 = vmatpush1.msra.mxu0 0.0
    %10949 = vmatprep.subr.mxu0 0.0
    %10950 = vmatpush1.msra.mxu0 0.0
    %10951 = vmatprep.subr.mxu0 0.0
    %10952 = vmatpush1.msra.mxu0 0.0
    %10953 = vmatprep.mubr.f32.mxu0 0.0
    %10954 = vmatmul.mubr.f32.gmra.mrb[0].mxu0 %v10885
    %v10955 = vpop.f32.mrb[0].mxu0
    %v10956 = vadd.f32 0.0, %v10955
    %v10957 = vpop.f32.mrb[0].mxu0
    %10958 = vdwg.mxu0
    %10959 = vrot.lane.b32.xlu0 %v423, 40
    %v10960 = vpop.permute.xlu0 %10959
    %v10962 = vsel %vm1836, %v9803, 0
    %v10964 = vsel %vm1840, %v10960, 0
    %10966 = vmatprep.subr.mxu0 0.0
    %10967 = vmatpush1.msra.mxu0 %v10964
    %10968 = vmatprep.subr.mxu0 0.0
    %10969 = vmatpush1.msra.mxu0 0.0
    %10970 = vmatprep.subr.mxu0 0.0
    %10971 = vmatpush1.msra.mxu0 0.0
    %10972 = vmatprep.subr.mxu0 0.0
    %10973 = vmatpush1.msra.mxu0 0.0
    %10974 = vmatprep.subr.mxu0 0.0
    %10975 = vmatpush1.msra.mxu0 0.0
    %10976 = vmatprep.subr.mxu0 0.0
    %10977 = vmatpush1.msra.mxu0 0.0
    %10978 = vmatprep.subr.mxu0 0.0
    %10979 = vmatpush1.msra.mxu0 0.0
    %10980 = vmatprep.subr.mxu0 0.0
    %10981 = vmatpush1.msra.mxu0 0.0
    %10982 = vmatprep.subr.mxu0 0.0
    %10983 = vmatpush1.msra.mxu0 0.0
    %10984 = vmatprep.subr.mxu0 0.0
    %10985 = vmatpush1.msra.mxu0 0.0
    %10986 = vmatprep.subr.mxu0 0.0
    %10987 = vmatpush1.msra.mxu0 0.0
    %10988 = vmatprep.subr.mxu0 0.0
    %10989 = vmatpush1.msra.mxu0 0.0
    %10990 = vmatprep.subr.mxu0 0.0
    %10991 = vmatpush1.msra.mxu0 0.0
    %10992 = vmatprep.subr.mxu0 0.0
    %10993 = vmatpush1.msra.mxu0 0.0
    %10994 = vmatprep.subr.mxu0 0.0
    %10995 = vmatpush1.msra.mxu0 0.0
    %10996 = vmatprep.subr.mxu0 0.0
    %10997 = vmatpush1.msra.mxu0 0.0
    %10998 = vmatprep.subr.mxu0 0.0
    %10999 = vmatpush1.msra.mxu0 0.0
    %11000 = vmatprep.subr.mxu0 0.0
    %11001 = vmatpush1.msra.mxu0 0.0
    %11002 = vmatprep.subr.mxu0 0.0
    %11003 = vmatpush1.msra.mxu0 0.0
    %11004 = vmatprep.subr.mxu0 0.0
    %11005 = vmatpush1.msra.mxu0 0.0
    %11006 = vmatprep.subr.mxu0 0.0
    %11007 = vmatpush1.msra.mxu0 0.0
    %11008 = vmatprep.subr.mxu0 0.0
    %11009 = vmatpush1.msra.mxu0 0.0
    %11010 = vmatprep.subr.mxu0 0.0
    %11011 = vmatpush1.msra.mxu0 0.0
    %11012 = vmatprep.subr.mxu0 0.0
    %11013 = vmatpush1.msra.mxu0 0.0
    %11014 = vmatprep.subr.mxu0 0.0
    %11015 = vmatpush1.msra.mxu0 0.0
    %11016 = vmatprep.subr.mxu0 0.0
    %11017 = vmatpush1.msra.mxu0 0.0
    %11018 = vmatprep.subr.mxu0 0.0
    %11019 = vmatpush1.msra.mxu0 0.0
    %11020 = vmatprep.subr.mxu0 0.0
    %11021 = vmatpush1.msra.mxu0 0.0
    %11022 = vmatprep.subr.mxu0 0.0
    %11023 = vmatpush1.msra.mxu0 0.0
    %11024 = vmatprep.subr.mxu0 0.0
    %11025 = vmatpush1.msra.mxu0 0.0
    %11026 = vmatprep.subr.mxu0 0.0
    %11027 = vmatpush1.msra.mxu0 0.0
    %11028 = vmatprep.subr.mxu0 0.0
    %11029 = vmatpush1.msra.mxu0 0.0
    %11030 = vmatprep.mubr.f32.mxu0 0.0
    %11031 = vmatmul.mubr.f32.gmra.mrb[0].mxu0 %v10962
    %v11032 = vpop.f32.mrb[0].mxu0
    %v11033 = vadd.f32 0.0, %v11032
    %v11034 = vpop.f32.mrb[0].mxu0
    %11035 = vdwg.mxu0
    %11052 = vrot.lane.b32.xlu0 %v4566, 8
    %v11053 = vpop.permute.xlu0 %11052
    %11054 = vrot.lane.b32.xlu0 %v4643, 8
    %v11055 = vpop.permute.xlu0 %11054
    %11056 = vrot.lane.b32.xlu0 %v4720, 8
    %v11057 = vpop.permute.xlu0 %11056
    %11058 = vrot.lane.b32.xlu0 %v4797, 8
    %v11059 = vpop.permute.xlu0 %11058
    %11060 = vrot.lane.b32.xlu0 %v4874, 8
    %v11061 = vpop.permute.xlu0 %11060
    %11062 = vrot.lane.b32.xlu0 %v4951, 8
    %v11063 = vpop.permute.xlu0 %11062
    %11064 = vrot.lane.b32.xlu0 %v5028, 8
    %v11065 = vpop.permute.xlu0 %11064
    %11066 = vrot.lane.b32.xlu0 %v5105, 8
    %v11067 = vpop.permute.xlu0 %11066
    %11068 = vrot.lane.b32.xlu0 %v5182, 8
    %v11069 = vpop.permute.xlu0 %11068
    %11070 = vrot.lane.b32.xlu0 %v5259, 8
    %v11071 = vpop.permute.xlu0 %11070
    %11072 = vrot.lane.b32.xlu0 %v5336, 8
    %v11073 = vpop.permute.xlu0 %11072
    %11074 = vrot.lane.b32.xlu0 %v5413, 8
    %v11075 = vpop.permute.xlu0 %11074
    %11076 = vrot.lane.b32.xlu0 %v5490, 8
    %v11077 = vpop.permute.xlu0 %11076
    %11078 = vrot.lane.b32.xlu0 %v5567, 8
    %v11079 = vpop.permute.xlu0 %11078
    %11080 = vrot.lane.b32.xlu0 %v5644, 8
    %v11081 = vpop.permute.xlu0 %11080
    %11082 = vrot.lane.b32.xlu0 %v5721, 8
    %v11083 = vpop.permute.xlu0 %11082
    %11116 = vrot.lane.b32.xlu0 %v7222, 16
    %v11117 = vpop.permute.xlu0 %11116
    %11118 = vrot.lane.b32.xlu0 %v7299, 16
    %v11119 = vpop.permute.xlu0 %11118
    %11120 = vrot.lane.b32.xlu0 %v7376, 16
    %v11121 = vpop.permute.xlu0 %11120
    %11122 = vrot.lane.b32.xlu0 %v7453, 16
    %v11123 = vpop.permute.xlu0 %11122
    %11124 = vrot.lane.b32.xlu0 %v7530, 16
    %v11125 = vpop.permute.xlu0 %11124
    %11126 = vrot.lane.b32.xlu0 %v7607, 16
    %v11127 = vpop.permute.xlu0 %11126
    %11128 = vrot.lane.b32.xlu0 %v7684, 16
    %v11129 = vpop.permute.xlu0 %11128
    %11130 = vrot.lane.b32.xlu0 %v7761, 16
    %v11131 = vpop.permute.xlu0 %11130
    %11132 = vrot.lane.b32.xlu0 %v7838, 16
    %v11133 = vpop.permute.xlu0 %11132
    %11134 = vrot.lane.b32.xlu0 %v7915, 16
    %v11135 = vpop.permute.xlu0 %11134
    %11136 = vrot.lane.b32.xlu0 %v7992, 16
    %v11137 = vpop.permute.xlu0 %11136
    %11138 = vrot.lane.b32.xlu0 %v8069, 16
    %v11139 = vpop.permute.xlu0 %11138
    %11140 = vrot.lane.b32.xlu0 %v8146, 16
    %v11141 = vpop.permute.xlu0 %11140
    %11142 = vrot.lane.b32.xlu0 %v8223, 16
    %v11143 = vpop.permute.xlu0 %11142
    %11144 = vrot.lane.b32.xlu0 %v8300, 16
    %v11145 = vpop.permute.xlu0 %11144
    %11146 = vrot.lane.b32.xlu0 %v8377, 16
    %v11147 = vpop.permute.xlu0 %11146
    %11180 = vrot.lane.b32.xlu0 %v9878, 24
    %v11181 = vpop.permute.xlu0 %11180
    %11182 = vrot.lane.b32.xlu0 %v9955, 24
    %v11183 = vpop.permute.xlu0 %11182
    %11184 = vrot.lane.b32.xlu0 %v10032, 24
    %v11185 = vpop.permute.xlu0 %11184
    %11186 = vrot.lane.b32.xlu0 %v10109, 24
    %v11187 = vpop.permute.xlu0 %11186
    %11188 = vrot.lane.b32.xlu0 %v10186, 24
    %v11189 = vpop.permute.xlu0 %11188
    %11190 = vrot.lane.b32.xlu0 %v10263, 24
    %v11191 = vpop.permute.xlu0 %11190
    %11192 = vrot.lane.b32.xlu0 %v10340, 24
    %v11193 = vpop.permute.xlu0 %11192
    %11194 = vrot.lane.b32.xlu0 %v10417, 24
    %v11195 = vpop.permute.xlu0 %11194
    %11196 = vrot.lane.b32.xlu0 %v10494, 24
    %v11197 = vpop.permute.xlu0 %11196
    %11198 = vrot.lane.b32.xlu0 %v10571, 24
    %v11199 = vpop.permute.xlu0 %11198
    %11200 = vrot.lane.b32.xlu0 %v10648, 24
    %v11201 = vpop.permute.xlu0 %11200
    %11202 = vrot.lane.b32.xlu0 %v10725, 24
    %v11203 = vpop.permute.xlu0 %11202
    %11204 = vrot.lane.b32.xlu0 %v10802, 24
    %v11205 = vpop.permute.xlu0 %11204
    %11206 = vrot.lane.b32.xlu0 %v10879, 24
    %v11207 = vpop.permute.xlu0 %11206
    %11208 = vrot.lane.b32.xlu0 %v10956, 24
    %v11209 = vpop.permute.xlu0 %11208
    %11210 = vrot.lane.b32.xlu0 %v11033, 24
    %v11211 = vpop.permute.xlu0 %11210
    %v11228 = vsel %vm427, %v1910, %v11053
    %v11229 = vsel %vm427, %v1987, %v11055
    %v11230 = vsel %vm427, %v2064, %v11057
    %v11231 = vsel %vm427, %v2141, %v11059
    %v11232 = vsel %vm427, %v2218, %v11061
    %v11233 = vsel %vm427, %v2295, %v11063
    %v11234 = vsel %vm427, %v2372, %v11065
    %v11235 = vsel %vm427, %v2449, %v11067
    %v11236 = vsel %vm427, %v2526, %v11069
    %v11237 = vsel %vm427, %v2603, %v11071
    %v11238 = vsel %vm427, %v2680, %v11073
    %v11239 = vsel %vm427, %v2757, %v11075
    %v11240 = vsel %vm427, %v2834, %v11077
    %v11241 = vsel %vm427, %v2911, %v11079
    %v11242 = vsel %vm427, %v2988, %v11081
    %v11243 = vsel %vm427, %v3065, %v11083
    %vm11244 = vcmask 130048
    %v11245 = vsel %vm11244, %v11228, %v11117
    %v11246 = vsel %vm11244, %v11229, %v11119
    %v11247 = vsel %vm11244, %v11230, %v11121
    %v11248 = vsel %vm11244, %v11231, %v11123
    %v11249 = vsel %vm11244, %v11232, %v11125
    %v11250 = vsel %vm11244, %v11233, %v11127
    %v11251 = vsel %vm11244, %v11234, %v11129
    %v11252 = vsel %vm11244, %v11235, %v11131
    %v11253 = vsel %vm11244, %v11236, %v11133
    %v11254 = vsel %vm11244, %v11237, %v11135
    %v11255 = vsel %vm11244, %v11238, %v11137
    %v11256 = vsel %vm11244, %v11239, %v11139
    %v11257 = vsel %vm11244, %v11240, %v11141
    %v11258 = vsel %vm11244, %v11241, %v11143
    %v11259 = vsel %vm11244, %v11242, %v11145
    %v11260 = vsel %vm11244, %v11243, %v11147
    %vm11261 = vcmask 195584
    %v11262 = vsel %vm11261, %v11245, %v11181
    %v11263 = vsel %vm11261, %v11246, %v11183
    %v11264 = vsel %vm11261, %v11247, %v11185
    %v11265 = vsel %vm11261, %v11248, %v11187
    %v11266 = vsel %vm11261, %v11249, %v11189
    %v11267 = vsel %vm11261, %v11250, %v11191
    %v11268 = vsel %vm11261, %v11251, %v11193
    %v11269 = vsel %vm11261, %v11252, %v11195
    %v11270 = vsel %vm11261, %v11253, %v11197
    %v11271 = vsel %vm11261, %v11254, %v11199
    %v11272 = vsel %vm11261, %v11255, %v11201
    %v11273 = vsel %vm11261, %v11256, %v11203
    %v11274 = vsel %vm11261, %v11257, %v11205
    %v11275 = vsel %vm11261, %v11258, %v11207
    %v11276 = vsel %vm11261, %v11259, %v11209
    %v11277 = vsel %vm11261, %v11260, %v11211
    %vm11278 = vcmask 254976
    %11279 = vst.msk [vmem:[#allocation3] sm:$0x3] %vm11278, %v11262
    %11280 = vst.msk [vmem:[#allocation3 + $0x2] sm:$0x3] %vm11278, %v11263
    %11281 = vst.msk [vmem:[#allocation3 + $0x4] sm:$0x3] %vm11278, %v11264
    %11282 = vst.msk [vmem:[#allocation3 + $0x6] sm:$0x3] %vm11278, %v11265
    %11283 = vst.msk [vmem:[#allocation3 + $0x8] sm:$0x3] %vm11278, %v11266
    %11284 = vst.msk [vmem:[#allocation3 + $0xa] sm:$0x3] %vm11278, %v11267
    %11285 = vst.msk [vmem:[#allocation3 + $0xc] sm:$0x3] %vm11278, %v11268
    %11286 = vst.msk [vmem:[#allocation3 + $0xe] sm:$0x3] %vm11278, %v11269
    %11287 = vst.msk [vmem:[#allocation3 + $0x10] sm:$0x3] %vm11278, %v11270
    %11288 = vst.msk [vmem:[#allocation3 + $0x12] sm:$0x3] %vm11278, %v11271
    %11289 = vst.msk [vmem:[#allocation3 + $0x14] sm:$0x3] %vm11278, %v11272
    %11290 = vst.msk [vmem:[#allocation3 + $0x16] sm:$0x3] %vm11278, %v11273
    %11291 = vst.msk [vmem:[#allocation3 + $0x18] sm:$0x3] %vm11278, %v11274
    %11292 = vst.msk [vmem:[#allocation3 + $0x1a] sm:$0x3] %vm11278, %v11275
    %11293 = vst.msk [vmem:[#allocation3 + $0x1c] sm:$0x3] %vm11278, %v11276
    %11294 = vst.msk [vmem:[#allocation3 + $0x1e] sm:$0x3] %vm11278, %v11277
    %v11295 = vld [vmem:[#allocation3] sm:$0xff]
    %v11296 = vld [vmem:[#allocation3 + $0x8] sm:$0xff]
    %v11297 = vld [vmem:[#allocation3 + $0x10] sm:$0xff]
    %v11298 = vld [vmem:[#allocation3 + $0x18] sm:$0xff]
    %v11299 = vld [vmem:[#allocation13] sm:$0xff]
    %v11300 = vld [vmem:[#allocation13 + $0x8] sm:$0xff]
    %v11301 = vld [vmem:[#allocation13 + $0x10] sm:$0xff]
    %v11302 = vld [vmem:[#allocation13 + $0x18] sm:$0xff]
    %v11303 = vld [vmem:[#allocation15] sm:$0x1]
    %v11305 = vlaneseq
    %v11306 = vshrl.u32 %v11305, 7
    %v11307 = vsub.s32 0, %v11306
    %v11308 = vrot.slane %v11303, %v11307
    %v11311 = vsel %vm275, %v11295, 0
    %v11314 = vsel %vm275, %v11296, 0
    %v11317 = vsel %vm275, %v11297, 0
    %v11320 = vsel %vm275, %v11298, 0
    %11322 = vmatprep.subr.mxu0 0.0
    %11323 = vmatpush1.msra.mxu0 %v11299
    %11324 = vmatprep.subr.mxu0 0.0
    %11325 = vmatpush1.msra.mxu0 %v11300
    %11326 = vmatprep.subr.mxu0 0.0
    %11327 = vmatpush1.msra.mxu0 %v11301
    %11328 = vmatprep.subr.mxu0 0.0
    %11329 = vmatpush1.msra.mxu0 %v11302
    %11330 = vmatprep.subr.mxu0 0.0
    %11331 = vmatpush1.msra.mxu0 0.0
    %11332 = vmatprep.subr.mxu0 0.0
    %11333 = vmatpush1.msra.mxu0 0.0
    %11334 = vmatprep.subr.mxu0 0.0
    %11335 = vmatpush1.msra.mxu0 0.0
    %11336 = vmatprep.subr.mxu0 0.0
    %11337 = vmatpush1.msra.mxu0 0.0
    %11338 = vmatprep.subr.mxu0 0.0
    %11339 = vmatpush1.msra.mxu0 0.0
    %11340 = vmatprep.subr.mxu0 0.0
    %11341 = vmatpush1.msra.mxu0 0.0
    %11342 = vmatprep.subr.mxu0 0.0
    %11343 = vmatpush1.msra.mxu0 0.0
    %11344 = vmatprep.subr.mxu0 0.0
    %11345 = vmatpush1.msra.mxu0 0.0
    %11346 = vmatprep.subr.mxu0 0.0
    %11347 = vmatpush1.msra.mxu0 0.0
    %11348 = vmatprep.subr.mxu0 0.0
    %11349 = vmatpush1.msra.mxu0 0.0
    %11350 = vmatprep.subr.mxu0 0.0
    %11351 = vmatpush1.msra.mxu0 0.0
    %11352 = vmatprep.subr.mxu0 0.0
    %11353 = vmatpush1.msra.mxu0 0.0
    %11354 = vmatprep.subr.mxu0 0.0
    %11355 = vmatpush1.msra.mxu0 0.0
    %11356 = vmatprep.subr.mxu0 0.0
    %11357 = vmatpush1.msra.mxu0 0.0
    %11358 = vmatprep.subr.mxu0 0.0
    %11359 = vmatpush1.msra.mxu0 0.0
    %11360 = vmatprep.subr.mxu0 0.0
    %11361 = vmatpush1.msra.mxu0 0.0
    %11362 = vmatprep.subr.mxu0 0.0
    %11363 = vmatpush1.msra.mxu0 0.0
    %11364 = vmatprep.subr.mxu0 0.0
    %11365 = vmatpush1.msra.mxu0 0.0
    %11366 = vmatprep.subr.mxu0 0.0
    %11367 = vmatpush1.msra.mxu0 0.0
    %11368 = vmatprep.subr.mxu0 0.0
    %11369 = vmatpush1.msra.mxu0 0.0
    %11370 = vmatprep.subr.mxu0 0.0
    %11371 = vmatpush1.msra.mxu0 0.0
    %11372 = vmatprep.subr.mxu0 0.0
    %11373 = vmatpush1.msra.mxu0 0.0
    %11374 = vmatprep.subr.mxu0 0.0
    %11375 = vmatpush1.msra.mxu0 0.0
    %11376 = vmatprep.subr.mxu0 0.0
    %11377 = vmatpush1.msra.mxu0 0.0
    %11378 = vmatprep.subr.mxu0 0.0
    %11379 = vmatpush1.msra.mxu0 0.0
    %11380 = vmatprep.subr.mxu0 0.0
    %11381 = vmatpush1.msra.mxu0 0.0
    %11382 = vmatprep.subr.mxu0 0.0
    %11383 = vmatpush1.msra.mxu0 0.0
    %11384 = vmatprep.subr.mxu0 0.0
    %11385 = vmatpush1.msra.mxu0 0.0
    %11386 = vmatprep.mubr.f32.mxu0 0.0
    %11387 = vmatmul.mubr.f32.gmra.mrb[0].mxu0 %v11311
    %v11388 = vpop.f32.mrb[0].mxu0
    %v11389 = vadd.f32 %v11308, %v11388
    %v11390 = vpop.f32.mrb[0].mxu0
    %11391 = vmatprep.mubr.f32.mxu0 0.0
    %11392 = vmatmul.mubr.f32.gmra.mrb[0].mxu0 %v11314
    %v11393 = vpop.f32.mrb[0].mxu0
    %v11394 = vadd.f32 %v11308, %v11393
    %v11395 = vpop.f32.mrb[0].mxu0
    %11396 = vmatprep.mubr.f32.mxu0 0.0
    %11397 = vmatmul.mubr.f32.gmra.mrb[0].mxu0 %v11317
    %v11398 = vpop.f32.mrb[0].mxu0
    %v11399 = vadd.f32 %v11308, %v11398
    %v11400 = vpop.f32.mrb[0].mxu0
    %11401 = vmatprep.mubr.f32.mxu0 0.0
    %11402 = vmatmul.mubr.f32.gmra.mrb[0].mxu0 %v11320
    %v11403 = vpop.f32.mrb[0].mxu0
    %v11404 = vadd.f32 %v11308, %v11403
    %v11405 = vpop.f32.mrb[0].mxu0
    %11406 = vdwg.mxu0
    %v11407 = vld [vmem:[#allocation16] sm:$0xff]
    %v11408 = vld [vmem:[#allocation16 + $0x8] sm:$0xff]
    %v11409 = vld [vmem:[#allocation16 + $0x10] sm:$0xff]
    %v11410 = vld [vmem:[#allocation16 + $0x18] sm:$0xff]
    %v11411 = vld [vmem:[#allocation18] sm:$0x1]
    %v11413 = vlaneseq
    %v11414 = vshrl.u32 %v11413, 7
    %v11415 = vsub.s32 0, %v11414
    %v11416 = vrot.slane %v11411, %v11415
    %v11419 = vsel %vm275, %v11389, 0
    %v11422 = vsel %vm275, %v11394, 0
    %v11425 = vsel %vm275, %v11399, 0
    %v11428 = vsel %vm275, %v11404, 0
    %11430 = vmatprep.subr.mxu0 0.0
    %11431 = vmatpush1.msra.mxu0 %v11407
    %11432 = vmatprep.subr.mxu0 0.0
    %11433 = vmatpush1.msra.mxu0 %v11408
    %11434 = vmatprep.subr.mxu0 0.0
    %11435 = vmatpush1.msra.mxu0 %v11409
    %11436 = vmatprep.subr.mxu0 0.0
    %11437 = vmatpush1.msra.mxu0 %v11410
    %11438 = vmatprep.subr.mxu0 0.0
    %11439 = vmatpush1.msra.mxu0 0.0
    %11440 = vmatprep.subr.mxu0 0.0
    %11441 = vmatpush1.msra.mxu0 0.0
    %11442 = vmatprep.subr.mxu0 0.0
    %11443 = vmatpush1.msra.mxu0 0.0
    %11444 = vmatprep.subr.mxu0 0.0
    %11445 = vmatpush1.msra.mxu0 0.0
    %11446 = vmatprep.subr.mxu0 0.0
    %11447 = vmatpush1.msra.mxu0 0.0
    %11448 = vmatprep.subr.mxu0 0.0
    %11449 = vmatpush1.msra.mxu0 0.0
    %11450 = vmatprep.subr.mxu0 0.0
    %11451 = vmatpush1.msra.mxu0 0.0
    %11452 = vmatprep.subr.mxu0 0.0
    %11453 = vmatpush1.msra.mxu0 0.0
    %11454 = vmatprep.subr.mxu0 0.0
    %11455 = vmatpush1.msra.mxu0 0.0
    %11456 = vmatprep.subr.mxu0 0.0
    %11457 = vmatpush1.msra.mxu0 0.0
    %11458 = vmatprep.subr.mxu0 0.0
    %11459 = vmatpush1.msra.mxu0 0.0
    %11460 = vmatprep.subr.mxu0 0.0
    %11461 = vmatpush1.msra.mxu0 0.0
    %11462 = vmatprep.subr.mxu0 0.0
    %11463 = vmatpush1.msra.mxu0 0.0
    %11464 = vmatprep.subr.mxu0 0.0
    %11465 = vmatpush1.msra.mxu0 0.0
    %11466 = vmatprep.subr.mxu0 0.0
    %11467 = vmatpush1.msra.mxu0 0.0
    %11468 = vmatprep.subr.mxu0 0.0
    %11469 = vmatpush1.msra.mxu0 0.0
    %11470 = vmatprep.subr.mxu0 0.0
    %11471 = vmatpush1.msra.mxu0 0.0
    %11472 = vmatprep.subr.mxu0 0.0
    %11473 = vmatpush1.msra.mxu0 0.0
    %11474 = vmatprep.subr.mxu0 0.0
    %11475 = vmatpush1.msra.mxu0 0.0
    %11476 = vmatprep.subr.mxu0 0.0
    %11477 = vmatpush1.msra.mxu0 0.0
    %11478 = vmatprep.subr.mxu0 0.0
    %11479 = vmatpush1.msra.mxu0 0.0
    %11480 = vmatprep.subr.mxu0 0.0
    %11481 = vmatpush1.msra.mxu0 0.0
    %11482 = vmatprep.subr.mxu0 0.0
    %11483 = vmatpush1.msra.mxu0 0.0
    %11484 = vmatprep.subr.mxu0 0.0
    %11485 = vmatpush1.msra.mxu0 0.0
    %11486 = vmatprep.subr.mxu0 0.0
    %11487 = vmatpush1.msra.mxu0 0.0
    %11488 = vmatprep.subr.mxu0 0.0
    %11489 = vmatpush1.msra.mxu0 0.0
    %11490 = vmatprep.subr.mxu0 0.0
    %11491 = vmatpush1.msra.mxu0 0.0
    %11492 = vmatprep.subr.mxu0 0.0
    %11493 = vmatpush1.msra.mxu0 0.0
    %11494 = vmatprep.mubr.f32.mxu0 0.0
    %11495 = vmatmul.mubr.f32.gmra.mrb[0].mxu0 %v11419
    %v11496 = vpop.f32.mrb[0].mxu0
    %v11497 = vadd.f32 %v11416, %v11496
    %v11498 = vpop.f32.mrb[0].mxu0
    %11499 = vmatprep.mubr.f32.mxu0 0.0
    %11500 = vmatmul.mubr.f32.gmra.mrb[0].mxu0 %v11422
    %v11501 = vpop.f32.mrb[0].mxu0
    %v11502 = vadd.f32 %v11416, %v11501
    %v11503 = vpop.f32.mrb[0].mxu0
    %11504 = vmatprep.mubr.f32.mxu0 0.0
    %11505 = vmatmul.mubr.f32.gmra.mrb[0].mxu0 %v11425
    %v11506 = vpop.f32.mrb[0].mxu0
    %v11507 = vadd.f32 %v11416, %v11506
    %v11508 = vpop.f32.mrb[0].mxu0
    %11509 = vmatprep.mubr.f32.mxu0 0.0
    %11510 = vmatmul.mubr.f32.gmra.mrb[0].mxu0 %v11428
    %v11511 = vpop.f32.mrb[0].mxu0
    %v11512 = vadd.f32 %v11416, %v11511
    %v11513 = vpop.f32.mrb[0].mxu0
    %11514 = vdwg.mxu0
    %11515 = vst.msk [vmem:[#allocation19] sm:$0xff] %vm166, %v11497
    %11516 = vst.msk [vmem:[#allocation19 + $0x8] sm:$0xff] %vm166, %v11502
    %11517 = vst.msk [vmem:[#allocation19 + $0x10] sm:$0xff] %vm166, %v11507
    %11518 = vst.msk [vmem:[#allocation19 + $0x18] sm:$0xff] %vm166, %v11512
    // Predicated region
    $region74: #{tpu_custom_call.1} parent=1 // pred_check
      _
    $region75: #{tpu_custom_call.1} parent=1 // pred_check_branch
      %11520 = sbr.rel (0) target = $region77
    $region76: #{tpu_custom_call.1} parent=1 // pred_region
      %s11522 = ssub.s32 512, 512
      %11523 = vsyncadd [#allocation6], %s11522
      %s11524 = sshll.u32 [#allocation19], 4
      %s11525 = int_to_ptr.vmem [resolvable:$true] %s11524
      %11530 = dma.vmem_to_hbm [thread:$0]  %s11525, 512, %s9, [#allocation6], 128, 128, 8
    $region77: #{tpu_custom_call.1} parent=1 // pred_fallthru
      _
    // Predicated region
    $region78: #{tpu_custom_call.1} parent=1 // pred_check
      _
    $region79: #{tpu_custom_call.1} parent=1 // pred_check_branch
      %11532 = sbr.rel (0) target = $region81
    $region80: #{tpu_custom_call.1} parent=1 // pred_region
      %11533 = dma.done [#allocation6], 512
    $region81: #{tpu_custom_call.1} parent=1 // pred_fallthru
      _
    %11534 = vsyncpa [#allocation5], 1
    %11535 = vsyncpa [#allocation8], 1
    %11536 = vsyncpa [#allocation11], 1
    %11537 = vsyncpa [#allocation14], 1
    %11538 = vsyncpa [#allocation17], 1
    %11539 = vsyncpa [#allocation6], 1

</llo_original>
